<compile_context>
chip_gen: v6e
topology: v6e:2x2x1
jax: 0.10.0
libtpu: 0.0.40
codegen_flags: <defaults>
</compile_context>

<pallas_src>
import math

import jax
import jax.numpy as jnp
from jax.experimental import pallas as pl
from jax.experimental.pallas import tpu as pltpu

# --- small synthetic hyper-parameters consistent with the module -------------
D_MODEL = 128          # d_model (512 in the original; scaled down)
N_HEADS = 8            # n_heads (same as original)
D_HEAD = D_MODEL // N_HEADS
D_FF = 256             # d_ff (2048 in the original; scaled down)
N_LAYERS = 2           # N decoder blocks (6 in the original; scaled down)
VOCAB = 32             # src_vocab == trg_vocab
VOCAB_PAD = 128        # lane-dense padded fc_out width (wrapper slices back)
BATCH = 2
SEQ = 8
LN_EPS = 1e-5
MAX_LEN = 64
TILE_T = 8             # token rows per grid step


# ----------------------------- Pallas kernel --------------------------------
def _layer_norm(v, g, b):
    mu = jnp.mean(v, axis=-1, keepdims=True)
    var = jnp.mean((v - mu) * (v - mu), axis=-1, keepdims=True)
    return (v - mu) * jax.lax.rsqrt(var + LN_EPS) * g + b


def transformer_kernel(x_ref, y_ref,
                       attWqkv_ref, attBqkv_ref, attWo_ref, attBo_ref,
                       ffW1_ref, ffB1_ref, ffW2_ref, ffB2_ref,
                       lnG_ref, lnB_ref, fnG_ref, fnB_ref,
                       fcW_ref, fcB_ref, out_ref):
    x = x_ref[...]                       # (T, D) src embeddings (+ PE), f32
    y = y_ref[...]                       # (T, D) trg embeddings (+ PE), f32
    T = y.shape[0]

    def mha(inp, l, which):
        # Fused Q/K/V projection: single (T,D)x(D,3D) bf16 MXU matmul.
        inp_b = inp.astype(jnp.bfloat16)
        qkv = jnp.dot(inp_b, attWqkv_ref[l, which],
                      preferred_element_type=jnp.float32) + attBqkv_ref[l, which]
        # 1/sqrt(d_model) scale already folded into the Q weights & bias.
        q = qkv[:, 0 * D_MODEL:1 * D_MODEL]
        k = qkv[:, 1 * D_MODEL:2 * D_MODEL]
        v = qkv[:, 2 * D_MODEL:3 * D_MODEL]
        q3 = q.reshape(T, N_HEADS, D_HEAD).astype(jnp.bfloat16)
        k3 = k.reshape(T, N_HEADS, D_HEAD).astype(jnp.bfloat16)
        v3 = v.reshape(T, N_HEADS, D_HEAD).astype(jnp.bfloat16)
        # transpose(1, -3) in the reference is a no-op -> per-token HxH scores.
        scores = jnp.einsum('thd,tgd->thg', q3, k3,
                            preferred_element_type=jnp.float32)
        m = jnp.max(scores, axis=-1, keepdims=True)
        e = jnp.exp(scores - m)
        w = e * pl.reciprocal(jnp.sum(e, axis=-1, keepdims=True), approx=True)
        att = jnp.einsum('thg,tgd->thd', w.astype(jnp.bfloat16), v3,
                         preferred_element_type=jnp.float32)
        att = att.reshape(T, D_MODEL).astype(jnp.bfloat16)
        return jnp.dot(att, attWo_ref[l, which],
                       preferred_element_type=jnp.float32) + attBo_ref[l, which]

    for l in range(N_LAYERS):            # 2 small layers: static unroll, weights resident
        # self-attention on y + ResidualNorm1
        att1 = mha(y, l, 0)
        y = _layer_norm(att1 + y, lnG_ref[l, 0], lnB_ref[l, 0])
        # "enc_att": unmasked self-attention over x + ResidualNorm2
        att2 = mha(x, l, 1)
        y = _layer_norm(att2 + y, lnG_ref[l, 1], lnB_ref[l, 1])
        # FeedForward + ResidualNorm3 (bf16 matmul inputs, f32 accumulate)
        h = jnp.dot(y.astype(jnp.bfloat16), ffW1_ref[l],
                    preferred_element_type=jnp.float32) + ffB1_ref[l]
        h = jnp.maximum(h, 0.0)
        ff = jnp.dot(h.astype(jnp.bfloat16), ffW2_ref[l],
                     preferred_element_type=jnp.float32) + ffB2_ref[l]
        y = _layer_norm(ff + y, lnG_ref[l, 2], lnB_ref[l, 2])

    # final Decoder LayerNorm + fc_out (lane-dense padded to 128 out lanes)
    y = _layer_norm(y, fnG_ref[...], fnB_ref[...])
    out_ref[...] = jnp.dot(y.astype(jnp.bfloat16), fcW_ref[...],
                           preferred_element_type=jnp.float32) + fcB_ref[...]


# ------------------------------ glue (plain JAX) -----------------------------
def positional_encoding_table(max_len, d_model):
    position = jnp.arange(max_len, dtype=jnp.float32)[:, None]
    div_term = jnp.exp(jnp.arange(0, d_model, 2, dtype=jnp.float32)
                       * (-math.log(10000.0) / d_model))
    pe = jnp.zeros((max_len, d_model), jnp.float32)
    pe = pe.at[:, 0::2].set(jnp.sin(position * div_term))
    pe = pe.at[:, 1::2].set(jnp.cos(position * div_term))
    return pe


def init_params(key):
    keys = jax.random.split(key, 10)

    def nrm(k, shape, scale=0.02):
        return (scale * jax.random.normal(k, shape)).astype(jnp.float32)

    return dict(
        src_embed=nrm(keys[0], (VOCAB, D_MODEL)),
        trg_embed=nrm(keys[1], (VOCAB, D_MODEL)),
        # [layer, which_att(0=self,1=enc), which_proj(q,k,v,out), in, out]
        attW=nrm(keys[2], (N_LAYERS, 2, 4, D_MODEL, D_MODEL)),
        attB=nrm(keys[3], (N_LAYERS, 2, 4, 1, D_MODEL)),
        ffW1=nrm(keys[4], (N_LAYERS, D_MODEL, D_FF)),
        ffB1=nrm(keys[5], (N_LAYERS, 1, D_FF)),
        ffW2=nrm(keys[6], (N_LAYERS, D_FF, D_MODEL)),
        ffB2=nrm(keys[7], (N_LAYERS, 1, D_MODEL)),
        lnG=jnp.ones((N_LAYERS, 3, 1, D_MODEL), jnp.float32),
        lnB=jnp.zeros((N_LAYERS, 3, 1, D_MODEL), jnp.float32),
        fnG=jnp.ones((1, D_MODEL), jnp.float32),
        fnB=jnp.zeros((1, D_MODEL), jnp.float32),
        fcW=nrm(keys[8], (D_MODEL, VOCAB)),
        fcB=nrm(keys[9], (1, VOCAB)),
    )


def _prep_kernel_weights(params):
    """Fuse QKV, fold score scale into Q, pad fc_out to 128 lanes, bf16 weights."""
    scale = 1.0 / math.sqrt(D_MODEL)          # reference scales by sqrt(d_model)
    attW, attB = params['attW'], params['attB']
    attWqkv = jnp.concatenate(
        [attW[:, :, 0] * scale, attW[:, :, 1], attW[:, :, 2]],
        axis=-1).astype(jnp.bfloat16)                          # (L, 2, D, 3D)
    attBqkv = jnp.concatenate(
        [attB[:, :, 0] * scale, attB[:, :, 1], attB[:, :, 2]],
        axis=-1)                                               # (L, 2, 1, 3D) f32
    attWo = attW[:, :, 3].astype(jnp.bfloat16)                 # (L, 2, D, D)
    attBo = attB[:, :, 3]                                      # (L, 2, 1, D) f32
    fcW = jnp.zeros((D_MODEL, VOCAB_PAD), jnp.float32).at[:, :VOCAB].set(
        params['fcW']).astype(jnp.bfloat16)
    fcB = jnp.zeros((1, VOCAB_PAD), jnp.float32).at[:, :VOCAB].set(params['fcB'])
    return (attWqkv, attBqkv, attWo, attBo,
            params['ffW1'].astype(jnp.bfloat16), params['ffB1'],
            params['ffW2'].astype(jnp.bfloat16), params['ffB2'],
            params['lnG'], params['lnB'],
            params['fnG'], params['fnB'],
            fcW, fcB)


def transformer_forward(params, x_tok, y_tok):
    B, S = x_tok.shape
    BT = B * S
    pe = positional_encoding_table(MAX_LEN, D_MODEL)
    # reference quirk: pe[:x.size(0)] indexes by BATCH, broadcast over seq.
    x_emb = params['src_embed'][x_tok] + pe[:B][:, None, :]
    y_emb = params['trg_embed'][y_tok] + pe[:B][:, None, :]
    x_flat = x_emb.reshape(BT, D_MODEL).astype(jnp.float32)
    y_flat = y_emb.reshape(BT, D_MODEL).astype(jnp.float32)

    weights = _prep_kernel_weights(params)

    def resident(arr):
        # whole-array block, constant across the row grid -> stays in VMEM
        return pl.BlockSpec(arr.shape, lambda i, n=arr.ndim: (0,) * n)

    row_spec = pl.BlockSpec((TILE_T, D_MODEL), lambda i: (i, 0))
    out_spec = pl.BlockSpec((TILE_T, VOCAB_PAD), lambda i: (i, 0))
    in_specs = [row_spec, row_spec] + [resident(w) for w in weights]

    # advisory cost hint for the XLA scheduler
    flops = 2 * BT * (N_LAYERS * (2 * (3 * D_MODEL * D_MODEL
                                       + D_MODEL * D_MODEL
                                       + 2 * N_HEADS * N_HEADS * D_HEAD)
                                  + 2 * D_MODEL * D_FF)
                      + D_MODEL * VOCAB_PAD)
    transcendentals = BT * N_LAYERS * 2 * (N_HEADS * N_HEADS + N_HEADS)
    bytes_accessed = (x_flat.size * 4 + y_flat.size * 4 + BT * VOCAB_PAD * 4
                      + sum(int(w.size) * w.dtype.itemsize for w in weights))

    out = pl.pallas_call(
        transformer_kernel,
        out_shape=jax.ShapeDtypeStruct((BT, VOCAB_PAD), jnp.float32),
        grid=(BT // TILE_T,),
        in_specs=in_specs,
        out_specs=out_spec,
        compiler_params=pltpu.CompilerParams(
            dimension_semantics=("parallel",)),
        cost_estimate=pl.CostEstimate(flops=flops,
                                      transcendentals=transcendentals,
                                      bytes_accessed=bytes_accessed),
    )(x_flat, y_flat, *weights)
    return out[:, :VOCAB].reshape(B, S, VOCAB)


if __name__ == "__main__":
    key = jax.random.PRNGKey(0)
    pkey, xkey, ykey = jax.random.split(key, 3)
    params = init_params(pkey)
    x_tok = jax.random.randint(xkey, (BATCH, SEQ), 0, VOCAB, dtype=jnp.int32)
    y_tok = jax.random.randint(ykey, (BATCH, SEQ), 0, VOCAB, dtype=jnp.int32)

    out = jax.jit(transformer_forward)(params, x_tok, y_tok)
    jax.block_until_ready(out)
    assert out.shape == (BATCH, SEQ, VOCAB)
    assert bool(jnp.all(jnp.isfinite(out)))
    print("KERNEL_OK")
</pallas_src>

<mosaic_0001>
module attributes {stable_mosaic.version = 11 : i64} {
  func.func @transformer_kernel(%arg0: i32, %arg1: memref<8x128xf32, #tpu.memory_space<vmem>>, %arg2: memref<8x128xf32, #tpu.memory_space<vmem>>, %arg3: memref<2x2x128x384xbf16, #tpu.memory_space<vmem>>, %arg4: memref<2x2x1x384xf32, #tpu.memory_space<vmem>>, %arg5: memref<2x2x128x128xbf16, #tpu.memory_space<vmem>>, %arg6: memref<2x2x1x128xf32, #tpu.memory_space<vmem>>, %arg7: memref<2x128x256xbf16, #tpu.memory_space<vmem>>, %arg8: memref<2x1x256xf32, #tpu.memory_space<vmem>>, %arg9: memref<2x256x128xbf16, #tpu.memory_space<vmem>>, %arg10: memref<2x1x128xf32, #tpu.memory_space<vmem>>, %arg11: memref<2x3x1x128xf32, #tpu.memory_space<vmem>>, %arg12: memref<2x3x1x128xf32, #tpu.memory_space<vmem>>, %arg13: memref<1x128xf32, #tpu.memory_space<vmem>>, %arg14: memref<1x128xf32, #tpu.memory_space<vmem>>, %arg15: memref<128x128xbf16, #tpu.memory_space<vmem>>, %arg16: memref<1x128xf32, #tpu.memory_space<vmem>>, %arg17: memref<8x128xf32, #tpu.memory_space<vmem>>) attributes {dimension_semantics = [#tpu.dimension_semantics<parallel>], iteration_bounds = array<i64: 2>, scalar_prefetch = 0 : i64, scratch_operands = 0 : i64, tpu.core_type = #tpu.core_type<tc>, window_params = [{transform_indices = @transform_0, window_bounds = array<i64: 8, 128>}, {transform_indices = @transform_1, window_bounds = array<i64: 8, 128>}, {pipeline_mode = #tpu.pipeline_mode<synchronous>, transform_indices = @transform_2, window_bounds = array<i64: 2, 2, 128, 384>}, {pipeline_mode = #tpu.pipeline_mode<synchronous>, transform_indices = @transform_3, window_bounds = array<i64: 2, 2, 1, 384>}, {pipeline_mode = #tpu.pipeline_mode<synchronous>, transform_indices = @transform_4, window_bounds = array<i64: 2, 2, 128, 128>}, {pipeline_mode = #tpu.pipeline_mode<synchronous>, transform_indices = @transform_5, window_bounds = array<i64: 2, 2, 1, 128>}, {pipeline_mode = #tpu.pipeline_mode<synchronous>, transform_indices = @transform_6, window_bounds = array<i64: 2, 128, 256>}, {pipeline_mode = #tpu.pipeline_mode<synchronous>, transform_indices = @transform_7, window_bounds = array<i64: 2, 1, 256>}, {pipeline_mode = #tpu.pipeline_mode<synchronous>, transform_indices = @transform_8, window_bounds = array<i64: 2, 256, 128>}, {pipeline_mode = #tpu.pipeline_mode<synchronous>, transform_indices = @transform_9, window_bounds = array<i64: 2, 1, 128>}, {pipeline_mode = #tpu.pipeline_mode<synchronous>, transform_indices = @transform_10, window_bounds = array<i64: 2, 3, 1, 128>}, {pipeline_mode = #tpu.pipeline_mode<synchronous>, transform_indices = @transform_11, window_bounds = array<i64: 2, 3, 1, 128>}, {pipeline_mode = #tpu.pipeline_mode<synchronous>, transform_indices = @transform_12, window_bounds = array<i64: 1, 128>}, {pipeline_mode = #tpu.pipeline_mode<synchronous>, transform_indices = @transform_13, window_bounds = array<i64: 1, 128>}, {pipeline_mode = #tpu.pipeline_mode<synchronous>, transform_indices = @transform_14, window_bounds = array<i64: 128, 128>}, {pipeline_mode = #tpu.pipeline_mode<synchronous>, transform_indices = @transform_15, window_bounds = array<i64: 1, 128>}, {transform_indices = @transform_16, window_bounds = array<i64: 8, 128>}]} {
    %c0 = arith.constant 0 : index
    %c0_0 = arith.constant 0 : index
    %0 = vector.load %arg1[%c0, %c0_0] : memref<8x128xf32, #tpu.memory_space<vmem>>, vector<8x128xf32>
    %c0_1 = arith.constant 0 : index
    %c0_2 = arith.constant 0 : index
    %1 = vector.load %arg2[%c0_1, %c0_2] : memref<8x128xf32, #tpu.memory_space<vmem>>, vector<8x128xf32>
    %2 = arith.truncf %1 : vector<8x128xf32> to vector<8x128xbf16>
    %c0_3 = arith.constant 0 : index
    %c0_4 = arith.constant 0 : index
    %c0_5 = arith.constant 0 : index
    %c0_6 = arith.constant 0 : index
    %3 = vector.load %arg3[%c0_3, %c0_4, %c0_5, %c0_6] : memref<2x2x128x384xbf16, #tpu.memory_space<vmem>>, vector<1x1x128x384xbf16>
    %4 = vector.shape_cast %3 : vector<1x1x128x384xbf16> to vector<128x384xbf16>
    %cst = arith.constant dense<0.000000e+00> : vector<8x384xf32>
    %5 = tpu.matmul %2, %4, %cst {dimension_numbers = #tpu.dot_dimension_numbers<[1], [0], [0], [1], [0, 0, 1, 1], [], []>} : vector<8x128xbf16>, vector<128x384xbf16>, vector<8x384xf32> -> vector<8x384xf32>
    %c0_7 = arith.constant 0 : index
    %c0_8 = arith.constant 0 : index
    %c0_9 = arith.constant 0 : index
    %c0_10 = arith.constant 0 : index
    %6 = vector.load %arg4[%c0_7, %c0_8, %c0_9, %c0_10] : memref<2x2x1x384xf32, #tpu.memory_space<vmem>>, vector<1x1x1x384xf32>
    %7 = vector.shape_cast %6 : vector<1x1x1x384xf32> to vector<1x384xf32>
    %8 = vector.broadcast %7 : vector<1x384xf32> to vector<8x384xf32>
    %9 = arith.addf %5, %8 : vector<8x384xf32>
    %10 = vector.extract_strided_slice %9 {offsets = [0, 0], sizes = [8, 128], strides = [1, 1]} : vector<8x384xf32> to vector<8x128xf32>
    %11 = vector.extract_strided_slice %9 {offsets = [0, 128], sizes = [8, 128], strides = [1, 1]} : vector<8x384xf32> to vector<8x128xf32>
    %12 = vector.extract_strided_slice %9 {offsets = [0, 256], sizes = [8, 128], strides = [1, 1]} : vector<8x384xf32> to vector<8x128xf32>
    %13 = vector.shape_cast %10 : vector<8x128xf32> to vector<8x8x16xf32>
    %14 = arith.truncf %13 : vector<8x8x16xf32> to vector<8x8x16xbf16>
    %15 = vector.shape_cast %11 : vector<8x128xf32> to vector<8x8x16xf32>
    %16 = arith.truncf %15 : vector<8x8x16xf32> to vector<8x8x16xbf16>
    %17 = vector.shape_cast %12 : vector<8x128xf32> to vector<8x8x16xf32>
    %18 = arith.truncf %17 : vector<8x8x16xf32> to vector<8x8x16xbf16>
    "tpu.trace_start"() <{level = 10 : i32, message = "thd,tgd->thg"}> : () -> ()
    %cst_11 = arith.constant dense<0.000000e+00> : vector<8x8x8xf32>
    %19 = tpu.matmul %14, %16, %cst_11 {dimension_numbers = #tpu.dot_dimension_numbers<[2], [2], [1], [1], [0, 0, 0, 1, 1, 1], [0], [0]>} : vector<8x8x16xbf16>, vector<8x8x16xbf16>, vector<8x8x8xf32> -> vector<8x8x8xf32>
    "tpu.trace_stop"() : () -> ()
    %cst_12 = arith.constant dense<0xFF800000> : vector<8x8xf32>
    %20 = vector.multi_reduction <maximumf>, %19, %cst_12 [2] : vector<8x8x8xf32> to vector<8x8xf32>
    %21 = vector.shape_cast %20 : vector<8x8xf32> to vector<8x8x1xf32>
    %22 = vector.broadcast %21 : vector<8x8x1xf32> to vector<8x8x8xf32>
    %23 = arith.subf %19, %22 : vector<8x8x8xf32>
    %24 = math.exp %23 : vector<8x8x8xf32>
    %cst_13 = arith.constant dense<0.000000e+00> : vector<8x8xf32>
    %25 = vector.multi_reduction <add>, %24, %cst_13 [2] : vector<8x8x8xf32> to vector<8x8xf32>
    %26 = vector.shape_cast %25 : vector<8x8xf32> to vector<8x8x1xf32>
    %27 = tpu.reciprocal %26 {approx = true} : vector<8x8x1xf32> -> vector<8x8x1xf32>
    %28 = vector.broadcast %27 : vector<8x8x1xf32> to vector<8x8x8xf32>
    %29 = arith.mulf %24, %28 : vector<8x8x8xf32>
    %30 = arith.truncf %29 : vector<8x8x8xf32> to vector<8x8x8xbf16>
    "tpu.trace_start"() <{level = 10 : i32, message = "thg,tgd->thd"}> : () -> ()
    %cst_14 = arith.constant dense<0.000000e+00> : vector<8x8x16xf32>
    %31 = tpu.matmul %30, %18, %cst_14 {dimension_numbers = #tpu.dot_dimension_numbers<[2], [1], [1], [2], [0, 0, 0, 1, 1, 2], [0], [0]>} : vector<8x8x8xbf16>, vector<8x8x16xbf16>, vector<8x8x16xf32> -> vector<8x8x16xf32>
    "tpu.trace_stop"() : () -> ()
    %32 = vector.shape_cast %31 : vector<8x8x16xf32> to vector<8x128xf32>
    %33 = arith.truncf %32 : vector<8x128xf32> to vector<8x128xbf16>
    %c0_15 = arith.constant 0 : index
    %c0_16 = arith.constant 0 : index
    %c0_17 = arith.constant 0 : index
    %c0_18 = arith.constant 0 : index
    %34 = vector.load %arg5[%c0_15, %c0_16, %c0_17, %c0_18] : memref<2x2x128x128xbf16, #tpu.memory_space<vmem>>, vector<1x1x128x128xbf16>
    %35 = vector.shape_cast %34 : vector<1x1x128x128xbf16> to vector<128x128xbf16>
    %cst_19 = arith.constant dense<0.000000e+00> : vector<8x128xf32>
    %36 = tpu.matmul %33, %35, %cst_19 {dimension_numbers = #tpu.dot_dimension_numbers<[1], [0], [0], [1], [0, 0, 1, 1], [], []>} : vector<8x128xbf16>, vector<128x128xbf16>, vector<8x128xf32> -> vector<8x128xf32>
    %c0_20 = arith.constant 0 : index
    %c0_21 = arith.constant 0 : index
    %c0_22 = arith.constant 0 : index
    %c0_23 = arith.constant 0 : index
    %37 = vector.load %arg6[%c0_20, %c0_21, %c0_22, %c0_23] : memref<2x2x1x128xf32, #tpu.memory_space<vmem>>, vector<1x1x1x128xf32>
    %38 = vector.shape_cast %37 : vector<1x1x1x128xf32> to vector<1x128xf32>
    %39 = vector.broadcast %38 : vector<1x128xf32> to vector<8x128xf32>
    %40 = arith.addf %36, %39 : vector<8x128xf32>
    %41 = arith.addf %40, %1 : vector<8x128xf32>
    %c0_24 = arith.constant 0 : index
    %c0_25 = arith.constant 0 : index
    %c0_26 = arith.constant 0 : index
    %c0_27 = arith.constant 0 : index
    %42 = vector.load %arg11[%c0_24, %c0_25, %c0_26, %c0_27] : memref<2x3x1x128xf32, #tpu.memory_space<vmem>>, vector<1x1x1x128xf32>
    %43 = vector.shape_cast %42 : vector<1x1x1x128xf32> to vector<1x128xf32>
    %c0_28 = arith.constant 0 : index
    %c0_29 = arith.constant 0 : index
    %c0_30 = arith.constant 0 : index
    %c0_31 = arith.constant 0 : index
    %44 = vector.load %arg12[%c0_28, %c0_29, %c0_30, %c0_31] : memref<2x3x1x128xf32, #tpu.memory_space<vmem>>, vector<1x1x1x128xf32>
    %45 = vector.shape_cast %44 : vector<1x1x1x128xf32> to vector<1x128xf32>
    %cst_32 = arith.constant dense<0.000000e+00> : vector<8xf32>
    %46 = vector.multi_reduction <add>, %41, %cst_32 [1] : vector<8x128xf32> to vector<8xf32>
    %47 = vector.shape_cast %46 : vector<8xf32> to vector<8x1xf32>
    %cst_33 = arith.constant 1.280000e+02 : f32
    %48 = vector.broadcast %cst_33 : f32 to vector<8x1xf32>
    %49 = arith.divf %47, %48 : vector<8x1xf32>
    %50 = vector.broadcast %49 : vector<8x1xf32> to vector<8x128xf32>
    %51 = arith.subf %41, %50 : vector<8x128xf32>
    %52 = vector.broadcast %49 : vector<8x1xf32> to vector<8x128xf32>
    %53 = arith.subf %41, %52 : vector<8x128xf32>
    %54 = arith.mulf %51, %53 : vector<8x128xf32>
    %cst_34 = arith.constant dense<0.000000e+00> : vector<8xf32>
    %55 = vector.multi_reduction <add>, %54, %cst_34 [1] : vector<8x128xf32> to vector<8xf32>
    %56 = vector.shape_cast %55 : vector<8xf32> to vector<8x1xf32>
    %cst_35 = arith.constant 1.280000e+02 : f32
    %57 = vector.broadcast %cst_35 : f32 to vector<8x1xf32>
    %58 = arith.divf %56, %57 : vector<8x1xf32>
    %59 = vector.broadcast %49 : vector<8x1xf32> to vector<8x128xf32>
    %60 = arith.subf %41, %59 : vector<8x128xf32>
    %cst_36 = arith.constant 9.99999974E-6 : f32
    %61 = vector.broadcast %cst_36 : f32 to vector<8x1xf32>
    %62 = arith.addf %58, %61 : vector<8x1xf32>
    %63 = math.rsqrt %62 : vector<8x1xf32>
    %64 = vector.broadcast %63 : vector<8x1xf32> to vector<8x128xf32>
    %65 = arith.mulf %60, %64 : vector<8x128xf32>
    %66 = vector.broadcast %43 : vector<1x128xf32> to vector<8x128xf32>
    %67 = arith.mulf %65, %66 : vector<8x128xf32>
    %68 = vector.broadcast %45 : vector<1x128xf32> to vector<8x128xf32>
    %69 = arith.addf %67, %68 : vector<8x128xf32>
    %70 = arith.truncf %0 : vector<8x128xf32> to vector<8x128xbf16>
    %c0_37 = arith.constant 0 : index
    %c1 = arith.constant 1 : index
    %c0_38 = arith.constant 0 : index
    %c0_39 = arith.constant 0 : index
    %71 = vector.load %arg3[%c0_37, %c1, %c0_38, %c0_39] : memref<2x2x128x384xbf16, #tpu.memory_space<vmem>>, vector<1x1x128x384xbf16>
    %72 = vector.shape_cast %71 : vector<1x1x128x384xbf16> to vector<128x384xbf16>
    %cst_40 = arith.constant dense<0.000000e+00> : vector<8x384xf32>
    %73 = tpu.matmul %70, %72, %cst_40 {dimension_numbers = #tpu.dot_dimension_numbers<[1], [0], [0], [1], [0, 0, 1, 1], [], []>} : vector<8x128xbf16>, vector<128x384xbf16>, vector<8x384xf32> -> vector<8x384xf32>
    %c0_41 = arith.constant 0 : index
    %c1_42 = arith.constant 1 : index
    %c0_43 = arith.constant 0 : index
    %c0_44 = arith.constant 0 : index
    %74 = vector.load %arg4[%c0_41, %c1_42, %c0_43, %c0_44] : memref<2x2x1x384xf32, #tpu.memory_space<vmem>>, vector<1x1x1x384xf32>
    %75 = vector.shape_cast %74 : vector<1x1x1x384xf32> to vector<1x384xf32>
    %76 = vector.broadcast %75 : vector<1x384xf32> to vector<8x384xf32>
    %77 = arith.addf %73, %76 : vector<8x384xf32>
    %78 = vector.extract_strided_slice %77 {offsets = [0, 0], sizes = [8, 128], strides = [1, 1]} : vector<8x384xf32> to vector<8x128xf32>
    %79 = vector.extract_strided_slice %77 {offsets = [0, 128], sizes = [8, 128], strides = [1, 1]} : vector<8x384xf32> to vector<8x128xf32>
    %80 = vector.extract_strided_slice %77 {offsets = [0, 256], sizes = [8, 128], strides = [1, 1]} : vector<8x384xf32> to vector<8x128xf32>
    %81 = vector.shape_cast %78 : vector<8x128xf32> to vector<8x8x16xf32>
    %82 = arith.truncf %81 : vector<8x8x16xf32> to vector<8x8x16xbf16>
    %83 = vector.shape_cast %79 : vector<8x128xf32> to vector<8x8x16xf32>
    %84 = arith.truncf %83 : vector<8x8x16xf32> to vector<8x8x16xbf16>
    %85 = vector.shape_cast %80 : vector<8x128xf32> to vector<8x8x16xf32>
    %86 = arith.truncf %85 : vector<8x8x16xf32> to vector<8x8x16xbf16>
    "tpu.trace_start"() <{level = 10 : i32, message = "thd,tgd->thg"}> : () -> ()
    %cst_45 = arith.constant dense<0.000000e+00> : vector<8x8x8xf32>
    %87 = tpu.matmul %82, %84, %cst_45 {dimension_numbers = #tpu.dot_dimension_numbers<[2], [2], [1], [1], [0, 0, 0, 1, 1, 1], [0], [0]>} : vector<8x8x16xbf16>, vector<8x8x16xbf16>, vector<8x8x8xf32> -> vector<8x8x8xf32>
    "tpu.trace_stop"() : () -> ()
    %cst_46 = arith.constant dense<0xFF800000> : vector<8x8xf32>
    %88 = vector.multi_reduction <maximumf>, %87, %cst_46 [2] : vector<8x8x8xf32> to vector<8x8xf32>
    %89 = vector.shape_cast %88 : vector<8x8xf32> to vector<8x8x1xf32>
    %90 = vector.broadcast %89 : vector<8x8x1xf32> to vector<8x8x8xf32>
    %91 = arith.subf %87, %90 : vector<8x8x8xf32>
    %92 = math.exp %91 : vector<8x8x8xf32>
    %cst_47 = arith.constant dense<0.000000e+00> : vector<8x8xf32>
    %93 = vector.multi_reduction <add>, %92, %cst_47 [2] : vector<8x8x8xf32> to vector<8x8xf32>
    %94 = vector.shape_cast %93 : vector<8x8xf32> to vector<8x8x1xf32>
    %95 = tpu.reciprocal %94 {approx = true} : vector<8x8x1xf32> -> vector<8x8x1xf32>
    %96 = vector.broadcast %95 : vector<8x8x1xf32> to vector<8x8x8xf32>
    %97 = arith.mulf %92, %96 : vector<8x8x8xf32>
    %98 = arith.truncf %97 : vector<8x8x8xf32> to vector<8x8x8xbf16>
    "tpu.trace_start"() <{level = 10 : i32, message = "thg,tgd->thd"}> : () -> ()
    %cst_48 = arith.constant dense<0.000000e+00> : vector<8x8x16xf32>
    %99 = tpu.matmul %98, %86, %cst_48 {dimension_numbers = #tpu.dot_dimension_numbers<[2], [1], [1], [2], [0, 0, 0, 1, 1, 2], [0], [0]>} : vector<8x8x8xbf16>, vector<8x8x16xbf16>, vector<8x8x16xf32> -> vector<8x8x16xf32>
    "tpu.trace_stop"() : () -> ()
    %100 = vector.shape_cast %99 : vector<8x8x16xf32> to vector<8x128xf32>
    %101 = arith.truncf %100 : vector<8x128xf32> to vector<8x128xbf16>
    %c0_49 = arith.constant 0 : index
    %c1_50 = arith.constant 1 : index
    %c0_51 = arith.constant 0 : index
    %c0_52 = arith.constant 0 : index
    %102 = vector.load %arg5[%c0_49, %c1_50, %c0_51, %c0_52] : memref<2x2x128x128xbf16, #tpu.memory_space<vmem>>, vector<1x1x128x128xbf16>
    %103 = vector.shape_cast %102 : vector<1x1x128x128xbf16> to vector<128x128xbf16>
    %cst_53 = arith.constant dense<0.000000e+00> : vector<8x128xf32>
    %104 = tpu.matmul %101, %103, %cst_53 {dimension_numbers = #tpu.dot_dimension_numbers<[1], [0], [0], [1], [0, 0, 1, 1], [], []>} : vector<8x128xbf16>, vector<128x128xbf16>, vector<8x128xf32> -> vector<8x128xf32>
    %c0_54 = arith.constant 0 : index
    %c1_55 = arith.constant 1 : index
    %c0_56 = arith.constant 0 : index
    %c0_57 = arith.constant 0 : index
    %105 = vector.load %arg6[%c0_54, %c1_55, %c0_56, %c0_57] : memref<2x2x1x128xf32, #tpu.memory_space<vmem>>, vector<1x1x1x128xf32>
    %106 = vector.shape_cast %105 : vector<1x1x1x128xf32> to vector<1x128xf32>
    %107 = vector.broadcast %106 : vector<1x128xf32> to vector<8x128xf32>
    %108 = arith.addf %104, %107 : vector<8x128xf32>
    %109 = arith.addf %108, %69 : vector<8x128xf32>
    %c0_58 = arith.constant 0 : index
    %c1_59 = arith.constant 1 : index
    %c0_60 = arith.constant 0 : index
    %c0_61 = arith.constant 0 : index
    %110 = vector.load %arg11[%c0_58, %c1_59, %c0_60, %c0_61] : memref<2x3x1x128xf32, #tpu.memory_space<vmem>>, vector<1x1x1x128xf32>
    %111 = vector.shape_cast %110 : vector<1x1x1x128xf32> to vector<1x128xf32>
    %c0_62 = arith.constant 0 : index
    %c1_63 = arith.constant 1 : index
    %c0_64 = arith.constant 0 : index
    %c0_65 = arith.constant 0 : index
    %112 = vector.load %arg12[%c0_62, %c1_63, %c0_64, %c0_65] : memref<2x3x1x128xf32, #tpu.memory_space<vmem>>, vector<1x1x1x128xf32>
    %113 = vector.shape_cast %112 : vector<1x1x1x128xf32> to vector<1x128xf32>
    %cst_66 = arith.constant dense<0.000000e+00> : vector<8xf32>
    %114 = vector.multi_reduction <add>, %109, %cst_66 [1] : vector<8x128xf32> to vector<8xf32>
    %115 = vector.shape_cast %114 : vector<8xf32> to vector<8x1xf32>
    %cst_67 = arith.constant 1.280000e+02 : f32
    %116 = vector.broadcast %cst_67 : f32 to vector<8x1xf32>
    %117 = arith.divf %115, %116 : vector<8x1xf32>
    %118 = vector.broadcast %117 : vector<8x1xf32> to vector<8x128xf32>
    %119 = arith.subf %109, %118 : vector<8x128xf32>
    %120 = vector.broadcast %117 : vector<8x1xf32> to vector<8x128xf32>
    %121 = arith.subf %109, %120 : vector<8x128xf32>
    %122 = arith.mulf %119, %121 : vector<8x128xf32>
    %cst_68 = arith.constant dense<0.000000e+00> : vector<8xf32>
    %123 = vector.multi_reduction <add>, %122, %cst_68 [1] : vector<8x128xf32> to vector<8xf32>
    %124 = vector.shape_cast %123 : vector<8xf32> to vector<8x1xf32>
    %cst_69 = arith.constant 1.280000e+02 : f32
    %125 = vector.broadcast %cst_69 : f32 to vector<8x1xf32>
    %126 = arith.divf %124, %125 : vector<8x1xf32>
    %127 = vector.broadcast %117 : vector<8x1xf32> to vector<8x128xf32>
    %128 = arith.subf %109, %127 : vector<8x128xf32>
    %cst_70 = arith.constant 9.99999974E-6 : f32
    %129 = vector.broadcast %cst_70 : f32 to vector<8x1xf32>
    %130 = arith.addf %126, %129 : vector<8x1xf32>
    %131 = math.rsqrt %130 : vector<8x1xf32>
    %132 = vector.broadcast %131 : vector<8x1xf32> to vector<8x128xf32>
    %133 = arith.mulf %128, %132 : vector<8x128xf32>
    %134 = vector.broadcast %111 : vector<1x128xf32> to vector<8x128xf32>
    %135 = arith.mulf %133, %134 : vector<8x128xf32>
    %136 = vector.broadcast %113 : vector<1x128xf32> to vector<8x128xf32>
    %137 = arith.addf %135, %136 : vector<8x128xf32>
    %138 = arith.truncf %137 : vector<8x128xf32> to vector<8x128xbf16>
    %c0_71 = arith.constant 0 : index
    %c0_72 = arith.constant 0 : index
    %c0_73 = arith.constant 0 : index
    %139 = vector.load %arg7[%c0_71, %c0_72, %c0_73] : memref<2x128x256xbf16, #tpu.memory_space<vmem>>, vector<1x128x256xbf16>
    %140 = vector.shape_cast %139 : vector<1x128x256xbf16> to vector<128x256xbf16>
    %cst_74 = arith.constant dense<0.000000e+00> : vector<8x256xf32>
    %141 = tpu.matmul %138, %140, %cst_74 {dimension_numbers = #tpu.dot_dimension_numbers<[1], [0], [0], [1], [0, 0, 1, 1], [], []>} : vector<8x128xbf16>, vector<128x256xbf16>, vector<8x256xf32> -> vector<8x256xf32>
    %c0_75 = arith.constant 0 : index
    %c0_76 = arith.constant 0 : index
    %c0_77 = arith.constant 0 : index
    %142 = vector.load %arg8[%c0_75, %c0_76, %c0_77] : memref<2x1x256xf32, #tpu.memory_space<vmem>>, vector<1x1x256xf32>
    %143 = vector.shape_cast %142 : vector<1x1x256xf32> to vector<1x256xf32>
    %144 = vector.broadcast %143 : vector<1x256xf32> to vector<8x256xf32>
    %145 = arith.addf %141, %144 : vector<8x256xf32>
    %cst_78 = arith.constant 0.000000e+00 : f32
    %146 = vector.broadcast %cst_78 : f32 to vector<8x256xf32>
    %147 = arith.maximumf %145, %146 : vector<8x256xf32>
    %148 = arith.truncf %147 : vector<8x256xf32> to vector<8x256xbf16>
    %c0_79 = arith.constant 0 : index
    %c0_80 = arith.constant 0 : index
    %c0_81 = arith.constant 0 : index
    %149 = vector.load %arg9[%c0_79, %c0_80, %c0_81] : memref<2x256x128xbf16, #tpu.memory_space<vmem>>, vector<1x256x128xbf16>
    %150 = vector.shape_cast %149 : vector<1x256x128xbf16> to vector<256x128xbf16>
    %cst_82 = arith.constant dense<0.000000e+00> : vector<8x128xf32>
    %151 = tpu.matmul %148, %150, %cst_82 {dimension_numbers = #tpu.dot_dimension_numbers<[1], [0], [0], [1], [0, 0, 1, 1], [], []>} : vector<8x256xbf16>, vector<256x128xbf16>, vector<8x128xf32> -> vector<8x128xf32>
    %c0_83 = arith.constant 0 : index
    %c0_84 = arith.constant 0 : index
    %c0_85 = arith.constant 0 : index
    %152 = vector.load %arg10[%c0_83, %c0_84, %c0_85] : memref<2x1x128xf32, #tpu.memory_space<vmem>>, vector<1x1x128xf32>
    %153 = vector.shape_cast %152 : vector<1x1x128xf32> to vector<1x128xf32>
    %154 = vector.broadcast %153 : vector<1x128xf32> to vector<8x128xf32>
    %155 = arith.addf %151, %154 : vector<8x128xf32>
    %156 = arith.addf %155, %137 : vector<8x128xf32>
    %c0_86 = arith.constant 0 : index
    %c2 = arith.constant 2 : index
    %c0_87 = arith.constant 0 : index
    %c0_88 = arith.constant 0 : index
    %157 = vector.load %arg11[%c0_86, %c2, %c0_87, %c0_88] : memref<2x3x1x128xf32, #tpu.memory_space<vmem>>, vector<1x1x1x128xf32>
    %158 = vector.shape_cast %157 : vector<1x1x1x128xf32> to vector<1x128xf32>
    %c0_89 = arith.constant 0 : index
    %c2_90 = arith.constant 2 : index
    %c0_91 = arith.constant 0 : index
    %c0_92 = arith.constant 0 : index
    %159 = vector.load %arg12[%c0_89, %c2_90, %c0_91, %c0_92] : memref<2x3x1x128xf32, #tpu.memory_space<vmem>>, vector<1x1x1x128xf32>
    %160 = vector.shape_cast %159 : vector<1x1x1x128xf32> to vector<1x128xf32>
    %cst_93 = arith.constant dense<0.000000e+00> : vector<8xf32>
    %161 = vector.multi_reduction <add>, %156, %cst_93 [1] : vector<8x128xf32> to vector<8xf32>
    %162 = vector.shape_cast %161 : vector<8xf32> to vector<8x1xf32>
    %cst_94 = arith.constant 1.280000e+02 : f32
    %163 = vector.broadcast %cst_94 : f32 to vector<8x1xf32>
    %164 = arith.divf %162, %163 : vector<8x1xf32>
    %165 = vector.broadcast %164 : vector<8x1xf32> to vector<8x128xf32>
    %166 = arith.subf %156, %165 : vector<8x128xf32>
    %167 = vector.broadcast %164 : vector<8x1xf32> to vector<8x128xf32>
    %168 = arith.subf %156, %167 : vector<8x128xf32>
    %169 = arith.mulf %166, %168 : vector<8x128xf32>
    %cst_95 = arith.constant dense<0.000000e+00> : vector<8xf32>
    %170 = vector.multi_reduction <add>, %169, %cst_95 [1] : vector<8x128xf32> to vector<8xf32>
    %171 = vector.shape_cast %170 : vector<8xf32> to vector<8x1xf32>
    %cst_96 = arith.constant 1.280000e+02 : f32
    %172 = vector.broadcast %cst_96 : f32 to vector<8x1xf32>
    %173 = arith.divf %171, %172 : vector<8x1xf32>
    %174 = vector.broadcast %164 : vector<8x1xf32> to vector<8x128xf32>
    %175 = arith.subf %156, %174 : vector<8x128xf32>
    %cst_97 = arith.constant 9.99999974E-6 : f32
    %176 = vector.broadcast %cst_97 : f32 to vector<8x1xf32>
    %177 = arith.addf %173, %176 : vector<8x1xf32>
    %178 = math.rsqrt %177 : vector<8x1xf32>
    %179 = vector.broadcast %178 : vector<8x1xf32> to vector<8x128xf32>
    %180 = arith.mulf %175, %179 : vector<8x128xf32>
    %181 = vector.broadcast %158 : vector<1x128xf32> to vector<8x128xf32>
    %182 = arith.mulf %180, %181 : vector<8x128xf32>
    %183 = vector.broadcast %160 : vector<1x128xf32> to vector<8x128xf32>
    %184 = arith.addf %182, %183 : vector<8x128xf32>
    %185 = arith.truncf %184 : vector<8x128xf32> to vector<8x128xbf16>
    %c1_98 = arith.constant 1 : index
    %c0_99 = arith.constant 0 : index
    %c0_100 = arith.constant 0 : index
    %c0_101 = arith.constant 0 : index
    %186 = vector.load %arg3[%c1_98, %c0_99, %c0_100, %c0_101] : memref<2x2x128x384xbf16, #tpu.memory_space<vmem>>, vector<1x1x128x384xbf16>
    %187 = vector.shape_cast %186 : vector<1x1x128x384xbf16> to vector<128x384xbf16>
    %cst_102 = arith.constant dense<0.000000e+00> : vector<8x384xf32>
    %188 = tpu.matmul %185, %187, %cst_102 {dimension_numbers = #tpu.dot_dimension_numbers<[1], [0], [0], [1], [0, 0, 1, 1], [], []>} : vector<8x128xbf16>, vector<128x384xbf16>, vector<8x384xf32> -> vector<8x384xf32>
    %c1_103 = arith.constant 1 : index
    %c0_104 = arith.constant 0 : index
    %c0_105 = arith.constant 0 : index
    %c0_106 = arith.constant 0 : index
    %189 = vector.load %arg4[%c1_103, %c0_104, %c0_105, %c0_106] : memref<2x2x1x384xf32, #tpu.memory_space<vmem>>, vector<1x1x1x384xf32>
    %190 = vector.shape_cast %189 : vector<1x1x1x384xf32> to vector<1x384xf32>
    %191 = vector.broadcast %190 : vector<1x384xf32> to vector<8x384xf32>
    %192 = arith.addf %188, %191 : vector<8x384xf32>
    %193 = vector.extract_strided_slice %192 {offsets = [0, 0], sizes = [8, 128], strides = [1, 1]} : vector<8x384xf32> to vector<8x128xf32>
    %194 = vector.extract_strided_slice %192 {offsets = [0, 128], sizes = [8, 128], strides = [1, 1]} : vector<8x384xf32> to vector<8x128xf32>
    %195 = vector.extract_strided_slice %192 {offsets = [0, 256], sizes = [8, 128], strides = [1, 1]} : vector<8x384xf32> to vector<8x128xf32>
    %196 = vector.shape_cast %193 : vector<8x128xf32> to vector<8x8x16xf32>
    %197 = arith.truncf %196 : vector<8x8x16xf32> to vector<8x8x16xbf16>
    %198 = vector.shape_cast %194 : vector<8x128xf32> to vector<8x8x16xf32>
    %199 = arith.truncf %198 : vector<8x8x16xf32> to vector<8x8x16xbf16>
    %200 = vector.shape_cast %195 : vector<8x128xf32> to vector<8x8x16xf32>
    %201 = arith.truncf %200 : vector<8x8x16xf32> to vector<8x8x16xbf16>
    "tpu.trace_start"() <{level = 10 : i32, message = "thd,tgd->thg"}> : () -> ()
    %cst_107 = arith.constant dense<0.000000e+00> : vector<8x8x8xf32>
    %202 = tpu.matmul %197, %199, %cst_107 {dimension_numbers = #tpu.dot_dimension_numbers<[2], [2], [1], [1], [0, 0, 0, 1, 1, 1], [0], [0]>} : vector<8x8x16xbf16>, vector<8x8x16xbf16>, vector<8x8x8xf32> -> vector<8x8x8xf32>
    "tpu.trace_stop"() : () -> ()
    %cst_108 = arith.constant dense<0xFF800000> : vector<8x8xf32>
    %203 = vector.multi_reduction <maximumf>, %202, %cst_108 [2] : vector<8x8x8xf32> to vector<8x8xf32>
    %204 = vector.shape_cast %203 : vector<8x8xf32> to vector<8x8x1xf32>
    %205 = vector.broadcast %204 : vector<8x8x1xf32> to vector<8x8x8xf32>
    %206 = arith.subf %202, %205 : vector<8x8x8xf32>
    %207 = math.exp %206 : vector<8x8x8xf32>
    %cst_109 = arith.constant dense<0.000000e+00> : vector<8x8xf32>
    %208 = vector.multi_reduction <add>, %207, %cst_109 [2] : vector<8x8x8xf32> to vector<8x8xf32>
    %209 = vector.shape_cast %208 : vector<8x8xf32> to vector<8x8x1xf32>
    %210 = tpu.reciprocal %209 {approx = true} : vector<8x8x1xf32> -> vector<8x8x1xf32>
    %211 = vector.broadcast %210 : vector<8x8x1xf32> to vector<8x8x8xf32>
    %212 = arith.mulf %207, %211 : vector<8x8x8xf32>
    %213 = arith.truncf %212 : vector<8x8x8xf32> to vector<8x8x8xbf16>
    "tpu.trace_start"() <{level = 10 : i32, message = "thg,tgd->thd"}> : () -> ()
    %cst_110 = arith.constant dense<0.000000e+00> : vector<8x8x16xf32>
    %214 = tpu.matmul %213, %201, %cst_110 {dimension_numbers = #tpu.dot_dimension_numbers<[2], [1], [1], [2], [0, 0, 0, 1, 1, 2], [0], [0]>} : vector<8x8x8xbf16>, vector<8x8x16xbf16>, vector<8x8x16xf32> -> vector<8x8x16xf32>
    "tpu.trace_stop"() : () -> ()
    %215 = vector.shape_cast %214 : vector<8x8x16xf32> to vector<8x128xf32>
    %216 = arith.truncf %215 : vector<8x128xf32> to vector<8x128xbf16>
    %c1_111 = arith.constant 1 : index
    %c0_112 = arith.constant 0 : index
    %c0_113 = arith.constant 0 : index
    %c0_114 = arith.constant 0 : index
    %217 = vector.load %arg5[%c1_111, %c0_112, %c0_113, %c0_114] : memref<2x2x128x128xbf16, #tpu.memory_space<vmem>>, vector<1x1x128x128xbf16>
    %218 = vector.shape_cast %217 : vector<1x1x128x128xbf16> to vector<128x128xbf16>
    %cst_115 = arith.constant dense<0.000000e+00> : vector<8x128xf32>
    %219 = tpu.matmul %216, %218, %cst_115 {dimension_numbers = #tpu.dot_dimension_numbers<[1], [0], [0], [1], [0, 0, 1, 1], [], []>} : vector<8x128xbf16>, vector<128x128xbf16>, vector<8x128xf32> -> vector<8x128xf32>
    %c1_116 = arith.constant 1 : index
    %c0_117 = arith.constant 0 : index
    %c0_118 = arith.constant 0 : index
    %c0_119 = arith.constant 0 : index
    %220 = vector.load %arg6[%c1_116, %c0_117, %c0_118, %c0_119] : memref<2x2x1x128xf32, #tpu.memory_space<vmem>>, vector<1x1x1x128xf32>
    %221 = vector.shape_cast %220 : vector<1x1x1x128xf32> to vector<1x128xf32>
    %222 = vector.broadcast %221 : vector<1x128xf32> to vector<8x128xf32>
    %223 = arith.addf %219, %222 : vector<8x128xf32>
    %224 = arith.addf %223, %184 : vector<8x128xf32>
    %c1_120 = arith.constant 1 : index
    %c0_121 = arith.constant 0 : index
    %c0_122 = arith.constant 0 : index
    %c0_123 = arith.constant 0 : index
    %225 = vector.load %arg11[%c1_120, %c0_121, %c0_122, %c0_123] : memref<2x3x1x128xf32, #tpu.memory_space<vmem>>, vector<1x1x1x128xf32>
    %226 = vector.shape_cast %225 : vector<1x1x1x128xf32> to vector<1x128xf32>
    %c1_124 = arith.constant 1 : index
    %c0_125 = arith.constant 0 : index
    %c0_126 = arith.constant 0 : index
    %c0_127 = arith.constant 0 : index
    %227 = vector.load %arg12[%c1_124, %c0_125, %c0_126, %c0_127] : memref<2x3x1x128xf32, #tpu.memory_space<vmem>>, vector<1x1x1x128xf32>
    %228 = vector.shape_cast %227 : vector<1x1x1x128xf32> to vector<1x128xf32>
    %cst_128 = arith.constant dense<0.000000e+00> : vector<8xf32>
    %229 = vector.multi_reduction <add>, %224, %cst_128 [1] : vector<8x128xf32> to vector<8xf32>
    %230 = vector.shape_cast %229 : vector<8xf32> to vector<8x1xf32>
    %cst_129 = arith.constant 1.280000e+02 : f32
    %231 = vector.broadcast %cst_129 : f32 to vector<8x1xf32>
    %232 = arith.divf %230, %231 : vector<8x1xf32>
    %233 = vector.broadcast %232 : vector<8x1xf32> to vector<8x128xf32>
    %234 = arith.subf %224, %233 : vector<8x128xf32>
    %235 = vector.broadcast %232 : vector<8x1xf32> to vector<8x128xf32>
    %236 = arith.subf %224, %235 : vector<8x128xf32>
    %237 = arith.mulf %234, %236 : vector<8x128xf32>
    %cst_130 = arith.constant dense<0.000000e+00> : vector<8xf32>
    %238 = vector.multi_reduction <add>, %237, %cst_130 [1] : vector<8x128xf32> to vector<8xf32>
    %239 = vector.shape_cast %238 : vector<8xf32> to vector<8x1xf32>
    %cst_131 = arith.constant 1.280000e+02 : f32
    %240 = vector.broadcast %cst_131 : f32 to vector<8x1xf32>
    %241 = arith.divf %239, %240 : vector<8x1xf32>
    %242 = vector.broadcast %232 : vector<8x1xf32> to vector<8x128xf32>
    %243 = arith.subf %224, %242 : vector<8x128xf32>
    %cst_132 = arith.constant 9.99999974E-6 : f32
    %244 = vector.broadcast %cst_132 : f32 to vector<8x1xf32>
    %245 = arith.addf %241, %244 : vector<8x1xf32>
    %246 = math.rsqrt %245 : vector<8x1xf32>
    %247 = vector.broadcast %246 : vector<8x1xf32> to vector<8x128xf32>
    %248 = arith.mulf %243, %247 : vector<8x128xf32>
    %249 = vector.broadcast %226 : vector<1x128xf32> to vector<8x128xf32>
    %250 = arith.mulf %248, %249 : vector<8x128xf32>
    %251 = vector.broadcast %228 : vector<1x128xf32> to vector<8x128xf32>
    %252 = arith.addf %250, %251 : vector<8x128xf32>
    %253 = arith.truncf %0 : vector<8x128xf32> to vector<8x128xbf16>
    %c1_133 = arith.constant 1 : index
    %c1_134 = arith.constant 1 : index
    %c0_135 = arith.constant 0 : index
    %c0_136 = arith.constant 0 : index
    %254 = vector.load %arg3[%c1_133, %c1_134, %c0_135, %c0_136] : memref<2x2x128x384xbf16, #tpu.memory_space<vmem>>, vector<1x1x128x384xbf16>
    %255 = vector.shape_cast %254 : vector<1x1x128x384xbf16> to vector<128x384xbf16>
    %cst_137 = arith.constant dense<0.000000e+00> : vector<8x384xf32>
    %256 = tpu.matmul %253, %255, %cst_137 {dimension_numbers = #tpu.dot_dimension_numbers<[1], [0], [0], [1], [0, 0, 1, 1], [], []>} : vector<8x128xbf16>, vector<128x384xbf16>, vector<8x384xf32> -> vector<8x384xf32>
    %c1_138 = arith.constant 1 : index
    %c1_139 = arith.constant 1 : index
    %c0_140 = arith.constant 0 : index
    %c0_141 = arith.constant 0 : index
    %257 = vector.load %arg4[%c1_138, %c1_139, %c0_140, %c0_141] : memref<2x2x1x384xf32, #tpu.memory_space<vmem>>, vector<1x1x1x384xf32>
    %258 = vector.shape_cast %257 : vector<1x1x1x384xf32> to vector<1x384xf32>
    %259 = vector.broadcast %258 : vector<1x384xf32> to vector<8x384xf32>
    %260 = arith.addf %256, %259 : vector<8x384xf32>
    %261 = vector.extract_strided_slice %260 {offsets = [0, 0], sizes = [8, 128], strides = [1, 1]} : vector<8x384xf32> to vector<8x128xf32>
    %262 = vector.extract_strided_slice %260 {offsets = [0, 128], sizes = [8, 128], strides = [1, 1]} : vector<8x384xf32> to vector<8x128xf32>
    %263 = vector.extract_strided_slice %260 {offsets = [0, 256], sizes = [8, 128], strides = [1, 1]} : vector<8x384xf32> to vector<8x128xf32>
    %264 = vector.shape_cast %261 : vector<8x128xf32> to vector<8x8x16xf32>
    %265 = arith.truncf %264 : vector<8x8x16xf32> to vector<8x8x16xbf16>
    %266 = vector.shape_cast %262 : vector<8x128xf32> to vector<8x8x16xf32>
    %267 = arith.truncf %266 : vector<8x8x16xf32> to vector<8x8x16xbf16>
    %268 = vector.shape_cast %263 : vector<8x128xf32> to vector<8x8x16xf32>
    %269 = arith.truncf %268 : vector<8x8x16xf32> to vector<8x8x16xbf16>
    "tpu.trace_start"() <{level = 10 : i32, message = "thd,tgd->thg"}> : () -> ()
    %cst_142 = arith.constant dense<0.000000e+00> : vector<8x8x8xf32>
    %270 = tpu.matmul %265, %267, %cst_142 {dimension_numbers = #tpu.dot_dimension_numbers<[2], [2], [1], [1], [0, 0, 0, 1, 1, 1], [0], [0]>} : vector<8x8x16xbf16>, vector<8x8x16xbf16>, vector<8x8x8xf32> -> vector<8x8x8xf32>
    "tpu.trace_stop"() : () -> ()
    %cst_143 = arith.constant dense<0xFF800000> : vector<8x8xf32>
    %271 = vector.multi_reduction <maximumf>, %270, %cst_143 [2] : vector<8x8x8xf32> to vector<8x8xf32>
    %272 = vector.shape_cast %271 : vector<8x8xf32> to vector<8x8x1xf32>
    %273 = vector.broadcast %272 : vector<8x8x1xf32> to vector<8x8x8xf32>
    %274 = arith.subf %270, %273 : vector<8x8x8xf32>
    %275 = math.exp %274 : vector<8x8x8xf32>
    %cst_144 = arith.constant dense<0.000000e+00> : vector<8x8xf32>
    %276 = vector.multi_reduction <add>, %275, %cst_144 [2] : vector<8x8x8xf32> to vector<8x8xf32>
    %277 = vector.shape_cast %276 : vector<8x8xf32> to vector<8x8x1xf32>
    %278 = tpu.reciprocal %277 {approx = true} : vector<8x8x1xf32> -> vector<8x8x1xf32>
    %279 = vector.broadcast %278 : vector<8x8x1xf32> to vector<8x8x8xf32>
    %280 = arith.mulf %275, %279 : vector<8x8x8xf32>
    %281 = arith.truncf %280 : vector<8x8x8xf32> to vector<8x8x8xbf16>
    "tpu.trace_start"() <{level = 10 : i32, message = "thg,tgd->thd"}> : () -> ()
    %cst_145 = arith.constant dense<0.000000e+00> : vector<8x8x16xf32>
    %282 = tpu.matmul %281, %269, %cst_145 {dimension_numbers = #tpu.dot_dimension_numbers<[2], [1], [1], [2], [0, 0, 0, 1, 1, 2], [0], [0]>} : vector<8x8x8xbf16>, vector<8x8x16xbf16>, vector<8x8x16xf32> -> vector<8x8x16xf32>
    "tpu.trace_stop"() : () -> ()
    %283 = vector.shape_cast %282 : vector<8x8x16xf32> to vector<8x128xf32>
    %284 = arith.truncf %283 : vector<8x128xf32> to vector<8x128xbf16>
    %c1_146 = arith.constant 1 : index
    %c1_147 = arith.constant 1 : index
    %c0_148 = arith.constant 0 : index
    %c0_149 = arith.constant 0 : index
    %285 = vector.load %arg5[%c1_146, %c1_147, %c0_148, %c0_149] : memref<2x2x128x128xbf16, #tpu.memory_space<vmem>>, vector<1x1x128x128xbf16>
    %286 = vector.shape_cast %285 : vector<1x1x128x128xbf16> to vector<128x128xbf16>
    %cst_150 = arith.constant dense<0.000000e+00> : vector<8x128xf32>
    %287 = tpu.matmul %284, %286, %cst_150 {dimension_numbers = #tpu.dot_dimension_numbers<[1], [0], [0], [1], [0, 0, 1, 1], [], []>} : vector<8x128xbf16>, vector<128x128xbf16>, vector<8x128xf32> -> vector<8x128xf32>
    %c1_151 = arith.constant 1 : index
    %c1_152 = arith.constant 1 : index
    %c0_153 = arith.constant 0 : index
    %c0_154 = arith.constant 0 : index
    %288 = vector.load %arg6[%c1_151, %c1_152, %c0_153, %c0_154] : memref<2x2x1x128xf32, #tpu.memory_space<vmem>>, vector<1x1x1x128xf32>
    %289 = vector.shape_cast %288 : vector<1x1x1x128xf32> to vector<1x128xf32>
    %290 = vector.broadcast %289 : vector<1x128xf32> to vector<8x128xf32>
    %291 = arith.addf %287, %290 : vector<8x128xf32>
    %292 = arith.addf %291, %252 : vector<8x128xf32>
    %c1_155 = arith.constant 1 : index
    %c1_156 = arith.constant 1 : index
    %c0_157 = arith.constant 0 : index
    %c0_158 = arith.constant 0 : index
    %293 = vector.load %arg11[%c1_155, %c1_156, %c0_157, %c0_158] : memref<2x3x1x128xf32, #tpu.memory_space<vmem>>, vector<1x1x1x128xf32>
    %294 = vector.shape_cast %293 : vector<1x1x1x128xf32> to vector<1x128xf32>
    %c1_159 = arith.constant 1 : index
    %c1_160 = arith.constant 1 : index
    %c0_161 = arith.constant 0 : index
    %c0_162 = arith.constant 0 : index
    %295 = vector.load %arg12[%c1_159, %c1_160, %c0_161, %c0_162] : memref<2x3x1x128xf32, #tpu.memory_space<vmem>>, vector<1x1x1x128xf32>
    %296 = vector.shape_cast %295 : vector<1x1x1x128xf32> to vector<1x128xf32>
    %cst_163 = arith.constant dense<0.000000e+00> : vector<8xf32>
    %297 = vector.multi_reduction <add>, %292, %cst_163 [1] : vector<8x128xf32> to vector<8xf32>
    %298 = vector.shape_cast %297 : vector<8xf32> to vector<8x1xf32>
    %cst_164 = arith.constant 1.280000e+02 : f32
    %299 = vector.broadcast %cst_164 : f32 to vector<8x1xf32>
    %300 = arith.divf %298, %299 : vector<8x1xf32>
    %301 = vector.broadcast %300 : vector<8x1xf32> to vector<8x128xf32>
    %302 = arith.subf %292, %301 : vector<8x128xf32>
    %303 = vector.broadcast %300 : vector<8x1xf32> to vector<8x128xf32>
    %304 = arith.subf %292, %303 : vector<8x128xf32>
    %305 = arith.mulf %302, %304 : vector<8x128xf32>
    %cst_165 = arith.constant dense<0.000000e+00> : vector<8xf32>
    %306 = vector.multi_reduction <add>, %305, %cst_165 [1] : vector<8x128xf32> to vector<8xf32>
    %307 = vector.shape_cast %306 : vector<8xf32> to vector<8x1xf32>
    %cst_166 = arith.constant 1.280000e+02 : f32
    %308 = vector.broadcast %cst_166 : f32 to vector<8x1xf32>
    %309 = arith.divf %307, %308 : vector<8x1xf32>
    %310 = vector.broadcast %300 : vector<8x1xf32> to vector<8x128xf32>
    %311 = arith.subf %292, %310 : vector<8x128xf32>
    %cst_167 = arith.constant 9.99999974E-6 : f32
    %312 = vector.broadcast %cst_167 : f32 to vector<8x1xf32>
    %313 = arith.addf %309, %312 : vector<8x1xf32>
    %314 = math.rsqrt %313 : vector<8x1xf32>
    %315 = vector.broadcast %314 : vector<8x1xf32> to vector<8x128xf32>
    %316 = arith.mulf %311, %315 : vector<8x128xf32>
    %317 = vector.broadcast %294 : vector<1x128xf32> to vector<8x128xf32>
    %318 = arith.mulf %316, %317 : vector<8x128xf32>
    %319 = vector.broadcast %296 : vector<1x128xf32> to vector<8x128xf32>
    %320 = arith.addf %318, %319 : vector<8x128xf32>
    %321 = arith.truncf %320 : vector<8x128xf32> to vector<8x128xbf16>
    %c1_168 = arith.constant 1 : index
    %c0_169 = arith.constant 0 : index
    %c0_170 = arith.constant 0 : index
    %322 = vector.load %arg7[%c1_168, %c0_169, %c0_170] : memref<2x128x256xbf16, #tpu.memory_space<vmem>>, vector<1x128x256xbf16>
    %323 = vector.shape_cast %322 : vector<1x128x256xbf16> to vector<128x256xbf16>
    %cst_171 = arith.constant dense<0.000000e+00> : vector<8x256xf32>
    %324 = tpu.matmul %321, %323, %cst_171 {dimension_numbers = #tpu.dot_dimension_numbers<[1], [0], [0], [1], [0, 0, 1, 1], [], []>} : vector<8x128xbf16>, vector<128x256xbf16>, vector<8x256xf32> -> vector<8x256xf32>
    %c1_172 = arith.constant 1 : index
    %c0_173 = arith.constant 0 : index
    %c0_174 = arith.constant 0 : index
    %325 = vector.load %arg8[%c1_172, %c0_173, %c0_174] : memref<2x1x256xf32, #tpu.memory_space<vmem>>, vector<1x1x256xf32>
    %326 = vector.shape_cast %325 : vector<1x1x256xf32> to vector<1x256xf32>
    %327 = vector.broadcast %326 : vector<1x256xf32> to vector<8x256xf32>
    %328 = arith.addf %324, %327 : vector<8x256xf32>
    %cst_175 = arith.constant 0.000000e+00 : f32
    %329 = vector.broadcast %cst_175 : f32 to vector<8x256xf32>
    %330 = arith.maximumf %328, %329 : vector<8x256xf32>
    %331 = arith.truncf %330 : vector<8x256xf32> to vector<8x256xbf16>
    %c1_176 = arith.constant 1 : index
    %c0_177 = arith.constant 0 : index
    %c0_178 = arith.constant 0 : index
    %332 = vector.load %arg9[%c1_176, %c0_177, %c0_178] : memref<2x256x128xbf16, #tpu.memory_space<vmem>>, vector<1x256x128xbf16>
    %333 = vector.shape_cast %332 : vector<1x256x128xbf16> to vector<256x128xbf16>
    %cst_179 = arith.constant dense<0.000000e+00> : vector<8x128xf32>
    %334 = tpu.matmul %331, %333, %cst_179 {dimension_numbers = #tpu.dot_dimension_numbers<[1], [0], [0], [1], [0, 0, 1, 1], [], []>} : vector<8x256xbf16>, vector<256x128xbf16>, vector<8x128xf32> -> vector<8x128xf32>
    %c1_180 = arith.constant 1 : index
    %c0_181 = arith.constant 0 : index
    %c0_182 = arith.constant 0 : index
    %335 = vector.load %arg10[%c1_180, %c0_181, %c0_182] : memref<2x1x128xf32, #tpu.memory_space<vmem>>, vector<1x1x128xf32>
    %336 = vector.shape_cast %335 : vector<1x1x128xf32> to vector<1x128xf32>
    %337 = vector.broadcast %336 : vector<1x128xf32> to vector<8x128xf32>
    %338 = arith.addf %334, %337 : vector<8x128xf32>
    %339 = arith.addf %338, %320 : vector<8x128xf32>
    %c1_183 = arith.constant 1 : index
    %c2_184 = arith.constant 2 : index
    %c0_185 = arith.constant 0 : index
    %c0_186 = arith.constant 0 : index
    %340 = vector.load %arg11[%c1_183, %c2_184, %c0_185, %c0_186] : memref<2x3x1x128xf32, #tpu.memory_space<vmem>>, vector<1x1x1x128xf32>
    %341 = vector.shape_cast %340 : vector<1x1x1x128xf32> to vector<1x128xf32>
    %c1_187 = arith.constant 1 : index
    %c2_188 = arith.constant 2 : index
    %c0_189 = arith.constant 0 : index
    %c0_190 = arith.constant 0 : index
    %342 = vector.load %arg12[%c1_187, %c2_188, %c0_189, %c0_190] : memref<2x3x1x128xf32, #tpu.memory_space<vmem>>, vector<1x1x1x128xf32>
    %343 = vector.shape_cast %342 : vector<1x1x1x128xf32> to vector<1x128xf32>
    %cst_191 = arith.constant dense<0.000000e+00> : vector<8xf32>
    %344 = vector.multi_reduction <add>, %339, %cst_191 [1] : vector<8x128xf32> to vector<8xf32>
    %345 = vector.shape_cast %344 : vector<8xf32> to vector<8x1xf32>
    %cst_192 = arith.constant 1.280000e+02 : f32
    %346 = vector.broadcast %cst_192 : f32 to vector<8x1xf32>
    %347 = arith.divf %345, %346 : vector<8x1xf32>
    %348 = vector.broadcast %347 : vector<8x1xf32> to vector<8x128xf32>
    %349 = arith.subf %339, %348 : vector<8x128xf32>
    %350 = vector.broadcast %347 : vector<8x1xf32> to vector<8x128xf32>
    %351 = arith.subf %339, %350 : vector<8x128xf32>
    %352 = arith.mulf %349, %351 : vector<8x128xf32>
    %cst_193 = arith.constant dense<0.000000e+00> : vector<8xf32>
    %353 = vector.multi_reduction <add>, %352, %cst_193 [1] : vector<8x128xf32> to vector<8xf32>
    %354 = vector.shape_cast %353 : vector<8xf32> to vector<8x1xf32>
    %cst_194 = arith.constant 1.280000e+02 : f32
    %355 = vector.broadcast %cst_194 : f32 to vector<8x1xf32>
    %356 = arith.divf %354, %355 : vector<8x1xf32>
    %357 = vector.broadcast %347 : vector<8x1xf32> to vector<8x128xf32>
    %358 = arith.subf %339, %357 : vector<8x128xf32>
    %cst_195 = arith.constant 9.99999974E-6 : f32
    %359 = vector.broadcast %cst_195 : f32 to vector<8x1xf32>
    %360 = arith.addf %356, %359 : vector<8x1xf32>
    %361 = math.rsqrt %360 : vector<8x1xf32>
    %362 = vector.broadcast %361 : vector<8x1xf32> to vector<8x128xf32>
    %363 = arith.mulf %358, %362 : vector<8x128xf32>
    %364 = vector.broadcast %341 : vector<1x128xf32> to vector<8x128xf32>
    %365 = arith.mulf %363, %364 : vector<8x128xf32>
    %366 = vector.broadcast %343 : vector<1x128xf32> to vector<8x128xf32>
    %367 = arith.addf %365, %366 : vector<8x128xf32>
    %c0_196 = arith.constant 0 : index
    %c0_197 = arith.constant 0 : index
    %368 = vector.load %arg13[%c0_196, %c0_197] : memref<1x128xf32, #tpu.memory_space<vmem>>, vector<1x128xf32>
    %c0_198 = arith.constant 0 : index
    %c0_199 = arith.constant 0 : index
    %369 = vector.load %arg14[%c0_198, %c0_199] : memref<1x128xf32, #tpu.memory_space<vmem>>, vector<1x128xf32>
    %cst_200 = arith.constant dense<0.000000e+00> : vector<8xf32>
    %370 = vector.multi_reduction <add>, %367, %cst_200 [1] : vector<8x128xf32> to vector<8xf32>
    %371 = vector.shape_cast %370 : vector<8xf32> to vector<8x1xf32>
    %cst_201 = arith.constant 1.280000e+02 : f32
    %372 = vector.broadcast %cst_201 : f32 to vector<8x1xf32>
    %373 = arith.divf %371, %372 : vector<8x1xf32>
    %374 = vector.broadcast %373 : vector<8x1xf32> to vector<8x128xf32>
    %375 = arith.subf %367, %374 : vector<8x128xf32>
    %376 = vector.broadcast %373 : vector<8x1xf32> to vector<8x128xf32>
    %377 = arith.subf %367, %376 : vector<8x128xf32>
    %378 = arith.mulf %375, %377 : vector<8x128xf32>
    %cst_202 = arith.constant dense<0.000000e+00> : vector<8xf32>
    %379 = vector.multi_reduction <add>, %378, %cst_202 [1] : vector<8x128xf32> to vector<8xf32>
    %380 = vector.shape_cast %379 : vector<8xf32> to vector<8x1xf32>
    %cst_203 = arith.constant 1.280000e+02 : f32
    %381 = vector.broadcast %cst_203 : f32 to vector<8x1xf32>
    %382 = arith.divf %380, %381 : vector<8x1xf32>
    %383 = vector.broadcast %373 : vector<8x1xf32> to vector<8x128xf32>
    %384 = arith.subf %367, %383 : vector<8x128xf32>
    %cst_204 = arith.constant 9.99999974E-6 : f32
    %385 = vector.broadcast %cst_204 : f32 to vector<8x1xf32>
    %386 = arith.addf %382, %385 : vector<8x1xf32>
    %387 = math.rsqrt %386 : vector<8x1xf32>
    %388 = vector.broadcast %387 : vector<8x1xf32> to vector<8x128xf32>
    %389 = arith.mulf %384, %388 : vector<8x128xf32>
    %390 = vector.broadcast %368 : vector<1x128xf32> to vector<8x128xf32>
    %391 = arith.mulf %389, %390 : vector<8x128xf32>
    %392 = vector.broadcast %369 : vector<1x128xf32> to vector<8x128xf32>
    %393 = arith.addf %391, %392 : vector<8x128xf32>
    %394 = arith.truncf %393 : vector<8x128xf32> to vector<8x128xbf16>
    %c0_205 = arith.constant 0 : index
    %c0_206 = arith.constant 0 : index
    %395 = vector.load %arg15[%c0_205, %c0_206] : memref<128x128xbf16, #tpu.memory_space<vmem>>, vector<128x128xbf16>
    %cst_207 = arith.constant dense<0.000000e+00> : vector<8x128xf32>
    %396 = tpu.matmul %394, %395, %cst_207 {dimension_numbers = #tpu.dot_dimension_numbers<[1], [0], [0], [1], [0, 0, 1, 1], [], []>} : vector<8x128xbf16>, vector<128x128xbf16>, vector<8x128xf32> -> vector<8x128xf32>
    %c0_208 = arith.constant 0 : index
    %c0_209 = arith.constant 0 : index
    %397 = vector.load %arg16[%c0_208, %c0_209] : memref<1x128xf32, #tpu.memory_space<vmem>>, vector<1x128xf32>
    %398 = vector.broadcast %397 : vector<1x128xf32> to vector<8x128xf32>
    %399 = arith.addf %396, %398 : vector<8x128xf32>
    %c0_210 = arith.constant 0 : index
    %c0_211 = arith.constant 0 : index
    %400 = vector.load %arg17[%c0_210, %c0_211] : memref<8x128xf32, #tpu.memory_space<vmem>>, vector<8x128xf32>
    tpu.vector_store %arg17[%c0_210, %c0_211], %399 {strides = array<i32>} : memref<8x128xf32, #tpu.memory_space<vmem>>, vector<8x128xf32>,
    return
  }
  func.func @transform_0(%arg0: i32) -> (i32, i32) {
    %c0_i32 = arith.constant 0 : i32
    %c0_i32_0 = arith.constant 0 : i32
    return %arg0, %c0_i32 : i32, i32
  }
  func.func @transform_1(%arg0: i32) -> (i32, i32) {
    %c0_i32 = arith.constant 0 : i32
    %c0_i32_0 = arith.constant 0 : i32
    return %arg0, %c0_i32 : i32, i32
  }
  func.func @transform_2(%arg0: i32) -> (i32, i32, i32, i32) {
    %c0_i32 = arith.constant 0 : i32
    %c0_i32_0 = arith.constant 0 : i32
    %c0_i32_1 = arith.constant 0 : i32
    %c0_i32_2 = arith.constant 0 : i32
    %c0_i32_3 = arith.constant 0 : i32
    return %c0_i32, %c0_i32_0, %c0_i32_1, %c0_i32_2 : i32, i32, i32, i32
  }
  func.func @transform_3(%arg0: i32) -> (i32, i32, i32, i32) {
    %c0_i32 = arith.constant 0 : i32
    %c0_i32_0 = arith.constant 0 : i32
    %c0_i32_1 = arith.constant 0 : i32
    %c0_i32_2 = arith.constant 0 : i32
    %c0_i32_3 = arith.constant 0 : i32
    return %c0_i32, %c0_i32_0, %c0_i32_1, %c0_i32_2 : i32, i32, i32, i32
  }
  func.func @transform_4(%arg0: i32) -> (i32, i32, i32, i32) {
    %c0_i32 = arith.constant 0 : i32
    %c0_i32_0 = arith.constant 0 : i32
    %c0_i32_1 = arith.constant 0 : i32
    %c0_i32_2 = arith.constant 0 : i32
    %c0_i32_3 = arith.constant 0 : i32
    return %c0_i32, %c0_i32_0, %c0_i32_1, %c0_i32_2 : i32, i32, i32, i32
  }
  func.func @transform_5(%arg0: i32) -> (i32, i32, i32, i32) {
    %c0_i32 = arith.constant 0 : i32
    %c0_i32_0 = arith.constant 0 : i32
    %c0_i32_1 = arith.constant 0 : i32
    %c0_i32_2 = arith.constant 0 : i32
    %c0_i32_3 = arith.constant 0 : i32
    return %c0_i32, %c0_i32_0, %c0_i32_1, %c0_i32_2 : i32, i32, i32, i32
  }
  func.func @transform_6(%arg0: i32) -> (i32, i32, i32) {
    %c0_i32 = arith.constant 0 : i32
    %c0_i32_0 = arith.constant 0 : i32
    %c0_i32_1 = arith.constant 0 : i32
    %c0_i32_2 = arith.constant 0 : i32
    return %c0_i32, %c0_i32_0, %c0_i32_1 : i32, i32, i32
  }
  func.func @transform_7(%arg0: i32) -> (i32, i32, i32) {
    %c0_i32 = arith.constant 0 : i32
    %c0_i32_0 = arith.constant 0 : i32
    %c0_i32_1 = arith.constant 0 : i32
    %c0_i32_2 = arith.constant 0 : i32
    return %c0_i32, %c0_i32_0, %c0_i32_1 : i32, i32, i32
  }
  func.func @transform_8(%arg0: i32) -> (i32, i32, i32) {
    %c0_i32 = arith.constant 0 : i32
    %c0_i32_0 = arith.constant 0 : i32
    %c0_i32_1 = arith.constant 0 : i32
    %c0_i32_2 = arith.constant 0 : i32
    return %c0_i32, %c0_i32_0, %c0_i32_1 : i32, i32, i32
  }
  func.func @transform_9(%arg0: i32) -> (i32, i32, i32) {
    %c0_i32 = arith.constant 0 : i32
    %c0_i32_0 = arith.constant 0 : i32
    %c0_i32_1 = arith.constant 0 : i32
    %c0_i32_2 = arith.constant 0 : i32
    return %c0_i32, %c0_i32_0, %c0_i32_1 : i32, i32, i32
  }
  func.func @transform_10(%arg0: i32) -> (i32, i32, i32, i32) {
    %c0_i32 = arith.constant 0 : i32
    %c0_i32_0 = arith.constant 0 : i32
    %c0_i32_1 = arith.constant 0 : i32
    %c0_i32_2 = arith.constant 0 : i32
    %c0_i32_3 = arith.constant 0 : i32
    return %c0_i32, %c0_i32_0, %c0_i32_1, %c0_i32_2 : i32, i32, i32, i32
  }
  func.func @transform_11(%arg0: i32) -> (i32, i32, i32, i32) {
    %c0_i32 = arith.constant 0 : i32
    %c0_i32_0 = arith.constant 0 : i32
    %c0_i32_1 = arith.constant 0 : i32
    %c0_i32_2 = arith.constant 0 : i32
    %c0_i32_3 = arith.constant 0 : i32
    return %c0_i32, %c0_i32_0, %c0_i32_1, %c0_i32_2 : i32, i32, i32, i32
  }
  func.func @transform_12(%arg0: i32) -> (i32, i32) {
    %c0_i32 = arith.constant 0 : i32
    %c0_i32_0 = arith.constant 0 : i32
    %c0_i32_1 = arith.constant 0 : i32
    return %c0_i32, %c0_i32_0 : i32, i32
  }
  func.func @transform_13(%arg0: i32) -> (i32, i32) {
    %c0_i32 = arith.constant 0 : i32
    %c0_i32_0 = arith.constant 0 : i32
    %c0_i32_1 = arith.constant 0 : i32
    return %c0_i32, %c0_i32_0 : i32, i32
  }
  func.func @transform_14(%arg0: i32) -> (i32, i32) {
    %c0_i32 = arith.constant 0 : i32
    %c0_i32_0 = arith.constant 0 : i32
    %c0_i32_1 = arith.constant 0 : i32
    return %c0_i32, %c0_i32_0 : i32, i32
  }
  func.func @transform_15(%arg0: i32) -> (i32, i32) {
    %c0_i32 = arith.constant 0 : i32
    %c0_i32_0 = arith.constant 0 : i32
    %c0_i32_1 = arith.constant 0 : i32
    return %c0_i32, %c0_i32_0 : i32, i32
  }
  func.func @transform_16(%arg0: i32) -> (i32, i32) {
    %c0_i32 = arith.constant 0 : i32
    %c0_i32_0 = arith.constant 0 : i32
    return %arg0, %c0_i32 : i32, i32
  }
}

</mosaic_0001>

<llo_original>
// kernel: transformer_forward.1
$region0: #{transformer_forward.1}
  #allocation0 [shape = 'u32[]', space=smem, size = 0x4, offset = 0x4, fixed_abs, tag = 'smem constant byte address 0x4 - core index']
  #allocation1 [shape = 'u32[144,128]{1,0:T(1,128)}', space=vmem, size = 0x12000, scoped, tag = 'internal scratch']
  %s0 = inlined_call_operand.vmem [shape: f32[16,128], index: 0, kind: input, shape index: {}]
  %s1 = inlined_call_operand.vmem [shape: f32[16,128], index: 1, kind: input, shape index: {}]
  %s2 = inlined_call_operand.vmem [shape: bf16[2,2,128,384], index: 2, kind: input, shape index: {}]
  %s3 = inlined_call_operand.vmem [shape: f32[2,2,1,384], index: 3, kind: input, shape index: {}]
  %s4 = inlined_call_operand.vmem [shape: bf16[2,2,128,128], index: 4, kind: input, shape index: {}]
  %s5 = inlined_call_operand.vmem [shape: f32[2,2,1,128], index: 5, kind: input, shape index: {}]
  %s6 = inlined_call_operand.vmem [shape: bf16[2,128,256], index: 6, kind: input, shape index: {}]
  %s7 = inlined_call_operand.vmem [shape: f32[2,1,256], index: 7, kind: input, shape index: {}]
  %s8 = inlined_call_operand.vmem [shape: bf16[2,256,128], index: 8, kind: input, shape index: {}]
  %s9 = inlined_call_operand.vmem [shape: f32[2,1,128], index: 9, kind: input, shape index: {}]
  %s10 = inlined_call_operand.vmem [shape: f32[2,3,1,128], index: 10, kind: input, shape index: {}]
  %s11 = inlined_call_operand.vmem [shape: f32[2,3,1,128], index: 11, kind: input, shape index: {}]
  %s12 = inlined_call_operand.vmem [shape: f32[1,128], index: 12, kind: input, shape index: {}]
  %s13 = inlined_call_operand.vmem [shape: f32[1,128], index: 13, kind: input, shape index: {}]
  %s14 = inlined_call_operand.vmem [shape: bf16[128,128], index: 14, kind: input, shape index: {}]
  %s15 = inlined_call_operand.vmem [shape: f32[1,128], index: 15, kind: input, shape index: {}]
  %s16 = inlined_call_operand.vmem [shape: f32[16,128], index: 16, kind: output, shape index: {}]
  %s17 = sld [smem:[#allocation0]]
  $region97: #{transformer_forward.1} parent=0
    _
  %s19 = ssub.s32 1, %s17
  %s20 = scalar_select 0, %s19, %s17
  loop: start=0, step=1, limit=4
  $region2: #{transformer_forward.1} parent=0 // loop_pre_header
    _
  $region3: #{transformer_forward.1} parent=0 // loop_header
    %s22 = sphi 0, %s26
    %p23 = scmp.ge.s32.totalorder %s22, 4
    %s32 = sphi 0, %s34
    %s35 = sphi 0, %s32
    %s36 = sphi 0, %s35
    %s52 = sphi 0, %s36
    %s58 = sphi 0, %s60
    %s61 = sphi 0, %s58
    %s62 = sphi 0, %s61
    %s78 = sphi 0, %s62
    %s82 = sphi 0, %s82
    %s84 = sphi 0, %s82
    %s85 = sphi 0, %s84
    %s99 = sphi 0, %s85
    %s103 = sphi 0, %s103
    %s105 = sphi 0, %s103
    %s106 = sphi 0, %s105
    %s120 = sphi 0, %s106
    %s124 = sphi 0, %s124
    %s126 = sphi 0, %s124
    %s127 = sphi 0, %s126
    %s141 = sphi 0, %s127
    %s145 = sphi 0, %s145
    %s147 = sphi 0, %s145
    %s148 = sphi 0, %s147
    %s162 = sphi 0, %s148
    %s166 = sphi 0, %s166
    %s168 = sphi 0, %s166
    %s169 = sphi 0, %s168
    %s183 = sphi 0, %s169
    %s187 = sphi 0, %s187
    %s189 = sphi 0, %s187
    %s190 = sphi 0, %s189
    %s204 = sphi 0, %s190
    %s208 = sphi 0, %s208
    %s210 = sphi 0, %s208
    %s211 = sphi 0, %s210
    %s225 = sphi 0, %s211
    %s229 = sphi 0, %s229
    %s231 = sphi 0, %s229
    %s232 = sphi 0, %s231
    %s246 = sphi 0, %s232
    %s250 = sphi 0, %s250
    %s252 = sphi 0, %s250
    %s253 = sphi 0, %s252
    %s267 = sphi 0, %s253
    %s271 = sphi 0, %s271
    %s273 = sphi 0, %s271
    %s274 = sphi 0, %s273
    %s288 = sphi 0, %s274
    %s292 = sphi 0, %s292
    %s294 = sphi 0, %s292
    %s295 = sphi 0, %s294
    %s309 = sphi 0, %s295
    %s313 = sphi 0, %s313
    %s315 = sphi 0, %s313
    %s316 = sphi 0, %s315
    %s330 = sphi 0, %s316
    %s334 = sphi 0, %s334
    %s336 = sphi 0, %s334
    %s337 = sphi 0, %s336
    %s351 = sphi 0, %s337
    %s355 = sphi 0, %s355
    %s357 = sphi 0, %s355
    %s358 = sphi 0, %s357
    %s372 = sphi 0, %s358
    %s378 = sphi 0, %s380
    %s381 = sphi 0, %s378
    %s382 = sphi 0, %s381
    %s398 = sphi 0, %s382
  $region4: #{transformer_forward.1} parent=0 // loop_header_branch
    %25 = sbr.rel (%p23) target = $region8
  $region5: #{transformer_forward.1} parent=0 // loop_body
    %s27 = ssub.s32 %s22, 1
    %s28 = ssub.s32 %s22, 2
    %s29 = sadd.s32 %s22, 1
    %s30 = ssub.s32 %s22, %s29
    %p31 = scmp.eq.s32.totalorder %s30, 0
    %s33 = sadd.s32 %s32, 1
    %s34 = scalar_select %p31, %s32, %s33
    %p37 = pneg %p31
    %p38 = scmp.eq.s32.totalorder %s22, 1
    %p39 = por %p37, %p38
    %p40 = scmp.ne.s32.totalorder %s32, %s35
    %p41 = scmp.eq.s32.totalorder %s22, 0
    %p42 = por %p40, %p41
    %p43 = scmp.ne.s32.totalorder %s32, %s35
    %p44 = scmp.eq.s32.totalorder %s27, 1
    %p45 = por %p43, %p44
    %p46 = scmp.ne.s32.totalorder %s35, %s36
    %p47 = scmp.eq.s32.totalorder %s27, 0
    %p48 = por %p46, %p47
    %p49 = scmp.ne.s32.totalorder %s35, %s36
    %p50 = scmp.eq.s32.totalorder %s28, 1
    %p51 = por %p49, %p50
    %p53 = scmp.ne.s32.totalorder %s36, %s52
    %p54 = scmp.eq.s32.totalorder %s28, 0
    %p55 = por %p53, %p54
    %s56 = ssub.s32 %s22, %s29
    %p57 = scmp.eq.s32.totalorder %s56, 0
    %s59 = sadd.s32 %s58, 1
    %s60 = scalar_select %p57, %s58, %s59
    %p63 = pneg %p57
    %p64 = scmp.eq.s32.totalorder %s22, 1
    %p65 = por %p63, %p64
    %p66 = scmp.ne.s32.totalorder %s58, %s61
    %p67 = scmp.eq.s32.totalorder %s22, 0
    %p68 = por %p66, %p67
    %p69 = scmp.ne.s32.totalorder %s58, %s61
    %p70 = scmp.eq.s32.totalorder %s27, 1
    %p71 = por %p69, %p70
    %p72 = scmp.ne.s32.totalorder %s61, %s62
    %p73 = scmp.eq.s32.totalorder %s27, 0
    %p74 = por %p72, %p73
    %p75 = scmp.ne.s32.totalorder %s61, %s62
    %p76 = scmp.eq.s32.totalorder %s28, 1
    %p77 = por %p75, %p76
    %p79 = scmp.ne.s32.totalorder %s62, %s78
    %p80 = scmp.eq.s32.totalorder %s28, 0
    %p81 = por %p79, %p80
    %s83 = sadd.s32 %s82, 1
    %p86 = scmp.eq.s32.totalorder %s22, 1
    %p87 = scmp.ne.s32.totalorder %s82, %s84
    %p88 = scmp.eq.s32.totalorder %s22, 0
    %p89 = por %p87, %p88
    %p90 = scmp.ne.s32.totalorder %s82, %s84
    %p91 = scmp.eq.s32.totalorder %s27, 1
    %p92 = por %p90, %p91
    %p93 = scmp.ne.s32.totalorder %s84, %s85
    %p94 = scmp.eq.s32.totalorder %s27, 0
    %p95 = por %p93, %p94
    %p96 = scmp.ne.s32.totalorder %s84, %s85
    %p97 = scmp.eq.s32.totalorder %s28, 1
    %p98 = por %p96, %p97
    %p100 = scmp.ne.s32.totalorder %s85, %s99
    %p101 = scmp.eq.s32.totalorder %s28, 0
    %p102 = por %p100, %p101
    %s104 = sadd.s32 %s103, 1
    %p107 = scmp.eq.s32.totalorder %s22, 1
    %p108 = scmp.ne.s32.totalorder %s103, %s105
    %p109 = scmp.eq.s32.totalorder %s22, 0
    %p110 = por %p108, %p109
    %p111 = scmp.ne.s32.totalorder %s103, %s105
    %p112 = scmp.eq.s32.totalorder %s27, 1
    %p113 = por %p111, %p112
    %p114 = scmp.ne.s32.totalorder %s105, %s106
    %p115 = scmp.eq.s32.totalorder %s27, 0
    %p116 = por %p114, %p115
    %p117 = scmp.ne.s32.totalorder %s105, %s106
    %p118 = scmp.eq.s32.totalorder %s28, 1
    %p119 = por %p117, %p118
    %p121 = scmp.ne.s32.totalorder %s106, %s120
    %p122 = scmp.eq.s32.totalorder %s28, 0
    %p123 = por %p121, %p122
    %s125 = sadd.s32 %s124, 1
    %p128 = scmp.eq.s32.totalorder %s22, 1
    %p129 = scmp.ne.s32.totalorder %s124, %s126
    %p130 = scmp.eq.s32.totalorder %s22, 0
    %p131 = por %p129, %p130
    %p132 = scmp.ne.s32.totalorder %s124, %s126
    %p133 = scmp.eq.s32.totalorder %s27, 1
    %p134 = por %p132, %p133
    %p135 = scmp.ne.s32.totalorder %s126, %s127
    %p136 = scmp.eq.s32.totalorder %s27, 0
    %p137 = por %p135, %p136
    %p138 = scmp.ne.s32.totalorder %s126, %s127
    %p139 = scmp.eq.s32.totalorder %s28, 1
    %p140 = por %p138, %p139
    %p142 = scmp.ne.s32.totalorder %s127, %s141
    %p143 = scmp.eq.s32.totalorder %s28, 0
    %p144 = por %p142, %p143
    %s146 = sadd.s32 %s145, 1
    %p149 = scmp.eq.s32.totalorder %s22, 1
    %p150 = scmp.ne.s32.totalorder %s145, %s147
    %p151 = scmp.eq.s32.totalorder %s22, 0
    %p152 = por %p150, %p151
    %p153 = scmp.ne.s32.totalorder %s145, %s147
    %p154 = scmp.eq.s32.totalorder %s27, 1
    %p155 = por %p153, %p154
    %p156 = scmp.ne.s32.totalorder %s147, %s148
    %p157 = scmp.eq.s32.totalorder %s27, 0
    %p158 = por %p156, %p157
    %p159 = scmp.ne.s32.totalorder %s147, %s148
    %p160 = scmp.eq.s32.totalorder %s28, 1
    %p161 = por %p159, %p160
    %p163 = scmp.ne.s32.totalorder %s148, %s162
    %p164 = scmp.eq.s32.totalorder %s28, 0
    %p165 = por %p163, %p164
    %s167 = sadd.s32 %s166, 1
    %p170 = scmp.eq.s32.totalorder %s22, 1
    %p171 = scmp.ne.s32.totalorder %s166, %s168
    %p172 = scmp.eq.s32.totalorder %s22, 0
    %p173 = por %p171, %p172
    %p174 = scmp.ne.s32.totalorder %s166, %s168
    %p175 = scmp.eq.s32.totalorder %s27, 1
    %p176 = por %p174, %p175
    %p177 = scmp.ne.s32.totalorder %s168, %s169
    %p178 = scmp.eq.s32.totalorder %s27, 0
    %p179 = por %p177, %p178
    %p180 = scmp.ne.s32.totalorder %s168, %s169
    %p181 = scmp.eq.s32.totalorder %s28, 1
    %p182 = por %p180, %p181
    %p184 = scmp.ne.s32.totalorder %s169, %s183
    %p185 = scmp.eq.s32.totalorder %s28, 0
    %p186 = por %p184, %p185
    %s188 = sadd.s32 %s187, 1
    %p191 = scmp.eq.s32.totalorder %s22, 1
    %p192 = scmp.ne.s32.totalorder %s187, %s189
    %p193 = scmp.eq.s32.totalorder %s22, 0
    %p194 = por %p192, %p193
    %p195 = scmp.ne.s32.totalorder %s187, %s189
    %p196 = scmp.eq.s32.totalorder %s27, 1
    %p197 = por %p195, %p196
    %p198 = scmp.ne.s32.totalorder %s189, %s190
    %p199 = scmp.eq.s32.totalorder %s27, 0
    %p200 = por %p198, %p199
    %p201 = scmp.ne.s32.totalorder %s189, %s190
    %p202 = scmp.eq.s32.totalorder %s28, 1
    %p203 = por %p201, %p202
    %p205 = scmp.ne.s32.totalorder %s190, %s204
    %p206 = scmp.eq.s32.totalorder %s28, 0
    %p207 = por %p205, %p206
    %s209 = sadd.s32 %s208, 1
    %p212 = scmp.eq.s32.totalorder %s22, 1
    %p213 = scmp.ne.s32.totalorder %s208, %s210
    %p214 = scmp.eq.s32.totalorder %s22, 0
    %p215 = por %p213, %p214
    %p216 = scmp.ne.s32.totalorder %s208, %s210
    %p217 = scmp.eq.s32.totalorder %s27, 1
    %p218 = por %p216, %p217
    %p219 = scmp.ne.s32.totalorder %s210, %s211
    %p220 = scmp.eq.s32.totalorder %s27, 0
    %p221 = por %p219, %p220
    %p222 = scmp.ne.s32.totalorder %s210, %s211
    %p223 = scmp.eq.s32.totalorder %s28, 1
    %p224 = por %p222, %p223
    %p226 = scmp.ne.s32.totalorder %s211, %s225
    %p227 = scmp.eq.s32.totalorder %s28, 0
    %p228 = por %p226, %p227
    %s230 = sadd.s32 %s229, 1
    %p233 = scmp.eq.s32.totalorder %s22, 1
    %p234 = scmp.ne.s32.totalorder %s229, %s231
    %p235 = scmp.eq.s32.totalorder %s22, 0
    %p236 = por %p234, %p235
    %p237 = scmp.ne.s32.totalorder %s229, %s231
    %p238 = scmp.eq.s32.totalorder %s27, 1
    %p239 = por %p237, %p238
    %p240 = scmp.ne.s32.totalorder %s231, %s232
    %p241 = scmp.eq.s32.totalorder %s27, 0
    %p242 = por %p240, %p241
    %p243 = scmp.ne.s32.totalorder %s231, %s232
    %p244 = scmp.eq.s32.totalorder %s28, 1
    %p245 = por %p243, %p244
    %p247 = scmp.ne.s32.totalorder %s232, %s246
    %p248 = scmp.eq.s32.totalorder %s28, 0
    %p249 = por %p247, %p248
    %s251 = sadd.s32 %s250, 1
    %p254 = scmp.eq.s32.totalorder %s22, 1
    %p255 = scmp.ne.s32.totalorder %s250, %s252
    %p256 = scmp.eq.s32.totalorder %s22, 0
    %p257 = por %p255, %p256
    %p258 = scmp.ne.s32.totalorder %s250, %s252
    %p259 = scmp.eq.s32.totalorder %s27, 1
    %p260 = por %p258, %p259
    %p261 = scmp.ne.s32.totalorder %s252, %s253
    %p262 = scmp.eq.s32.totalorder %s27, 0
    %p263 = por %p261, %p262
    %p264 = scmp.ne.s32.totalorder %s252, %s253
    %p265 = scmp.eq.s32.totalorder %s28, 1
    %p266 = por %p264, %p265
    %p268 = scmp.ne.s32.totalorder %s253, %s267
    %p269 = scmp.eq.s32.totalorder %s28, 0
    %p270 = por %p268, %p269
    %s272 = sadd.s32 %s271, 1
    %p275 = scmp.eq.s32.totalorder %s22, 1
    %p276 = scmp.ne.s32.totalorder %s271, %s273
    %p277 = scmp.eq.s32.totalorder %s22, 0
    %p278 = por %p276, %p277
    %p279 = scmp.ne.s32.totalorder %s271, %s273
    %p280 = scmp.eq.s32.totalorder %s27, 1
    %p281 = por %p279, %p280
    %p282 = scmp.ne.s32.totalorder %s273, %s274
    %p283 = scmp.eq.s32.totalorder %s27, 0
    %p284 = por %p282, %p283
    %p285 = scmp.ne.s32.totalorder %s273, %s274
    %p286 = scmp.eq.s32.totalorder %s28, 1
    %p287 = por %p285, %p286
    %p289 = scmp.ne.s32.totalorder %s274, %s288
    %p290 = scmp.eq.s32.totalorder %s28, 0
    %p291 = por %p289, %p290
    %s293 = sadd.s32 %s292, 1
    %p296 = scmp.eq.s32.totalorder %s22, 1
    %p297 = scmp.ne.s32.totalorder %s292, %s294
    %p298 = scmp.eq.s32.totalorder %s22, 0
    %p299 = por %p297, %p298
    %p300 = scmp.ne.s32.totalorder %s292, %s294
    %p301 = scmp.eq.s32.totalorder %s27, 1
    %p302 = por %p300, %p301
    %p303 = scmp.ne.s32.totalorder %s294, %s295
    %p304 = scmp.eq.s32.totalorder %s27, 0
    %p305 = por %p303, %p304
    %p306 = scmp.ne.s32.totalorder %s294, %s295
    %p307 = scmp.eq.s32.totalorder %s28, 1
    %p308 = por %p306, %p307
    %p310 = scmp.ne.s32.totalorder %s295, %s309
    %p311 = scmp.eq.s32.totalorder %s28, 0
    %p312 = por %p310, %p311
    %s314 = sadd.s32 %s313, 1
    %p317 = scmp.eq.s32.totalorder %s22, 1
    %p318 = scmp.ne.s32.totalorder %s313, %s315
    %p319 = scmp.eq.s32.totalorder %s22, 0
    %p320 = por %p318, %p319
    %p321 = scmp.ne.s32.totalorder %s313, %s315
    %p322 = scmp.eq.s32.totalorder %s27, 1
    %p323 = por %p321, %p322
    %p324 = scmp.ne.s32.totalorder %s315, %s316
    %p325 = scmp.eq.s32.totalorder %s27, 0
    %p326 = por %p324, %p325
    %p327 = scmp.ne.s32.totalorder %s315, %s316
    %p328 = scmp.eq.s32.totalorder %s28, 1
    %p329 = por %p327, %p328
    %p331 = scmp.ne.s32.totalorder %s316, %s330
    %p332 = scmp.eq.s32.totalorder %s28, 0
    %p333 = por %p331, %p332
    %s335 = sadd.s32 %s334, 1
    %p338 = scmp.eq.s32.totalorder %s22, 1
    %p339 = scmp.ne.s32.totalorder %s334, %s336
    %p340 = scmp.eq.s32.totalorder %s22, 0
    %p341 = por %p339, %p340
    %p342 = scmp.ne.s32.totalorder %s334, %s336
    %p343 = scmp.eq.s32.totalorder %s27, 1
    %p344 = por %p342, %p343
    %p345 = scmp.ne.s32.totalorder %s336, %s337
    %p346 = scmp.eq.s32.totalorder %s27, 0
    %p347 = por %p345, %p346
    %p348 = scmp.ne.s32.totalorder %s336, %s337
    %p349 = scmp.eq.s32.totalorder %s28, 1
    %p350 = por %p348, %p349
    %p352 = scmp.ne.s32.totalorder %s337, %s351
    %p353 = scmp.eq.s32.totalorder %s28, 0
    %p354 = por %p352, %p353
    %s356 = sadd.s32 %s355, 1
    %p359 = scmp.eq.s32.totalorder %s22, 1
    %p360 = scmp.ne.s32.totalorder %s355, %s357
    %p361 = scmp.eq.s32.totalorder %s22, 0
    %p362 = por %p360, %p361
    %p363 = scmp.ne.s32.totalorder %s355, %s357
    %p364 = scmp.eq.s32.totalorder %s27, 1
    %p365 = por %p363, %p364
    %p366 = scmp.ne.s32.totalorder %s357, %s358
    %p367 = scmp.eq.s32.totalorder %s27, 0
    %p368 = por %p366, %p367
    %p369 = scmp.ne.s32.totalorder %s357, %s358
    %p370 = scmp.eq.s32.totalorder %s28, 1
    %p371 = por %p369, %p370
    %p373 = scmp.ne.s32.totalorder %s358, %s372
    %p374 = scmp.eq.s32.totalorder %s28, 0
    %p375 = por %p373, %p374
    %s376 = ssub.s32 %s22, %s29
    %p377 = scmp.eq.s32.totalorder %s376, 0
    %s379 = sadd.s32 %s378, 1
    %s380 = scalar_select %p377, %s378, %s379
    %p383 = pneg %p377
    %p384 = scmp.eq.s32.totalorder %s22, 1
    %p385 = por %p383, %p384
    %p386 = scmp.ne.s32.totalorder %s378, %s381
    %p387 = scmp.eq.s32.totalorder %s22, 0
    %p388 = por %p386, %p387
    %p389 = scmp.ne.s32.totalorder %s378, %s381
    %p390 = scmp.eq.s32.totalorder %s27, 1
    %p391 = por %p389, %p390
    %p392 = scmp.ne.s32.totalorder %s381, %s382
    %p393 = scmp.eq.s32.totalorder %s27, 0
    %p394 = por %p392, %p393
    %p395 = scmp.ne.s32.totalorder %s381, %s382
    %p396 = scmp.eq.s32.totalorder %s28, 1
    %p397 = por %p395, %p396
    %p399 = scmp.ne.s32.totalorder %s382, %s398
    %p400 = scmp.eq.s32.totalorder %s28, 0
    %p401 = por %p399, %p400
    %p402 = scmp.le.s32.totalorder 1, %s22
    %p403 = scmp.lt.s32.totalorder %s22, 3
    %p404 = pnand %p402, %p403
    %p405 = pneg %p404
    // Predicated region
    $region9: #{transformer_forward.1} parent=5 // pred_check
      _
    $region10: #{transformer_forward.1} parent=5 // pred_check_branch
      %407 = sbr.rel (%p404) target = $region12
    $region11: #{transformer_forward.1} parent=5 // pred_region
      %s408 = ssub.s32 %s22, 1
      // Predicated region
      $region13: #{transformer_forward.1} parent=11 // pred_check
        %p409 = pneg %p95
      $region14: #{transformer_forward.1} parent=11 // pred_check_branch
        %411 = sbr.rel (%p409) target = $region16
      $region15: #{transformer_forward.1} parent=11 // pred_region
        _
      $region16: #{transformer_forward.1} parent=11 // pred_fallthru
        _
      // Predicated region
      $region17: #{transformer_forward.1} parent=11 // pred_check
        %p412 = pneg %p116
      $region18: #{transformer_forward.1} parent=11 // pred_check_branch
        %414 = sbr.rel (%p412) target = $region20
      $region19: #{transformer_forward.1} parent=11 // pred_region
        _
      $region20: #{transformer_forward.1} parent=11 // pred_fallthru
        _
      // Predicated region
      $region21: #{transformer_forward.1} parent=11 // pred_check
        %p415 = pneg %p137
      $region22: #{transformer_forward.1} parent=11 // pred_check_branch
        %417 = sbr.rel (%p415) target = $region24
      $region23: #{transformer_forward.1} parent=11 // pred_region
        _
      $region24: #{transformer_forward.1} parent=11 // pred_fallthru
        _
      // Predicated region
      $region25: #{transformer_forward.1} parent=11 // pred_check
        %p418 = pneg %p158
      $region26: #{transformer_forward.1} parent=11 // pred_check_branch
        %420 = sbr.rel (%p418) target = $region28
      $region27: #{transformer_forward.1} parent=11 // pred_region
        _
      $region28: #{transformer_forward.1} parent=11 // pred_fallthru
        _
      // Predicated region
      $region29: #{transformer_forward.1} parent=11 // pred_check
        %p421 = pneg %p179
      $region30: #{transformer_forward.1} parent=11 // pred_check_branch
        %423 = sbr.rel (%p421) target = $region32
      $region31: #{transformer_forward.1} parent=11 // pred_region
        _
      $region32: #{transformer_forward.1} parent=11 // pred_fallthru
        _
      // Predicated region
      $region33: #{transformer_forward.1} parent=11 // pred_check
        %p424 = pneg %p200
      $region34: #{transformer_forward.1} parent=11 // pred_check_branch
        %426 = sbr.rel (%p424) target = $region36
      $region35: #{transformer_forward.1} parent=11 // pred_region
        _
      $region36: #{transformer_forward.1} parent=11 // pred_fallthru
        _
      // Predicated region
      $region37: #{transformer_forward.1} parent=11 // pred_check
        %p427 = pneg %p221
      $region38: #{transformer_forward.1} parent=11 // pred_check_branch
        %429 = sbr.rel (%p427) target = $region40
      $region39: #{transformer_forward.1} parent=11 // pred_region
        _
      $region40: #{transformer_forward.1} parent=11 // pred_fallthru
        _
      // Predicated region
      $region41: #{transformer_forward.1} parent=11 // pred_check
        %p430 = pneg %p242
      $region42: #{transformer_forward.1} parent=11 // pred_check_branch
        %432 = sbr.rel (%p430) target = $region44
      $region43: #{transformer_forward.1} parent=11 // pred_region
        _
      $region44: #{transformer_forward.1} parent=11 // pred_fallthru
        _
      // Predicated region
      $region45: #{transformer_forward.1} parent=11 // pred_check
        %p433 = pneg %p263
      $region46: #{transformer_forward.1} parent=11 // pred_check_branch
        %435 = sbr.rel (%p433) target = $region48
      $region47: #{transformer_forward.1} parent=11 // pred_region
        _
      $region48: #{transformer_forward.1} parent=11 // pred_fallthru
        _
      // Predicated region
      $region49: #{transformer_forward.1} parent=11 // pred_check
        %p436 = pneg %p284
      $region50: #{transformer_forward.1} parent=11 // pred_check_branch
        %438 = sbr.rel (%p436) target = $region52
      $region51: #{transformer_forward.1} parent=11 // pred_region
        _
      $region52: #{transformer_forward.1} parent=11 // pred_fallthru
        _
      // Predicated region
      $region53: #{transformer_forward.1} parent=11 // pred_check
        %p439 = pneg %p305
      $region54: #{transformer_forward.1} parent=11 // pred_check_branch
        %441 = sbr.rel (%p439) target = $region56
      $region55: #{transformer_forward.1} parent=11 // pred_region
        _
      $region56: #{transformer_forward.1} parent=11 // pred_fallthru
        _
      // Predicated region
      $region57: #{transformer_forward.1} parent=11 // pred_check
        %p442 = pneg %p326
      $region58: #{transformer_forward.1} parent=11 // pred_check_branch
        %444 = sbr.rel (%p442) target = $region60
      $region59: #{transformer_forward.1} parent=11 // pred_region
        _
      $region60: #{transformer_forward.1} parent=11 // pred_fallthru
        _
      // Predicated region
      $region61: #{transformer_forward.1} parent=11 // pred_check
        %p445 = pneg %p347
      $region62: #{transformer_forward.1} parent=11 // pred_check_branch
        %447 = sbr.rel (%p445) target = $region64
      $region63: #{transformer_forward.1} parent=11 // pred_region
        _
      $region64: #{transformer_forward.1} parent=11 // pred_fallthru
        _
      // Predicated region
      $region65: #{transformer_forward.1} parent=11 // pred_check
        %p448 = pneg %p368
      $region66: #{transformer_forward.1} parent=11 // pred_check_branch
        %450 = sbr.rel (%p448) target = $region68
      $region67: #{transformer_forward.1} parent=11 // pred_region
        _
      $region68: #{transformer_forward.1} parent=11 // pred_fallthru
        _
    $region12: #{transformer_forward.1} parent=5 // pred_fallthru
      _
    %p451 = scmp.lt.s32.totalorder %s22, 2
    // Predicated region
    $region69: #{transformer_forward.1} parent=5 // pred_check
      %p452 = pneg %p451
    $region70: #{transformer_forward.1} parent=5 // pred_check_branch
      %454 = sbr.rel (%p452) target = $region72
    $region71: #{transformer_forward.1} parent=5 // pred_region
      // Predicated region
      $region73: #{transformer_forward.1} parent=71 // pred_check
        %p455 = pneg %p42
      $region74: #{transformer_forward.1} parent=71 // pred_check_branch
        %457 = sbr.rel (%p455) target = $region76
      $region75: #{transformer_forward.1} parent=71 // pred_region
        %p458 = scmp.lt.s32.totalorder %s22, 1
        %s459 = scalar_select %p458, %s22, 1
        %s460 = smul.addr %s459, 8
        %s461 = scalar_lea.vmem %s0, %s460
      $region76: #{transformer_forward.1} parent=71 // pred_fallthru
        _
      // Predicated region
      $region77: #{transformer_forward.1} parent=71 // pred_check
        %p462 = pneg %p68
      $region78: #{transformer_forward.1} parent=71 // pred_check_branch
        %464 = sbr.rel (%p462) target = $region80
      $region79: #{transformer_forward.1} parent=71 // pred_region
        %p465 = scmp.lt.s32.totalorder %s22, 1
        %s466 = scalar_select %p465, %s22, 1
        %s467 = smul.addr %s466, 8
        %s468 = scalar_lea.vmem %s1, %s467
      $region80: #{transformer_forward.1} parent=71 // pred_fallthru
        _
    $region72: #{transformer_forward.1} parent=5 // pred_fallthru
      _
    %p469 = scmp.le.s32.totalorder 1, %s22
    %p470 = scmp.lt.s32.totalorder %s22, 3
    %p471 = pnand %p469, %p470
    %p472 = pneg %p471
    // Predicated region
    $region81: #{transformer_forward.1} parent=5 // pred_check
      _
    $region82: #{transformer_forward.1} parent=5 // pred_check_branch
      %474 = sbr.rel (%p471) target = $region84
    $region83: #{transformer_forward.1} parent=5 // pred_region
      %s475 = ssub.s32 %s22, 1
      %p476 = scmp.lt.s32.totalorder %s27, 1
      %s477 = scalar_select %p476, %s27, 1
      %s478 = smul.addr %s477, 8
      %s479 = scalar_lea.vmem %s0, %s478
      %p480 = pneg %p48
      %p481 = pneg %p45
      %p482 = scmp.lt.s32.totalorder %s27, 1
      %s483 = scalar_select %p482, %s27, 1
      %s484 = smul.addr %s483, 8
      %s485 = scalar_lea.vmem %s1, %s484
      %p486 = pneg %p74
      %p487 = pneg %p71
      %p488 = pneg %p95
      %p489 = pneg %p92
      %p490 = pneg %p116
      %p491 = pneg %p113
      %p492 = pneg %p137
      %p493 = pneg %p134
      %p494 = pneg %p158
      %p495 = pneg %p155
      %p496 = pneg %p179
      %p497 = pneg %p176
      %p498 = pneg %p200
      %p499 = pneg %p197
      %p500 = pneg %p221
      %p501 = pneg %p218
      %p502 = pneg %p242
      %p503 = pneg %p239
      %p504 = pneg %p263
      %p505 = pneg %p260
      %p506 = pneg %p284
      %p507 = pneg %p281
      %p508 = pneg %p305
      %p509 = pneg %p302
      %p510 = pneg %p326
      %p511 = pneg %p323
      %p512 = pneg %p347
      %p513 = pneg %p344
      %p514 = pneg %p368
      %p515 = pneg %p365
      %p516 = pneg %p394
      %p517 = pneg %p391
      %p518 = scmp.lt.s32.totalorder %s27, 1
      %s519 = scalar_select %p518, %s27, 1
      %s520 = smul.addr %s519, 8
      %s521 = scalar_lea.vmem %s16, %s520
      %p522 = scmp.lt.s32.totalorder %s27, 1
      %s523 = scalar_select %p522, %s27, 1
      %s524 = smul.addr %s523, 8
      %s525 = scalar_lea.vmem %s0, %s524
      %p526 = scmp.lt.s32.totalorder %s27, 1
      %s527 = scalar_select %p526, %s27, 1
      %s528 = smul.addr %s527, 8
      %s529 = scalar_lea.vmem %s1, %s528
      %p530 = scmp.lt.s32.totalorder %s27, 1
      %s531 = scalar_select %p530, %s27, 1
      %s532 = smul.addr %s531, 8
      %s533 = scalar_lea.vmem %s16, %s532
      %v535 = vld [vmem:[%s525] sm:$0xff]
      %v536 = vld [vmem:[%s529] sm:$0xff]
      %v537 = vpack.c.bf16 %v536, %v536
      %v538 = vld [vmem:[%s2] sm:$0xff]
      %v539 = vld [vmem:[%s2 + $0x8] sm:$0xf]
      %v540 = vld [vmem:[%s2 + $0xc] sm:$0xff]
      %v541 = vld [vmem:[%s2 + $0x14] sm:$0xf]
      %v542 = vld [vmem:[%s2 + $0x18] sm:$0xff]
      %v543 = vld [vmem:[%s2 + $0x20] sm:$0xf]
      %v544 = vld [vmem:[%s2 + $0x24] sm:$0xff]
      %v545 = vld [vmem:[%s2 + $0x2c] sm:$0xf]
      %v546 = vld [vmem:[%s2 + $0x30] sm:$0xff]
      %v547 = vld [vmem:[%s2 + $0x38] sm:$0xf]
      %v548 = vld [vmem:[%s2 + $0x3c] sm:$0xff]
      %v549 = vld [vmem:[%s2 + $0x44] sm:$0xf]
      %v550 = vld [vmem:[%s2 + $0x48] sm:$0xff]
      %v551 = vld [vmem:[%s2 + $0x50] sm:$0xf]
      %v552 = vld [vmem:[%s2 + $0x54] sm:$0xff]
      %v553 = vld [vmem:[%s2 + $0x5c] sm:$0xf]
      %v554 = vld [vmem:[%s2 + $0x60] sm:$0xff]
      %v555 = vld [vmem:[%s2 + $0x68] sm:$0xf]
      %v556 = vld [vmem:[%s2 + $0x6c] sm:$0xff]
      %v557 = vld [vmem:[%s2 + $0x74] sm:$0xf]
      %v558 = vld [vmem:[%s2 + $0x78] sm:$0xff]
      %v559 = vld [vmem:[%s2 + $0x80] sm:$0xf]
      %v560 = vld [vmem:[%s2 + $0x84] sm:$0xff]
      %v561 = vld [vmem:[%s2 + $0x8c] sm:$0xf]
      %v562 = vld [vmem:[%s2 + $0x90] sm:$0xff]
      %v563 = vld [vmem:[%s2 + $0x98] sm:$0xf]
      %v564 = vld [vmem:[%s2 + $0x9c] sm:$0xff]
      %v565 = vld [vmem:[%s2 + $0xa4] sm:$0xf]
      %v566 = vld [vmem:[%s2 + $0xa8] sm:$0xff]
      %v567 = vld [vmem:[%s2 + $0xb0] sm:$0xf]
      %v568 = vld [vmem:[%s2 + $0xb4] sm:$0xff]
      %v569 = vld [vmem:[%s2 + $0xbc] sm:$0xf]
      %v570 = vld [vmem:[%s3] sm:$0x7]
      %v572 = vlaneseq
      %v573 = vshrl.u32 %v572, 7
      %v574 = vsub.s32 0, %v573
      %v575 = vrot.slane %v570, %v574
      %v576 = vlaneseq
      %v577 = vshrl.u32 %v576, 7
      %v578 = vsub.s32 1, %v577
      %v579 = vrot.slane %v570, %v578
      %v580 = vlaneseq
      %v581 = vshrl.u32 %v580, 7
      %v582 = vsub.s32 2, %v581
      %v583 = vrot.slane %v570, %v582
      %v619 = vunpack.c.l.b16 %v538
      %v620 = vunpack.c.h.b16 %v538
      %v621 = vunpack.c.l.b16 %v539
      %v622 = vunpack.c.l.b16 %v540
      %v623 = vunpack.c.h.b16 %v540
      %v624 = vunpack.c.l.b16 %v541
      %v625 = vunpack.c.l.b16 %v542
      %v626 = vunpack.c.h.b16 %v542
      %v627 = vunpack.c.l.b16 %v543
      %v628 = vunpack.c.l.b16 %v544
      %v629 = vunpack.c.h.b16 %v544
      %v630 = vunpack.c.l.b16 %v545
      %v631 = vunpack.c.l.b16 %v546
      %v632 = vunpack.c.h.b16 %v546
      %v633 = vunpack.c.l.b16 %v547
      %v634 = vunpack.c.l.b16 %v548
      %v635 = vunpack.c.h.b16 %v548
      %v636 = vunpack.c.l.b16 %v549
      %v637 = vunpack.c.l.b16 %v550
      %v638 = vunpack.c.h.b16 %v550
      %v639 = vunpack.c.l.b16 %v551
      %v640 = vunpack.c.l.b16 %v552
      %v641 = vunpack.c.h.b16 %v552
      %v642 = vunpack.c.l.b16 %v553
      %v643 = vunpack.c.l.b16 %v554
      %v644 = vunpack.c.h.b16 %v554
      %v645 = vunpack.c.l.b16 %v555
      %v646 = vunpack.c.l.b16 %v556
      %v647 = vunpack.c.h.b16 %v556
      %v648 = vunpack.c.l.b16 %v557
      %v649 = vunpack.c.l.b16 %v558
      %v650 = vunpack.c.h.b16 %v558
      %v651 = vunpack.c.l.b16 %v559
      %v652 = vunpack.c.l.b16 %v560
      %v653 = vunpack.c.h.b16 %v560
      %v654 = vunpack.c.l.b16 %v561
      %v655 = vunpack.c.l.b16 %v562
      %v656 = vunpack.c.h.b16 %v562
      %v657 = vunpack.c.l.b16 %v563
      %v658 = vunpack.c.l.b16 %v564
      %v659 = vunpack.c.h.b16 %v564
      %v660 = vunpack.c.l.b16 %v565
      %v661 = vunpack.c.l.b16 %v566
      %v662 = vunpack.c.h.b16 %v566
      %v663 = vunpack.c.l.b16 %v567
      %v664 = vunpack.c.l.b16 %v568
      %v665 = vunpack.c.h.b16 %v568
      %v666 = vunpack.c.l.b16 %v569
      %v667 = vpack.c.b16 %v622, %v619
      %v668 = vpack.c.b16 %v623, %v620
      %v669 = vpack.c.b16 %v624, %v621
      %v670 = vpack.c.b16 %v628, %v625
      %v671 = vpack.c.b16 %v629, %v626
      %v672 = vpack.c.b16 %v630, %v627
      %v673 = vpack.c.b16 %v634, %v631
      %v674 = vpack.c.b16 %v635, %v632
      %v675 = vpack.c.b16 %v636, %v633
      %v676 = vpack.c.b16 %v640, %v637
      %v677 = vpack.c.b16 %v641, %v638
      %v678 = vpack.c.b16 %v642, %v639
      %v679 = vpack.c.b16 %v646, %v643
      %v680 = vpack.c.b16 %v647, %v644
      %v681 = vpack.c.b16 %v648, %v645
      %v682 = vpack.c.b16 %v652, %v649
      %v683 = vpack.c.b16 %v653, %v650
      %v684 = vpack.c.b16 %v654, %v651
      %v685 = vpack.c.b16 %v658, %v655
      %v686 = vpack.c.b16 %v659, %v656
      %v687 = vpack.c.b16 %v660, %v657
      %v688 = vpack.c.b16 %v664, %v661
      %v689 = vpack.c.b16 %v665, %v662
      %v690 = vpack.c.b16 %v666, %v663
      %715 = vmatprep.subr.bf16.mxu0 %v689
      %716 = vmatpush1.bf16.msra.mxu0 %v688
      %717 = vmatprep.subr.bf16.mxu0 %v686
      %718 = vmatpush1.bf16.msra.mxu0 %v685
      %719 = vmatprep.subr.bf16.mxu0 %v683
      %720 = vmatpush1.bf16.msra.mxu0 %v682
      %721 = vmatprep.subr.bf16.mxu0 %v680
      %722 = vmatpush1.bf16.msra.mxu0 %v679
      %723 = vmatprep.subr.bf16.mxu0 %v677
      %724 = vmatpush1.bf16.msra.mxu0 %v676
      %725 = vmatprep.subr.bf16.mxu0 %v674
      %726 = vmatpush1.bf16.msra.mxu0 %v673
      %727 = vmatprep.subr.bf16.mxu0 %v671
      %728 = vmatpush1.bf16.msra.mxu0 %v670
      %729 = vmatprep.subr.bf16.mxu0 %v668
      %730 = vmatpush1.bf16.msra.mxu0 %v667
      %731 = vmatprep.subr.bf16.mxu0 0
      %732 = vmatpush2.bf16.msra.mxu0 0
      %733 = vmatprep.subr.bf16.mxu0 0
      %734 = vmatpush2.bf16.msra.mxu0 0
      %735 = vmatprep.subr.bf16.mxu0 0
      %736 = vmatpush2.bf16.msra.mxu0 0
      %737 = vmatprep.subr.bf16.mxu0 0
      %738 = vmatpush2.bf16.msra.mxu0 0
      %739 = vmatprep.subr.bf16.mxu0 0
      %740 = vmatpush2.bf16.msra.mxu0 0
      %741 = vmatprep.subr.bf16.mxu0 0
      %742 = vmatpush2.bf16.msra.mxu0 0
      %743 = vmatprep.subr.bf16.mxu0 0
      %744 = vmatpush2.bf16.msra.mxu0 0
      %745 = vmatprep.subr.bf16.mxu0 0
      %746 = vmatpush2.bf16.msra.mxu0 0
      %747 = vmatprep.mubr.bf16.mxu0 0
      %748 = vmatmul.mubr.bf16.gmra.mxu0 %v537
      %v749 = vpop.f32.mrf.mxu0
      %v750 = vadd.f32 %v575, %v749
      %v751 = vpop.f32.mrf.mxu0
      %v752 = vadd.f32 %v579, %v751
      %v753 = vpop.f32.mrf.mxu0
      %v754 = vpop.f32.mrf.mxu0
      %755 = vdwg.mxu0
      %756 = vmatprep.subr.bf16.mxu0 0
      %757 = vmatpush1.bf16.msra.mxu0 %v690
      %758 = vmatprep.subr.bf16.mxu0 0
      %759 = vmatpush1.bf16.msra.mxu0 %v687
      %760 = vmatprep.subr.bf16.mxu0 0
      %761 = vmatpush1.bf16.msra.mxu0 %v684
      %762 = vmatprep.subr.bf16.mxu0 0
      %763 = vmatpush1.bf16.msra.mxu0 %v681
      %764 = vmatprep.subr.bf16.mxu0 0
      %765 = vmatpush1.bf16.msra.mxu0 %v678
      %766 = vmatprep.subr.bf16.mxu0 0
      %767 = vmatpush1.bf16.msra.mxu0 %v675
      %768 = vmatprep.subr.bf16.mxu0 0
      %769 = vmatpush1.bf16.msra.mxu0 %v672
      %770 = vmatprep.subr.bf16.mxu0 0
      %771 = vmatpush1.bf16.msra.mxu0 %v669
      %772 = vmatprep.subr.bf16.mxu0 0
      %773 = vmatpush2.bf16.msra.mxu0 0
      %774 = vmatprep.subr.bf16.mxu0 0
      %775 = vmatpush2.bf16.msra.mxu0 0
      %776 = vmatprep.subr.bf16.mxu0 0
      %777 = vmatpush2.bf16.msra.mxu0 0
      %778 = vmatprep.subr.bf16.mxu0 0
      %779 = vmatpush2.bf16.msra.mxu0 0
      %780 = vmatprep.subr.bf16.mxu0 0
      %781 = vmatpush2.bf16.msra.mxu0 0
      %782 = vmatprep.subr.bf16.mxu0 0
      %783 = vmatpush2.bf16.msra.mxu0 0
      %784 = vmatprep.subr.bf16.mxu0 0
      %785 = vmatpush2.bf16.msra.mxu0 0
      %786 = vmatprep.subr.bf16.mxu0 0
      %787 = vmatpush2.bf16.msra.mxu0 0
      %788 = vmatprep.mubr.bf16.mxu0 0
      %789 = vmatmul.mubr.bf16.gmra.mxu0 %v537
      %v790 = vpop.f32.mrf.mxu0
      %v791 = vadd.f32 %v583, %v790
      %v792 = vpop.f32.mrf.mxu0
      %v793 = vpop.f32.mrf.mxu0
      %v794 = vpop.f32.mrf.mxu0
      %795 = vdwg.mxu0
      %797 = vrot.lane.b32.xlu0 %v750, 112
      %v798 = vpop.permute.xlu0 %797
      %800 = vrot.lane.b32.xlu0 %v750, 96
      %v801 = vpop.permute.xlu0 %800
      %803 = vrot.lane.b32.xlu0 %v750, 80
      %v804 = vpop.permute.xlu0 %803
      %806 = vrot.lane.b32.xlu0 %v750, 64
      %v807 = vpop.permute.xlu0 %806
      %809 = vrot.lane.b32.xlu0 %v750, 48
      %v810 = vpop.permute.xlu0 %809
      %812 = vrot.lane.b32.xlu0 %v750, 32
      %v813 = vpop.permute.xlu0 %812
      %815 = vrot.lane.b32.xlu0 %v750, 16
      %v816 = vpop.permute.xlu0 %815
      %v818 = vcombine.low %v750, %v801
      %v819 = vcombine.high %v750, %v801
      %v821 = vunpack.c.l.s4 1983009808
      %v822 = vunpack.c.0.s8 %v821
      %v823 = vlaneseq
      %v824 = vshrl.u32 %v823, 7
      %v825 = vsub.s32 %v822, %v824
      %v826 = vrot.slane %v818, %v825
      %v828 = vunpack.c.l.s4 1983009808
      %v829 = vunpack.c.0.s8 %v828
      %v830 = vlaneseq
      %v831 = vshrl.u32 %v830, 7
      %v832 = vsub.s32 %v829, %v831
      %v833 = vrot.slane %v819, %v832
      %v834 = vcombine.low %v798, %v804
      %v835 = vcombine.high %v798, %v804
      %v837 = vunpack.c.l.s4 1983009808
      %v838 = vunpack.c.0.s8 %v837
      %v839 = vlaneseq
      %v840 = vshrl.u32 %v839, 7
      %v841 = vsub.s32 %v838, %v840
      %v842 = vrot.slane %v834, %v841
      %v844 = vunpack.c.l.s4 1983009808
      %v845 = vunpack.c.0.s8 %v844
      %v846 = vlaneseq
      %v847 = vshrl.u32 %v846, 7
      %v848 = vsub.s32 %v845, %v847
      %v849 = vrot.slane %v835, %v848
      %v850 = vcombine.low %v807, %v813
      %v851 = vcombine.high %v807, %v813
      %v853 = vunpack.c.l.s4 1983009808
      %v854 = vunpack.c.0.s8 %v853
      %v855 = vlaneseq
      %v856 = vshrl.u32 %v855, 7
      %v857 = vsub.s32 %v854, %v856
      %v858 = vrot.slane %v850, %v857
      %v860 = vunpack.c.l.s4 1983009808
      %v861 = vunpack.c.0.s8 %v860
      %v862 = vlaneseq
      %v863 = vshrl.u32 %v862, 7
      %v864 = vsub.s32 %v861, %v863
      %v865 = vrot.slane %v851, %v864
      %v866 = vcombine.low %v810, %v816
      %v867 = vcombine.high %v810, %v816
      %v869 = vunpack.c.l.s4 1983009808
      %v870 = vunpack.c.0.s8 %v869
      %v871 = vlaneseq
      %v872 = vshrl.u32 %v871, 7
      %v873 = vsub.s32 %v870, %v872
      %v874 = vrot.slane %v866, %v873
      %v876 = vunpack.c.l.s4 1983009808
      %v877 = vunpack.c.0.s8 %v876
      %v878 = vlaneseq
      %v879 = vshrl.u32 %v878, 7
      %v880 = vsub.s32 %v877, %v879
      %v881 = vrot.slane %v867, %v880
      %v882 = vcombine.low %v826, %v842
      %v883 = vcombine.high %v826, %v842
      %v885 = vunpack.c.l.s4 1934713408
      %v886 = vunpack.c.0.s8 %v885
      %v887 = vlaneseq
      %v888 = vshrl.u32 %v887, 7
      %v889 = vsub.s32 %v886, %v888
      %v890 = vrot.slane %v882, %v889
      %v892 = vunpack.c.l.s4 1934713408
      %v893 = vunpack.c.0.s8 %v892
      %v894 = vlaneseq
      %v895 = vshrl.u32 %v894, 7
      %v896 = vsub.s32 %v893, %v895
      %v897 = vrot.slane %v883, %v896
      %v898 = vcombine.low %v833, %v849
      %v899 = vcombine.high %v833, %v849
      %v901 = vunpack.c.l.s4 1934713408
      %v902 = vunpack.c.0.s8 %v901
      %v903 = vlaneseq
      %v904 = vshrl.u32 %v903, 7
      %v905 = vsub.s32 %v902, %v904
      %v906 = vrot.slane %v898, %v905
      %v908 = vunpack.c.l.s4 1934713408
      %v909 = vunpack.c.0.s8 %v908
      %v910 = vlaneseq
      %v911 = vshrl.u32 %v910, 7
      %v912 = vsub.s32 %v909, %v911
      %v913 = vrot.slane %v899, %v912
      %v914 = vcombine.low %v858, %v874
      %v915 = vcombine.high %v858, %v874
      %v917 = vunpack.c.l.s4 1934713408
      %v918 = vunpack.c.0.s8 %v917
      %v919 = vlaneseq
      %v920 = vshrl.u32 %v919, 7
      %v921 = vsub.s32 %v918, %v920
      %v922 = vrot.slane %v914, %v921
      %v924 = vunpack.c.l.s4 1934713408
      %v925 = vunpack.c.0.s8 %v924
      %v926 = vlaneseq
      %v927 = vshrl.u32 %v926, 7
      %v928 = vsub.s32 %v925, %v927
      %v929 = vrot.slane %v915, %v928
      %v930 = vcombine.low %v865, %v881
      %v931 = vcombine.high %v865, %v881
      %v933 = vunpack.c.l.s4 1934713408
      %v934 = vunpack.c.0.s8 %v933
      %v935 = vlaneseq
      %v936 = vshrl.u32 %v935, 7
      %v937 = vsub.s32 %v934, %v936
      %v938 = vrot.slane %v930, %v937
      %v940 = vunpack.c.l.s4 1934713408
      %v941 = vunpack.c.0.s8 %v940
      %v942 = vlaneseq
      %v943 = vshrl.u32 %v942, 7
      %v944 = vsub.s32 %v941, %v943
      %v945 = vrot.slane %v931, %v944
      %v946 = vcombine.low %v890, %v922
      %v947 = vcombine.high %v890, %v922
      %v948 = vcombine.low %v897, %v929
      %v949 = vcombine.high %v897, %v929
      %v950 = vcombine.low %v906, %v938
      %v951 = vcombine.high %v906, %v938
      %v952 = vcombine.low %v913, %v945
      %v953 = vcombine.high %v913, %v945
      %v954 = vpack.c.bf16 %v946, %v946
      %v955 = vpack.c.bf16 %v947, %v947
      %v956 = vpack.c.bf16 %v948, %v948
      %v957 = vpack.c.bf16 %v949, %v949
      %v958 = vpack.c.bf16 %v950, %v950
      %v959 = vpack.c.bf16 %v951, %v951
      %v960 = vpack.c.bf16 %v952, %v952
      %v961 = vpack.c.bf16 %v953, %v953
      %963 = vrot.lane.b32.xlu0 %v752, 112
      %v964 = vpop.permute.xlu0 %963
      %966 = vrot.lane.b32.xlu0 %v752, 96
      %v967 = vpop.permute.xlu0 %966
      %969 = vrot.lane.b32.xlu0 %v752, 80
      %v970 = vpop.permute.xlu0 %969
      %972 = vrot.lane.b32.xlu0 %v752, 64
      %v973 = vpop.permute.xlu0 %972
      %975 = vrot.lane.b32.xlu0 %v752, 48
      %v976 = vpop.permute.xlu0 %975
      %978 = vrot.lane.b32.xlu0 %v752, 32
      %v979 = vpop.permute.xlu0 %978
      %981 = vrot.lane.b32.xlu0 %v752, 16
      %v982 = vpop.permute.xlu0 %981
      %v984 = vcombine.low %v752, %v967
      %v985 = vcombine.high %v752, %v967
      %v987 = vunpack.c.l.s4 1983009808
      %v988 = vunpack.c.0.s8 %v987
      %v989 = vlaneseq
      %v990 = vshrl.u32 %v989, 7
      %v991 = vsub.s32 %v988, %v990
      %v992 = vrot.slane %v984, %v991
      %v994 = vunpack.c.l.s4 1983009808
      %v995 = vunpack.c.0.s8 %v994
      %v996 = vlaneseq
      %v997 = vshrl.u32 %v996, 7
      %v998 = vsub.s32 %v995, %v997
      %v999 = vrot.slane %v985, %v998
      %v1000 = vcombine.low %v964, %v970
      %v1001 = vcombine.high %v964, %v970
      %v1003 = vunpack.c.l.s4 1983009808
      %v1004 = vunpack.c.0.s8 %v1003
      %v1005 = vlaneseq
      %v1006 = vshrl.u32 %v1005, 7
      %v1007 = vsub.s32 %v1004, %v1006
      %v1008 = vrot.slane %v1000, %v1007
      %v1010 = vunpack.c.l.s4 1983009808
      %v1011 = vunpack.c.0.s8 %v1010
      %v1012 = vlaneseq
      %v1013 = vshrl.u32 %v1012, 7
      %v1014 = vsub.s32 %v1011, %v1013
      %v1015 = vrot.slane %v1001, %v1014
      %v1016 = vcombine.low %v973, %v979
      %v1017 = vcombine.high %v973, %v979
      %v1019 = vunpack.c.l.s4 1983009808
      %v1020 = vunpack.c.0.s8 %v1019
      %v1021 = vlaneseq
      %v1022 = vshrl.u32 %v1021, 7
      %v1023 = vsub.s32 %v1020, %v1022
      %v1024 = vrot.slane %v1016, %v1023
      %v1026 = vunpack.c.l.s4 1983009808
      %v1027 = vunpack.c.0.s8 %v1026
      %v1028 = vlaneseq
      %v1029 = vshrl.u32 %v1028, 7
      %v1030 = vsub.s32 %v1027, %v1029
      %v1031 = vrot.slane %v1017, %v1030
      %v1032 = vcombine.low %v976, %v982
      %v1033 = vcombine.high %v976, %v982
      %v1035 = vunpack.c.l.s4 1983009808
      %v1036 = vunpack.c.0.s8 %v1035
      %v1037 = vlaneseq
      %v1038 = vshrl.u32 %v1037, 7
      %v1039 = vsub.s32 %v1036, %v1038
      %v1040 = vrot.slane %v1032, %v1039
      %v1042 = vunpack.c.l.s4 1983009808
      %v1043 = vunpack.c.0.s8 %v1042
      %v1044 = vlaneseq
      %v1045 = vshrl.u32 %v1044, 7
      %v1046 = vsub.s32 %v1043, %v1045
      %v1047 = vrot.slane %v1033, %v1046
      %v1048 = vcombine.low %v992, %v1008
      %v1049 = vcombine.high %v992, %v1008
      %v1051 = vunpack.c.l.s4 1934713408
      %v1052 = vunpack.c.0.s8 %v1051
      %v1053 = vlaneseq
      %v1054 = vshrl.u32 %v1053, 7
      %v1055 = vsub.s32 %v1052, %v1054
      %v1056 = vrot.slane %v1048, %v1055
      %v1058 = vunpack.c.l.s4 1934713408
      %v1059 = vunpack.c.0.s8 %v1058
      %v1060 = vlaneseq
      %v1061 = vshrl.u32 %v1060, 7
      %v1062 = vsub.s32 %v1059, %v1061
      %v1063 = vrot.slane %v1049, %v1062
      %v1064 = vcombine.low %v999, %v1015
      %v1065 = vcombine.high %v999, %v1015
      %v1067 = vunpack.c.l.s4 1934713408
      %v1068 = vunpack.c.0.s8 %v1067
      %v1069 = vlaneseq
      %v1070 = vshrl.u32 %v1069, 7
      %v1071 = vsub.s32 %v1068, %v1070
      %v1072 = vrot.slane %v1064, %v1071
      %v1074 = vunpack.c.l.s4 1934713408
      %v1075 = vunpack.c.0.s8 %v1074
      %v1076 = vlaneseq
      %v1077 = vshrl.u32 %v1076, 7
      %v1078 = vsub.s32 %v1075, %v1077
      %v1079 = vrot.slane %v1065, %v1078
      %v1080 = vcombine.low %v1024, %v1040
      %v1081 = vcombine.high %v1024, %v1040
      %v1083 = vunpack.c.l.s4 1934713408
      %v1084 = vunpack.c.0.s8 %v1083
      %v1085 = vlaneseq
      %v1086 = vshrl.u32 %v1085, 7
      %v1087 = vsub.s32 %v1084, %v1086
      %v1088 = vrot.slane %v1080, %v1087
      %v1090 = vunpack.c.l.s4 1934713408
      %v1091 = vunpack.c.0.s8 %v1090
      %v1092 = vlaneseq
      %v1093 = vshrl.u32 %v1092, 7
      %v1094 = vsub.s32 %v1091, %v1093
      %v1095 = vrot.slane %v1081, %v1094
      %v1096 = vcombine.low %v1031, %v1047
      %v1097 = vcombine.high %v1031, %v1047
      %v1099 = vunpack.c.l.s4 1934713408
      %v1100 = vunpack.c.0.s8 %v1099
      %v1101 = vlaneseq
      %v1102 = vshrl.u32 %v1101, 7
      %v1103 = vsub.s32 %v1100, %v1102
      %v1104 = vrot.slane %v1096, %v1103
      %v1106 = vunpack.c.l.s4 1934713408
      %v1107 = vunpack.c.0.s8 %v1106
      %v1108 = vlaneseq
      %v1109 = vshrl.u32 %v1108, 7
      %v1110 = vsub.s32 %v1107, %v1109
      %v1111 = vrot.slane %v1097, %v1110
      %v1112 = vcombine.low %v1056, %v1088
      %v1113 = vcombine.high %v1056, %v1088
      %v1114 = vcombine.low %v1063, %v1095
      %v1115 = vcombine.high %v1063, %v1095
      %v1116 = vcombine.low %v1072, %v1104
      %v1117 = vcombine.high %v1072, %v1104
      %v1118 = vcombine.low %v1079, %v1111
      %v1119 = vcombine.high %v1079, %v1111
      %v1120 = vpack.c.bf16 %v1112, %v1112
      %v1121 = vpack.c.bf16 %v1113, %v1113
      %v1122 = vpack.c.bf16 %v1114, %v1114
      %v1123 = vpack.c.bf16 %v1115, %v1115
      %v1124 = vpack.c.bf16 %v1116, %v1116
      %v1125 = vpack.c.bf16 %v1117, %v1117
      %v1126 = vpack.c.bf16 %v1118, %v1118
      %v1127 = vpack.c.bf16 %v1119, %v1119
      %1129 = vrot.lane.b32.xlu0 %v791, 112
      %v1130 = vpop.permute.xlu0 %1129
      %1132 = vrot.lane.b32.xlu0 %v791, 96
      %v1133 = vpop.permute.xlu0 %1132
      %1135 = vrot.lane.b32.xlu0 %v791, 80
      %v1136 = vpop.permute.xlu0 %1135
      %1138 = vrot.lane.b32.xlu0 %v791, 64
      %v1139 = vpop.permute.xlu0 %1138
      %1141 = vrot.lane.b32.xlu0 %v791, 48
      %v1142 = vpop.permute.xlu0 %1141
      %1144 = vrot.lane.b32.xlu0 %v791, 32
      %v1145 = vpop.permute.xlu0 %1144
      %1147 = vrot.lane.b32.xlu0 %v791, 16
      %v1148 = vpop.permute.xlu0 %1147
      %v1150 = vcombine.low %v791, %v1133
      %v1151 = vcombine.high %v791, %v1133
      %v1153 = vunpack.c.l.s4 1983009808
      %v1154 = vunpack.c.0.s8 %v1153
      %v1155 = vlaneseq
      %v1156 = vshrl.u32 %v1155, 7
      %v1157 = vsub.s32 %v1154, %v1156
      %v1158 = vrot.slane %v1150, %v1157
      %v1160 = vunpack.c.l.s4 1983009808
      %v1161 = vunpack.c.0.s8 %v1160
      %v1162 = vlaneseq
      %v1163 = vshrl.u32 %v1162, 7
      %v1164 = vsub.s32 %v1161, %v1163
      %v1165 = vrot.slane %v1151, %v1164
      %v1166 = vcombine.low %v1130, %v1136
      %v1167 = vcombine.high %v1130, %v1136
      %v1169 = vunpack.c.l.s4 1983009808
      %v1170 = vunpack.c.0.s8 %v1169
      %v1171 = vlaneseq
      %v1172 = vshrl.u32 %v1171, 7
      %v1173 = vsub.s32 %v1170, %v1172
      %v1174 = vrot.slane %v1166, %v1173
      %v1176 = vunpack.c.l.s4 1983009808
      %v1177 = vunpack.c.0.s8 %v1176
      %v1178 = vlaneseq
      %v1179 = vshrl.u32 %v1178, 7
      %v1180 = vsub.s32 %v1177, %v1179
      %v1181 = vrot.slane %v1167, %v1180
      %v1182 = vcombine.low %v1139, %v1145
      %v1183 = vcombine.high %v1139, %v1145
      %v1185 = vunpack.c.l.s4 1983009808
      %v1186 = vunpack.c.0.s8 %v1185
      %v1187 = vlaneseq
      %v1188 = vshrl.u32 %v1187, 7
      %v1189 = vsub.s32 %v1186, %v1188
      %v1190 = vrot.slane %v1182, %v1189
      %v1192 = vunpack.c.l.s4 1983009808
      %v1193 = vunpack.c.0.s8 %v1192
      %v1194 = vlaneseq
      %v1195 = vshrl.u32 %v1194, 7
      %v1196 = vsub.s32 %v1193, %v1195
      %v1197 = vrot.slane %v1183, %v1196
      %v1198 = vcombine.low %v1142, %v1148
      %v1199 = vcombine.high %v1142, %v1148
      %v1201 = vunpack.c.l.s4 1983009808
      %v1202 = vunpack.c.0.s8 %v1201
      %v1203 = vlaneseq
      %v1204 = vshrl.u32 %v1203, 7
      %v1205 = vsub.s32 %v1202, %v1204
      %v1206 = vrot.slane %v1198, %v1205
      %v1208 = vunpack.c.l.s4 1983009808
      %v1209 = vunpack.c.0.s8 %v1208
      %v1210 = vlaneseq
      %v1211 = vshrl.u32 %v1210, 7
      %v1212 = vsub.s32 %v1209, %v1211
      %v1213 = vrot.slane %v1199, %v1212
      %v1214 = vcombine.low %v1158, %v1174
      %v1215 = vcombine.high %v1158, %v1174
      %v1217 = vunpack.c.l.s4 1934713408
      %v1218 = vunpack.c.0.s8 %v1217
      %v1219 = vlaneseq
      %v1220 = vshrl.u32 %v1219, 7
      %v1221 = vsub.s32 %v1218, %v1220
      %v1222 = vrot.slane %v1214, %v1221
      %v1224 = vunpack.c.l.s4 1934713408
      %v1225 = vunpack.c.0.s8 %v1224
      %v1226 = vlaneseq
      %v1227 = vshrl.u32 %v1226, 7
      %v1228 = vsub.s32 %v1225, %v1227
      %v1229 = vrot.slane %v1215, %v1228
      %v1230 = vcombine.low %v1165, %v1181
      %v1231 = vcombine.high %v1165, %v1181
      %v1233 = vunpack.c.l.s4 1934713408
      %v1234 = vunpack.c.0.s8 %v1233
      %v1235 = vlaneseq
      %v1236 = vshrl.u32 %v1235, 7
      %v1237 = vsub.s32 %v1234, %v1236
      %v1238 = vrot.slane %v1230, %v1237
      %v1240 = vunpack.c.l.s4 1934713408
      %v1241 = vunpack.c.0.s8 %v1240
      %v1242 = vlaneseq
      %v1243 = vshrl.u32 %v1242, 7
      %v1244 = vsub.s32 %v1241, %v1243
      %v1245 = vrot.slane %v1231, %v1244
      %v1246 = vcombine.low %v1190, %v1206
      %v1247 = vcombine.high %v1190, %v1206
      %v1249 = vunpack.c.l.s4 1934713408
      %v1250 = vunpack.c.0.s8 %v1249
      %v1251 = vlaneseq
      %v1252 = vshrl.u32 %v1251, 7
      %v1253 = vsub.s32 %v1250, %v1252
      %v1254 = vrot.slane %v1246, %v1253
      %v1256 = vunpack.c.l.s4 1934713408
      %v1257 = vunpack.c.0.s8 %v1256
      %v1258 = vlaneseq
      %v1259 = vshrl.u32 %v1258, 7
      %v1260 = vsub.s32 %v1257, %v1259
      %v1261 = vrot.slane %v1247, %v1260
      %v1262 = vcombine.low %v1197, %v1213
      %v1263 = vcombine.high %v1197, %v1213
      %v1265 = vunpack.c.l.s4 1934713408
      %v1266 = vunpack.c.0.s8 %v1265
      %v1267 = vlaneseq
      %v1268 = vshrl.u32 %v1267, 7
      %v1269 = vsub.s32 %v1266, %v1268
      %v1270 = vrot.slane %v1262, %v1269
      %v1272 = vunpack.c.l.s4 1934713408
      %v1273 = vunpack.c.0.s8 %v1272
      %v1274 = vlaneseq
      %v1275 = vshrl.u32 %v1274, 7
      %v1276 = vsub.s32 %v1273, %v1275
      %v1277 = vrot.slane %v1263, %v1276
      %v1278 = vcombine.low %v1222, %v1254
      %v1279 = vcombine.high %v1222, %v1254
      %v1280 = vcombine.low %v1229, %v1261
      %v1281 = vcombine.high %v1229, %v1261
      %v1282 = vcombine.low %v1238, %v1270
      %v1283 = vcombine.high %v1238, %v1270
      %v1284 = vcombine.low %v1245, %v1277
      %v1285 = vcombine.high %v1245, %v1277
      %v1286 = vpack.c.bf16 %v1278, %v1278
      %v1287 = vpack.c.bf16 %v1279, %v1279
      %v1288 = vpack.c.bf16 %v1280, %v1280
      %v1289 = vpack.c.bf16 %v1281, %v1281
      %v1290 = vpack.c.bf16 %v1282, %v1282
      %v1291 = vpack.c.bf16 %v1283, %v1283
      %v1292 = vpack.c.bf16 %v1284, %v1284
      %v1293 = vpack.c.bf16 %v1285, %v1285
      %vm1294 = vcmask 130048
      %v1296 = vsel %vm1294, %v954, 0
      %v1299 = vsel %vm1294, %v1120, 0
      %1301 = vmatprep.subr.bf16.mxu0 0
      %1302 = vmatpush1.bf16.xpose.msra.mxu0 0
      %1303 = vmatprep.subr.bf16.mxu0 0
      %1304 = vmatpush1.bf16.xpose.msra.mxu0 0
      %1305 = vmatprep.subr.bf16.mxu0 0
      %1306 = vmatpush1.bf16.xpose.msra.mxu0 0
      %1307 = vmatprep.subr.bf16.mxu0 0
      %1308 = vmatpush1.bf16.xpose.msra.mxu0 0
      %1309 = vmatprep.subr.bf16.mxu0 0
      %1310 = vmatpush1.bf16.xpose.msra.mxu0 0
      %1311 = vmatprep.subr.bf16.mxu0 0
      %1312 = vmatpush1.bf16.xpose.msra.mxu0 0
      %1313 = vmatprep.subr.bf16.mxu0 0
      %1314 = vmatpush1.bf16.xpose.msra.mxu0 0
      %1315 = vmatprep.subr.bf16.mxu0 0
      %1316 = vmatpush1.bf16.xpose.msra.mxu0 %v1299
      %1317 = vmatprep.subr.bf16.mxu0 0
      %1318 = vmatpush2.bf16.xpose.msra.mxu0 0
      %1319 = vmatprep.subr.bf16.mxu0 0
      %1320 = vmatpush2.bf16.xpose.msra.mxu0 0
      %1321 = vmatprep.subr.bf16.mxu0 0
      %1322 = vmatpush2.bf16.xpose.msra.mxu0 0
      %1323 = vmatprep.subr.bf16.mxu0 0
      %1324 = vmatpush2.bf16.xpose.msra.mxu0 0
      %1325 = vmatprep.subr.bf16.mxu0 0
      %1326 = vmatpush2.bf16.xpose.msra.mxu0 0
      %1327 = vmatprep.subr.bf16.mxu0 0
      %1328 = vmatpush2.bf16.xpose.msra.mxu0 0
      %1329 = vmatprep.subr.bf16.mxu0 0
      %1330 = vmatpush2.bf16.xpose.msra.mxu0 0
      %1331 = vmatprep.subr.bf16.mxu0 0
      %1332 = vmatpush2.bf16.xpose.msra.mxu0 0
      %1333 = vmatprep.mubr.bf16.mxu0 0
      %1334 = vmatmul.mubr.bf16.gmra.mxu0 %v1296
      %v1335 = vpop.f32.mrf.mxu0
      %v1336 = vadd.f32 0.0, %v1335
      %v1337 = vpop.f32.mrf.mxu0
      %v1338 = vpop.f32.mrf.mxu0
      %v1339 = vpop.f32.mrf.mxu0
      %1340 = vdwg.mxu0
      %v1342 = vsel %vm1294, %v955, 0
      %v1345 = vsel %vm1294, %v1121, 0
      %1347 = vmatprep.subr.bf16.mxu0 0
      %1348 = vmatpush1.bf16.xpose.msra.mxu0 0
      %1349 = vmatprep.subr.bf16.mxu0 0
      %1350 = vmatpush1.bf16.xpose.msra.mxu0 0
      %1351 = vmatprep.subr.bf16.mxu0 0
      %1352 = vmatpush1.bf16.xpose.msra.mxu0 0
      %1353 = vmatprep.subr.bf16.mxu0 0
      %1354 = vmatpush1.bf16.xpose.msra.mxu0 0
      %1355 = vmatprep.subr.bf16.mxu0 0
      %1356 = vmatpush1.bf16.xpose.msra.mxu0 0
      %1357 = vmatprep.subr.bf16.mxu0 0
      %1358 = vmatpush1.bf16.xpose.msra.mxu0 0
      %1359 = vmatprep.subr.bf16.mxu0 0
      %1360 = vmatpush1.bf16.xpose.msra.mxu0 0
      %1361 = vmatprep.subr.bf16.mxu0 0
      %1362 = vmatpush1.bf16.xpose.msra.mxu0 %v1345
      %1363 = vmatprep.subr.bf16.mxu0 0
      %1364 = vmatpush2.bf16.xpose.msra.mxu0 0
      %1365 = vmatprep.subr.bf16.mxu0 0
      %1366 = vmatpush2.bf16.xpose.msra.mxu0 0
      %1367 = vmatprep.subr.bf16.mxu0 0
      %1368 = vmatpush2.bf16.xpose.msra.mxu0 0
      %1369 = vmatprep.subr.bf16.mxu0 0
      %1370 = vmatpush2.bf16.xpose.msra.mxu0 0
      %1371 = vmatprep.subr.bf16.mxu0 0
      %1372 = vmatpush2.bf16.xpose.msra.mxu0 0
      %1373 = vmatprep.subr.bf16.mxu0 0
      %1374 = vmatpush2.bf16.xpose.msra.mxu0 0
      %1375 = vmatprep.subr.bf16.mxu0 0
      %1376 = vmatpush2.bf16.xpose.msra.mxu0 0
      %1377 = vmatprep.subr.bf16.mxu0 0
      %1378 = vmatpush2.bf16.xpose.msra.mxu0 0
      %1379 = vmatprep.mubr.bf16.mxu0 0
      %1380 = vmatmul.mubr.bf16.gmra.mxu0 %v1342
      %v1381 = vpop.f32.mrf.mxu0
      %v1382 = vadd.f32 0.0, %v1381
      %v1383 = vpop.f32.mrf.mxu0
      %v1384 = vpop.f32.mrf.mxu0
      %v1385 = vpop.f32.mrf.mxu0
      %1386 = vdwg.mxu0
      %v1388 = vsel %vm1294, %v956, 0
      %v1391 = vsel %vm1294, %v1122, 0
      %1393 = vmatprep.subr.bf16.mxu0 0
      %1394 = vmatpush1.bf16.xpose.msra.mxu0 0
      %1395 = vmatprep.subr.bf16.mxu0 0
      %1396 = vmatpush1.bf16.xpose.msra.mxu0 0
      %1397 = vmatprep.subr.bf16.mxu0 0
      %1398 = vmatpush1.bf16.xpose.msra.mxu0 0
      %1399 = vmatprep.subr.bf16.mxu0 0
      %1400 = vmatpush1.bf16.xpose.msra.mxu0 0
      %1401 = vmatprep.subr.bf16.mxu0 0
      %1402 = vmatpush1.bf16.xpose.msra.mxu0 0
      %1403 = vmatprep.subr.bf16.mxu0 0
      %1404 = vmatpush1.bf16.xpose.msra.mxu0 0
      %1405 = vmatprep.subr.bf16.mxu0 0
      %1406 = vmatpush1.bf16.xpose.msra.mxu0 0
      %1407 = vmatprep.subr.bf16.mxu0 0
      %1408 = vmatpush1.bf16.xpose.msra.mxu0 %v1391
      %1409 = vmatprep.subr.bf16.mxu0 0
      %1410 = vmatpush2.bf16.xpose.msra.mxu0 0
      %1411 = vmatprep.subr.bf16.mxu0 0
      %1412 = vmatpush2.bf16.xpose.msra.mxu0 0
      %1413 = vmatprep.subr.bf16.mxu0 0
      %1414 = vmatpush2.bf16.xpose.msra.mxu0 0
      %1415 = vmatprep.subr.bf16.mxu0 0
      %1416 = vmatpush2.bf16.xpose.msra.mxu0 0
      %1417 = vmatprep.subr.bf16.mxu0 0
      %1418 = vmatpush2.bf16.xpose.msra.mxu0 0
      %1419 = vmatprep.subr.bf16.mxu0 0
      %1420 = vmatpush2.bf16.xpose.msra.mxu0 0
      %1421 = vmatprep.subr.bf16.mxu0 0
      %1422 = vmatpush2.bf16.xpose.msra.mxu0 0
      %1423 = vmatprep.subr.bf16.mxu0 0
      %1424 = vmatpush2.bf16.xpose.msra.mxu0 0
      %1425 = vmatprep.mubr.bf16.mxu0 0
      %1426 = vmatmul.mubr.bf16.gmra.mxu0 %v1388
      %v1427 = vpop.f32.mrf.mxu0
      %v1428 = vadd.f32 0.0, %v1427
      %v1429 = vpop.f32.mrf.mxu0
      %v1430 = vpop.f32.mrf.mxu0
      %v1431 = vpop.f32.mrf.mxu0
      %1432 = vdwg.mxu0
      %v1434 = vsel %vm1294, %v957, 0
      %v1437 = vsel %vm1294, %v1123, 0
      %1439 = vmatprep.subr.bf16.mxu0 0
      %1440 = vmatpush1.bf16.xpose.msra.mxu0 0
      %1441 = vmatprep.subr.bf16.mxu0 0
      %1442 = vmatpush1.bf16.xpose.msra.mxu0 0
      %1443 = vmatprep.subr.bf16.mxu0 0
      %1444 = vmatpush1.bf16.xpose.msra.mxu0 0
      %1445 = vmatprep.subr.bf16.mxu0 0
      %1446 = vmatpush1.bf16.xpose.msra.mxu0 0
      %1447 = vmatprep.subr.bf16.mxu0 0
      %1448 = vmatpush1.bf16.xpose.msra.mxu0 0
      %1449 = vmatprep.subr.bf16.mxu0 0
      %1450 = vmatpush1.bf16.xpose.msra.mxu0 0
      %1451 = vmatprep.subr.bf16.mxu0 0
      %1452 = vmatpush1.bf16.xpose.msra.mxu0 0
      %1453 = vmatprep.subr.bf16.mxu0 0
      %1454 = vmatpush1.bf16.xpose.msra.mxu0 %v1437
      %1455 = vmatprep.subr.bf16.mxu0 0
      %1456 = vmatpush2.bf16.xpose.msra.mxu0 0
      %1457 = vmatprep.subr.bf16.mxu0 0
      %1458 = vmatpush2.bf16.xpose.msra.mxu0 0
      %1459 = vmatprep.subr.bf16.mxu0 0
      %1460 = vmatpush2.bf16.xpose.msra.mxu0 0
      %1461 = vmatprep.subr.bf16.mxu0 0
      %1462 = vmatpush2.bf16.xpose.msra.mxu0 0
      %1463 = vmatprep.subr.bf16.mxu0 0
      %1464 = vmatpush2.bf16.xpose.msra.mxu0 0
      %1465 = vmatprep.subr.bf16.mxu0 0
      %1466 = vmatpush2.bf16.xpose.msra.mxu0 0
      %1467 = vmatprep.subr.bf16.mxu0 0
      %1468 = vmatpush2.bf16.xpose.msra.mxu0 0
      %1469 = vmatprep.subr.bf16.mxu0 0
      %1470 = vmatpush2.bf16.xpose.msra.mxu0 0
      %1471 = vmatprep.mubr.bf16.mxu0 0
      %1472 = vmatmul.mubr.bf16.gmra.mxu0 %v1434
      %v1473 = vpop.f32.mrf.mxu0
      %v1474 = vadd.f32 0.0, %v1473
      %v1475 = vpop.f32.mrf.mxu0
      %v1476 = vpop.f32.mrf.mxu0
      %v1477 = vpop.f32.mrf.mxu0
      %1478 = vdwg.mxu0
      %v1480 = vsel %vm1294, %v958, 0
      %v1483 = vsel %vm1294, %v1124, 0
      %1485 = vmatprep.subr.bf16.mxu0 0
      %1486 = vmatpush1.bf16.xpose.msra.mxu0 0
      %1487 = vmatprep.subr.bf16.mxu0 0
      %1488 = vmatpush1.bf16.xpose.msra.mxu0 0
      %1489 = vmatprep.subr.bf16.mxu0 0
      %1490 = vmatpush1.bf16.xpose.msra.mxu0 0
      %1491 = vmatprep.subr.bf16.mxu0 0
      %1492 = vmatpush1.bf16.xpose.msra.mxu0 0
      %1493 = vmatprep.subr.bf16.mxu0 0
      %1494 = vmatpush1.bf16.xpose.msra.mxu0 0
      %1495 = vmatprep.subr.bf16.mxu0 0
      %1496 = vmatpush1.bf16.xpose.msra.mxu0 0
      %1497 = vmatprep.subr.bf16.mxu0 0
      %1498 = vmatpush1.bf16.xpose.msra.mxu0 0
      %1499 = vmatprep.subr.bf16.mxu0 0
      %1500 = vmatpush1.bf16.xpose.msra.mxu0 %v1483
      %1501 = vmatprep.subr.bf16.mxu0 0
      %1502 = vmatpush2.bf16.xpose.msra.mxu0 0
      %1503 = vmatprep.subr.bf16.mxu0 0
      %1504 = vmatpush2.bf16.xpose.msra.mxu0 0
      %1505 = vmatprep.subr.bf16.mxu0 0
      %1506 = vmatpush2.bf16.xpose.msra.mxu0 0
      %1507 = vmatprep.subr.bf16.mxu0 0
      %1508 = vmatpush2.bf16.xpose.msra.mxu0 0
      %1509 = vmatprep.subr.bf16.mxu0 0
      %1510 = vmatpush2.bf16.xpose.msra.mxu0 0
      %1511 = vmatprep.subr.bf16.mxu0 0
      %1512 = vmatpush2.bf16.xpose.msra.mxu0 0
      %1513 = vmatprep.subr.bf16.mxu0 0
      %1514 = vmatpush2.bf16.xpose.msra.mxu0 0
      %1515 = vmatprep.subr.bf16.mxu0 0
      %1516 = vmatpush2.bf16.xpose.msra.mxu0 0
      %1517 = vmatprep.mubr.bf16.mxu0 0
      %1518 = vmatmul.mubr.bf16.gmra.mxu0 %v1480
      %v1519 = vpop.f32.mrf.mxu0
      %v1520 = vadd.f32 0.0, %v1519
      %v1521 = vpop.f32.mrf.mxu0
      %v1522 = vpop.f32.mrf.mxu0
      %v1523 = vpop.f32.mrf.mxu0
      %1524 = vdwg.mxu0
      %v1526 = vsel %vm1294, %v959, 0
      %v1529 = vsel %vm1294, %v1125, 0
      %1531 = vmatprep.subr.bf16.mxu0 0
      %1532 = vmatpush1.bf16.xpose.msra.mxu0 0
      %1533 = vmatprep.subr.bf16.mxu0 0
      %1534 = vmatpush1.bf16.xpose.msra.mxu0 0
      %1535 = vmatprep.subr.bf16.mxu0 0
      %1536 = vmatpush1.bf16.xpose.msra.mxu0 0
      %1537 = vmatprep.subr.bf16.mxu0 0
      %1538 = vmatpush1.bf16.xpose.msra.mxu0 0
      %1539 = vmatprep.subr.bf16.mxu0 0
      %1540 = vmatpush1.bf16.xpose.msra.mxu0 0
      %1541 = vmatprep.subr.bf16.mxu0 0
      %1542 = vmatpush1.bf16.xpose.msra.mxu0 0
      %1543 = vmatprep.subr.bf16.mxu0 0
      %1544 = vmatpush1.bf16.xpose.msra.mxu0 0
      %1545 = vmatprep.subr.bf16.mxu0 0
      %1546 = vmatpush1.bf16.xpose.msra.mxu0 %v1529
      %1547 = vmatprep.subr.bf16.mxu0 0
      %1548 = vmatpush2.bf16.xpose.msra.mxu0 0
      %1549 = vmatprep.subr.bf16.mxu0 0
      %1550 = vmatpush2.bf16.xpose.msra.mxu0 0
      %1551 = vmatprep.subr.bf16.mxu0 0
      %1552 = vmatpush2.bf16.xpose.msra.mxu0 0
      %1553 = vmatprep.subr.bf16.mxu0 0
      %1554 = vmatpush2.bf16.xpose.msra.mxu0 0
      %1555 = vmatprep.subr.bf16.mxu0 0
      %1556 = vmatpush2.bf16.xpose.msra.mxu0 0
      %1557 = vmatprep.subr.bf16.mxu0 0
      %1558 = vmatpush2.bf16.xpose.msra.mxu0 0
      %1559 = vmatprep.subr.bf16.mxu0 0
      %1560 = vmatpush2.bf16.xpose.msra.mxu0 0
      %1561 = vmatprep.subr.bf16.mxu0 0
      %1562 = vmatpush2.bf16.xpose.msra.mxu0 0
      %1563 = vmatprep.mubr.bf16.mxu0 0
      %1564 = vmatmul.mubr.bf16.gmra.mxu0 %v1526
      %v1565 = vpop.f32.mrf.mxu0
      %v1566 = vadd.f32 0.0, %v1565
      %v1567 = vpop.f32.mrf.mxu0
      %v1568 = vpop.f32.mrf.mxu0
      %v1569 = vpop.f32.mrf.mxu0
      %1570 = vdwg.mxu0
      %v1572 = vsel %vm1294, %v960, 0
      %v1575 = vsel %vm1294, %v1126, 0
      %1577 = vmatprep.subr.bf16.mxu0 0
      %1578 = vmatpush1.bf16.xpose.msra.mxu0 0
      %1579 = vmatprep.subr.bf16.mxu0 0
      %1580 = vmatpush1.bf16.xpose.msra.mxu0 0
      %1581 = vmatprep.subr.bf16.mxu0 0
      %1582 = vmatpush1.bf16.xpose.msra.mxu0 0
      %1583 = vmatprep.subr.bf16.mxu0 0
      %1584 = vmatpush1.bf16.xpose.msra.mxu0 0
      %1585 = vmatprep.subr.bf16.mxu0 0
      %1586 = vmatpush1.bf16.xpose.msra.mxu0 0
      %1587 = vmatprep.subr.bf16.mxu0 0
      %1588 = vmatpush1.bf16.xpose.msra.mxu0 0
      %1589 = vmatprep.subr.bf16.mxu0 0
      %1590 = vmatpush1.bf16.xpose.msra.mxu0 0
      %1591 = vmatprep.subr.bf16.mxu0 0
      %1592 = vmatpush1.bf16.xpose.msra.mxu0 %v1575
      %1593 = vmatprep.subr.bf16.mxu0 0
      %1594 = vmatpush2.bf16.xpose.msra.mxu0 0
      %1595 = vmatprep.subr.bf16.mxu0 0
      %1596 = vmatpush2.bf16.xpose.msra.mxu0 0
      %1597 = vmatprep.subr.bf16.mxu0 0
      %1598 = vmatpush2.bf16.xpose.msra.mxu0 0
      %1599 = vmatprep.subr.bf16.mxu0 0
      %1600 = vmatpush2.bf16.xpose.msra.mxu0 0
      %1601 = vmatprep.subr.bf16.mxu0 0
      %1602 = vmatpush2.bf16.xpose.msra.mxu0 0
      %1603 = vmatprep.subr.bf16.mxu0 0
      %1604 = vmatpush2.bf16.xpose.msra.mxu0 0
      %1605 = vmatprep.subr.bf16.mxu0 0
      %1606 = vmatpush2.bf16.xpose.msra.mxu0 0
      %1607 = vmatprep.subr.bf16.mxu0 0
      %1608 = vmatpush2.bf16.xpose.msra.mxu0 0
      %1609 = vmatprep.mubr.bf16.mxu0 0
      %1610 = vmatmul.mubr.bf16.gmra.mxu0 %v1572
      %v1611 = vpop.f32.mrf.mxu0
      %v1612 = vadd.f32 0.0, %v1611
      %v1613 = vpop.f32.mrf.mxu0
      %v1614 = vpop.f32.mrf.mxu0
      %v1615 = vpop.f32.mrf.mxu0
      %1616 = vdwg.mxu0
      %v1618 = vsel %vm1294, %v961, 0
      %v1621 = vsel %vm1294, %v1127, 0
      %1623 = vmatprep.subr.bf16.mxu0 0
      %1624 = vmatpush1.bf16.xpose.msra.mxu0 0
      %1625 = vmatprep.subr.bf16.mxu0 0
      %1626 = vmatpush1.bf16.xpose.msra.mxu0 0
      %1627 = vmatprep.subr.bf16.mxu0 0
      %1628 = vmatpush1.bf16.xpose.msra.mxu0 0
      %1629 = vmatprep.subr.bf16.mxu0 0
      %1630 = vmatpush1.bf16.xpose.msra.mxu0 0
      %1631 = vmatprep.subr.bf16.mxu0 0
      %1632 = vmatpush1.bf16.xpose.msra.mxu0 0
      %1633 = vmatprep.subr.bf16.mxu0 0
      %1634 = vmatpush1.bf16.xpose.msra.mxu0 0
      %1635 = vmatprep.subr.bf16.mxu0 0
      %1636 = vmatpush1.bf16.xpose.msra.mxu0 0
      %1637 = vmatprep.subr.bf16.mxu0 0
      %1638 = vmatpush1.bf16.xpose.msra.mxu0 %v1621
      %1639 = vmatprep.subr.bf16.mxu0 0
      %1640 = vmatpush2.bf16.xpose.msra.mxu0 0
      %1641 = vmatprep.subr.bf16.mxu0 0
      %1642 = vmatpush2.bf16.xpose.msra.mxu0 0
      %1643 = vmatprep.subr.bf16.mxu0 0
      %1644 = vmatpush2.bf16.xpose.msra.mxu0 0
      %1645 = vmatprep.subr.bf16.mxu0 0
      %1646 = vmatpush2.bf16.xpose.msra.mxu0 0
      %1647 = vmatprep.subr.bf16.mxu0 0
      %1648 = vmatpush2.bf16.xpose.msra.mxu0 0
      %1649 = vmatprep.subr.bf16.mxu0 0
      %1650 = vmatpush2.bf16.xpose.msra.mxu0 0
      %1651 = vmatprep.subr.bf16.mxu0 0
      %1652 = vmatpush2.bf16.xpose.msra.mxu0 0
      %1653 = vmatprep.subr.bf16.mxu0 0
      %1654 = vmatpush2.bf16.xpose.msra.mxu0 0
      %1655 = vmatprep.mubr.bf16.mxu0 0
      %1656 = vmatmul.mubr.bf16.gmra.mxu0 %v1618
      %v1657 = vpop.f32.mrf.mxu0
      %v1658 = vadd.f32 0.0, %v1657
      %v1659 = vpop.f32.mrf.mxu0
      %v1660 = vpop.f32.mrf.mxu0
      %v1661 = vpop.f32.mrf.mxu0
      %1662 = vdwg.mxu0
      %vm1663 = vcmask 64512
      %v1664 = vsel %vm1663, %v1336, -inf
      %1665 = vmax.xlane.f32.xlu0 %v1664
      %v1666 = vpop.xlane.xlu0 %1665
      %v1667 = vsel %vm1663, %v1382, -inf
      %1668 = vmax.xlane.f32.xlu0 %v1667
      %v1669 = vpop.xlane.xlu0 %1668
      %v1670 = vsel %vm1663, %v1428, -inf
      %1671 = vmax.xlane.f32.xlu0 %v1670
      %v1672 = vpop.xlane.xlu0 %1671
      %v1673 = vsel %vm1663, %v1474, -inf
      %1674 = vmax.xlane.f32.xlu0 %v1673
      %v1675 = vpop.xlane.xlu0 %1674
      %v1676 = vsel %vm1663, %v1520, -inf
      %1677 = vmax.xlane.f32.xlu0 %v1676
      %v1678 = vpop.xlane.xlu0 %1677
      %v1679 = vsel %vm1663, %v1566, -inf
      %1680 = vmax.xlane.f32.xlu0 %v1679
      %v1681 = vpop.xlane.xlu0 %1680
      %v1682 = vsel %vm1663, %v1612, -inf
      %1683 = vmax.xlane.f32.xlu0 %v1682
      %v1684 = vpop.xlane.xlu0 %1683
      %v1685 = vsel %vm1663, %v1658, -inf
      %1686 = vmax.xlane.f32.xlu0 %v1685
      %v1687 = vpop.xlane.xlu0 %1686
      %v1688 = vsub.f32 %v1336, %v1666
      %v1689 = vsub.f32 %v1382, %v1669
      %v1690 = vsub.f32 %v1428, %v1672
      %v1691 = vsub.f32 %v1474, %v1675
      %v1692 = vsub.f32 %v1520, %v1678
      %v1693 = vsub.f32 %v1566, %v1681
      %v1694 = vsub.f32 %v1612, %v1684
      %v1695 = vsub.f32 %v1658, %v1687
      %v1696 = vmul.f32 %v1688, 1.442695
      %v1697 = vpow.pop %v1696
      %v1698 = vmul.f32 %v1689, 1.442695
      %v1699 = vpow.pop %v1698
      %v1700 = vmul.f32 %v1690, 1.442695
      %v1701 = vpow.pop %v1700
      %v1702 = vmul.f32 %v1691, 1.442695
      %v1703 = vpow.pop %v1702
      %v1704 = vmul.f32 %v1692, 1.442695
      %v1705 = vpow.pop %v1704
      %v1706 = vmul.f32 %v1693, 1.442695
      %v1707 = vpow.pop %v1706
      %v1708 = vmul.f32 %v1694, 1.442695
      %v1709 = vpow.pop %v1708
      %v1710 = vmul.f32 %v1695, 1.442695
      %v1711 = vpow.pop %v1710
      %v1712 = vsel %vm1663, %v1697, 0.0
      %1713 = vadd.xlane.f32.xlu0 %v1712
      %v1714 = vpop.xlane.xlu0 %1713
      %v1715 = vsel %vm1663, %v1699, 0.0
      %1716 = vadd.xlane.f32.xlu0 %v1715
      %v1717 = vpop.xlane.xlu0 %1716
      %v1718 = vsel %vm1663, %v1701, 0.0
      %1719 = vadd.xlane.f32.xlu0 %v1718
      %v1720 = vpop.xlane.xlu0 %1719
      %v1721 = vsel %vm1663, %v1703, 0.0
      %1722 = vadd.xlane.f32.xlu0 %v1721
      %v1723 = vpop.xlane.xlu0 %1722
      %v1724 = vsel %vm1663, %v1705, 0.0
      %1725 = vadd.xlane.f32.xlu0 %v1724
      %v1726 = vpop.xlane.xlu0 %1725
      %v1727 = vsel %vm1663, %v1707, 0.0
      %1728 = vadd.xlane.f32.xlu0 %v1727
      %v1729 = vpop.xlane.xlu0 %1728
      %v1730 = vsel %vm1663, %v1709, 0.0
      %1731 = vadd.xlane.f32.xlu0 %v1730
      %v1732 = vpop.xlane.xlu0 %1731
      %v1733 = vsel %vm1663, %v1711, 0.0
      %1734 = vadd.xlane.f32.xlu0 %v1733
      %v1735 = vpop.xlane.xlu0 %1734
      %v1736 = vrcp.pop %v1714
      %v1737 = vrcp.pop %v1717
      %v1738 = vrcp.pop %v1720
      %v1739 = vrcp.pop %v1723
      %v1740 = vrcp.pop %v1726
      %v1741 = vrcp.pop %v1729
      %v1742 = vrcp.pop %v1732
      %v1743 = vrcp.pop %v1735
      %v1744 = vmul.f32 %v1697, %v1736
      %v1745 = vmul.f32 %v1699, %v1737
      %v1746 = vmul.f32 %v1701, %v1738
      %v1747 = vmul.f32 %v1703, %v1739
      %v1748 = vmul.f32 %v1705, %v1740
      %v1749 = vmul.f32 %v1707, %v1741
      %v1750 = vmul.f32 %v1709, %v1742
      %v1751 = vmul.f32 %v1711, %v1743
      %v1752 = vpack.c.bf16 %v1744, %v1744
      %v1753 = vpack.c.bf16 %v1745, %v1745
      %v1754 = vpack.c.bf16 %v1746, %v1746
      %v1755 = vpack.c.bf16 %v1747, %v1747
      %v1756 = vpack.c.bf16 %v1748, %v1748
      %v1757 = vpack.c.bf16 %v1749, %v1749
      %v1758 = vpack.c.bf16 %v1750, %v1750
      %v1759 = vpack.c.bf16 %v1751, %v1751
      %v1761 = vsel %vm1663, %v1752, 0
      %vm1763 = vcmask 1043456
      %v1765 = vsel %vm1763, %v1286, 0
      %1767 = vmatprep.subr.bf16.mxu0 0
      %1768 = vmatpush1.bf16.msra.mxu0 0
      %1769 = vmatprep.subr.bf16.mxu0 0
      %1770 = vmatpush1.bf16.msra.mxu0 0
      %1771 = vmatprep.subr.bf16.mxu0 0
      %1772 = vmatpush1.bf16.msra.mxu0 0
      %1773 = vmatprep.subr.bf16.mxu0 0
      %1774 = vmatpush1.bf16.msra.mxu0 0
      %1775 = vmatprep.subr.bf16.mxu0 0
      %1776 = vmatpush1.bf16.msra.mxu0 0
      %1777 = vmatprep.subr.bf16.mxu0 0
      %1778 = vmatpush1.bf16.msra.mxu0 0
      %1779 = vmatprep.subr.bf16.mxu0 0
      %1780 = vmatpush1.bf16.msra.mxu0 0
      %1781 = vmatprep.subr.bf16.mxu0 0
      %1782 = vmatpush1.bf16.msra.mxu0 %v1765
      %1783 = vmatprep.subr.bf16.mxu0 0
      %1784 = vmatpush2.bf16.msra.mxu0 0
      %1785 = vmatprep.subr.bf16.mxu0 0
      %1786 = vmatpush2.bf16.msra.mxu0 0
      %1787 = vmatprep.subr.bf16.mxu0 0
      %1788 = vmatpush2.bf16.msra.mxu0 0
      %1789 = vmatprep.subr.bf16.mxu0 0
      %1790 = vmatpush2.bf16.msra.mxu0 0
      %1791 = vmatprep.subr.bf16.mxu0 0
      %1792 = vmatpush2.bf16.msra.mxu0 0
      %1793 = vmatprep.subr.bf16.mxu0 0
      %1794 = vmatpush2.bf16.msra.mxu0 0
      %1795 = vmatprep.subr.bf16.mxu0 0
      %1796 = vmatpush2.bf16.msra.mxu0 0
      %1797 = vmatprep.subr.bf16.mxu0 0
      %1798 = vmatpush2.bf16.msra.mxu0 0
      %1799 = vmatprep.mubr.bf16.mxu0 0
      %1800 = vmatmul.mubr.bf16.gmra.mxu0 %v1761
      %v1801 = vpop.f32.mrf.mxu0
      %v1802 = vadd.f32 0.0, %v1801
      %v1803 = vpop.f32.mrf.mxu0
      %v1804 = vpop.f32.mrf.mxu0
      %v1805 = vpop.f32.mrf.mxu0
      %1806 = vdwg.mxu0
      %v1808 = vsel %vm1663, %v1753, 0
      %v1811 = vsel %vm1763, %v1287, 0
      %1813 = vmatprep.subr.bf16.mxu0 0
      %1814 = vmatpush1.bf16.msra.mxu0 0
      %1815 = vmatprep.subr.bf16.mxu0 0
      %1816 = vmatpush1.bf16.msra.mxu0 0
      %1817 = vmatprep.subr.bf16.mxu0 0
      %1818 = vmatpush1.bf16.msra.mxu0 0
      %1819 = vmatprep.subr.bf16.mxu0 0
      %1820 = vmatpush1.bf16.msra.mxu0 0
      %1821 = vmatprep.subr.bf16.mxu0 0
      %1822 = vmatpush1.bf16.msra.mxu0 0
      %1823 = vmatprep.subr.bf16.mxu0 0
      %1824 = vmatpush1.bf16.msra.mxu0 0
      %1825 = vmatprep.subr.bf16.mxu0 0
      %1826 = vmatpush1.bf16.msra.mxu0 0
      %1827 = vmatprep.subr.bf16.mxu0 0
      %1828 = vmatpush1.bf16.msra.mxu0 %v1811
      %1829 = vmatprep.subr.bf16.mxu0 0
      %1830 = vmatpush2.bf16.msra.mxu0 0
      %1831 = vmatprep.subr.bf16.mxu0 0
      %1832 = vmatpush2.bf16.msra.mxu0 0
      %1833 = vmatprep.subr.bf16.mxu0 0
      %1834 = vmatpush2.bf16.msra.mxu0 0
      %1835 = vmatprep.subr.bf16.mxu0 0
      %1836 = vmatpush2.bf16.msra.mxu0 0
      %1837 = vmatprep.subr.bf16.mxu0 0
      %1838 = vmatpush2.bf16.msra.mxu0 0
      %1839 = vmatprep.subr.bf16.mxu0 0
      %1840 = vmatpush2.bf16.msra.mxu0 0
      %1841 = vmatprep.subr.bf16.mxu0 0
      %1842 = vmatpush2.bf16.msra.mxu0 0
      %1843 = vmatprep.subr.bf16.mxu0 0
      %1844 = vmatpush2.bf16.msra.mxu0 0
      %1845 = vmatprep.mubr.bf16.mxu0 0
      %1846 = vmatmul.mubr.bf16.gmra.mxu0 %v1808
      %v1847 = vpop.f32.mrf.mxu0
      %v1848 = vadd.f32 0.0, %v1847
      %v1849 = vpop.f32.mrf.mxu0
      %v1850 = vpop.f32.mrf.mxu0
      %v1851 = vpop.f32.mrf.mxu0
      %1852 = vdwg.mxu0
      %v1854 = vsel %vm1663, %v1754, 0
      %v1857 = vsel %vm1763, %v1288, 0
      %1859 = vmatprep.subr.bf16.mxu0 0
      %1860 = vmatpush1.bf16.msra.mxu0 0
      %1861 = vmatprep.subr.bf16.mxu0 0
      %1862 = vmatpush1.bf16.msra.mxu0 0
      %1863 = vmatprep.subr.bf16.mxu0 0
      %1864 = vmatpush1.bf16.msra.mxu0 0
      %1865 = vmatprep.subr.bf16.mxu0 0
      %1866 = vmatpush1.bf16.msra.mxu0 0
      %1867 = vmatprep.subr.bf16.mxu0 0
      %1868 = vmatpush1.bf16.msra.mxu0 0
      %1869 = vmatprep.subr.bf16.mxu0 0
      %1870 = vmatpush1.bf16.msra.mxu0 0
      %1871 = vmatprep.subr.bf16.mxu0 0
      %1872 = vmatpush1.bf16.msra.mxu0 0
      %1873 = vmatprep.subr.bf16.mxu0 0
      %1874 = vmatpush1.bf16.msra.mxu0 %v1857
      %1875 = vmatprep.subr.bf16.mxu0 0
      %1876 = vmatpush2.bf16.msra.mxu0 0
      %1877 = vmatprep.subr.bf16.mxu0 0
      %1878 = vmatpush2.bf16.msra.mxu0 0
      %1879 = vmatprep.subr.bf16.mxu0 0
      %1880 = vmatpush2.bf16.msra.mxu0 0
      %1881 = vmatprep.subr.bf16.mxu0 0
      %1882 = vmatpush2.bf16.msra.mxu0 0
      %1883 = vmatprep.subr.bf16.mxu0 0
      %1884 = vmatpush2.bf16.msra.mxu0 0
      %1885 = vmatprep.subr.bf16.mxu0 0
      %1886 = vmatpush2.bf16.msra.mxu0 0
      %1887 = vmatprep.subr.bf16.mxu0 0
      %1888 = vmatpush2.bf16.msra.mxu0 0
      %1889 = vmatprep.subr.bf16.mxu0 0
      %1890 = vmatpush2.bf16.msra.mxu0 0
      %1891 = vmatprep.mubr.bf16.mxu0 0
      %1892 = vmatmul.mubr.bf16.gmra.mxu0 %v1854
      %v1893 = vpop.f32.mrf.mxu0
      %v1894 = vadd.f32 0.0, %v1893
      %v1895 = vpop.f32.mrf.mxu0
      %v1896 = vpop.f32.mrf.mxu0
      %v1897 = vpop.f32.mrf.mxu0
      %1898 = vdwg.mxu0
      %v1900 = vsel %vm1663, %v1755, 0
      %v1903 = vsel %vm1763, %v1289, 0
      %1905 = vmatprep.subr.bf16.mxu0 0
      %1906 = vmatpush1.bf16.msra.mxu0 0
      %1907 = vmatprep.subr.bf16.mxu0 0
      %1908 = vmatpush1.bf16.msra.mxu0 0
      %1909 = vmatprep.subr.bf16.mxu0 0
      %1910 = vmatpush1.bf16.msra.mxu0 0
      %1911 = vmatprep.subr.bf16.mxu0 0
      %1912 = vmatpush1.bf16.msra.mxu0 0
      %1913 = vmatprep.subr.bf16.mxu0 0
      %1914 = vmatpush1.bf16.msra.mxu0 0
      %1915 = vmatprep.subr.bf16.mxu0 0
      %1916 = vmatpush1.bf16.msra.mxu0 0
      %1917 = vmatprep.subr.bf16.mxu0 0
      %1918 = vmatpush1.bf16.msra.mxu0 0
      %1919 = vmatprep.subr.bf16.mxu0 0
      %1920 = vmatpush1.bf16.msra.mxu0 %v1903
      %1921 = vmatprep.subr.bf16.mxu0 0
      %1922 = vmatpush2.bf16.msra.mxu0 0
      %1923 = vmatprep.subr.bf16.mxu0 0
      %1924 = vmatpush2.bf16.msra.mxu0 0
      %1925 = vmatprep.subr.bf16.mxu0 0
      %1926 = vmatpush2.bf16.msra.mxu0 0
      %1927 = vmatprep.subr.bf16.mxu0 0
      %1928 = vmatpush2.bf16.msra.mxu0 0
      %1929 = vmatprep.subr.bf16.mxu0 0
      %1930 = vmatpush2.bf16.msra.mxu0 0
      %1931 = vmatprep.subr.bf16.mxu0 0
      %1932 = vmatpush2.bf16.msra.mxu0 0
      %1933 = vmatprep.subr.bf16.mxu0 0
      %1934 = vmatpush2.bf16.msra.mxu0 0
      %1935 = vmatprep.subr.bf16.mxu0 0
      %1936 = vmatpush2.bf16.msra.mxu0 0
      %1937 = vmatprep.mubr.bf16.mxu0 0
      %1938 = vmatmul.mubr.bf16.gmra.mxu0 %v1900
      %v1939 = vpop.f32.mrf.mxu0
      %v1940 = vadd.f32 0.0, %v1939
      %v1941 = vpop.f32.mrf.mxu0
      %v1942 = vpop.f32.mrf.mxu0
      %v1943 = vpop.f32.mrf.mxu0
      %1944 = vdwg.mxu0
      %v1946 = vsel %vm1663, %v1756, 0
      %v1949 = vsel %vm1763, %v1290, 0
      %1951 = vmatprep.subr.bf16.mxu0 0
      %1952 = vmatpush1.bf16.msra.mxu0 0
      %1953 = vmatprep.subr.bf16.mxu0 0
      %1954 = vmatpush1.bf16.msra.mxu0 0
      %1955 = vmatprep.subr.bf16.mxu0 0
      %1956 = vmatpush1.bf16.msra.mxu0 0
      %1957 = vmatprep.subr.bf16.mxu0 0
      %1958 = vmatpush1.bf16.msra.mxu0 0
      %1959 = vmatprep.subr.bf16.mxu0 0
      %1960 = vmatpush1.bf16.msra.mxu0 0
      %1961 = vmatprep.subr.bf16.mxu0 0
      %1962 = vmatpush1.bf16.msra.mxu0 0
      %1963 = vmatprep.subr.bf16.mxu0 0
      %1964 = vmatpush1.bf16.msra.mxu0 0
      %1965 = vmatprep.subr.bf16.mxu0 0
      %1966 = vmatpush1.bf16.msra.mxu0 %v1949
      %1967 = vmatprep.subr.bf16.mxu0 0
      %1968 = vmatpush2.bf16.msra.mxu0 0
      %1969 = vmatprep.subr.bf16.mxu0 0
      %1970 = vmatpush2.bf16.msra.mxu0 0
      %1971 = vmatprep.subr.bf16.mxu0 0
      %1972 = vmatpush2.bf16.msra.mxu0 0
      %1973 = vmatprep.subr.bf16.mxu0 0
      %1974 = vmatpush2.bf16.msra.mxu0 0
      %1975 = vmatprep.subr.bf16.mxu0 0
      %1976 = vmatpush2.bf16.msra.mxu0 0
      %1977 = vmatprep.subr.bf16.mxu0 0
      %1978 = vmatpush2.bf16.msra.mxu0 0
      %1979 = vmatprep.subr.bf16.mxu0 0
      %1980 = vmatpush2.bf16.msra.mxu0 0
      %1981 = vmatprep.subr.bf16.mxu0 0
      %1982 = vmatpush2.bf16.msra.mxu0 0
      %1983 = vmatprep.mubr.bf16.mxu0 0
      %1984 = vmatmul.mubr.bf16.gmra.mxu0 %v1946
      %v1985 = vpop.f32.mrf.mxu0
      %v1986 = vadd.f32 0.0, %v1985
      %v1987 = vpop.f32.mrf.mxu0
      %v1988 = vpop.f32.mrf.mxu0
      %v1989 = vpop.f32.mrf.mxu0
      %1990 = vdwg.mxu0
      %v1992 = vsel %vm1663, %v1757, 0
      %v1995 = vsel %vm1763, %v1291, 0
      %1997 = vmatprep.subr.bf16.mxu0 0
      %1998 = vmatpush1.bf16.msra.mxu0 0
      %1999 = vmatprep.subr.bf16.mxu0 0
      %2000 = vmatpush1.bf16.msra.mxu0 0
      %2001 = vmatprep.subr.bf16.mxu0 0
      %2002 = vmatpush1.bf16.msra.mxu0 0
      %2003 = vmatprep.subr.bf16.mxu0 0
      %2004 = vmatpush1.bf16.msra.mxu0 0
      %2005 = vmatprep.subr.bf16.mxu0 0
      %2006 = vmatpush1.bf16.msra.mxu0 0
      %2007 = vmatprep.subr.bf16.mxu0 0
      %2008 = vmatpush1.bf16.msra.mxu0 0
      %2009 = vmatprep.subr.bf16.mxu0 0
      %2010 = vmatpush1.bf16.msra.mxu0 0
      %2011 = vmatprep.subr.bf16.mxu0 0
      %2012 = vmatpush1.bf16.msra.mxu0 %v1995
      %2013 = vmatprep.subr.bf16.mxu0 0
      %2014 = vmatpush2.bf16.msra.mxu0 0
      %2015 = vmatprep.subr.bf16.mxu0 0
      %2016 = vmatpush2.bf16.msra.mxu0 0
      %2017 = vmatprep.subr.bf16.mxu0 0
      %2018 = vmatpush2.bf16.msra.mxu0 0
      %2019 = vmatprep.subr.bf16.mxu0 0
      %2020 = vmatpush2.bf16.msra.mxu0 0
      %2021 = vmatprep.subr.bf16.mxu0 0
      %2022 = vmatpush2.bf16.msra.mxu0 0
      %2023 = vmatprep.subr.bf16.mxu0 0
      %2024 = vmatpush2.bf16.msra.mxu0 0
      %2025 = vmatprep.subr.bf16.mxu0 0
      %2026 = vmatpush2.bf16.msra.mxu0 0
      %2027 = vmatprep.subr.bf16.mxu0 0
      %2028 = vmatpush2.bf16.msra.mxu0 0
      %2029 = vmatprep.mubr.bf16.mxu0 0
      %2030 = vmatmul.mubr.bf16.gmra.mxu0 %v1992
      %v2031 = vpop.f32.mrf.mxu0
      %v2032 = vadd.f32 0.0, %v2031
      %v2033 = vpop.f32.mrf.mxu0
      %v2034 = vpop.f32.mrf.mxu0
      %v2035 = vpop.f32.mrf.mxu0
      %2036 = vdwg.mxu0
      %v2038 = vsel %vm1663, %v1758, 0
      %v2041 = vsel %vm1763, %v1292, 0
      %2043 = vmatprep.subr.bf16.mxu0 0
      %2044 = vmatpush1.bf16.msra.mxu0 0
      %2045 = vmatprep.subr.bf16.mxu0 0
      %2046 = vmatpush1.bf16.msra.mxu0 0
      %2047 = vmatprep.subr.bf16.mxu0 0
      %2048 = vmatpush1.bf16.msra.mxu0 0
      %2049 = vmatprep.subr.bf16.mxu0 0
      %2050 = vmatpush1.bf16.msra.mxu0 0
      %2051 = vmatprep.subr.bf16.mxu0 0
      %2052 = vmatpush1.bf16.msra.mxu0 0
      %2053 = vmatprep.subr.bf16.mxu0 0
      %2054 = vmatpush1.bf16.msra.mxu0 0
      %2055 = vmatprep.subr.bf16.mxu0 0
      %2056 = vmatpush1.bf16.msra.mxu0 0
      %2057 = vmatprep.subr.bf16.mxu0 0
      %2058 = vmatpush1.bf16.msra.mxu0 %v2041
      %2059 = vmatprep.subr.bf16.mxu0 0
      %2060 = vmatpush2.bf16.msra.mxu0 0
      %2061 = vmatprep.subr.bf16.mxu0 0
      %2062 = vmatpush2.bf16.msra.mxu0 0
      %2063 = vmatprep.subr.bf16.mxu0 0
      %2064 = vmatpush2.bf16.msra.mxu0 0
      %2065 = vmatprep.subr.bf16.mxu0 0
      %2066 = vmatpush2.bf16.msra.mxu0 0
      %2067 = vmatprep.subr.bf16.mxu0 0
      %2068 = vmatpush2.bf16.msra.mxu0 0
      %2069 = vmatprep.subr.bf16.mxu0 0
      %2070 = vmatpush2.bf16.msra.mxu0 0
      %2071 = vmatprep.subr.bf16.mxu0 0
      %2072 = vmatpush2.bf16.msra.mxu0 0
      %2073 = vmatprep.subr.bf16.mxu0 0
      %2074 = vmatpush2.bf16.msra.mxu0 0
      %2075 = vmatprep.mubr.bf16.mxu0 0
      %2076 = vmatmul.mubr.bf16.gmra.mxu0 %v2038
      %v2077 = vpop.f32.mrf.mxu0
      %v2078 = vadd.f32 0.0, %v2077
      %v2079 = vpop.f32.mrf.mxu0
      %v2080 = vpop.f32.mrf.mxu0
      %v2081 = vpop.f32.mrf.mxu0
      %2082 = vdwg.mxu0
      %v2084 = vsel %vm1663, %v1759, 0
      %v2087 = vsel %vm1763, %v1293, 0
      %2089 = vmatprep.subr.bf16.mxu0 0
      %2090 = vmatpush1.bf16.msra.mxu0 0
      %2091 = vmatprep.subr.bf16.mxu0 0
      %2092 = vmatpush1.bf16.msra.mxu0 0
      %2093 = vmatprep.subr.bf16.mxu0 0
      %2094 = vmatpush1.bf16.msra.mxu0 0
      %2095 = vmatprep.subr.bf16.mxu0 0
      %2096 = vmatpush1.bf16.msra.mxu0 0
      %2097 = vmatprep.subr.bf16.mxu0 0
      %2098 = vmatpush1.bf16.msra.mxu0 0
      %2099 = vmatprep.subr.bf16.mxu0 0
      %2100 = vmatpush1.bf16.msra.mxu0 0
      %2101 = vmatprep.subr.bf16.mxu0 0
      %2102 = vmatpush1.bf16.msra.mxu0 0
      %2103 = vmatprep.subr.bf16.mxu0 0
      %2104 = vmatpush1.bf16.msra.mxu0 %v2087
      %2105 = vmatprep.subr.bf16.mxu0 0
      %2106 = vmatpush2.bf16.msra.mxu0 0
      %2107 = vmatprep.subr.bf16.mxu0 0
      %2108 = vmatpush2.bf16.msra.mxu0 0
      %2109 = vmatprep.subr.bf16.mxu0 0
      %2110 = vmatpush2.bf16.msra.mxu0 0
      %2111 = vmatprep.subr.bf16.mxu0 0
      %2112 = vmatpush2.bf16.msra.mxu0 0
      %2113 = vmatprep.subr.bf16.mxu0 0
      %2114 = vmatpush2.bf16.msra.mxu0 0
      %2115 = vmatprep.subr.bf16.mxu0 0
      %2116 = vmatpush2.bf16.msra.mxu0 0
      %2117 = vmatprep.subr.bf16.mxu0 0
      %2118 = vmatpush2.bf16.msra.mxu0 0
      %2119 = vmatprep.subr.bf16.mxu0 0
      %2120 = vmatpush2.bf16.msra.mxu0 0
      %2121 = vmatprep.mubr.bf16.mxu0 0
      %2122 = vmatmul.mubr.bf16.gmra.mxu0 %v2084
      %v2123 = vpop.f32.mrf.mxu0
      %v2124 = vadd.f32 0.0, %v2123
      %v2125 = vpop.f32.mrf.mxu0
      %v2126 = vpop.f32.mrf.mxu0
      %v2127 = vpop.f32.mrf.mxu0
      %2128 = vdwg.mxu0
      %v2129 = vcombine.low %v1802, %v1894
      %v2130 = vcombine.high %v1802, %v1894
      %v2132 = vunpack.c.l.s4 1983009808
      %v2133 = vunpack.c.0.s8 %v2132
      %v2134 = vlaneseq
      %v2135 = vshrl.u32 %v2134, 7
      %v2136 = vsub.s32 %v2133, %v2135
      %v2137 = vrot.slane %v2129, %v2136
      %v2139 = vunpack.c.l.s4 1983009808
      %v2140 = vunpack.c.0.s8 %v2139
      %v2141 = vlaneseq
      %v2142 = vshrl.u32 %v2141, 7
      %v2143 = vsub.s32 %v2140, %v2142
      %v2144 = vrot.slane %v2130, %v2143
      %v2145 = vcombine.low %v1848, %v1940
      %v2146 = vcombine.high %v1848, %v1940
      %v2148 = vunpack.c.l.s4 1983009808
      %v2149 = vunpack.c.0.s8 %v2148
      %v2150 = vlaneseq
      %v2151 = vshrl.u32 %v2150, 7
      %v2152 = vsub.s32 %v2149, %v2151
      %v2153 = vrot.slane %v2145, %v2152
      %v2155 = vunpack.c.l.s4 1983009808
      %v2156 = vunpack.c.0.s8 %v2155
      %v2157 = vlaneseq
      %v2158 = vshrl.u32 %v2157, 7
      %v2159 = vsub.s32 %v2156, %v2158
      %v2160 = vrot.slane %v2146, %v2159
      %v2161 = vcombine.low %v1986, %v2078
      %v2162 = vcombine.high %v1986, %v2078
      %v2164 = vunpack.c.l.s4 1983009808
      %v2165 = vunpack.c.0.s8 %v2164
      %v2166 = vlaneseq
      %v2167 = vshrl.u32 %v2166, 7
      %v2168 = vsub.s32 %v2165, %v2167
      %v2169 = vrot.slane %v2161, %v2168
      %v2171 = vunpack.c.l.s4 1983009808
      %v2172 = vunpack.c.0.s8 %v2171
      %v2173 = vlaneseq
      %v2174 = vshrl.u32 %v2173, 7
      %v2175 = vsub.s32 %v2172, %v2174
      %v2176 = vrot.slane %v2162, %v2175
      %v2177 = vcombine.low %v2032, %v2124
      %v2178 = vcombine.high %v2032, %v2124
      %v2180 = vunpack.c.l.s4 1983009808
      %v2181 = vunpack.c.0.s8 %v2180
      %v2182 = vlaneseq
      %v2183 = vshrl.u32 %v2182, 7
      %v2184 = vsub.s32 %v2181, %v2183
      %v2185 = vrot.slane %v2177, %v2184
      %v2187 = vunpack.c.l.s4 1983009808
      %v2188 = vunpack.c.0.s8 %v2187
      %v2189 = vlaneseq
      %v2190 = vshrl.u32 %v2189, 7
      %v2191 = vsub.s32 %v2188, %v2190
      %v2192 = vrot.slane %v2178, %v2191
      %v2193 = vcombine.low %v2137, %v2153
      %v2194 = vcombine.high %v2137, %v2153
      %v2196 = vunpack.c.l.s4 1934713408
      %v2197 = vunpack.c.0.s8 %v2196
      %v2198 = vlaneseq
      %v2199 = vshrl.u32 %v2198, 7
      %v2200 = vsub.s32 %v2197, %v2199
      %v2201 = vrot.slane %v2193, %v2200
      %v2203 = vunpack.c.l.s4 1934713408
      %v2204 = vunpack.c.0.s8 %v2203
      %v2205 = vlaneseq
      %v2206 = vshrl.u32 %v2205, 7
      %v2207 = vsub.s32 %v2204, %v2206
      %v2208 = vrot.slane %v2194, %v2207
      %v2209 = vcombine.low %v2144, %v2160
      %v2210 = vcombine.high %v2144, %v2160
      %v2212 = vunpack.c.l.s4 1934713408
      %v2213 = vunpack.c.0.s8 %v2212
      %v2214 = vlaneseq
      %v2215 = vshrl.u32 %v2214, 7
      %v2216 = vsub.s32 %v2213, %v2215
      %v2217 = vrot.slane %v2209, %v2216
      %v2219 = vunpack.c.l.s4 1934713408
      %v2220 = vunpack.c.0.s8 %v2219
      %v2221 = vlaneseq
      %v2222 = vshrl.u32 %v2221, 7
      %v2223 = vsub.s32 %v2220, %v2222
      %v2224 = vrot.slane %v2210, %v2223
      %v2225 = vcombine.low %v2169, %v2185
      %v2226 = vcombine.high %v2169, %v2185
      %v2228 = vunpack.c.l.s4 1934713408
      %v2229 = vunpack.c.0.s8 %v2228
      %v2230 = vlaneseq
      %v2231 = vshrl.u32 %v2230, 7
      %v2232 = vsub.s32 %v2229, %v2231
      %v2233 = vrot.slane %v2225, %v2232
      %v2235 = vunpack.c.l.s4 1934713408
      %v2236 = vunpack.c.0.s8 %v2235
      %v2237 = vlaneseq
      %v2238 = vshrl.u32 %v2237, 7
      %v2239 = vsub.s32 %v2236, %v2238
      %v2240 = vrot.slane %v2226, %v2239
      %v2241 = vcombine.low %v2176, %v2192
      %v2242 = vcombine.high %v2176, %v2192
      %v2244 = vunpack.c.l.s4 1934713408
      %v2245 = vunpack.c.0.s8 %v2244
      %v2246 = vlaneseq
      %v2247 = vshrl.u32 %v2246, 7
      %v2248 = vsub.s32 %v2245, %v2247
      %v2249 = vrot.slane %v2241, %v2248
      %v2251 = vunpack.c.l.s4 1934713408
      %v2252 = vunpack.c.0.s8 %v2251
      %v2253 = vlaneseq
      %v2254 = vshrl.u32 %v2253, 7
      %v2255 = vsub.s32 %v2252, %v2254
      %v2256 = vrot.slane %v2242, %v2255
      %v2257 = vcombine.low %v2201, %v2233
      %v2258 = vcombine.high %v2201, %v2233
      %v2259 = vcombine.low %v2208, %v2240
      %v2260 = vcombine.high %v2208, %v2240
      %v2261 = vcombine.low %v2217, %v2249
      %v2262 = vcombine.high %v2217, %v2249
      %v2263 = vcombine.low %v2224, %v2256
      %v2264 = vcombine.high %v2224, %v2256
      %2266 = vrot.lane.b32.xlu0 %v2258, 16
      %v2267 = vpop.permute.xlu0 %2266
      %2270 = vrot.lane.b32.xlu0 %v2259, 32
      %v2271 = vpop.permute.xlu0 %2270
      %2274 = vrot.lane.b32.xlu0 %v2260, 48
      %v2275 = vpop.permute.xlu0 %2274
      %2278 = vrot.lane.b32.xlu0 %v2261, 64
      %v2279 = vpop.permute.xlu0 %2278
      %2282 = vrot.lane.b32.xlu0 %v2262, 80
      %v2283 = vpop.permute.xlu0 %2282
      %2286 = vrot.lane.b32.xlu0 %v2263, 96
      %v2287 = vpop.permute.xlu0 %2286
      %2290 = vrot.lane.b32.xlu0 %v2264, 112
      %v2291 = vpop.permute.xlu0 %2290
      %v2293 = vsel %vm1294, %v2257, %v2267
      %vm2294 = vcmask 261120
      %v2295 = vsel %vm2294, %v2293, %v2271
      %vm2296 = vcmask 392192
      %v2297 = vsel %vm2296, %v2295, %v2275
      %vm2298 = vcmask 523264
      %v2299 = vsel %vm2298, %v2297, %v2279
      %vm2300 = vcmask 654336
      %v2301 = vsel %vm2300, %v2299, %v2283
      %vm2302 = vcmask 785408
      %v2303 = vsel %vm2302, %v2301, %v2287
      %vm2304 = vcmask 916480
      %v2305 = vsel %vm2304, %v2303, %v2291
      %v2306 = vpack.c.bf16 %v2305, %v2305
      %v2307 = vld [vmem:[%s4] sm:$0xf]
      %v2308 = vld [vmem:[%s4 + $0x4] sm:$0xf]
      %v2309 = vld [vmem:[%s4 + $0x8] sm:$0xf]
      %v2310 = vld [vmem:[%s4 + $0xc] sm:$0xf]
      %v2311 = vld [vmem:[%s4 + $0x10] sm:$0xf]
      %v2312 = vld [vmem:[%s4 + $0x14] sm:$0xf]
      %v2313 = vld [vmem:[%s4 + $0x18] sm:$0xf]
      %v2314 = vld [vmem:[%s4 + $0x1c] sm:$0xf]
      %v2315 = vld [vmem:[%s4 + $0x20] sm:$0xf]
      %v2316 = vld [vmem:[%s4 + $0x24] sm:$0xf]
      %v2317 = vld [vmem:[%s4 + $0x28] sm:$0xf]
      %v2318 = vld [vmem:[%s4 + $0x2c] sm:$0xf]
      %v2319 = vld [vmem:[%s4 + $0x30] sm:$0xf]
      %v2320 = vld [vmem:[%s4 + $0x34] sm:$0xf]
      %v2321 = vld [vmem:[%s4 + $0x38] sm:$0xf]
      %v2322 = vld [vmem:[%s4 + $0x3c] sm:$0xf]
      %v2323 = vld [vmem:[%s5] sm:$0x1]
      %v2325 = vlaneseq
      %v2326 = vshrl.u32 %v2325, 7
      %v2327 = vsub.s32 0, %v2326
      %v2328 = vrot.slane %v2323, %v2327
      %v2346 = vunpack.c.l.b16 %v2307
      %v2347 = vunpack.c.l.b16 %v2308
      %v2348 = vunpack.c.l.b16 %v2309
      %v2349 = vunpack.c.l.b16 %v2310
      %v2350 = vunpack.c.l.b16 %v2311
      %v2351 = vunpack.c.l.b16 %v2312
      %v2352 = vunpack.c.l.b16 %v2313
      %v2353 = vunpack.c.l.b16 %v2314
      %v2354 = vunpack.c.l.b16 %v2315
      %v2355 = vunpack.c.l.b16 %v2316
      %v2356 = vunpack.c.l.b16 %v2317
      %v2357 = vunpack.c.l.b16 %v2318
      %v2358 = vunpack.c.l.b16 %v2319
      %v2359 = vunpack.c.l.b16 %v2320
      %v2360 = vunpack.c.l.b16 %v2321
      %v2361 = vunpack.c.l.b16 %v2322
      %v2362 = vpack.c.b16 %v2347, %v2346
      %v2363 = vpack.c.b16 %v2349, %v2348
      %v2364 = vpack.c.b16 %v2351, %v2350
      %v2365 = vpack.c.b16 %v2353, %v2352
      %v2366 = vpack.c.b16 %v2355, %v2354
      %v2367 = vpack.c.b16 %v2357, %v2356
      %v2368 = vpack.c.b16 %v2359, %v2358
      %v2369 = vpack.c.b16 %v2361, %v2360
      %2378 = vmatprep.subr.bf16.mxu0 0
      %2379 = vmatpush1.bf16.msra.mxu0 %v2369
      %2380 = vmatprep.subr.bf16.mxu0 0
      %2381 = vmatpush1.bf16.msra.mxu0 %v2368
      %2382 = vmatprep.subr.bf16.mxu0 0
      %2383 = vmatpush1.bf16.msra.mxu0 %v2367
      %2384 = vmatprep.subr.bf16.mxu0 0
      %2385 = vmatpush1.bf16.msra.mxu0 %v2366
      %2386 = vmatprep.subr.bf16.mxu0 0
      %2387 = vmatpush1.bf16.msra.mxu0 %v2365
      %2388 = vmatprep.subr.bf16.mxu0 0
      %2389 = vmatpush1.bf16.msra.mxu0 %v2364
      %2390 = vmatprep.subr.bf16.mxu0 0
      %2391 = vmatpush1.bf16.msra.mxu0 %v2363
      %2392 = vmatprep.subr.bf16.mxu0 0
      %2393 = vmatpush1.bf16.msra.mxu0 %v2362
      %2394 = vmatprep.subr.bf16.mxu0 0
      %2395 = vmatpush2.bf16.msra.mxu0 0
      %2396 = vmatprep.subr.bf16.mxu0 0
      %2397 = vmatpush2.bf16.msra.mxu0 0
      %2398 = vmatprep.subr.bf16.mxu0 0
      %2399 = vmatpush2.bf16.msra.mxu0 0
      %2400 = vmatprep.subr.bf16.mxu0 0
      %2401 = vmatpush2.bf16.msra.mxu0 0
      %2402 = vmatprep.subr.bf16.mxu0 0
      %2403 = vmatpush2.bf16.msra.mxu0 0
      %2404 = vmatprep.subr.bf16.mxu0 0
      %2405 = vmatpush2.bf16.msra.mxu0 0
      %2406 = vmatprep.subr.bf16.mxu0 0
      %2407 = vmatpush2.bf16.msra.mxu0 0
      %2408 = vmatprep.subr.bf16.mxu0 0
      %2409 = vmatpush2.bf16.msra.mxu0 0
      %2410 = vmatprep.mubr.bf16.mxu0 0
      %2411 = vmatmul.mubr.bf16.gmra.mxu0 %v2306
      %v2412 = vpop.f32.mrf.mxu0
      %v2413 = vadd.f32 %v2328, %v2412
      %v2414 = vpop.f32.mrf.mxu0
      %v2415 = vpop.f32.mrf.mxu0
      %v2416 = vpop.f32.mrf.mxu0
      %2417 = vdwg.mxu0
      %v2418 = vadd.f32 %v2413, %v536
      %v2419 = vld [vmem:[%s10] sm:$0x1]
      %v2420 = vld [vmem:[%s11] sm:$0x1]
      %2421 = vadd.xlane.f32.xlu0 %v2418
      %v2422 = vpop.xlane.xlu0 %2421
      %v2423 = vrcp.pop 128.0
      %v2424 = vmul.f32 %v2422, %v2423
      %v2425 = vsub.f32 %v2418, %v2424
      %v2426 = vmul.f32 %v2425, %v2425
      %2427 = vadd.xlane.f32.xlu0 %v2426
      %v2428 = vpop.xlane.xlu0 %2427
      %v2429 = vmul.f32 %v2428, %v2423
      %v2430 = vadd.f32 %v2429, 1e-05
      %v2431 = vrsqrt.pop %v2430
      %v2432 = vmul.f32 %v2425, %v2431
      %v2434 = vlaneseq
      %v2435 = vshrl.u32 %v2434, 7
      %v2436 = vsub.s32 0, %v2435
      %v2437 = vrot.slane %v2419, %v2436
      %v2439 = vmul.f32 %v2432, %v2437
      %v2441 = vlaneseq
      %v2442 = vshrl.u32 %v2441, 7
      %v2443 = vsub.s32 0, %v2442
      %v2444 = vrot.slane %v2420, %v2443
      %v2446 = vadd.f32 %v2439, %v2444
      %v2447 = vpack.c.bf16 %v535, %v535
      %s2448 = scalar_lea.vmem %s2, 192
      %v2449 = vld [vmem:[%s2448] sm:$0xff]
      %v2450 = vld [vmem:[%s2448 + $0x8] sm:$0xf]
      %v2451 = vld [vmem:[%s2448 + $0xc] sm:$0xff]
      %v2452 = vld [vmem:[%s2448 + $0x14] sm:$0xf]
      %v2453 = vld [vmem:[%s2448 + $0x18] sm:$0xff]
      %v2454 = vld [vmem:[%s2448 + $0x20] sm:$0xf]
      %v2455 = vld [vmem:[%s2448 + $0x24] sm:$0xff]
      %v2456 = vld [vmem:[%s2448 + $0x2c] sm:$0xf]
      %v2457 = vld [vmem:[%s2448 + $0x30] sm:$0xff]
      %v2458 = vld [vmem:[%s2448 + $0x38] sm:$0xf]
      %v2459 = vld [vmem:[%s2448 + $0x3c] sm:$0xff]
      %v2460 = vld [vmem:[%s2448 + $0x44] sm:$0xf]
      %v2461 = vld [vmem:[%s2448 + $0x48] sm:$0xff]
      %v2462 = vld [vmem:[%s2448 + $0x50] sm:$0xf]
      %v2463 = vld [vmem:[%s2448 + $0x54] sm:$0xff]
      %v2464 = vld [vmem:[%s2448 + $0x5c] sm:$0xf]
      %v2465 = vld [vmem:[%s2448 + $0x60] sm:$0xff]
      %v2466 = vld [vmem:[%s2448 + $0x68] sm:$0xf]
      %v2467 = vld [vmem:[%s2448 + $0x6c] sm:$0xff]
      %v2468 = vld [vmem:[%s2448 + $0x74] sm:$0xf]
      %v2469 = vld [vmem:[%s2448 + $0x78] sm:$0xff]
      %v2470 = vld [vmem:[%s2448 + $0x80] sm:$0xf]
      %v2471 = vld [vmem:[%s2448 + $0x84] sm:$0xff]
      %v2472 = vld [vmem:[%s2448 + $0x8c] sm:$0xf]
      %v2473 = vld [vmem:[%s2448 + $0x90] sm:$0xff]
      %v2474 = vld [vmem:[%s2448 + $0x98] sm:$0xf]
      %v2475 = vld [vmem:[%s2448 + $0x9c] sm:$0xff]
      %v2476 = vld [vmem:[%s2448 + $0xa4] sm:$0xf]
      %v2477 = vld [vmem:[%s2448 + $0xa8] sm:$0xff]
      %v2478 = vld [vmem:[%s2448 + $0xb0] sm:$0xf]
      %v2479 = vld [vmem:[%s2448 + $0xb4] sm:$0xff]
      %v2480 = vld [vmem:[%s2448 + $0xbc] sm:$0xf]
      %s2481 = scalar_lea.vmem %s3, 3
      %v2482 = vld [vmem:[%s2481] sm:$0x7]
      %v2484 = vlaneseq
      %v2485 = vshrl.u32 %v2484, 7
      %v2486 = vsub.s32 0, %v2485
      %v2487 = vrot.slane %v2482, %v2486
      %v2488 = vlaneseq
      %v2489 = vshrl.u32 %v2488, 7
      %v2490 = vsub.s32 1, %v2489
      %v2491 = vrot.slane %v2482, %v2490
      %v2492 = vlaneseq
      %v2493 = vshrl.u32 %v2492, 7
      %v2494 = vsub.s32 2, %v2493
      %v2495 = vrot.slane %v2482, %v2494
      %v2531 = vunpack.c.l.b16 %v2449
      %v2532 = vunpack.c.h.b16 %v2449
      %v2533 = vunpack.c.l.b16 %v2450
      %v2534 = vunpack.c.l.b16 %v2451
      %v2535 = vunpack.c.h.b16 %v2451
      %v2536 = vunpack.c.l.b16 %v2452
      %v2537 = vunpack.c.l.b16 %v2453
      %v2538 = vunpack.c.h.b16 %v2453
      %v2539 = vunpack.c.l.b16 %v2454
      %v2540 = vunpack.c.l.b16 %v2455
      %v2541 = vunpack.c.h.b16 %v2455
      %v2542 = vunpack.c.l.b16 %v2456
      %v2543 = vunpack.c.l.b16 %v2457
      %v2544 = vunpack.c.h.b16 %v2457
      %v2545 = vunpack.c.l.b16 %v2458
      %v2546 = vunpack.c.l.b16 %v2459
      %v2547 = vunpack.c.h.b16 %v2459
      %v2548 = vunpack.c.l.b16 %v2460
      %v2549 = vunpack.c.l.b16 %v2461
      %v2550 = vunpack.c.h.b16 %v2461
      %v2551 = vunpack.c.l.b16 %v2462
      %v2552 = vunpack.c.l.b16 %v2463
      %v2553 = vunpack.c.h.b16 %v2463
      %v2554 = vunpack.c.l.b16 %v2464
      %v2555 = vunpack.c.l.b16 %v2465
      %v2556 = vunpack.c.h.b16 %v2465
      %v2557 = vunpack.c.l.b16 %v2466
      %v2558 = vunpack.c.l.b16 %v2467
      %v2559 = vunpack.c.h.b16 %v2467
      %v2560 = vunpack.c.l.b16 %v2468
      %v2561 = vunpack.c.l.b16 %v2469
      %v2562 = vunpack.c.h.b16 %v2469
      %v2563 = vunpack.c.l.b16 %v2470
      %v2564 = vunpack.c.l.b16 %v2471
      %v2565 = vunpack.c.h.b16 %v2471
      %v2566 = vunpack.c.l.b16 %v2472
      %v2567 = vunpack.c.l.b16 %v2473
      %v2568 = vunpack.c.h.b16 %v2473
      %v2569 = vunpack.c.l.b16 %v2474
      %v2570 = vunpack.c.l.b16 %v2475
      %v2571 = vunpack.c.h.b16 %v2475
      %v2572 = vunpack.c.l.b16 %v2476
      %v2573 = vunpack.c.l.b16 %v2477
      %v2574 = vunpack.c.h.b16 %v2477
      %v2575 = vunpack.c.l.b16 %v2478
      %v2576 = vunpack.c.l.b16 %v2479
      %v2577 = vunpack.c.h.b16 %v2479
      %v2578 = vunpack.c.l.b16 %v2480
      %v2579 = vpack.c.b16 %v2534, %v2531
      %v2580 = vpack.c.b16 %v2535, %v2532
      %v2581 = vpack.c.b16 %v2536, %v2533
      %v2582 = vpack.c.b16 %v2540, %v2537
      %v2583 = vpack.c.b16 %v2541, %v2538
      %v2584 = vpack.c.b16 %v2542, %v2539
      %v2585 = vpack.c.b16 %v2546, %v2543
      %v2586 = vpack.c.b16 %v2547, %v2544
      %v2587 = vpack.c.b16 %v2548, %v2545
      %v2588 = vpack.c.b16 %v2552, %v2549
      %v2589 = vpack.c.b16 %v2553, %v2550
      %v2590 = vpack.c.b16 %v2554, %v2551
      %v2591 = vpack.c.b16 %v2558, %v2555
      %v2592 = vpack.c.b16 %v2559, %v2556
      %v2593 = vpack.c.b16 %v2560, %v2557
      %v2594 = vpack.c.b16 %v2564, %v2561
      %v2595 = vpack.c.b16 %v2565, %v2562
      %v2596 = vpack.c.b16 %v2566, %v2563
      %v2597 = vpack.c.b16 %v2570, %v2567
      %v2598 = vpack.c.b16 %v2571, %v2568
      %v2599 = vpack.c.b16 %v2572, %v2569
      %v2600 = vpack.c.b16 %v2576, %v2573
      %v2601 = vpack.c.b16 %v2577, %v2574
      %v2602 = vpack.c.b16 %v2578, %v2575
      %2627 = vmatprep.subr.bf16.mxu0 %v2601
      %2628 = vmatpush1.bf16.msra.mxu0 %v2600
      %2629 = vmatprep.subr.bf16.mxu0 %v2598
      %2630 = vmatpush1.bf16.msra.mxu0 %v2597
      %2631 = vmatprep.subr.bf16.mxu0 %v2595
      %2632 = vmatpush1.bf16.msra.mxu0 %v2594
      %2633 = vmatprep.subr.bf16.mxu0 %v2592
      %2634 = vmatpush1.bf16.msra.mxu0 %v2591
      %2635 = vmatprep.subr.bf16.mxu0 %v2589
      %2636 = vmatpush1.bf16.msra.mxu0 %v2588
      %2637 = vmatprep.subr.bf16.mxu0 %v2586
      %2638 = vmatpush1.bf16.msra.mxu0 %v2585
      %2639 = vmatprep.subr.bf16.mxu0 %v2583
      %2640 = vmatpush1.bf16.msra.mxu0 %v2582
      %2641 = vmatprep.subr.bf16.mxu0 %v2580
      %2642 = vmatpush1.bf16.msra.mxu0 %v2579
      %2643 = vmatprep.subr.bf16.mxu0 0
      %2644 = vmatpush2.bf16.msra.mxu0 0
      %2645 = vmatprep.subr.bf16.mxu0 0
      %2646 = vmatpush2.bf16.msra.mxu0 0
      %2647 = vmatprep.subr.bf16.mxu0 0
      %2648 = vmatpush2.bf16.msra.mxu0 0
      %2649 = vmatprep.subr.bf16.mxu0 0
      %2650 = vmatpush2.bf16.msra.mxu0 0
      %2651 = vmatprep.subr.bf16.mxu0 0
      %2652 = vmatpush2.bf16.msra.mxu0 0
      %2653 = vmatprep.subr.bf16.mxu0 0
      %2654 = vmatpush2.bf16.msra.mxu0 0
      %2655 = vmatprep.subr.bf16.mxu0 0
      %2656 = vmatpush2.bf16.msra.mxu0 0
      %2657 = vmatprep.subr.bf16.mxu0 0
      %2658 = vmatpush2.bf16.msra.mxu0 0
      %2659 = vmatprep.mubr.bf16.mxu0 0
      %2660 = vmatmul.mubr.bf16.gmra.mxu0 %v2447
      %v2661 = vpop.f32.mrf.mxu0
      %v2662 = vadd.f32 %v2487, %v2661
      %v2663 = vpop.f32.mrf.mxu0
      %v2664 = vadd.f32 %v2491, %v2663
      %v2665 = vpop.f32.mrf.mxu0
      %v2666 = vpop.f32.mrf.mxu0
      %2667 = vdwg.mxu0
      %2668 = vmatprep.subr.bf16.mxu0 0
      %2669 = vmatpush1.bf16.msra.mxu0 %v2602
      %2670 = vmatprep.subr.bf16.mxu0 0
      %2671 = vmatpush1.bf16.msra.mxu0 %v2599
      %2672 = vmatprep.subr.bf16.mxu0 0
      %2673 = vmatpush1.bf16.msra.mxu0 %v2596
      %2674 = vmatprep.subr.bf16.mxu0 0
      %2675 = vmatpush1.bf16.msra.mxu0 %v2593
      %2676 = vmatprep.subr.bf16.mxu0 0
      %2677 = vmatpush1.bf16.msra.mxu0 %v2590
      %2678 = vmatprep.subr.bf16.mxu0 0
      %2679 = vmatpush1.bf16.msra.mxu0 %v2587
      %2680 = vmatprep.subr.bf16.mxu0 0
      %2681 = vmatpush1.bf16.msra.mxu0 %v2584
      %2682 = vmatprep.subr.bf16.mxu0 0
      %2683 = vmatpush1.bf16.msra.mxu0 %v2581
      %2684 = vmatprep.subr.bf16.mxu0 0
      %2685 = vmatpush2.bf16.msra.mxu0 0
      %2686 = vmatprep.subr.bf16.mxu0 0
      %2687 = vmatpush2.bf16.msra.mxu0 0
      %2688 = vmatprep.subr.bf16.mxu0 0
      %2689 = vmatpush2.bf16.msra.mxu0 0
      %2690 = vmatprep.subr.bf16.mxu0 0
      %2691 = vmatpush2.bf16.msra.mxu0 0
      %2692 = vmatprep.subr.bf16.mxu0 0
      %2693 = vmatpush2.bf16.msra.mxu0 0
      %2694 = vmatprep.subr.bf16.mxu0 0
      %2695 = vmatpush2.bf16.msra.mxu0 0
      %2696 = vmatprep.subr.bf16.mxu0 0
      %2697 = vmatpush2.bf16.msra.mxu0 0
      %2698 = vmatprep.subr.bf16.mxu0 0
      %2699 = vmatpush2.bf16.msra.mxu0 0
      %2700 = vmatprep.mubr.bf16.mxu0 0
      %2701 = vmatmul.mubr.bf16.gmra.mxu0 %v2447
      %v2702 = vpop.f32.mrf.mxu0
      %v2703 = vadd.f32 %v2495, %v2702
      %v2704 = vpop.f32.mrf.mxu0
      %v2705 = vpop.f32.mrf.mxu0
      %v2706 = vpop.f32.mrf.mxu0
      %2707 = vdwg.mxu0
      %2709 = vrot.lane.b32.xlu0 %v2662, 112
      %v2710 = vpop.permute.xlu0 %2709
      %2712 = vrot.lane.b32.xlu0 %v2662, 96
      %v2713 = vpop.permute.xlu0 %2712
      %2715 = vrot.lane.b32.xlu0 %v2662, 80
      %v2716 = vpop.permute.xlu0 %2715
      %2718 = vrot.lane.b32.xlu0 %v2662, 64
      %v2719 = vpop.permute.xlu0 %2718
      %2721 = vrot.lane.b32.xlu0 %v2662, 48
      %v2722 = vpop.permute.xlu0 %2721
      %2724 = vrot.lane.b32.xlu0 %v2662, 32
      %v2725 = vpop.permute.xlu0 %2724
      %2727 = vrot.lane.b32.xlu0 %v2662, 16
      %v2728 = vpop.permute.xlu0 %2727
      %v2730 = vcombine.low %v2662, %v2713
      %v2731 = vcombine.high %v2662, %v2713
      %v2733 = vunpack.c.l.s4 1983009808
      %v2734 = vunpack.c.0.s8 %v2733
      %v2735 = vlaneseq
      %v2736 = vshrl.u32 %v2735, 7
      %v2737 = vsub.s32 %v2734, %v2736
      %v2738 = vrot.slane %v2730, %v2737
      %v2740 = vunpack.c.l.s4 1983009808
      %v2741 = vunpack.c.0.s8 %v2740
      %v2742 = vlaneseq
      %v2743 = vshrl.u32 %v2742, 7
      %v2744 = vsub.s32 %v2741, %v2743
      %v2745 = vrot.slane %v2731, %v2744
      %v2746 = vcombine.low %v2710, %v2716
      %v2747 = vcombine.high %v2710, %v2716
      %v2749 = vunpack.c.l.s4 1983009808
      %v2750 = vunpack.c.0.s8 %v2749
      %v2751 = vlaneseq
      %v2752 = vshrl.u32 %v2751, 7
      %v2753 = vsub.s32 %v2750, %v2752
      %v2754 = vrot.slane %v2746, %v2753
      %v2756 = vunpack.c.l.s4 1983009808
      %v2757 = vunpack.c.0.s8 %v2756
      %v2758 = vlaneseq
      %v2759 = vshrl.u32 %v2758, 7
      %v2760 = vsub.s32 %v2757, %v2759
      %v2761 = vrot.slane %v2747, %v2760
      %v2762 = vcombine.low %v2719, %v2725
      %v2763 = vcombine.high %v2719, %v2725
      %v2765 = vunpack.c.l.s4 1983009808
      %v2766 = vunpack.c.0.s8 %v2765
      %v2767 = vlaneseq
      %v2768 = vshrl.u32 %v2767, 7
      %v2769 = vsub.s32 %v2766, %v2768
      %v2770 = vrot.slane %v2762, %v2769
      %v2772 = vunpack.c.l.s4 1983009808
      %v2773 = vunpack.c.0.s8 %v2772
      %v2774 = vlaneseq
      %v2775 = vshrl.u32 %v2774, 7
      %v2776 = vsub.s32 %v2773, %v2775
      %v2777 = vrot.slane %v2763, %v2776
      %v2778 = vcombine.low %v2722, %v2728
      %v2779 = vcombine.high %v2722, %v2728
      %v2781 = vunpack.c.l.s4 1983009808
      %v2782 = vunpack.c.0.s8 %v2781
      %v2783 = vlaneseq
      %v2784 = vshrl.u32 %v2783, 7
      %v2785 = vsub.s32 %v2782, %v2784
      %v2786 = vrot.slane %v2778, %v2785
      %v2788 = vunpack.c.l.s4 1983009808
      %v2789 = vunpack.c.0.s8 %v2788
      %v2790 = vlaneseq
      %v2791 = vshrl.u32 %v2790, 7
      %v2792 = vsub.s32 %v2789, %v2791
      %v2793 = vrot.slane %v2779, %v2792
      %v2794 = vcombine.low %v2738, %v2754
      %v2795 = vcombine.high %v2738, %v2754
      %v2797 = vunpack.c.l.s4 1934713408
      %v2798 = vunpack.c.0.s8 %v2797
      %v2799 = vlaneseq
      %v2800 = vshrl.u32 %v2799, 7
      %v2801 = vsub.s32 %v2798, %v2800
      %v2802 = vrot.slane %v2794, %v2801
      %v2804 = vunpack.c.l.s4 1934713408
      %v2805 = vunpack.c.0.s8 %v2804
      %v2806 = vlaneseq
      %v2807 = vshrl.u32 %v2806, 7
      %v2808 = vsub.s32 %v2805, %v2807
      %v2809 = vrot.slane %v2795, %v2808
      %v2810 = vcombine.low %v2745, %v2761
      %v2811 = vcombine.high %v2745, %v2761
      %v2813 = vunpack.c.l.s4 1934713408
      %v2814 = vunpack.c.0.s8 %v2813
      %v2815 = vlaneseq
      %v2816 = vshrl.u32 %v2815, 7
      %v2817 = vsub.s32 %v2814, %v2816
      %v2818 = vrot.slane %v2810, %v2817
      %v2820 = vunpack.c.l.s4 1934713408
      %v2821 = vunpack.c.0.s8 %v2820
      %v2822 = vlaneseq
      %v2823 = vshrl.u32 %v2822, 7
      %v2824 = vsub.s32 %v2821, %v2823
      %v2825 = vrot.slane %v2811, %v2824
      %v2826 = vcombine.low %v2770, %v2786
      %v2827 = vcombine.high %v2770, %v2786
      %v2829 = vunpack.c.l.s4 1934713408
      %v2830 = vunpack.c.0.s8 %v2829
      %v2831 = vlaneseq
      %v2832 = vshrl.u32 %v2831, 7
      %v2833 = vsub.s32 %v2830, %v2832
      %v2834 = vrot.slane %v2826, %v2833
      %v2836 = vunpack.c.l.s4 1934713408
      %v2837 = vunpack.c.0.s8 %v2836
      %v2838 = vlaneseq
      %v2839 = vshrl.u32 %v2838, 7
      %v2840 = vsub.s32 %v2837, %v2839
      %v2841 = vrot.slane %v2827, %v2840
      %v2842 = vcombine.low %v2777, %v2793
      %v2843 = vcombine.high %v2777, %v2793
      %v2845 = vunpack.c.l.s4 1934713408
      %v2846 = vunpack.c.0.s8 %v2845
      %v2847 = vlaneseq
      %v2848 = vshrl.u32 %v2847, 7
      %v2849 = vsub.s32 %v2846, %v2848
      %v2850 = vrot.slane %v2842, %v2849
      %v2852 = vunpack.c.l.s4 1934713408
      %v2853 = vunpack.c.0.s8 %v2852
      %v2854 = vlaneseq
      %v2855 = vshrl.u32 %v2854, 7
      %v2856 = vsub.s32 %v2853, %v2855
      %v2857 = vrot.slane %v2843, %v2856
      %v2858 = vcombine.low %v2802, %v2834
      %v2859 = vcombine.high %v2802, %v2834
      %v2860 = vcombine.low %v2809, %v2841
      %v2861 = vcombine.high %v2809, %v2841
      %v2862 = vcombine.low %v2818, %v2850
      %v2863 = vcombine.high %v2818, %v2850
      %v2864 = vcombine.low %v2825, %v2857
      %v2865 = vcombine.high %v2825, %v2857
      %v2866 = vpack.c.bf16 %v2858, %v2858
      %v2867 = vpack.c.bf16 %v2859, %v2859
      %v2868 = vpack.c.bf16 %v2860, %v2860
      %v2869 = vpack.c.bf16 %v2861, %v2861
      %v2870 = vpack.c.bf16 %v2862, %v2862
      %v2871 = vpack.c.bf16 %v2863, %v2863
      %v2872 = vpack.c.bf16 %v2864, %v2864
      %v2873 = vpack.c.bf16 %v2865, %v2865
      %2875 = vrot.lane.b32.xlu0 %v2664, 112
      %v2876 = vpop.permute.xlu0 %2875
      %2878 = vrot.lane.b32.xlu0 %v2664, 96
      %v2879 = vpop.permute.xlu0 %2878
      %2881 = vrot.lane.b32.xlu0 %v2664, 80
      %v2882 = vpop.permute.xlu0 %2881
      %2884 = vrot.lane.b32.xlu0 %v2664, 64
      %v2885 = vpop.permute.xlu0 %2884
      %2887 = vrot.lane.b32.xlu0 %v2664, 48
      %v2888 = vpop.permute.xlu0 %2887
      %2890 = vrot.lane.b32.xlu0 %v2664, 32
      %v2891 = vpop.permute.xlu0 %2890
      %2893 = vrot.lane.b32.xlu0 %v2664, 16
      %v2894 = vpop.permute.xlu0 %2893
      %v2896 = vcombine.low %v2664, %v2879
      %v2897 = vcombine.high %v2664, %v2879
      %v2899 = vunpack.c.l.s4 1983009808
      %v2900 = vunpack.c.0.s8 %v2899
      %v2901 = vlaneseq
      %v2902 = vshrl.u32 %v2901, 7
      %v2903 = vsub.s32 %v2900, %v2902
      %v2904 = vrot.slane %v2896, %v2903
      %v2906 = vunpack.c.l.s4 1983009808
      %v2907 = vunpack.c.0.s8 %v2906
      %v2908 = vlaneseq
      %v2909 = vshrl.u32 %v2908, 7
      %v2910 = vsub.s32 %v2907, %v2909
      %v2911 = vrot.slane %v2897, %v2910
      %v2912 = vcombine.low %v2876, %v2882
      %v2913 = vcombine.high %v2876, %v2882
      %v2915 = vunpack.c.l.s4 1983009808
      %v2916 = vunpack.c.0.s8 %v2915
      %v2917 = vlaneseq
      %v2918 = vshrl.u32 %v2917, 7
      %v2919 = vsub.s32 %v2916, %v2918
      %v2920 = vrot.slane %v2912, %v2919
      %v2922 = vunpack.c.l.s4 1983009808
      %v2923 = vunpack.c.0.s8 %v2922
      %v2924 = vlaneseq
      %v2925 = vshrl.u32 %v2924, 7
      %v2926 = vsub.s32 %v2923, %v2925
      %v2927 = vrot.slane %v2913, %v2926
      %v2928 = vcombine.low %v2885, %v2891
      %v2929 = vcombine.high %v2885, %v2891
      %v2931 = vunpack.c.l.s4 1983009808
      %v2932 = vunpack.c.0.s8 %v2931
      %v2933 = vlaneseq
      %v2934 = vshrl.u32 %v2933, 7
      %v2935 = vsub.s32 %v2932, %v2934
      %v2936 = vrot.slane %v2928, %v2935
      %v2938 = vunpack.c.l.s4 1983009808
      %v2939 = vunpack.c.0.s8 %v2938
      %v2940 = vlaneseq
      %v2941 = vshrl.u32 %v2940, 7
      %v2942 = vsub.s32 %v2939, %v2941
      %v2943 = vrot.slane %v2929, %v2942
      %v2944 = vcombine.low %v2888, %v2894
      %v2945 = vcombine.high %v2888, %v2894
      %v2947 = vunpack.c.l.s4 1983009808
      %v2948 = vunpack.c.0.s8 %v2947
      %v2949 = vlaneseq
      %v2950 = vshrl.u32 %v2949, 7
      %v2951 = vsub.s32 %v2948, %v2950
      %v2952 = vrot.slane %v2944, %v2951
      %v2954 = vunpack.c.l.s4 1983009808
      %v2955 = vunpack.c.0.s8 %v2954
      %v2956 = vlaneseq
      %v2957 = vshrl.u32 %v2956, 7
      %v2958 = vsub.s32 %v2955, %v2957
      %v2959 = vrot.slane %v2945, %v2958
      %v2960 = vcombine.low %v2904, %v2920
      %v2961 = vcombine.high %v2904, %v2920
      %v2963 = vunpack.c.l.s4 1934713408
      %v2964 = vunpack.c.0.s8 %v2963
      %v2965 = vlaneseq
      %v2966 = vshrl.u32 %v2965, 7
      %v2967 = vsub.s32 %v2964, %v2966
      %v2968 = vrot.slane %v2960, %v2967
      %v2970 = vunpack.c.l.s4 1934713408
      %v2971 = vunpack.c.0.s8 %v2970
      %v2972 = vlaneseq
      %v2973 = vshrl.u32 %v2972, 7
      %v2974 = vsub.s32 %v2971, %v2973
      %v2975 = vrot.slane %v2961, %v2974
      %v2976 = vcombine.low %v2911, %v2927
      %v2977 = vcombine.high %v2911, %v2927
      %v2979 = vunpack.c.l.s4 1934713408
      %v2980 = vunpack.c.0.s8 %v2979
      %v2981 = vlaneseq
      %v2982 = vshrl.u32 %v2981, 7
      %v2983 = vsub.s32 %v2980, %v2982
      %v2984 = vrot.slane %v2976, %v2983
      %v2986 = vunpack.c.l.s4 1934713408
      %v2987 = vunpack.c.0.s8 %v2986
      %v2988 = vlaneseq
      %v2989 = vshrl.u32 %v2988, 7
      %v2990 = vsub.s32 %v2987, %v2989
      %v2991 = vrot.slane %v2977, %v2990
      %v2992 = vcombine.low %v2936, %v2952
      %v2993 = vcombine.high %v2936, %v2952
      %v2995 = vunpack.c.l.s4 1934713408
      %v2996 = vunpack.c.0.s8 %v2995
      %v2997 = vlaneseq
      %v2998 = vshrl.u32 %v2997, 7
      %v2999 = vsub.s32 %v2996, %v2998
      %v3000 = vrot.slane %v2992, %v2999
      %v3002 = vunpack.c.l.s4 1934713408
      %v3003 = vunpack.c.0.s8 %v3002
      %v3004 = vlaneseq
      %v3005 = vshrl.u32 %v3004, 7
      %v3006 = vsub.s32 %v3003, %v3005
      %v3007 = vrot.slane %v2993, %v3006
      %v3008 = vcombine.low %v2943, %v2959
      %v3009 = vcombine.high %v2943, %v2959
      %v3011 = vunpack.c.l.s4 1934713408
      %v3012 = vunpack.c.0.s8 %v3011
      %v3013 = vlaneseq
      %v3014 = vshrl.u32 %v3013, 7
      %v3015 = vsub.s32 %v3012, %v3014
      %v3016 = vrot.slane %v3008, %v3015
      %v3018 = vunpack.c.l.s4 1934713408
      %v3019 = vunpack.c.0.s8 %v3018
      %v3020 = vlaneseq
      %v3021 = vshrl.u32 %v3020, 7
      %v3022 = vsub.s32 %v3019, %v3021
      %v3023 = vrot.slane %v3009, %v3022
      %v3024 = vcombine.low %v2968, %v3000
      %v3025 = vcombine.high %v2968, %v3000
      %v3026 = vcombine.low %v2975, %v3007
      %v3027 = vcombine.high %v2975, %v3007
      %v3028 = vcombine.low %v2984, %v3016
      %v3029 = vcombine.high %v2984, %v3016
      %v3030 = vcombine.low %v2991, %v3023
      %v3031 = vcombine.high %v2991, %v3023
      %v3032 = vpack.c.bf16 %v3024, %v3024
      %v3033 = vpack.c.bf16 %v3025, %v3025
      %v3034 = vpack.c.bf16 %v3026, %v3026
      %v3035 = vpack.c.bf16 %v3027, %v3027
      %v3036 = vpack.c.bf16 %v3028, %v3028
      %v3037 = vpack.c.bf16 %v3029, %v3029
      %v3038 = vpack.c.bf16 %v3030, %v3030
      %v3039 = vpack.c.bf16 %v3031, %v3031
      %3041 = vrot.lane.b32.xlu0 %v2703, 112
      %v3042 = vpop.permute.xlu0 %3041
      %3044 = vrot.lane.b32.xlu0 %v2703, 96
      %v3045 = vpop.permute.xlu0 %3044
      %3047 = vrot.lane.b32.xlu0 %v2703, 80
      %v3048 = vpop.permute.xlu0 %3047
      %3050 = vrot.lane.b32.xlu0 %v2703, 64
      %v3051 = vpop.permute.xlu0 %3050
      %3053 = vrot.lane.b32.xlu0 %v2703, 48
      %v3054 = vpop.permute.xlu0 %3053
      %3056 = vrot.lane.b32.xlu0 %v2703, 32
      %v3057 = vpop.permute.xlu0 %3056
      %3059 = vrot.lane.b32.xlu0 %v2703, 16
      %v3060 = vpop.permute.xlu0 %3059
      %v3062 = vcombine.low %v2703, %v3045
      %v3063 = vcombine.high %v2703, %v3045
      %v3065 = vunpack.c.l.s4 1983009808
      %v3066 = vunpack.c.0.s8 %v3065
      %v3067 = vlaneseq
      %v3068 = vshrl.u32 %v3067, 7
      %v3069 = vsub.s32 %v3066, %v3068
      %v3070 = vrot.slane %v3062, %v3069
      %v3072 = vunpack.c.l.s4 1983009808
      %v3073 = vunpack.c.0.s8 %v3072
      %v3074 = vlaneseq
      %v3075 = vshrl.u32 %v3074, 7
      %v3076 = vsub.s32 %v3073, %v3075
      %v3077 = vrot.slane %v3063, %v3076
      %v3078 = vcombine.low %v3042, %v3048
      %v3079 = vcombine.high %v3042, %v3048
      %v3081 = vunpack.c.l.s4 1983009808
      %v3082 = vunpack.c.0.s8 %v3081
      %v3083 = vlaneseq
      %v3084 = vshrl.u32 %v3083, 7
      %v3085 = vsub.s32 %v3082, %v3084
      %v3086 = vrot.slane %v3078, %v3085
      %v3088 = vunpack.c.l.s4 1983009808
      %v3089 = vunpack.c.0.s8 %v3088
      %v3090 = vlaneseq
      %v3091 = vshrl.u32 %v3090, 7
      %v3092 = vsub.s32 %v3089, %v3091
      %v3093 = vrot.slane %v3079, %v3092
      %v3094 = vcombine.low %v3051, %v3057
      %v3095 = vcombine.high %v3051, %v3057
      %v3097 = vunpack.c.l.s4 1983009808
      %v3098 = vunpack.c.0.s8 %v3097
      %v3099 = vlaneseq
      %v3100 = vshrl.u32 %v3099, 7
      %v3101 = vsub.s32 %v3098, %v3100
      %v3102 = vrot.slane %v3094, %v3101
      %v3104 = vunpack.c.l.s4 1983009808
      %v3105 = vunpack.c.0.s8 %v3104
      %v3106 = vlaneseq
      %v3107 = vshrl.u32 %v3106, 7
      %v3108 = vsub.s32 %v3105, %v3107
      %v3109 = vrot.slane %v3095, %v3108
      %v3110 = vcombine.low %v3054, %v3060
      %v3111 = vcombine.high %v3054, %v3060
      %v3113 = vunpack.c.l.s4 1983009808
      %v3114 = vunpack.c.0.s8 %v3113
      %v3115 = vlaneseq
      %v3116 = vshrl.u32 %v3115, 7
      %v3117 = vsub.s32 %v3114, %v3116
      %v3118 = vrot.slane %v3110, %v3117
      %v3120 = vunpack.c.l.s4 1983009808
      %v3121 = vunpack.c.0.s8 %v3120
      %v3122 = vlaneseq
      %v3123 = vshrl.u32 %v3122, 7
      %v3124 = vsub.s32 %v3121, %v3123
      %v3125 = vrot.slane %v3111, %v3124
      %v3126 = vcombine.low %v3070, %v3086
      %v3127 = vcombine.high %v3070, %v3086
      %v3129 = vunpack.c.l.s4 1934713408
      %v3130 = vunpack.c.0.s8 %v3129
      %v3131 = vlaneseq
      %v3132 = vshrl.u32 %v3131, 7
      %v3133 = vsub.s32 %v3130, %v3132
      %v3134 = vrot.slane %v3126, %v3133
      %v3136 = vunpack.c.l.s4 1934713408
      %v3137 = vunpack.c.0.s8 %v3136
      %v3138 = vlaneseq
      %v3139 = vshrl.u32 %v3138, 7
      %v3140 = vsub.s32 %v3137, %v3139
      %v3141 = vrot.slane %v3127, %v3140
      %v3142 = vcombine.low %v3077, %v3093
      %v3143 = vcombine.high %v3077, %v3093
      %v3145 = vunpack.c.l.s4 1934713408
      %v3146 = vunpack.c.0.s8 %v3145
      %v3147 = vlaneseq
      %v3148 = vshrl.u32 %v3147, 7
      %v3149 = vsub.s32 %v3146, %v3148
      %v3150 = vrot.slane %v3142, %v3149
      %v3152 = vunpack.c.l.s4 1934713408
      %v3153 = vunpack.c.0.s8 %v3152
      %v3154 = vlaneseq
      %v3155 = vshrl.u32 %v3154, 7
      %v3156 = vsub.s32 %v3153, %v3155
      %v3157 = vrot.slane %v3143, %v3156
      %v3158 = vcombine.low %v3102, %v3118
      %v3159 = vcombine.high %v3102, %v3118
      %v3161 = vunpack.c.l.s4 1934713408
      %v3162 = vunpack.c.0.s8 %v3161
      %v3163 = vlaneseq
      %v3164 = vshrl.u32 %v3163, 7
      %v3165 = vsub.s32 %v3162, %v3164
      %v3166 = vrot.slane %v3158, %v3165
      %v3168 = vunpack.c.l.s4 1934713408
      %v3169 = vunpack.c.0.s8 %v3168
      %v3170 = vlaneseq
      %v3171 = vshrl.u32 %v3170, 7
      %v3172 = vsub.s32 %v3169, %v3171
      %v3173 = vrot.slane %v3159, %v3172
      %v3174 = vcombine.low %v3109, %v3125
      %v3175 = vcombine.high %v3109, %v3125
      %v3177 = vunpack.c.l.s4 1934713408
      %v3178 = vunpack.c.0.s8 %v3177
      %v3179 = vlaneseq
      %v3180 = vshrl.u32 %v3179, 7
      %v3181 = vsub.s32 %v3178, %v3180
      %v3182 = vrot.slane %v3174, %v3181
      %v3184 = vunpack.c.l.s4 1934713408
      %v3185 = vunpack.c.0.s8 %v3184
      %v3186 = vlaneseq
      %v3187 = vshrl.u32 %v3186, 7
      %v3188 = vsub.s32 %v3185, %v3187
      %v3189 = vrot.slane %v3175, %v3188
      %v3190 = vcombine.low %v3134, %v3166
      %v3191 = vcombine.high %v3134, %v3166
      %v3192 = vcombine.low %v3141, %v3173
      %v3193 = vcombine.high %v3141, %v3173
      %v3194 = vcombine.low %v3150, %v3182
      %v3195 = vcombine.high %v3150, %v3182
      %v3196 = vcombine.low %v3157, %v3189
      %v3197 = vcombine.high %v3157, %v3189
      %v3198 = vpack.c.bf16 %v3190, %v3190
      %v3199 = vpack.c.bf16 %v3191, %v3191
      %v3200 = vpack.c.bf16 %v3192, %v3192
      %v3201 = vpack.c.bf16 %v3193, %v3193
      %v3202 = vpack.c.bf16 %v3194, %v3194
      %v3203 = vpack.c.bf16 %v3195, %v3195
      %v3204 = vpack.c.bf16 %v3196, %v3196
      %v3205 = vpack.c.bf16 %v3197, %v3197
      %v3207 = vsel %vm1294, %v2866, 0
      %v3210 = vsel %vm1294, %v3032, 0
      %3212 = vmatprep.subr.bf16.mxu0 0
      %3213 = vmatpush1.bf16.xpose.msra.mxu0 0
      %3214 = vmatprep.subr.bf16.mxu0 0
      %3215 = vmatpush1.bf16.xpose.msra.mxu0 0
      %3216 = vmatprep.subr.bf16.mxu0 0
      %3217 = vmatpush1.bf16.xpose.msra.mxu0 0
      %3218 = vmatprep.subr.bf16.mxu0 0
      %3219 = vmatpush1.bf16.xpose.msra.mxu0 0
      %3220 = vmatprep.subr.bf16.mxu0 0
      %3221 = vmatpush1.bf16.xpose.msra.mxu0 0
      %3222 = vmatprep.subr.bf16.mxu0 0
      %3223 = vmatpush1.bf16.xpose.msra.mxu0 0
      %3224 = vmatprep.subr.bf16.mxu0 0
      %3225 = vmatpush1.bf16.xpose.msra.mxu0 0
      %3226 = vmatprep.subr.bf16.mxu0 0
      %3227 = vmatpush1.bf16.xpose.msra.mxu0 %v3210
      %3228 = vmatprep.subr.bf16.mxu0 0
      %3229 = vmatpush2.bf16.xpose.msra.mxu0 0
      %3230 = vmatprep.subr.bf16.mxu0 0
      %3231 = vmatpush2.bf16.xpose.msra.mxu0 0
      %3232 = vmatprep.subr.bf16.mxu0 0
      %3233 = vmatpush2.bf16.xpose.msra.mxu0 0
      %3234 = vmatprep.subr.bf16.mxu0 0
      %3235 = vmatpush2.bf16.xpose.msra.mxu0 0
      %3236 = vmatprep.subr.bf16.mxu0 0
      %3237 = vmatpush2.bf16.xpose.msra.mxu0 0
      %3238 = vmatprep.subr.bf16.mxu0 0
      %3239 = vmatpush2.bf16.xpose.msra.mxu0 0
      %3240 = vmatprep.subr.bf16.mxu0 0
      %3241 = vmatpush2.bf16.xpose.msra.mxu0 0
      %3242 = vmatprep.subr.bf16.mxu0 0
      %3243 = vmatpush2.bf16.xpose.msra.mxu0 0
      %3244 = vmatprep.mubr.bf16.mxu0 0
      %3245 = vmatmul.mubr.bf16.gmra.mxu0 %v3207
      %v3246 = vpop.f32.mrf.mxu0
      %v3247 = vadd.f32 0.0, %v3246
      %v3248 = vpop.f32.mrf.mxu0
      %v3249 = vpop.f32.mrf.mxu0
      %v3250 = vpop.f32.mrf.mxu0
      %3251 = vdwg.mxu0
      %v3253 = vsel %vm1294, %v2867, 0
      %v3256 = vsel %vm1294, %v3033, 0
      %3258 = vmatprep.subr.bf16.mxu0 0
      %3259 = vmatpush1.bf16.xpose.msra.mxu0 0
      %3260 = vmatprep.subr.bf16.mxu0 0
      %3261 = vmatpush1.bf16.xpose.msra.mxu0 0
      %3262 = vmatprep.subr.bf16.mxu0 0
      %3263 = vmatpush1.bf16.xpose.msra.mxu0 0
      %3264 = vmatprep.subr.bf16.mxu0 0
      %3265 = vmatpush1.bf16.xpose.msra.mxu0 0
      %3266 = vmatprep.subr.bf16.mxu0 0
      %3267 = vmatpush1.bf16.xpose.msra.mxu0 0
      %3268 = vmatprep.subr.bf16.mxu0 0
      %3269 = vmatpush1.bf16.xpose.msra.mxu0 0
      %3270 = vmatprep.subr.bf16.mxu0 0
      %3271 = vmatpush1.bf16.xpose.msra.mxu0 0
      %3272 = vmatprep.subr.bf16.mxu0 0
      %3273 = vmatpush1.bf16.xpose.msra.mxu0 %v3256
      %3274 = vmatprep.subr.bf16.mxu0 0
      %3275 = vmatpush2.bf16.xpose.msra.mxu0 0
      %3276 = vmatprep.subr.bf16.mxu0 0
      %3277 = vmatpush2.bf16.xpose.msra.mxu0 0
      %3278 = vmatprep.subr.bf16.mxu0 0
      %3279 = vmatpush2.bf16.xpose.msra.mxu0 0
      %3280 = vmatprep.subr.bf16.mxu0 0
      %3281 = vmatpush2.bf16.xpose.msra.mxu0 0
      %3282 = vmatprep.subr.bf16.mxu0 0
      %3283 = vmatpush2.bf16.xpose.msra.mxu0 0
      %3284 = vmatprep.subr.bf16.mxu0 0
      %3285 = vmatpush2.bf16.xpose.msra.mxu0 0
      %3286 = vmatprep.subr.bf16.mxu0 0
      %3287 = vmatpush2.bf16.xpose.msra.mxu0 0
      %3288 = vmatprep.subr.bf16.mxu0 0
      %3289 = vmatpush2.bf16.xpose.msra.mxu0 0
      %3290 = vmatprep.mubr.bf16.mxu0 0
      %3291 = vmatmul.mubr.bf16.gmra.mxu0 %v3253
      %v3292 = vpop.f32.mrf.mxu0
      %v3293 = vadd.f32 0.0, %v3292
      %v3294 = vpop.f32.mrf.mxu0
      %v3295 = vpop.f32.mrf.mxu0
      %v3296 = vpop.f32.mrf.mxu0
      %3297 = vdwg.mxu0
      %v3299 = vsel %vm1294, %v2868, 0
      %v3302 = vsel %vm1294, %v3034, 0
      %3304 = vmatprep.subr.bf16.mxu0 0
      %3305 = vmatpush1.bf16.xpose.msra.mxu0 0
      %3306 = vmatprep.subr.bf16.mxu0 0
      %3307 = vmatpush1.bf16.xpose.msra.mxu0 0
      %3308 = vmatprep.subr.bf16.mxu0 0
      %3309 = vmatpush1.bf16.xpose.msra.mxu0 0
      %3310 = vmatprep.subr.bf16.mxu0 0
      %3311 = vmatpush1.bf16.xpose.msra.mxu0 0
      %3312 = vmatprep.subr.bf16.mxu0 0
      %3313 = vmatpush1.bf16.xpose.msra.mxu0 0
      %3314 = vmatprep.subr.bf16.mxu0 0
      %3315 = vmatpush1.bf16.xpose.msra.mxu0 0
      %3316 = vmatprep.subr.bf16.mxu0 0
      %3317 = vmatpush1.bf16.xpose.msra.mxu0 0
      %3318 = vmatprep.subr.bf16.mxu0 0
      %3319 = vmatpush1.bf16.xpose.msra.mxu0 %v3302
      %3320 = vmatprep.subr.bf16.mxu0 0
      %3321 = vmatpush2.bf16.xpose.msra.mxu0 0
      %3322 = vmatprep.subr.bf16.mxu0 0
      %3323 = vmatpush2.bf16.xpose.msra.mxu0 0
      %3324 = vmatprep.subr.bf16.mxu0 0
      %3325 = vmatpush2.bf16.xpose.msra.mxu0 0
      %3326 = vmatprep.subr.bf16.mxu0 0
      %3327 = vmatpush2.bf16.xpose.msra.mxu0 0
      %3328 = vmatprep.subr.bf16.mxu0 0
      %3329 = vmatpush2.bf16.xpose.msra.mxu0 0
      %3330 = vmatprep.subr.bf16.mxu0 0
      %3331 = vmatpush2.bf16.xpose.msra.mxu0 0
      %3332 = vmatprep.subr.bf16.mxu0 0
      %3333 = vmatpush2.bf16.xpose.msra.mxu0 0
      %3334 = vmatprep.subr.bf16.mxu0 0
      %3335 = vmatpush2.bf16.xpose.msra.mxu0 0
      %3336 = vmatprep.mubr.bf16.mxu0 0
      %3337 = vmatmul.mubr.bf16.gmra.mxu0 %v3299
      %v3338 = vpop.f32.mrf.mxu0
      %v3339 = vadd.f32 0.0, %v3338
      %v3340 = vpop.f32.mrf.mxu0
      %v3341 = vpop.f32.mrf.mxu0
      %v3342 = vpop.f32.mrf.mxu0
      %3343 = vdwg.mxu0
      %v3345 = vsel %vm1294, %v2869, 0
      %v3348 = vsel %vm1294, %v3035, 0
      %3350 = vmatprep.subr.bf16.mxu0 0
      %3351 = vmatpush1.bf16.xpose.msra.mxu0 0
      %3352 = vmatprep.subr.bf16.mxu0 0
      %3353 = vmatpush1.bf16.xpose.msra.mxu0 0
      %3354 = vmatprep.subr.bf16.mxu0 0
      %3355 = vmatpush1.bf16.xpose.msra.mxu0 0
      %3356 = vmatprep.subr.bf16.mxu0 0
      %3357 = vmatpush1.bf16.xpose.msra.mxu0 0
      %3358 = vmatprep.subr.bf16.mxu0 0
      %3359 = vmatpush1.bf16.xpose.msra.mxu0 0
      %3360 = vmatprep.subr.bf16.mxu0 0
      %3361 = vmatpush1.bf16.xpose.msra.mxu0 0
      %3362 = vmatprep.subr.bf16.mxu0 0
      %3363 = vmatpush1.bf16.xpose.msra.mxu0 0
      %3364 = vmatprep.subr.bf16.mxu0 0
      %3365 = vmatpush1.bf16.xpose.msra.mxu0 %v3348
      %3366 = vmatprep.subr.bf16.mxu0 0
      %3367 = vmatpush2.bf16.xpose.msra.mxu0 0
      %3368 = vmatprep.subr.bf16.mxu0 0
      %3369 = vmatpush2.bf16.xpose.msra.mxu0 0
      %3370 = vmatprep.subr.bf16.mxu0 0
      %3371 = vmatpush2.bf16.xpose.msra.mxu0 0
      %3372 = vmatprep.subr.bf16.mxu0 0
      %3373 = vmatpush2.bf16.xpose.msra.mxu0 0
      %3374 = vmatprep.subr.bf16.mxu0 0
      %3375 = vmatpush2.bf16.xpose.msra.mxu0 0
      %3376 = vmatprep.subr.bf16.mxu0 0
      %3377 = vmatpush2.bf16.xpose.msra.mxu0 0
      %3378 = vmatprep.subr.bf16.mxu0 0
      %3379 = vmatpush2.bf16.xpose.msra.mxu0 0
      %3380 = vmatprep.subr.bf16.mxu0 0
      %3381 = vmatpush2.bf16.xpose.msra.mxu0 0
      %3382 = vmatprep.mubr.bf16.mxu0 0
      %3383 = vmatmul.mubr.bf16.gmra.mxu0 %v3345
      %v3384 = vpop.f32.mrf.mxu0
      %v3385 = vadd.f32 0.0, %v3384
      %v3386 = vpop.f32.mrf.mxu0
      %v3387 = vpop.f32.mrf.mxu0
      %v3388 = vpop.f32.mrf.mxu0
      %3389 = vdwg.mxu0
      %v3391 = vsel %vm1294, %v2870, 0
      %v3394 = vsel %vm1294, %v3036, 0
      %3396 = vmatprep.subr.bf16.mxu0 0
      %3397 = vmatpush1.bf16.xpose.msra.mxu0 0
      %3398 = vmatprep.subr.bf16.mxu0 0
      %3399 = vmatpush1.bf16.xpose.msra.mxu0 0
      %3400 = vmatprep.subr.bf16.mxu0 0
      %3401 = vmatpush1.bf16.xpose.msra.mxu0 0
      %3402 = vmatprep.subr.bf16.mxu0 0
      %3403 = vmatpush1.bf16.xpose.msra.mxu0 0
      %3404 = vmatprep.subr.bf16.mxu0 0
      %3405 = vmatpush1.bf16.xpose.msra.mxu0 0
      %3406 = vmatprep.subr.bf16.mxu0 0
      %3407 = vmatpush1.bf16.xpose.msra.mxu0 0
      %3408 = vmatprep.subr.bf16.mxu0 0
      %3409 = vmatpush1.bf16.xpose.msra.mxu0 0
      %3410 = vmatprep.subr.bf16.mxu0 0
      %3411 = vmatpush1.bf16.xpose.msra.mxu0 %v3394
      %3412 = vmatprep.subr.bf16.mxu0 0
      %3413 = vmatpush2.bf16.xpose.msra.mxu0 0
      %3414 = vmatprep.subr.bf16.mxu0 0
      %3415 = vmatpush2.bf16.xpose.msra.mxu0 0
      %3416 = vmatprep.subr.bf16.mxu0 0
      %3417 = vmatpush2.bf16.xpose.msra.mxu0 0
      %3418 = vmatprep.subr.bf16.mxu0 0
      %3419 = vmatpush2.bf16.xpose.msra.mxu0 0
      %3420 = vmatprep.subr.bf16.mxu0 0
      %3421 = vmatpush2.bf16.xpose.msra.mxu0 0
      %3422 = vmatprep.subr.bf16.mxu0 0
      %3423 = vmatpush2.bf16.xpose.msra.mxu0 0
      %3424 = vmatprep.subr.bf16.mxu0 0
      %3425 = vmatpush2.bf16.xpose.msra.mxu0 0
      %3426 = vmatprep.subr.bf16.mxu0 0
      %3427 = vmatpush2.bf16.xpose.msra.mxu0 0
      %3428 = vmatprep.mubr.bf16.mxu0 0
      %3429 = vmatmul.mubr.bf16.gmra.mxu0 %v3391
      %v3430 = vpop.f32.mrf.mxu0
      %v3431 = vadd.f32 0.0, %v3430
      %v3432 = vpop.f32.mrf.mxu0
      %v3433 = vpop.f32.mrf.mxu0
      %v3434 = vpop.f32.mrf.mxu0
      %3435 = vdwg.mxu0
      %v3437 = vsel %vm1294, %v2871, 0
      %v3440 = vsel %vm1294, %v3037, 0
      %3442 = vmatprep.subr.bf16.mxu0 0
      %3443 = vmatpush1.bf16.xpose.msra.mxu0 0
      %3444 = vmatprep.subr.bf16.mxu0 0
      %3445 = vmatpush1.bf16.xpose.msra.mxu0 0
      %3446 = vmatprep.subr.bf16.mxu0 0
      %3447 = vmatpush1.bf16.xpose.msra.mxu0 0
      %3448 = vmatprep.subr.bf16.mxu0 0
      %3449 = vmatpush1.bf16.xpose.msra.mxu0 0
      %3450 = vmatprep.subr.bf16.mxu0 0
      %3451 = vmatpush1.bf16.xpose.msra.mxu0 0
      %3452 = vmatprep.subr.bf16.mxu0 0
      %3453 = vmatpush1.bf16.xpose.msra.mxu0 0
      %3454 = vmatprep.subr.bf16.mxu0 0
      %3455 = vmatpush1.bf16.xpose.msra.mxu0 0
      %3456 = vmatprep.subr.bf16.mxu0 0
      %3457 = vmatpush1.bf16.xpose.msra.mxu0 %v3440
      %3458 = vmatprep.subr.bf16.mxu0 0
      %3459 = vmatpush2.bf16.xpose.msra.mxu0 0
      %3460 = vmatprep.subr.bf16.mxu0 0
      %3461 = vmatpush2.bf16.xpose.msra.mxu0 0
      %3462 = vmatprep.subr.bf16.mxu0 0
      %3463 = vmatpush2.bf16.xpose.msra.mxu0 0
      %3464 = vmatprep.subr.bf16.mxu0 0
      %3465 = vmatpush2.bf16.xpose.msra.mxu0 0
      %3466 = vmatprep.subr.bf16.mxu0 0
      %3467 = vmatpush2.bf16.xpose.msra.mxu0 0
      %3468 = vmatprep.subr.bf16.mxu0 0
      %3469 = vmatpush2.bf16.xpose.msra.mxu0 0
      %3470 = vmatprep.subr.bf16.mxu0 0
      %3471 = vmatpush2.bf16.xpose.msra.mxu0 0
      %3472 = vmatprep.subr.bf16.mxu0 0
      %3473 = vmatpush2.bf16.xpose.msra.mxu0 0
      %3474 = vmatprep.mubr.bf16.mxu0 0
      %3475 = vmatmul.mubr.bf16.gmra.mxu0 %v3437
      %v3476 = vpop.f32.mrf.mxu0
      %v3477 = vadd.f32 0.0, %v3476
      %v3478 = vpop.f32.mrf.mxu0
      %v3479 = vpop.f32.mrf.mxu0
      %v3480 = vpop.f32.mrf.mxu0
      %3481 = vdwg.mxu0
      %v3483 = vsel %vm1294, %v2872, 0
      %v3486 = vsel %vm1294, %v3038, 0
      %3488 = vmatprep.subr.bf16.mxu0 0
      %3489 = vmatpush1.bf16.xpose.msra.mxu0 0
      %3490 = vmatprep.subr.bf16.mxu0 0
      %3491 = vmatpush1.bf16.xpose.msra.mxu0 0
      %3492 = vmatprep.subr.bf16.mxu0 0
      %3493 = vmatpush1.bf16.xpose.msra.mxu0 0
      %3494 = vmatprep.subr.bf16.mxu0 0
      %3495 = vmatpush1.bf16.xpose.msra.mxu0 0
      %3496 = vmatprep.subr.bf16.mxu0 0
      %3497 = vmatpush1.bf16.xpose.msra.mxu0 0
      %3498 = vmatprep.subr.bf16.mxu0 0
      %3499 = vmatpush1.bf16.xpose.msra.mxu0 0
      %3500 = vmatprep.subr.bf16.mxu0 0
      %3501 = vmatpush1.bf16.xpose.msra.mxu0 0
      %3502 = vmatprep.subr.bf16.mxu0 0
      %3503 = vmatpush1.bf16.xpose.msra.mxu0 %v3486
      %3504 = vmatprep.subr.bf16.mxu0 0
      %3505 = vmatpush2.bf16.xpose.msra.mxu0 0
      %3506 = vmatprep.subr.bf16.mxu0 0
      %3507 = vmatpush2.bf16.xpose.msra.mxu0 0
      %3508 = vmatprep.subr.bf16.mxu0 0
      %3509 = vmatpush2.bf16.xpose.msra.mxu0 0
      %3510 = vmatprep.subr.bf16.mxu0 0
      %3511 = vmatpush2.bf16.xpose.msra.mxu0 0
      %3512 = vmatprep.subr.bf16.mxu0 0
      %3513 = vmatpush2.bf16.xpose.msra.mxu0 0
      %3514 = vmatprep.subr.bf16.mxu0 0
      %3515 = vmatpush2.bf16.xpose.msra.mxu0 0
      %3516 = vmatprep.subr.bf16.mxu0 0
      %3517 = vmatpush2.bf16.xpose.msra.mxu0 0
      %3518 = vmatprep.subr.bf16.mxu0 0
      %3519 = vmatpush2.bf16.xpose.msra.mxu0 0
      %3520 = vmatprep.mubr.bf16.mxu0 0
      %3521 = vmatmul.mubr.bf16.gmra.mxu0 %v3483
      %v3522 = vpop.f32.mrf.mxu0
      %v3523 = vadd.f32 0.0, %v3522
      %v3524 = vpop.f32.mrf.mxu0
      %v3525 = vpop.f32.mrf.mxu0
      %v3526 = vpop.f32.mrf.mxu0
      %3527 = vdwg.mxu0
      %v3529 = vsel %vm1294, %v2873, 0
      %v3532 = vsel %vm1294, %v3039, 0
      %3534 = vmatprep.subr.bf16.mxu0 0
      %3535 = vmatpush1.bf16.xpose.msra.mxu0 0
      %3536 = vmatprep.subr.bf16.mxu0 0
      %3537 = vmatpush1.bf16.xpose.msra.mxu0 0
      %3538 = vmatprep.subr.bf16.mxu0 0
      %3539 = vmatpush1.bf16.xpose.msra.mxu0 0
      %3540 = vmatprep.subr.bf16.mxu0 0
      %3541 = vmatpush1.bf16.xpose.msra.mxu0 0
      %3542 = vmatprep.subr.bf16.mxu0 0
      %3543 = vmatpush1.bf16.xpose.msra.mxu0 0
      %3544 = vmatprep.subr.bf16.mxu0 0
      %3545 = vmatpush1.bf16.xpose.msra.mxu0 0
      %3546 = vmatprep.subr.bf16.mxu0 0
      %3547 = vmatpush1.bf16.xpose.msra.mxu0 0
      %3548 = vmatprep.subr.bf16.mxu0 0
      %3549 = vmatpush1.bf16.xpose.msra.mxu0 %v3532
      %3550 = vmatprep.subr.bf16.mxu0 0
      %3551 = vmatpush2.bf16.xpose.msra.mxu0 0
      %3552 = vmatprep.subr.bf16.mxu0 0
      %3553 = vmatpush2.bf16.xpose.msra.mxu0 0
      %3554 = vmatprep.subr.bf16.mxu0 0
      %3555 = vmatpush2.bf16.xpose.msra.mxu0 0
      %3556 = vmatprep.subr.bf16.mxu0 0
      %3557 = vmatpush2.bf16.xpose.msra.mxu0 0
      %3558 = vmatprep.subr.bf16.mxu0 0
      %3559 = vmatpush2.bf16.xpose.msra.mxu0 0
      %3560 = vmatprep.subr.bf16.mxu0 0
      %3561 = vmatpush2.bf16.xpose.msra.mxu0 0
      %3562 = vmatprep.subr.bf16.mxu0 0
      %3563 = vmatpush2.bf16.xpose.msra.mxu0 0
      %3564 = vmatprep.subr.bf16.mxu0 0
      %3565 = vmatpush2.bf16.xpose.msra.mxu0 0
      %3566 = vmatprep.mubr.bf16.mxu0 0
      %3567 = vmatmul.mubr.bf16.gmra.mxu0 %v3529
      %v3568 = vpop.f32.mrf.mxu0
      %v3569 = vadd.f32 0.0, %v3568
      %v3570 = vpop.f32.mrf.mxu0
      %v3571 = vpop.f32.mrf.mxu0
      %v3572 = vpop.f32.mrf.mxu0
      %3573 = vdwg.mxu0
      %v3574 = vsel %vm1663, %v3247, -inf
      %3575 = vmax.xlane.f32.xlu0 %v3574
      %v3576 = vpop.xlane.xlu0 %3575
      %v3577 = vsel %vm1663, %v3293, -inf
      %3578 = vmax.xlane.f32.xlu0 %v3577
      %v3579 = vpop.xlane.xlu0 %3578
      %v3580 = vsel %vm1663, %v3339, -inf
      %3581 = vmax.xlane.f32.xlu0 %v3580
      %v3582 = vpop.xlane.xlu0 %3581
      %v3583 = vsel %vm1663, %v3385, -inf
      %3584 = vmax.xlane.f32.xlu0 %v3583
      %v3585 = vpop.xlane.xlu0 %3584
      %v3586 = vsel %vm1663, %v3431, -inf
      %3587 = vmax.xlane.f32.xlu0 %v3586
      %v3588 = vpop.xlane.xlu0 %3587
      %v3589 = vsel %vm1663, %v3477, -inf
      %3590 = vmax.xlane.f32.xlu0 %v3589
      %v3591 = vpop.xlane.xlu0 %3590
      %v3592 = vsel %vm1663, %v3523, -inf
      %3593 = vmax.xlane.f32.xlu0 %v3592
      %v3594 = vpop.xlane.xlu0 %3593
      %v3595 = vsel %vm1663, %v3569, -inf
      %3596 = vmax.xlane.f32.xlu0 %v3595
      %v3597 = vpop.xlane.xlu0 %3596
      %v3598 = vsub.f32 %v3247, %v3576
      %v3599 = vsub.f32 %v3293, %v3579
      %v3600 = vsub.f32 %v3339, %v3582
      %v3601 = vsub.f32 %v3385, %v3585
      %v3602 = vsub.f32 %v3431, %v3588
      %v3603 = vsub.f32 %v3477, %v3591
      %v3604 = vsub.f32 %v3523, %v3594
      %v3605 = vsub.f32 %v3569, %v3597
      %v3606 = vmul.f32 %v3598, 1.442695
      %v3607 = vpow.pop %v3606
      %v3608 = vmul.f32 %v3599, 1.442695
      %v3609 = vpow.pop %v3608
      %v3610 = vmul.f32 %v3600, 1.442695
      %v3611 = vpow.pop %v3610
      %v3612 = vmul.f32 %v3601, 1.442695
      %v3613 = vpow.pop %v3612
      %v3614 = vmul.f32 %v3602, 1.442695
      %v3615 = vpow.pop %v3614
      %v3616 = vmul.f32 %v3603, 1.442695
      %v3617 = vpow.pop %v3616
      %v3618 = vmul.f32 %v3604, 1.442695
      %v3619 = vpow.pop %v3618
      %v3620 = vmul.f32 %v3605, 1.442695
      %v3621 = vpow.pop %v3620
      %v3622 = vsel %vm1663, %v3607, 0.0
      %3623 = vadd.xlane.f32.xlu0 %v3622
      %v3624 = vpop.xlane.xlu0 %3623
      %v3625 = vsel %vm1663, %v3609, 0.0
      %3626 = vadd.xlane.f32.xlu0 %v3625
      %v3627 = vpop.xlane.xlu0 %3626
      %v3628 = vsel %vm1663, %v3611, 0.0
      %3629 = vadd.xlane.f32.xlu0 %v3628
      %v3630 = vpop.xlane.xlu0 %3629
      %v3631 = vsel %vm1663, %v3613, 0.0
      %3632 = vadd.xlane.f32.xlu0 %v3631
      %v3633 = vpop.xlane.xlu0 %3632
      %v3634 = vsel %vm1663, %v3615, 0.0
      %3635 = vadd.xlane.f32.xlu0 %v3634
      %v3636 = vpop.xlane.xlu0 %3635
      %v3637 = vsel %vm1663, %v3617, 0.0
      %3638 = vadd.xlane.f32.xlu0 %v3637
      %v3639 = vpop.xlane.xlu0 %3638
      %v3640 = vsel %vm1663, %v3619, 0.0
      %3641 = vadd.xlane.f32.xlu0 %v3640
      %v3642 = vpop.xlane.xlu0 %3641
      %v3643 = vsel %vm1663, %v3621, 0.0
      %3644 = vadd.xlane.f32.xlu0 %v3643
      %v3645 = vpop.xlane.xlu0 %3644
      %v3646 = vrcp.pop %v3624
      %v3647 = vrcp.pop %v3627
      %v3648 = vrcp.pop %v3630
      %v3649 = vrcp.pop %v3633
      %v3650 = vrcp.pop %v3636
      %v3651 = vrcp.pop %v3639
      %v3652 = vrcp.pop %v3642
      %v3653 = vrcp.pop %v3645
      %v3654 = vmul.f32 %v3607, %v3646
      %v3655 = vmul.f32 %v3609, %v3647
      %v3656 = vmul.f32 %v3611, %v3648
      %v3657 = vmul.f32 %v3613, %v3649
      %v3658 = vmul.f32 %v3615, %v3650
      %v3659 = vmul.f32 %v3617, %v3651
      %v3660 = vmul.f32 %v3619, %v3652
      %v3661 = vmul.f32 %v3621, %v3653
      %v3662 = vpack.c.bf16 %v3654, %v3654
      %v3663 = vpack.c.bf16 %v3655, %v3655
      %v3664 = vpack.c.bf16 %v3656, %v3656
      %v3665 = vpack.c.bf16 %v3657, %v3657
      %v3666 = vpack.c.bf16 %v3658, %v3658
      %v3667 = vpack.c.bf16 %v3659, %v3659
      %v3668 = vpack.c.bf16 %v3660, %v3660
      %v3669 = vpack.c.bf16 %v3661, %v3661
      %v3671 = vsel %vm1663, %v3662, 0
      %v3674 = vsel %vm1763, %v3198, 0
      %3676 = vmatprep.subr.bf16.mxu0 0
      %3677 = vmatpush1.bf16.msra.mxu0 0
      %3678 = vmatprep.subr.bf16.mxu0 0
      %3679 = vmatpush1.bf16.msra.mxu0 0
      %3680 = vmatprep.subr.bf16.mxu0 0
      %3681 = vmatpush1.bf16.msra.mxu0 0
      %3682 = vmatprep.subr.bf16.mxu0 0
      %3683 = vmatpush1.bf16.msra.mxu0 0
      %3684 = vmatprep.subr.bf16.mxu0 0
      %3685 = vmatpush1.bf16.msra.mxu0 0
      %3686 = vmatprep.subr.bf16.mxu0 0
      %3687 = vmatpush1.bf16.msra.mxu0 0
      %3688 = vmatprep.subr.bf16.mxu0 0
      %3689 = vmatpush1.bf16.msra.mxu0 0
      %3690 = vmatprep.subr.bf16.mxu0 0
      %3691 = vmatpush1.bf16.msra.mxu0 %v3674
      %3692 = vmatprep.subr.bf16.mxu0 0
      %3693 = vmatpush2.bf16.msra.mxu0 0
      %3694 = vmatprep.subr.bf16.mxu0 0
      %3695 = vmatpush2.bf16.msra.mxu0 0
      %3696 = vmatprep.subr.bf16.mxu0 0
      %3697 = vmatpush2.bf16.msra.mxu0 0
      %3698 = vmatprep.subr.bf16.mxu0 0
      %3699 = vmatpush2.bf16.msra.mxu0 0
      %3700 = vmatprep.subr.bf16.mxu0 0
      %3701 = vmatpush2.bf16.msra.mxu0 0
      %3702 = vmatprep.subr.bf16.mxu0 0
      %3703 = vmatpush2.bf16.msra.mxu0 0
      %3704 = vmatprep.subr.bf16.mxu0 0
      %3705 = vmatpush2.bf16.msra.mxu0 0
      %3706 = vmatprep.subr.bf16.mxu0 0
      %3707 = vmatpush2.bf16.msra.mxu0 0
      %3708 = vmatprep.mubr.bf16.mxu0 0
      %3709 = vmatmul.mubr.bf16.gmra.mxu0 %v3671
      %v3710 = vpop.f32.mrf.mxu0
      %v3711 = vadd.f32 0.0, %v3710
      %v3712 = vpop.f32.mrf.mxu0
      %v3713 = vpop.f32.mrf.mxu0
      %v3714 = vpop.f32.mrf.mxu0
      %3715 = vdwg.mxu0
      %v3717 = vsel %vm1663, %v3663, 0
      %v3720 = vsel %vm1763, %v3199, 0
      %3722 = vmatprep.subr.bf16.mxu0 0
      %3723 = vmatpush1.bf16.msra.mxu0 0
      %3724 = vmatprep.subr.bf16.mxu0 0
      %3725 = vmatpush1.bf16.msra.mxu0 0
      %3726 = vmatprep.subr.bf16.mxu0 0
      %3727 = vmatpush1.bf16.msra.mxu0 0
      %3728 = vmatprep.subr.bf16.mxu0 0
      %3729 = vmatpush1.bf16.msra.mxu0 0
      %3730 = vmatprep.subr.bf16.mxu0 0
      %3731 = vmatpush1.bf16.msra.mxu0 0
      %3732 = vmatprep.subr.bf16.mxu0 0
      %3733 = vmatpush1.bf16.msra.mxu0 0
      %3734 = vmatprep.subr.bf16.mxu0 0
      %3735 = vmatpush1.bf16.msra.mxu0 0
      %3736 = vmatprep.subr.bf16.mxu0 0
      %3737 = vmatpush1.bf16.msra.mxu0 %v3720
      %3738 = vmatprep.subr.bf16.mxu0 0
      %3739 = vmatpush2.bf16.msra.mxu0 0
      %3740 = vmatprep.subr.bf16.mxu0 0
      %3741 = vmatpush2.bf16.msra.mxu0 0
      %3742 = vmatprep.subr.bf16.mxu0 0
      %3743 = vmatpush2.bf16.msra.mxu0 0
      %3744 = vmatprep.subr.bf16.mxu0 0
      %3745 = vmatpush2.bf16.msra.mxu0 0
      %3746 = vmatprep.subr.bf16.mxu0 0
      %3747 = vmatpush2.bf16.msra.mxu0 0
      %3748 = vmatprep.subr.bf16.mxu0 0
      %3749 = vmatpush2.bf16.msra.mxu0 0
      %3750 = vmatprep.subr.bf16.mxu0 0
      %3751 = vmatpush2.bf16.msra.mxu0 0
      %3752 = vmatprep.subr.bf16.mxu0 0
      %3753 = vmatpush2.bf16.msra.mxu0 0
      %3754 = vmatprep.mubr.bf16.mxu0 0
      %3755 = vmatmul.mubr.bf16.gmra.mxu0 %v3717
      %v3756 = vpop.f32.mrf.mxu0
      %v3757 = vadd.f32 0.0, %v3756
      %v3758 = vpop.f32.mrf.mxu0
      %v3759 = vpop.f32.mrf.mxu0
      %v3760 = vpop.f32.mrf.mxu0
      %3761 = vdwg.mxu0
      %v3763 = vsel %vm1663, %v3664, 0
      %v3766 = vsel %vm1763, %v3200, 0
      %3768 = vmatprep.subr.bf16.mxu0 0
      %3769 = vmatpush1.bf16.msra.mxu0 0
      %3770 = vmatprep.subr.bf16.mxu0 0
      %3771 = vmatpush1.bf16.msra.mxu0 0
      %3772 = vmatprep.subr.bf16.mxu0 0
      %3773 = vmatpush1.bf16.msra.mxu0 0
      %3774 = vmatprep.subr.bf16.mxu0 0
      %3775 = vmatpush1.bf16.msra.mxu0 0
      %3776 = vmatprep.subr.bf16.mxu0 0
      %3777 = vmatpush1.bf16.msra.mxu0 0
      %3778 = vmatprep.subr.bf16.mxu0 0
      %3779 = vmatpush1.bf16.msra.mxu0 0
      %3780 = vmatprep.subr.bf16.mxu0 0
      %3781 = vmatpush1.bf16.msra.mxu0 0
      %3782 = vmatprep.subr.bf16.mxu0 0
      %3783 = vmatpush1.bf16.msra.mxu0 %v3766
      %3784 = vmatprep.subr.bf16.mxu0 0
      %3785 = vmatpush2.bf16.msra.mxu0 0
      %3786 = vmatprep.subr.bf16.mxu0 0
      %3787 = vmatpush2.bf16.msra.mxu0 0
      %3788 = vmatprep.subr.bf16.mxu0 0
      %3789 = vmatpush2.bf16.msra.mxu0 0
      %3790 = vmatprep.subr.bf16.mxu0 0
      %3791 = vmatpush2.bf16.msra.mxu0 0
      %3792 = vmatprep.subr.bf16.mxu0 0
      %3793 = vmatpush2.bf16.msra.mxu0 0
      %3794 = vmatprep.subr.bf16.mxu0 0
      %3795 = vmatpush2.bf16.msra.mxu0 0
      %3796 = vmatprep.subr.bf16.mxu0 0
      %3797 = vmatpush2.bf16.msra.mxu0 0
      %3798 = vmatprep.subr.bf16.mxu0 0
      %3799 = vmatpush2.bf16.msra.mxu0 0
      %3800 = vmatprep.mubr.bf16.mxu0 0
      %3801 = vmatmul.mubr.bf16.gmra.mxu0 %v3763
      %v3802 = vpop.f32.mrf.mxu0
      %v3803 = vadd.f32 0.0, %v3802
      %v3804 = vpop.f32.mrf.mxu0
      %v3805 = vpop.f32.mrf.mxu0
      %v3806 = vpop.f32.mrf.mxu0
      %3807 = vdwg.mxu0
      %v3809 = vsel %vm1663, %v3665, 0
      %v3812 = vsel %vm1763, %v3201, 0
      %3814 = vmatprep.subr.bf16.mxu0 0
      %3815 = vmatpush1.bf16.msra.mxu0 0
      %3816 = vmatprep.subr.bf16.mxu0 0
      %3817 = vmatpush1.bf16.msra.mxu0 0
      %3818 = vmatprep.subr.bf16.mxu0 0
      %3819 = vmatpush1.bf16.msra.mxu0 0
      %3820 = vmatprep.subr.bf16.mxu0 0
      %3821 = vmatpush1.bf16.msra.mxu0 0
      %3822 = vmatprep.subr.bf16.mxu0 0
      %3823 = vmatpush1.bf16.msra.mxu0 0
      %3824 = vmatprep.subr.bf16.mxu0 0
      %3825 = vmatpush1.bf16.msra.mxu0 0
      %3826 = vmatprep.subr.bf16.mxu0 0
      %3827 = vmatpush1.bf16.msra.mxu0 0
      %3828 = vmatprep.subr.bf16.mxu0 0
      %3829 = vmatpush1.bf16.msra.mxu0 %v3812
      %3830 = vmatprep.subr.bf16.mxu0 0
      %3831 = vmatpush2.bf16.msra.mxu0 0
      %3832 = vmatprep.subr.bf16.mxu0 0
      %3833 = vmatpush2.bf16.msra.mxu0 0
      %3834 = vmatprep.subr.bf16.mxu0 0
      %3835 = vmatpush2.bf16.msra.mxu0 0
      %3836 = vmatprep.subr.bf16.mxu0 0
      %3837 = vmatpush2.bf16.msra.mxu0 0
      %3838 = vmatprep.subr.bf16.mxu0 0
      %3839 = vmatpush2.bf16.msra.mxu0 0
      %3840 = vmatprep.subr.bf16.mxu0 0
      %3841 = vmatpush2.bf16.msra.mxu0 0
      %3842 = vmatprep.subr.bf16.mxu0 0
      %3843 = vmatpush2.bf16.msra.mxu0 0
      %3844 = vmatprep.subr.bf16.mxu0 0
      %3845 = vmatpush2.bf16.msra.mxu0 0
      %3846 = vmatprep.mubr.bf16.mxu0 0
      %3847 = vmatmul.mubr.bf16.gmra.mxu0 %v3809
      %v3848 = vpop.f32.mrf.mxu0
      %v3849 = vadd.f32 0.0, %v3848
      %v3850 = vpop.f32.mrf.mxu0
      %v3851 = vpop.f32.mrf.mxu0
      %v3852 = vpop.f32.mrf.mxu0
      %3853 = vdwg.mxu0
      %v3855 = vsel %vm1663, %v3666, 0
      %v3858 = vsel %vm1763, %v3202, 0
      %3860 = vmatprep.subr.bf16.mxu0 0
      %3861 = vmatpush1.bf16.msra.mxu0 0
      %3862 = vmatprep.subr.bf16.mxu0 0
      %3863 = vmatpush1.bf16.msra.mxu0 0
      %3864 = vmatprep.subr.bf16.mxu0 0
      %3865 = vmatpush1.bf16.msra.mxu0 0
      %3866 = vmatprep.subr.bf16.mxu0 0
      %3867 = vmatpush1.bf16.msra.mxu0 0
      %3868 = vmatprep.subr.bf16.mxu0 0
      %3869 = vmatpush1.bf16.msra.mxu0 0
      %3870 = vmatprep.subr.bf16.mxu0 0
      %3871 = vmatpush1.bf16.msra.mxu0 0
      %3872 = vmatprep.subr.bf16.mxu0 0
      %3873 = vmatpush1.bf16.msra.mxu0 0
      %3874 = vmatprep.subr.bf16.mxu0 0
      %3875 = vmatpush1.bf16.msra.mxu0 %v3858
      %3876 = vmatprep.subr.bf16.mxu0 0
      %3877 = vmatpush2.bf16.msra.mxu0 0
      %3878 = vmatprep.subr.bf16.mxu0 0
      %3879 = vmatpush2.bf16.msra.mxu0 0
      %3880 = vmatprep.subr.bf16.mxu0 0
      %3881 = vmatpush2.bf16.msra.mxu0 0
      %3882 = vmatprep.subr.bf16.mxu0 0
      %3883 = vmatpush2.bf16.msra.mxu0 0
      %3884 = vmatprep.subr.bf16.mxu0 0
      %3885 = vmatpush2.bf16.msra.mxu0 0
      %3886 = vmatprep.subr.bf16.mxu0 0
      %3887 = vmatpush2.bf16.msra.mxu0 0
      %3888 = vmatprep.subr.bf16.mxu0 0
      %3889 = vmatpush2.bf16.msra.mxu0 0
      %3890 = vmatprep.subr.bf16.mxu0 0
      %3891 = vmatpush2.bf16.msra.mxu0 0
      %3892 = vmatprep.mubr.bf16.mxu0 0
      %3893 = vmatmul.mubr.bf16.gmra.mxu0 %v3855
      %v3894 = vpop.f32.mrf.mxu0
      %v3895 = vadd.f32 0.0, %v3894
      %v3896 = vpop.f32.mrf.mxu0
      %v3897 = vpop.f32.mrf.mxu0
      %v3898 = vpop.f32.mrf.mxu0
      %3899 = vdwg.mxu0
      %v3901 = vsel %vm1663, %v3667, 0
      %v3904 = vsel %vm1763, %v3203, 0
      %3906 = vmatprep.subr.bf16.mxu0 0
      %3907 = vmatpush1.bf16.msra.mxu0 0
      %3908 = vmatprep.subr.bf16.mxu0 0
      %3909 = vmatpush1.bf16.msra.mxu0 0
      %3910 = vmatprep.subr.bf16.mxu0 0
      %3911 = vmatpush1.bf16.msra.mxu0 0
      %3912 = vmatprep.subr.bf16.mxu0 0
      %3913 = vmatpush1.bf16.msra.mxu0 0
      %3914 = vmatprep.subr.bf16.mxu0 0
      %3915 = vmatpush1.bf16.msra.mxu0 0
      %3916 = vmatprep.subr.bf16.mxu0 0
      %3917 = vmatpush1.bf16.msra.mxu0 0
      %3918 = vmatprep.subr.bf16.mxu0 0
      %3919 = vmatpush1.bf16.msra.mxu0 0
      %3920 = vmatprep.subr.bf16.mxu0 0
      %3921 = vmatpush1.bf16.msra.mxu0 %v3904
      %3922 = vmatprep.subr.bf16.mxu0 0
      %3923 = vmatpush2.bf16.msra.mxu0 0
      %3924 = vmatprep.subr.bf16.mxu0 0
      %3925 = vmatpush2.bf16.msra.mxu0 0
      %3926 = vmatprep.subr.bf16.mxu0 0
      %3927 = vmatpush2.bf16.msra.mxu0 0
      %3928 = vmatprep.subr.bf16.mxu0 0
      %3929 = vmatpush2.bf16.msra.mxu0 0
      %3930 = vmatprep.subr.bf16.mxu0 0
      %3931 = vmatpush2.bf16.msra.mxu0 0
      %3932 = vmatprep.subr.bf16.mxu0 0
      %3933 = vmatpush2.bf16.msra.mxu0 0
      %3934 = vmatprep.subr.bf16.mxu0 0
      %3935 = vmatpush2.bf16.msra.mxu0 0
      %3936 = vmatprep.subr.bf16.mxu0 0
      %3937 = vmatpush2.bf16.msra.mxu0 0
      %3938 = vmatprep.mubr.bf16.mxu0 0
      %3939 = vmatmul.mubr.bf16.gmra.mxu0 %v3901
      %v3940 = vpop.f32.mrf.mxu0
      %v3941 = vadd.f32 0.0, %v3940
      %v3942 = vpop.f32.mrf.mxu0
      %v3943 = vpop.f32.mrf.mxu0
      %v3944 = vpop.f32.mrf.mxu0
      %3945 = vdwg.mxu0
      %v3947 = vsel %vm1663, %v3668, 0
      %v3950 = vsel %vm1763, %v3204, 0
      %3952 = vmatprep.subr.bf16.mxu0 0
      %3953 = vmatpush1.bf16.msra.mxu0 0
      %3954 = vmatprep.subr.bf16.mxu0 0
      %3955 = vmatpush1.bf16.msra.mxu0 0
      %3956 = vmatprep.subr.bf16.mxu0 0
      %3957 = vmatpush1.bf16.msra.mxu0 0
      %3958 = vmatprep.subr.bf16.mxu0 0
      %3959 = vmatpush1.bf16.msra.mxu0 0
      %3960 = vmatprep.subr.bf16.mxu0 0
      %3961 = vmatpush1.bf16.msra.mxu0 0
      %3962 = vmatprep.subr.bf16.mxu0 0
      %3963 = vmatpush1.bf16.msra.mxu0 0
      %3964 = vmatprep.subr.bf16.mxu0 0
      %3965 = vmatpush1.bf16.msra.mxu0 0
      %3966 = vmatprep.subr.bf16.mxu0 0
      %3967 = vmatpush1.bf16.msra.mxu0 %v3950
      %3968 = vmatprep.subr.bf16.mxu0 0
      %3969 = vmatpush2.bf16.msra.mxu0 0
      %3970 = vmatprep.subr.bf16.mxu0 0
      %3971 = vmatpush2.bf16.msra.mxu0 0
      %3972 = vmatprep.subr.bf16.mxu0 0
      %3973 = vmatpush2.bf16.msra.mxu0 0
      %3974 = vmatprep.subr.bf16.mxu0 0
      %3975 = vmatpush2.bf16.msra.mxu0 0
      %3976 = vmatprep.subr.bf16.mxu0 0
      %3977 = vmatpush2.bf16.msra.mxu0 0
      %3978 = vmatprep.subr.bf16.mxu0 0
      %3979 = vmatpush2.bf16.msra.mxu0 0
      %3980 = vmatprep.subr.bf16.mxu0 0
      %3981 = vmatpush2.bf16.msra.mxu0 0
      %3982 = vmatprep.subr.bf16.mxu0 0
      %3983 = vmatpush2.bf16.msra.mxu0 0
      %3984 = vmatprep.mubr.bf16.mxu0 0
      %3985 = vmatmul.mubr.bf16.gmra.mxu0 %v3947
      %v3986 = vpop.f32.mrf.mxu0
      %v3987 = vadd.f32 0.0, %v3986
      %v3988 = vpop.f32.mrf.mxu0
      %v3989 = vpop.f32.mrf.mxu0
      %v3990 = vpop.f32.mrf.mxu0
      %3991 = vdwg.mxu0
      %v3993 = vsel %vm1663, %v3669, 0
      %v3996 = vsel %vm1763, %v3205, 0
      %3998 = vmatprep.subr.bf16.mxu0 0
      %3999 = vmatpush1.bf16.msra.mxu0 0
      %4000 = vmatprep.subr.bf16.mxu0 0
      %4001 = vmatpush1.bf16.msra.mxu0 0
      %4002 = vmatprep.subr.bf16.mxu0 0
      %4003 = vmatpush1.bf16.msra.mxu0 0
      %4004 = vmatprep.subr.bf16.mxu0 0
      %4005 = vmatpush1.bf16.msra.mxu0 0
      %4006 = vmatprep.subr.bf16.mxu0 0
      %4007 = vmatpush1.bf16.msra.mxu0 0
      %4008 = vmatprep.subr.bf16.mxu0 0
      %4009 = vmatpush1.bf16.msra.mxu0 0
      %4010 = vmatprep.subr.bf16.mxu0 0
      %4011 = vmatpush1.bf16.msra.mxu0 0
      %4012 = vmatprep.subr.bf16.mxu0 0
      %4013 = vmatpush1.bf16.msra.mxu0 %v3996
      %4014 = vmatprep.subr.bf16.mxu0 0
      %4015 = vmatpush2.bf16.msra.mxu0 0
      %4016 = vmatprep.subr.bf16.mxu0 0
      %4017 = vmatpush2.bf16.msra.mxu0 0
      %4018 = vmatprep.subr.bf16.mxu0 0
      %4019 = vmatpush2.bf16.msra.mxu0 0
      %4020 = vmatprep.subr.bf16.mxu0 0
      %4021 = vmatpush2.bf16.msra.mxu0 0
      %4022 = vmatprep.subr.bf16.mxu0 0
      %4023 = vmatpush2.bf16.msra.mxu0 0
      %4024 = vmatprep.subr.bf16.mxu0 0
      %4025 = vmatpush2.bf16.msra.mxu0 0
      %4026 = vmatprep.subr.bf16.mxu0 0
      %4027 = vmatpush2.bf16.msra.mxu0 0
      %4028 = vmatprep.subr.bf16.mxu0 0
      %4029 = vmatpush2.bf16.msra.mxu0 0
      %4030 = vmatprep.mubr.bf16.mxu0 0
      %4031 = vmatmul.mubr.bf16.gmra.mxu0 %v3993
      %v4032 = vpop.f32.mrf.mxu0
      %v4033 = vadd.f32 0.0, %v4032
      %v4034 = vpop.f32.mrf.mxu0
      %v4035 = vpop.f32.mrf.mxu0
      %v4036 = vpop.f32.mrf.mxu0
      %4037 = vdwg.mxu0
      %v4038 = vcombine.low %v3711, %v3803
      %v4039 = vcombine.high %v3711, %v3803
      %v4041 = vunpack.c.l.s4 1983009808
      %v4042 = vunpack.c.0.s8 %v4041
      %v4043 = vlaneseq
      %v4044 = vshrl.u32 %v4043, 7
      %v4045 = vsub.s32 %v4042, %v4044
      %v4046 = vrot.slane %v4038, %v4045
      %v4048 = vunpack.c.l.s4 1983009808
      %v4049 = vunpack.c.0.s8 %v4048
      %v4050 = vlaneseq
      %v4051 = vshrl.u32 %v4050, 7
      %v4052 = vsub.s32 %v4049, %v4051
      %v4053 = vrot.slane %v4039, %v4052
      %v4054 = vcombine.low %v3757, %v3849
      %v4055 = vcombine.high %v3757, %v3849
      %v4057 = vunpack.c.l.s4 1983009808
      %v4058 = vunpack.c.0.s8 %v4057
      %v4059 = vlaneseq
      %v4060 = vshrl.u32 %v4059, 7
      %v4061 = vsub.s32 %v4058, %v4060
      %v4062 = vrot.slane %v4054, %v4061
      %v4064 = vunpack.c.l.s4 1983009808
      %v4065 = vunpack.c.0.s8 %v4064
      %v4066 = vlaneseq
      %v4067 = vshrl.u32 %v4066, 7
      %v4068 = vsub.s32 %v4065, %v4067
      %v4069 = vrot.slane %v4055, %v4068
      %v4070 = vcombine.low %v3895, %v3987
      %v4071 = vcombine.high %v3895, %v3987
      %v4073 = vunpack.c.l.s4 1983009808
      %v4074 = vunpack.c.0.s8 %v4073
      %v4075 = vlaneseq
      %v4076 = vshrl.u32 %v4075, 7
      %v4077 = vsub.s32 %v4074, %v4076
      %v4078 = vrot.slane %v4070, %v4077
      %v4080 = vunpack.c.l.s4 1983009808
      %v4081 = vunpack.c.0.s8 %v4080
      %v4082 = vlaneseq
      %v4083 = vshrl.u32 %v4082, 7
      %v4084 = vsub.s32 %v4081, %v4083
      %v4085 = vrot.slane %v4071, %v4084
      %v4086 = vcombine.low %v3941, %v4033
      %v4087 = vcombine.high %v3941, %v4033
      %v4089 = vunpack.c.l.s4 1983009808
      %v4090 = vunpack.c.0.s8 %v4089
      %v4091 = vlaneseq
      %v4092 = vshrl.u32 %v4091, 7
      %v4093 = vsub.s32 %v4090, %v4092
      %v4094 = vrot.slane %v4086, %v4093
      %v4096 = vunpack.c.l.s4 1983009808
      %v4097 = vunpack.c.0.s8 %v4096
      %v4098 = vlaneseq
      %v4099 = vshrl.u32 %v4098, 7
      %v4100 = vsub.s32 %v4097, %v4099
      %v4101 = vrot.slane %v4087, %v4100
      %v4102 = vcombine.low %v4046, %v4062
      %v4103 = vcombine.high %v4046, %v4062
      %v4105 = vunpack.c.l.s4 1934713408
      %v4106 = vunpack.c.0.s8 %v4105
      %v4107 = vlaneseq
      %v4108 = vshrl.u32 %v4107, 7
      %v4109 = vsub.s32 %v4106, %v4108
      %v4110 = vrot.slane %v4102, %v4109
      %v4112 = vunpack.c.l.s4 1934713408
      %v4113 = vunpack.c.0.s8 %v4112
      %v4114 = vlaneseq
      %v4115 = vshrl.u32 %v4114, 7
      %v4116 = vsub.s32 %v4113, %v4115
      %v4117 = vrot.slane %v4103, %v4116
      %v4118 = vcombine.low %v4053, %v4069
      %v4119 = vcombine.high %v4053, %v4069
      %v4121 = vunpack.c.l.s4 1934713408
      %v4122 = vunpack.c.0.s8 %v4121
      %v4123 = vlaneseq
      %v4124 = vshrl.u32 %v4123, 7
      %v4125 = vsub.s32 %v4122, %v4124
      %v4126 = vrot.slane %v4118, %v4125
      %v4128 = vunpack.c.l.s4 1934713408
      %v4129 = vunpack.c.0.s8 %v4128
      %v4130 = vlaneseq
      %v4131 = vshrl.u32 %v4130, 7
      %v4132 = vsub.s32 %v4129, %v4131
      %v4133 = vrot.slane %v4119, %v4132
      %v4134 = vcombine.low %v4078, %v4094
      %v4135 = vcombine.high %v4078, %v4094
      %v4137 = vunpack.c.l.s4 1934713408
      %v4138 = vunpack.c.0.s8 %v4137
      %v4139 = vlaneseq
      %v4140 = vshrl.u32 %v4139, 7
      %v4141 = vsub.s32 %v4138, %v4140
      %v4142 = vrot.slane %v4134, %v4141
      %v4144 = vunpack.c.l.s4 1934713408
      %v4145 = vunpack.c.0.s8 %v4144
      %v4146 = vlaneseq
      %v4147 = vshrl.u32 %v4146, 7
      %v4148 = vsub.s32 %v4145, %v4147
      %v4149 = vrot.slane %v4135, %v4148
      %v4150 = vcombine.low %v4085, %v4101
      %v4151 = vcombine.high %v4085, %v4101
      %v4153 = vunpack.c.l.s4 1934713408
      %v4154 = vunpack.c.0.s8 %v4153
      %v4155 = vlaneseq
      %v4156 = vshrl.u32 %v4155, 7
      %v4157 = vsub.s32 %v4154, %v4156
      %v4158 = vrot.slane %v4150, %v4157
      %v4160 = vunpack.c.l.s4 1934713408
      %v4161 = vunpack.c.0.s8 %v4160
      %v4162 = vlaneseq
      %v4163 = vshrl.u32 %v4162, 7
      %v4164 = vsub.s32 %v4161, %v4163
      %v4165 = vrot.slane %v4151, %v4164
      %v4166 = vcombine.low %v4110, %v4142
      %v4167 = vcombine.high %v4110, %v4142
      %v4168 = vcombine.low %v4117, %v4149
      %v4169 = vcombine.high %v4117, %v4149
      %v4170 = vcombine.low %v4126, %v4158
      %v4171 = vcombine.high %v4126, %v4158
      %v4172 = vcombine.low %v4133, %v4165
      %v4173 = vcombine.high %v4133, %v4165
      %4175 = vrot.lane.b32.xlu0 %v4167, 16
      %v4176 = vpop.permute.xlu0 %4175
      %4179 = vrot.lane.b32.xlu0 %v4168, 32
      %v4180 = vpop.permute.xlu0 %4179
      %4183 = vrot.lane.b32.xlu0 %v4169, 48
      %v4184 = vpop.permute.xlu0 %4183
      %4187 = vrot.lane.b32.xlu0 %v4170, 64
      %v4188 = vpop.permute.xlu0 %4187
      %4191 = vrot.lane.b32.xlu0 %v4171, 80
      %v4192 = vpop.permute.xlu0 %4191
      %4195 = vrot.lane.b32.xlu0 %v4172, 96
      %v4196 = vpop.permute.xlu0 %4195
      %4199 = vrot.lane.b32.xlu0 %v4173, 112
      %v4200 = vpop.permute.xlu0 %4199
      %v4202 = vsel %vm1294, %v4166, %v4176
      %v4203 = vsel %vm2294, %v4202, %v4180
      %v4204 = vsel %vm2296, %v4203, %v4184
      %v4205 = vsel %vm2298, %v4204, %v4188
      %v4206 = vsel %vm2300, %v4205, %v4192
      %v4207 = vsel %vm2302, %v4206, %v4196
      %v4208 = vsel %vm2304, %v4207, %v4200
      %v4209 = vpack.c.bf16 %v4208, %v4208
      %s4210 = scalar_lea.vmem %s4, 64
      %v4211 = vld [vmem:[%s4210] sm:$0xf]
      %v4212 = vld [vmem:[%s4210 + $0x4] sm:$0xf]
      %v4213 = vld [vmem:[%s4210 + $0x8] sm:$0xf]
      %v4214 = vld [vmem:[%s4210 + $0xc] sm:$0xf]
      %v4215 = vld [vmem:[%s4210 + $0x10] sm:$0xf]
      %v4216 = vld [vmem:[%s4210 + $0x14] sm:$0xf]
      %v4217 = vld [vmem:[%s4210 + $0x18] sm:$0xf]
      %v4218 = vld [vmem:[%s4210 + $0x1c] sm:$0xf]
      %v4219 = vld [vmem:[%s4210 + $0x20] sm:$0xf]
      %v4220 = vld [vmem:[%s4210 + $0x24] sm:$0xf]
      %v4221 = vld [vmem:[%s4210 + $0x28] sm:$0xf]
      %v4222 = vld [vmem:[%s4210 + $0x2c] sm:$0xf]
      %v4223 = vld [vmem:[%s4210 + $0x30] sm:$0xf]
      %v4224 = vld [vmem:[%s4210 + $0x34] sm:$0xf]
      %v4225 = vld [vmem:[%s4210 + $0x38] sm:$0xf]
      %v4226 = vld [vmem:[%s4210 + $0x3c] sm:$0xf]
      %s4227 = scalar_lea.vmem %s5, 1
      %v4228 = vld [vmem:[%s4227] sm:$0x1]
      %v4230 = vlaneseq
      %v4231 = vshrl.u32 %v4230, 7
      %v4232 = vsub.s32 0, %v4231
      %v4233 = vrot.slane %v4228, %v4232
      %v4251 = vunpack.c.l.b16 %v4211
      %v4252 = vunpack.c.l.b16 %v4212
      %v4253 = vunpack.c.l.b16 %v4213
      %v4254 = vunpack.c.l.b16 %v4214
      %v4255 = vunpack.c.l.b16 %v4215
      %v4256 = vunpack.c.l.b16 %v4216
      %v4257 = vunpack.c.l.b16 %v4217
      %v4258 = vunpack.c.l.b16 %v4218
      %v4259 = vunpack.c.l.b16 %v4219
      %v4260 = vunpack.c.l.b16 %v4220
      %v4261 = vunpack.c.l.b16 %v4221
      %v4262 = vunpack.c.l.b16 %v4222
      %v4263 = vunpack.c.l.b16 %v4223
      %v4264 = vunpack.c.l.b16 %v4224
      %v4265 = vunpack.c.l.b16 %v4225
      %v4266 = vunpack.c.l.b16 %v4226
      %v4267 = vpack.c.b16 %v4252, %v4251
      %v4268 = vpack.c.b16 %v4254, %v4253
      %v4269 = vpack.c.b16 %v4256, %v4255
      %v4270 = vpack.c.b16 %v4258, %v4257
      %v4271 = vpack.c.b16 %v4260, %v4259
      %v4272 = vpack.c.b16 %v4262, %v4261
      %v4273 = vpack.c.b16 %v4264, %v4263
      %v4274 = vpack.c.b16 %v4266, %v4265
      %4283 = vmatprep.subr.bf16.mxu0 0
      %4284 = vmatpush1.bf16.msra.mxu0 %v4274
      %4285 = vmatprep.subr.bf16.mxu0 0
      %4286 = vmatpush1.bf16.msra.mxu0 %v4273
      %4287 = vmatprep.subr.bf16.mxu0 0
      %4288 = vmatpush1.bf16.msra.mxu0 %v4272
      %4289 = vmatprep.subr.bf16.mxu0 0
      %4290 = vmatpush1.bf16.msra.mxu0 %v4271
      %4291 = vmatprep.subr.bf16.mxu0 0
      %4292 = vmatpush1.bf16.msra.mxu0 %v4270
      %4293 = vmatprep.subr.bf16.mxu0 0
      %4294 = vmatpush1.bf16.msra.mxu0 %v4269
      %4295 = vmatprep.subr.bf16.mxu0 0
      %4296 = vmatpush1.bf16.msra.mxu0 %v4268
      %4297 = vmatprep.subr.bf16.mxu0 0
      %4298 = vmatpush1.bf16.msra.mxu0 %v4267
      %4299 = vmatprep.subr.bf16.mxu0 0
      %4300 = vmatpush2.bf16.msra.mxu0 0
      %4301 = vmatprep.subr.bf16.mxu0 0
      %4302 = vmatpush2.bf16.msra.mxu0 0
      %4303 = vmatprep.subr.bf16.mxu0 0
      %4304 = vmatpush2.bf16.msra.mxu0 0
      %4305 = vmatprep.subr.bf16.mxu0 0
      %4306 = vmatpush2.bf16.msra.mxu0 0
      %4307 = vmatprep.subr.bf16.mxu0 0
      %4308 = vmatpush2.bf16.msra.mxu0 0
      %4309 = vmatprep.subr.bf16.mxu0 0
      %4310 = vmatpush2.bf16.msra.mxu0 0
      %4311 = vmatprep.subr.bf16.mxu0 0
      %4312 = vmatpush2.bf16.msra.mxu0 0
      %4313 = vmatprep.subr.bf16.mxu0 0
      %4314 = vmatpush2.bf16.msra.mxu0 0
      %4315 = vmatprep.mubr.bf16.mxu0 0
      %4316 = vmatmul.mubr.bf16.gmra.mxu0 %v4209
      %v4317 = vpop.f32.mrf.mxu0
      %v4318 = vadd.f32 %v4233, %v4317
      %v4319 = vpop.f32.mrf.mxu0
      %v4320 = vpop.f32.mrf.mxu0
      %v4321 = vpop.f32.mrf.mxu0
      %4322 = vdwg.mxu0
      %v4323 = vadd.f32 %v4318, %v2446
      %s4324 = scalar_lea.vmem %s10, 1
      %v4325 = vld [vmem:[%s4324] sm:$0x1]
      %s4326 = scalar_lea.vmem %s11, 1
      %v4327 = vld [vmem:[%s4326] sm:$0x1]
      %4328 = vadd.xlane.f32.xlu0 %v4323
      %v4329 = vpop.xlane.xlu0 %4328
      %v4330 = vmul.f32 %v4329, %v2423
      %v4331 = vsub.f32 %v4323, %v4330
      %v4332 = vmul.f32 %v4331, %v4331
      %4333 = vadd.xlane.f32.xlu0 %v4332
      %v4334 = vpop.xlane.xlu0 %4333
      %v4335 = vmul.f32 %v4334, %v2423
      %v4336 = vadd.f32 %v4335, 1e-05
      %v4337 = vrsqrt.pop %v4336
      %v4338 = vmul.f32 %v4331, %v4337
      %v4340 = vlaneseq
      %v4341 = vshrl.u32 %v4340, 7
      %v4342 = vsub.s32 0, %v4341
      %v4343 = vrot.slane %v4325, %v4342
      %v4345 = vmul.f32 %v4338, %v4343
      %v4347 = vlaneseq
      %v4348 = vshrl.u32 %v4347, 7
      %v4349 = vsub.s32 0, %v4348
      %v4350 = vrot.slane %v4327, %v4349
      %v4352 = vadd.f32 %v4345, %v4350
      %v4353 = vpack.c.bf16 %v4352, %v4352
      %v4354 = vld [vmem:[%s6] sm:$0xff]
      %v4355 = vld [vmem:[%s6 + $0x8] sm:$0xff]
      %v4356 = vld [vmem:[%s6 + $0x10] sm:$0xff]
      %v4357 = vld [vmem:[%s6 + $0x18] sm:$0xff]
      %v4358 = vld [vmem:[%s6 + $0x20] sm:$0xff]
      %v4359 = vld [vmem:[%s6 + $0x28] sm:$0xff]
      %v4360 = vld [vmem:[%s6 + $0x30] sm:$0xff]
      %v4361 = vld [vmem:[%s6 + $0x38] sm:$0xff]
      %v4362 = vld [vmem:[%s6 + $0x40] sm:$0xff]
      %v4363 = vld [vmem:[%s6 + $0x48] sm:$0xff]
      %v4364 = vld [vmem:[%s6 + $0x50] sm:$0xff]
      %v4365 = vld [vmem:[%s6 + $0x58] sm:$0xff]
      %v4366 = vld [vmem:[%s6 + $0x60] sm:$0xff]
      %v4367 = vld [vmem:[%s6 + $0x68] sm:$0xff]
      %v4368 = vld [vmem:[%s6 + $0x70] sm:$0xff]
      %v4369 = vld [vmem:[%s6 + $0x78] sm:$0xff]
      %v4370 = vld [vmem:[%s7] sm:$0x3]
      %v4372 = vlaneseq
      %v4373 = vshrl.u32 %v4372, 7
      %v4374 = vsub.s32 0, %v4373
      %v4375 = vrot.slane %v4370, %v4374
      %v4376 = vlaneseq
      %v4377 = vshrl.u32 %v4376, 7
      %v4378 = vsub.s32 1, %v4377
      %v4379 = vrot.slane %v4370, %v4378
      %v4398 = vunpack.c.l.b16 %v4354
      %v4399 = vunpack.c.h.b16 %v4354
      %v4400 = vunpack.c.l.b16 %v4355
      %v4401 = vunpack.c.h.b16 %v4355
      %v4402 = vunpack.c.l.b16 %v4356
      %v4403 = vunpack.c.h.b16 %v4356
      %v4404 = vunpack.c.l.b16 %v4357
      %v4405 = vunpack.c.h.b16 %v4357
      %v4406 = vunpack.c.l.b16 %v4358
      %v4407 = vunpack.c.h.b16 %v4358
      %v4408 = vunpack.c.l.b16 %v4359
      %v4409 = vunpack.c.h.b16 %v4359
      %v4410 = vunpack.c.l.b16 %v4360
      %v4411 = vunpack.c.h.b16 %v4360
      %v4412 = vunpack.c.l.b16 %v4361
      %v4413 = vunpack.c.h.b16 %v4361
      %v4414 = vunpack.c.l.b16 %v4362
      %v4415 = vunpack.c.h.b16 %v4362
      %v4416 = vunpack.c.l.b16 %v4363
      %v4417 = vunpack.c.h.b16 %v4363
      %v4418 = vunpack.c.l.b16 %v4364
      %v4419 = vunpack.c.h.b16 %v4364
      %v4420 = vunpack.c.l.b16 %v4365
      %v4421 = vunpack.c.h.b16 %v4365
      %v4422 = vunpack.c.l.b16 %v4366
      %v4423 = vunpack.c.h.b16 %v4366
      %v4424 = vunpack.c.l.b16 %v4367
      %v4425 = vunpack.c.h.b16 %v4367
      %v4426 = vunpack.c.l.b16 %v4368
      %v4427 = vunpack.c.h.b16 %v4368
      %v4428 = vunpack.c.l.b16 %v4369
      %v4429 = vunpack.c.h.b16 %v4369
      %v4430 = vpack.c.b16 %v4400, %v4398
      %v4431 = vpack.c.b16 %v4401, %v4399
      %v4432 = vpack.c.b16 %v4404, %v4402
      %v4433 = vpack.c.b16 %v4405, %v4403
      %v4434 = vpack.c.b16 %v4408, %v4406
      %v4435 = vpack.c.b16 %v4409, %v4407
      %v4436 = vpack.c.b16 %v4412, %v4410
      %v4437 = vpack.c.b16 %v4413, %v4411
      %v4438 = vpack.c.b16 %v4416, %v4414
      %v4439 = vpack.c.b16 %v4417, %v4415
      %v4440 = vpack.c.b16 %v4420, %v4418
      %v4441 = vpack.c.b16 %v4421, %v4419
      %v4442 = vpack.c.b16 %v4424, %v4422
      %v4443 = vpack.c.b16 %v4425, %v4423
      %v4444 = vpack.c.b16 %v4428, %v4426
      %v4445 = vpack.c.b16 %v4429, %v4427
      %4462 = vmatprep.subr.bf16.mxu0 %v4445
      %4463 = vmatpush1.bf16.msra.mxu0 %v4444
      %4464 = vmatprep.subr.bf16.mxu0 %v4443
      %4465 = vmatpush1.bf16.msra.mxu0 %v4442
      %4466 = vmatprep.subr.bf16.mxu0 %v4441
      %4467 = vmatpush1.bf16.msra.mxu0 %v4440
      %4468 = vmatprep.subr.bf16.mxu0 %v4439
      %4469 = vmatpush1.bf16.msra.mxu0 %v4438
      %4470 = vmatprep.subr.bf16.mxu0 %v4437
      %4471 = vmatpush1.bf16.msra.mxu0 %v4436
      %4472 = vmatprep.subr.bf16.mxu0 %v4435
      %4473 = vmatpush1.bf16.msra.mxu0 %v4434
      %4474 = vmatprep.subr.bf16.mxu0 %v4433
      %4475 = vmatpush1.bf16.msra.mxu0 %v4432
      %4476 = vmatprep.subr.bf16.mxu0 %v4431
      %4477 = vmatpush1.bf16.msra.mxu0 %v4430
      %4478 = vmatprep.subr.bf16.mxu0 0
      %4479 = vmatpush2.bf16.msra.mxu0 0
      %4480 = vmatprep.subr.bf16.mxu0 0
      %4481 = vmatpush2.bf16.msra.mxu0 0
      %4482 = vmatprep.subr.bf16.mxu0 0
      %4483 = vmatpush2.bf16.msra.mxu0 0
      %4484 = vmatprep.subr.bf16.mxu0 0
      %4485 = vmatpush2.bf16.msra.mxu0 0
      %4486 = vmatprep.subr.bf16.mxu0 0
      %4487 = vmatpush2.bf16.msra.mxu0 0
      %4488 = vmatprep.subr.bf16.mxu0 0
      %4489 = vmatpush2.bf16.msra.mxu0 0
      %4490 = vmatprep.subr.bf16.mxu0 0
      %4491 = vmatpush2.bf16.msra.mxu0 0
      %4492 = vmatprep.subr.bf16.mxu0 0
      %4493 = vmatpush2.bf16.msra.mxu0 0
      %4494 = vmatprep.mubr.bf16.mxu0 0
      %4495 = vmatmul.mubr.bf16.gmra.mxu0 %v4353
      %v4496 = vpop.f32.mrf.mxu0
      %v4497 = vadd.f32 %v4375, %v4496
      %v4498 = vpop.f32.mrf.mxu0
      %v4499 = vadd.f32 %v4379, %v4498
      %v4500 = vpop.f32.mrf.mxu0
      %v4501 = vpop.f32.mrf.mxu0
      %4502 = vdwg.mxu0
      %v4503 = vmax.f32 %v4497, 0.0
      %v4504 = vmax.f32 %v4499, 0.0
      %v4505 = vpack.c.bf16 %v4503, %v4503
      %v4506 = vpack.c.bf16 %v4504, %v4504
      %v4507 = vld [vmem:[%s8] sm:$0xf]
      %v4508 = vld [vmem:[%s8 + $0x4] sm:$0xf]
      %v4509 = vld [vmem:[%s8 + $0x8] sm:$0xf]
      %v4510 = vld [vmem:[%s8 + $0xc] sm:$0xf]
      %v4511 = vld [vmem:[%s8 + $0x10] sm:$0xf]
      %v4512 = vld [vmem:[%s8 + $0x14] sm:$0xf]
      %v4513 = vld [vmem:[%s8 + $0x18] sm:$0xf]
      %v4514 = vld [vmem:[%s8 + $0x1c] sm:$0xf]
      %v4515 = vld [vmem:[%s8 + $0x20] sm:$0xf]
      %v4516 = vld [vmem:[%s8 + $0x24] sm:$0xf]
      %v4517 = vld [vmem:[%s8 + $0x28] sm:$0xf]
      %v4518 = vld [vmem:[%s8 + $0x2c] sm:$0xf]
      %v4519 = vld [vmem:[%s8 + $0x30] sm:$0xf]
      %v4520 = vld [vmem:[%s8 + $0x34] sm:$0xf]
      %v4521 = vld [vmem:[%s8 + $0x38] sm:$0xf]
      %v4522 = vld [vmem:[%s8 + $0x3c] sm:$0xf]
      %v4523 = vld [vmem:[%s8 + $0x40] sm:$0xf]
      %v4524 = vld [vmem:[%s8 + $0x44] sm:$0xf]
      %v4525 = vld [vmem:[%s8 + $0x48] sm:$0xf]
      %v4526 = vld [vmem:[%s8 + $0x4c] sm:$0xf]
      %v4527 = vld [vmem:[%s8 + $0x50] sm:$0xf]
      %v4528 = vld [vmem:[%s8 + $0x54] sm:$0xf]
      %v4529 = vld [vmem:[%s8 + $0x58] sm:$0xf]
      %v4530 = vld [vmem:[%s8 + $0x5c] sm:$0xf]
      %v4531 = vld [vmem:[%s8 + $0x60] sm:$0xf]
      %v4532 = vld [vmem:[%s8 + $0x64] sm:$0xf]
      %v4533 = vld [vmem:[%s8 + $0x68] sm:$0xf]
      %v4534 = vld [vmem:[%s8 + $0x6c] sm:$0xf]
      %v4535 = vld [vmem:[%s8 + $0x70] sm:$0xf]
      %v4536 = vld [vmem:[%s8 + $0x74] sm:$0xf]
      %v4537 = vld [vmem:[%s8 + $0x78] sm:$0xf]
      %v4538 = vld [vmem:[%s8 + $0x7c] sm:$0xf]
      %v4539 = vld [vmem:[%s9] sm:$0x1]
      %v4541 = vlaneseq
      %v4542 = vshrl.u32 %v4541, 7
      %v4543 = vsub.s32 0, %v4542
      %v4544 = vrot.slane %v4539, %v4543
      %v4578 = vunpack.c.l.b16 %v4507
      %v4579 = vunpack.c.l.b16 %v4508
      %v4580 = vunpack.c.l.b16 %v4509
      %v4581 = vunpack.c.l.b16 %v4510
      %v4582 = vunpack.c.l.b16 %v4511
      %v4583 = vunpack.c.l.b16 %v4512
      %v4584 = vunpack.c.l.b16 %v4513
      %v4585 = vunpack.c.l.b16 %v4514
      %v4586 = vunpack.c.l.b16 %v4515
      %v4587 = vunpack.c.l.b16 %v4516
      %v4588 = vunpack.c.l.b16 %v4517
      %v4589 = vunpack.c.l.b16 %v4518
      %v4590 = vunpack.c.l.b16 %v4519
      %v4591 = vunpack.c.l.b16 %v4520
      %v4592 = vunpack.c.l.b16 %v4521
      %v4593 = vunpack.c.l.b16 %v4522
      %v4594 = vunpack.c.l.b16 %v4523
      %v4595 = vunpack.c.l.b16 %v4524
      %v4596 = vunpack.c.l.b16 %v4525
      %v4597 = vunpack.c.l.b16 %v4526
      %v4598 = vunpack.c.l.b16 %v4527
      %v4599 = vunpack.c.l.b16 %v4528
      %v4600 = vunpack.c.l.b16 %v4529
      %v4601 = vunpack.c.l.b16 %v4530
      %v4602 = vunpack.c.l.b16 %v4531
      %v4603 = vunpack.c.l.b16 %v4532
      %v4604 = vunpack.c.l.b16 %v4533
      %v4605 = vunpack.c.l.b16 %v4534
      %v4606 = vunpack.c.l.b16 %v4535
      %v4607 = vunpack.c.l.b16 %v4536
      %v4608 = vunpack.c.l.b16 %v4537
      %v4609 = vunpack.c.l.b16 %v4538
      %v4610 = vpack.c.b16 %v4579, %v4578
      %v4611 = vpack.c.b16 %v4581, %v4580
      %v4612 = vpack.c.b16 %v4583, %v4582
      %v4613 = vpack.c.b16 %v4585, %v4584
      %v4614 = vpack.c.b16 %v4587, %v4586
      %v4615 = vpack.c.b16 %v4589, %v4588
      %v4616 = vpack.c.b16 %v4591, %v4590
      %v4617 = vpack.c.b16 %v4593, %v4592
      %v4618 = vpack.c.b16 %v4595, %v4594
      %v4619 = vpack.c.b16 %v4597, %v4596
      %v4620 = vpack.c.b16 %v4599, %v4598
      %v4621 = vpack.c.b16 %v4601, %v4600
      %v4622 = vpack.c.b16 %v4603, %v4602
      %v4623 = vpack.c.b16 %v4605, %v4604
      %v4624 = vpack.c.b16 %v4607, %v4606
      %v4625 = vpack.c.b16 %v4609, %v4608
      %4642 = vmatprep.subr.bf16.mxu0 0
      %4643 = vmatpush1.bf16.msra.mxu0 %v4617
      %4644 = vmatprep.subr.bf16.mxu0 0
      %4645 = vmatpush1.bf16.msra.mxu0 %v4616
      %4646 = vmatprep.subr.bf16.mxu0 0
      %4647 = vmatpush1.bf16.msra.mxu0 %v4615
      %4648 = vmatprep.subr.bf16.mxu0 0
      %4649 = vmatpush1.bf16.msra.mxu0 %v4614
      %4650 = vmatprep.subr.bf16.mxu0 0
      %4651 = vmatpush1.bf16.msra.mxu0 %v4613
      %4652 = vmatprep.subr.bf16.mxu0 0
      %4653 = vmatpush1.bf16.msra.mxu0 %v4612
      %4654 = vmatprep.subr.bf16.mxu0 0
      %4655 = vmatpush1.bf16.msra.mxu0 %v4611
      %4656 = vmatprep.subr.bf16.mxu0 0
      %4657 = vmatpush1.bf16.msra.mxu0 %v4610
      %4658 = vmatprep.subr.bf16.mxu0 0
      %4659 = vmatpush2.bf16.msra.mxu0 %v4625
      %4660 = vmatprep.subr.bf16.mxu0 0
      %4661 = vmatpush2.bf16.msra.mxu0 %v4624
      %4662 = vmatprep.subr.bf16.mxu0 0
      %4663 = vmatpush2.bf16.msra.mxu0 %v4623
      %4664 = vmatprep.subr.bf16.mxu0 0
      %4665 = vmatpush2.bf16.msra.mxu0 %v4622
      %4666 = vmatprep.subr.bf16.mxu0 0
      %4667 = vmatpush2.bf16.msra.mxu0 %v4621
      %4668 = vmatprep.subr.bf16.mxu0 0
      %4669 = vmatpush2.bf16.msra.mxu0 %v4620
      %4670 = vmatprep.subr.bf16.mxu0 0
      %4671 = vmatpush2.bf16.msra.mxu0 %v4619
      %4672 = vmatprep.subr.bf16.mxu0 0
      %4673 = vmatpush2.bf16.msra.mxu0 %v4618
      %4674 = vmatprep.mubr.bf16.mxu0 %v4506
      %4675 = vmatmul.mubr.bf16.gmra.mxu0 %v4505
      %v4676 = vpop.f32.mrf.mxu0
      %v4677 = vadd.f32 %v4544, %v4676
      %v4678 = vpop.f32.mrf.mxu0
      %v4679 = vpop.f32.mrf.mxu0
      %v4680 = vpop.f32.mrf.mxu0
      %4681 = vdwg.mxu0
      %v4682 = vadd.f32 %v4677, %v4352
      %s4683 = scalar_lea.vmem %s10, 2
      %v4684 = vld [vmem:[%s4683] sm:$0x1]
      %s4685 = scalar_lea.vmem %s11, 2
      %v4686 = vld [vmem:[%s4685] sm:$0x1]
      %4687 = vadd.xlane.f32.xlu0 %v4682
      %v4688 = vpop.xlane.xlu0 %4687
      %v4689 = vmul.f32 %v4688, %v2423
      %v4690 = vsub.f32 %v4682, %v4689
      %v4691 = vmul.f32 %v4690, %v4690
      %4692 = vadd.xlane.f32.xlu0 %v4691
      %v4693 = vpop.xlane.xlu0 %4692
      %v4694 = vmul.f32 %v4693, %v2423
      %v4695 = vadd.f32 %v4694, 1e-05
      %v4696 = vrsqrt.pop %v4695
      %v4697 = vmul.f32 %v4690, %v4696
      %v4699 = vlaneseq
      %v4700 = vshrl.u32 %v4699, 7
      %v4701 = vsub.s32 0, %v4700
      %v4702 = vrot.slane %v4684, %v4701
      %v4704 = vmul.f32 %v4697, %v4702
      %v4706 = vlaneseq
      %v4707 = vshrl.u32 %v4706, 7
      %v4708 = vsub.s32 0, %v4707
      %v4709 = vrot.slane %v4686, %v4708
      %v4711 = vadd.f32 %v4704, %v4709
      %v4712 = vpack.c.bf16 %v4711, %v4711
      %s4713 = scalar_lea.vmem %s2, 384
      %v4714 = vld [vmem:[%s4713] sm:$0xff]
      %v4715 = vld [vmem:[%s4713 + $0x8] sm:$0xf]
      %v4716 = vld [vmem:[%s4713 + $0xc] sm:$0xff]
      %v4717 = vld [vmem:[%s4713 + $0x14] sm:$0xf]
      %v4718 = vld [vmem:[%s4713 + $0x18] sm:$0xff]
      %v4719 = vld [vmem:[%s4713 + $0x20] sm:$0xf]
      %v4720 = vld [vmem:[%s4713 + $0x24] sm:$0xff]
      %v4721 = vld [vmem:[%s4713 + $0x2c] sm:$0xf]
      %v4722 = vld [vmem:[%s4713 + $0x30] sm:$0xff]
      %v4723 = vld [vmem:[%s4713 + $0x38] sm:$0xf]
      %v4724 = vld [vmem:[%s4713 + $0x3c] sm:$0xff]
      %v4725 = vld [vmem:[%s4713 + $0x44] sm:$0xf]
      %v4726 = vld [vmem:[%s4713 + $0x48] sm:$0xff]
      %v4727 = vld [vmem:[%s4713 + $0x50] sm:$0xf]
      %v4728 = vld [vmem:[%s4713 + $0x54] sm:$0xff]
      %v4729 = vld [vmem:[%s4713 + $0x5c] sm:$0xf]
      %v4730 = vld [vmem:[%s4713 + $0x60] sm:$0xff]
      %v4731 = vld [vmem:[%s4713 + $0x68] sm:$0xf]
      %v4732 = vld [vmem:[%s4713 + $0x6c] sm:$0xff]
      %v4733 = vld [vmem:[%s4713 + $0x74] sm:$0xf]
      %v4734 = vld [vmem:[%s4713 + $0x78] sm:$0xff]
      %v4735 = vld [vmem:[%s4713 + $0x80] sm:$0xf]
      %v4736 = vld [vmem:[%s4713 + $0x84] sm:$0xff]
      %v4737 = vld [vmem:[%s4713 + $0x8c] sm:$0xf]
      %v4738 = vld [vmem:[%s4713 + $0x90] sm:$0xff]
      %v4739 = vld [vmem:[%s4713 + $0x98] sm:$0xf]
      %v4740 = vld [vmem:[%s4713 + $0x9c] sm:$0xff]
      %v4741 = vld [vmem:[%s4713 + $0xa4] sm:$0xf]
      %v4742 = vld [vmem:[%s4713 + $0xa8] sm:$0xff]
      %v4743 = vld [vmem:[%s4713 + $0xb0] sm:$0xf]
      %v4744 = vld [vmem:[%s4713 + $0xb4] sm:$0xff]
      %v4745 = vld [vmem:[%s4713 + $0xbc] sm:$0xf]
      %s4746 = scalar_lea.vmem %s3, 6
      %v4747 = vld [vmem:[%s4746] sm:$0x7]
      %v4749 = vlaneseq
      %v4750 = vshrl.u32 %v4749, 7
      %v4751 = vsub.s32 0, %v4750
      %v4752 = vrot.slane %v4747, %v4751
      %v4753 = vlaneseq
      %v4754 = vshrl.u32 %v4753, 7
      %v4755 = vsub.s32 1, %v4754
      %v4756 = vrot.slane %v4747, %v4755
      %v4757 = vlaneseq
      %v4758 = vshrl.u32 %v4757, 7
      %v4759 = vsub.s32 2, %v4758
      %v4760 = vrot.slane %v4747, %v4759
      %v4796 = vunpack.c.l.b16 %v4714
      %v4797 = vunpack.c.h.b16 %v4714
      %v4798 = vunpack.c.l.b16 %v4715
      %v4799 = vunpack.c.l.b16 %v4716
      %v4800 = vunpack.c.h.b16 %v4716
      %v4801 = vunpack.c.l.b16 %v4717
      %v4802 = vunpack.c.l.b16 %v4718
      %v4803 = vunpack.c.h.b16 %v4718
      %v4804 = vunpack.c.l.b16 %v4719
      %v4805 = vunpack.c.l.b16 %v4720
      %v4806 = vunpack.c.h.b16 %v4720
      %v4807 = vunpack.c.l.b16 %v4721
      %v4808 = vunpack.c.l.b16 %v4722
      %v4809 = vunpack.c.h.b16 %v4722
      %v4810 = vunpack.c.l.b16 %v4723
      %v4811 = vunpack.c.l.b16 %v4724
      %v4812 = vunpack.c.h.b16 %v4724
      %v4813 = vunpack.c.l.b16 %v4725
      %v4814 = vunpack.c.l.b16 %v4726
      %v4815 = vunpack.c.h.b16 %v4726
      %v4816 = vunpack.c.l.b16 %v4727
      %v4817 = vunpack.c.l.b16 %v4728
      %v4818 = vunpack.c.h.b16 %v4728
      %v4819 = vunpack.c.l.b16 %v4729
      %v4820 = vunpack.c.l.b16 %v4730
      %v4821 = vunpack.c.h.b16 %v4730
      %v4822 = vunpack.c.l.b16 %v4731
      %v4823 = vunpack.c.l.b16 %v4732
      %v4824 = vunpack.c.h.b16 %v4732
      %v4825 = vunpack.c.l.b16 %v4733
      %v4826 = vunpack.c.l.b16 %v4734
      %v4827 = vunpack.c.h.b16 %v4734
      %v4828 = vunpack.c.l.b16 %v4735
      %v4829 = vunpack.c.l.b16 %v4736
      %v4830 = vunpack.c.h.b16 %v4736
      %v4831 = vunpack.c.l.b16 %v4737
      %v4832 = vunpack.c.l.b16 %v4738
      %v4833 = vunpack.c.h.b16 %v4738
      %v4834 = vunpack.c.l.b16 %v4739
      %v4835 = vunpack.c.l.b16 %v4740
      %v4836 = vunpack.c.h.b16 %v4740
      %v4837 = vunpack.c.l.b16 %v4741
      %v4838 = vunpack.c.l.b16 %v4742
      %v4839 = vunpack.c.h.b16 %v4742
      %v4840 = vunpack.c.l.b16 %v4743
      %v4841 = vunpack.c.l.b16 %v4744
      %v4842 = vunpack.c.h.b16 %v4744
      %v4843 = vunpack.c.l.b16 %v4745
      %v4844 = vpack.c.b16 %v4799, %v4796
      %v4845 = vpack.c.b16 %v4800, %v4797
      %v4846 = vpack.c.b16 %v4801, %v4798
      %v4847 = vpack.c.b16 %v4805, %v4802
      %v4848 = vpack.c.b16 %v4806, %v4803
      %v4849 = vpack.c.b16 %v4807, %v4804
      %v4850 = vpack.c.b16 %v4811, %v4808
      %v4851 = vpack.c.b16 %v4812, %v4809
      %v4852 = vpack.c.b16 %v4813, %v4810
      %v4853 = vpack.c.b16 %v4817, %v4814
      %v4854 = vpack.c.b16 %v4818, %v4815
      %v4855 = vpack.c.b16 %v4819, %v4816
      %v4856 = vpack.c.b16 %v4823, %v4820
      %v4857 = vpack.c.b16 %v4824, %v4821
      %v4858 = vpack.c.b16 %v4825, %v4822
      %v4859 = vpack.c.b16 %v4829, %v4826
      %v4860 = vpack.c.b16 %v4830, %v4827
      %v4861 = vpack.c.b16 %v4831, %v4828
      %v4862 = vpack.c.b16 %v4835, %v4832
      %v4863 = vpack.c.b16 %v4836, %v4833
      %v4864 = vpack.c.b16 %v4837, %v4834
      %v4865 = vpack.c.b16 %v4841, %v4838
      %v4866 = vpack.c.b16 %v4842, %v4839
      %v4867 = vpack.c.b16 %v4843, %v4840
      %4892 = vmatprep.subr.bf16.mxu0 %v4866
      %4893 = vmatpush1.bf16.msra.mxu0 %v4865
      %4894 = vmatprep.subr.bf16.mxu0 %v4863
      %4895 = vmatpush1.bf16.msra.mxu0 %v4862
      %4896 = vmatprep.subr.bf16.mxu0 %v4860
      %4897 = vmatpush1.bf16.msra.mxu0 %v4859
      %4898 = vmatprep.subr.bf16.mxu0 %v4857
      %4899 = vmatpush1.bf16.msra.mxu0 %v4856
      %4900 = vmatprep.subr.bf16.mxu0 %v4854
      %4901 = vmatpush1.bf16.msra.mxu0 %v4853
      %4902 = vmatprep.subr.bf16.mxu0 %v4851
      %4903 = vmatpush1.bf16.msra.mxu0 %v4850
      %4904 = vmatprep.subr.bf16.mxu0 %v4848
      %4905 = vmatpush1.bf16.msra.mxu0 %v4847
      %4906 = vmatprep.subr.bf16.mxu0 %v4845
      %4907 = vmatpush1.bf16.msra.mxu0 %v4844
      %4908 = vmatprep.subr.bf16.mxu0 0
      %4909 = vmatpush2.bf16.msra.mxu0 0
      %4910 = vmatprep.subr.bf16.mxu0 0
      %4911 = vmatpush2.bf16.msra.mxu0 0
      %4912 = vmatprep.subr.bf16.mxu0 0
      %4913 = vmatpush2.bf16.msra.mxu0 0
      %4914 = vmatprep.subr.bf16.mxu0 0
      %4915 = vmatpush2.bf16.msra.mxu0 0
      %4916 = vmatprep.subr.bf16.mxu0 0
      %4917 = vmatpush2.bf16.msra.mxu0 0
      %4918 = vmatprep.subr.bf16.mxu0 0
      %4919 = vmatpush2.bf16.msra.mxu0 0
      %4920 = vmatprep.subr.bf16.mxu0 0
      %4921 = vmatpush2.bf16.msra.mxu0 0
      %4922 = vmatprep.subr.bf16.mxu0 0
      %4923 = vmatpush2.bf16.msra.mxu0 0
      %4924 = vmatprep.mubr.bf16.mxu0 0
      %4925 = vmatmul.mubr.bf16.gmra.mxu0 %v4712
      %v4926 = vpop.f32.mrf.mxu0
      %v4927 = vadd.f32 %v4752, %v4926
      %v4928 = vpop.f32.mrf.mxu0
      %v4929 = vadd.f32 %v4756, %v4928
      %v4930 = vpop.f32.mrf.mxu0
      %v4931 = vpop.f32.mrf.mxu0
      %4932 = vdwg.mxu0
      %4933 = vmatprep.subr.bf16.mxu0 0
      %4934 = vmatpush1.bf16.msra.mxu0 %v4867
      %4935 = vmatprep.subr.bf16.mxu0 0
      %4936 = vmatpush1.bf16.msra.mxu0 %v4864
      %4937 = vmatprep.subr.bf16.mxu0 0
      %4938 = vmatpush1.bf16.msra.mxu0 %v4861
      %4939 = vmatprep.subr.bf16.mxu0 0
      %4940 = vmatpush1.bf16.msra.mxu0 %v4858
      %4941 = vmatprep.subr.bf16.mxu0 0
      %4942 = vmatpush1.bf16.msra.mxu0 %v4855
      %4943 = vmatprep.subr.bf16.mxu0 0
      %4944 = vmatpush1.bf16.msra.mxu0 %v4852
      %4945 = vmatprep.subr.bf16.mxu0 0
      %4946 = vmatpush1.bf16.msra.mxu0 %v4849
      %4947 = vmatprep.subr.bf16.mxu0 0
      %4948 = vmatpush1.bf16.msra.mxu0 %v4846
      %4949 = vmatprep.subr.bf16.mxu0 0
      %4950 = vmatpush2.bf16.msra.mxu0 0
      %4951 = vmatprep.subr.bf16.mxu0 0
      %4952 = vmatpush2.bf16.msra.mxu0 0
      %4953 = vmatprep.subr.bf16.mxu0 0
      %4954 = vmatpush2.bf16.msra.mxu0 0
      %4955 = vmatprep.subr.bf16.mxu0 0
      %4956 = vmatpush2.bf16.msra.mxu0 0
      %4957 = vmatprep.subr.bf16.mxu0 0
      %4958 = vmatpush2.bf16.msra.mxu0 0
      %4959 = vmatprep.subr.bf16.mxu0 0
      %4960 = vmatpush2.bf16.msra.mxu0 0
      %4961 = vmatprep.subr.bf16.mxu0 0
      %4962 = vmatpush2.bf16.msra.mxu0 0
      %4963 = vmatprep.subr.bf16.mxu0 0
      %4964 = vmatpush2.bf16.msra.mxu0 0
      %4965 = vmatprep.mubr.bf16.mxu0 0
      %4966 = vmatmul.mubr.bf16.gmra.mxu0 %v4712
      %v4967 = vpop.f32.mrf.mxu0
      %v4968 = vadd.f32 %v4760, %v4967
      %v4969 = vpop.f32.mrf.mxu0
      %v4970 = vpop.f32.mrf.mxu0
      %v4971 = vpop.f32.mrf.mxu0
      %4972 = vdwg.mxu0
      %4974 = vrot.lane.b32.xlu0 %v4927, 112
      %v4975 = vpop.permute.xlu0 %4974
      %4977 = vrot.lane.b32.xlu0 %v4927, 96
      %v4978 = vpop.permute.xlu0 %4977
      %4980 = vrot.lane.b32.xlu0 %v4927, 80
      %v4981 = vpop.permute.xlu0 %4980
      %4983 = vrot.lane.b32.xlu0 %v4927, 64
      %v4984 = vpop.permute.xlu0 %4983
      %4986 = vrot.lane.b32.xlu0 %v4927, 48
      %v4987 = vpop.permute.xlu0 %4986
      %4989 = vrot.lane.b32.xlu0 %v4927, 32
      %v4990 = vpop.permute.xlu0 %4989
      %4992 = vrot.lane.b32.xlu0 %v4927, 16
      %v4993 = vpop.permute.xlu0 %4992
      %v4995 = vcombine.low %v4927, %v4978
      %v4996 = vcombine.high %v4927, %v4978
      %v4998 = vunpack.c.l.s4 1983009808
      %v4999 = vunpack.c.0.s8 %v4998
      %v5000 = vlaneseq
      %v5001 = vshrl.u32 %v5000, 7
      %v5002 = vsub.s32 %v4999, %v5001
      %v5003 = vrot.slane %v4995, %v5002
      %v5005 = vunpack.c.l.s4 1983009808
      %v5006 = vunpack.c.0.s8 %v5005
      %v5007 = vlaneseq
      %v5008 = vshrl.u32 %v5007, 7
      %v5009 = vsub.s32 %v5006, %v5008
      %v5010 = vrot.slane %v4996, %v5009
      %v5011 = vcombine.low %v4975, %v4981
      %v5012 = vcombine.high %v4975, %v4981
      %v5014 = vunpack.c.l.s4 1983009808
      %v5015 = vunpack.c.0.s8 %v5014
      %v5016 = vlaneseq
      %v5017 = vshrl.u32 %v5016, 7
      %v5018 = vsub.s32 %v5015, %v5017
      %v5019 = vrot.slane %v5011, %v5018
      %v5021 = vunpack.c.l.s4 1983009808
      %v5022 = vunpack.c.0.s8 %v5021
      %v5023 = vlaneseq
      %v5024 = vshrl.u32 %v5023, 7
      %v5025 = vsub.s32 %v5022, %v5024
      %v5026 = vrot.slane %v5012, %v5025
      %v5027 = vcombine.low %v4984, %v4990
      %v5028 = vcombine.high %v4984, %v4990
      %v5030 = vunpack.c.l.s4 1983009808
      %v5031 = vunpack.c.0.s8 %v5030
      %v5032 = vlaneseq
      %v5033 = vshrl.u32 %v5032, 7
      %v5034 = vsub.s32 %v5031, %v5033
      %v5035 = vrot.slane %v5027, %v5034
      %v5037 = vunpack.c.l.s4 1983009808
      %v5038 = vunpack.c.0.s8 %v5037
      %v5039 = vlaneseq
      %v5040 = vshrl.u32 %v5039, 7
      %v5041 = vsub.s32 %v5038, %v5040
      %v5042 = vrot.slane %v5028, %v5041
      %v5043 = vcombine.low %v4987, %v4993
      %v5044 = vcombine.high %v4987, %v4993
      %v5046 = vunpack.c.l.s4 1983009808
      %v5047 = vunpack.c.0.s8 %v5046
      %v5048 = vlaneseq
      %v5049 = vshrl.u32 %v5048, 7
      %v5050 = vsub.s32 %v5047, %v5049
      %v5051 = vrot.slane %v5043, %v5050
      %v5053 = vunpack.c.l.s4 1983009808
      %v5054 = vunpack.c.0.s8 %v5053
      %v5055 = vlaneseq
      %v5056 = vshrl.u32 %v5055, 7
      %v5057 = vsub.s32 %v5054, %v5056
      %v5058 = vrot.slane %v5044, %v5057
      %v5059 = vcombine.low %v5003, %v5019
      %v5060 = vcombine.high %v5003, %v5019
      %v5062 = vunpack.c.l.s4 1934713408
      %v5063 = vunpack.c.0.s8 %v5062
      %v5064 = vlaneseq
      %v5065 = vshrl.u32 %v5064, 7
      %v5066 = vsub.s32 %v5063, %v5065
      %v5067 = vrot.slane %v5059, %v5066
      %v5069 = vunpack.c.l.s4 1934713408
      %v5070 = vunpack.c.0.s8 %v5069
      %v5071 = vlaneseq
      %v5072 = vshrl.u32 %v5071, 7
      %v5073 = vsub.s32 %v5070, %v5072
      %v5074 = vrot.slane %v5060, %v5073
      %v5075 = vcombine.low %v5010, %v5026
      %v5076 = vcombine.high %v5010, %v5026
      %v5078 = vunpack.c.l.s4 1934713408
      %v5079 = vunpack.c.0.s8 %v5078
      %v5080 = vlaneseq
      %v5081 = vshrl.u32 %v5080, 7
      %v5082 = vsub.s32 %v5079, %v5081
      %v5083 = vrot.slane %v5075, %v5082
      %v5085 = vunpack.c.l.s4 1934713408
      %v5086 = vunpack.c.0.s8 %v5085
      %v5087 = vlaneseq
      %v5088 = vshrl.u32 %v5087, 7
      %v5089 = vsub.s32 %v5086, %v5088
      %v5090 = vrot.slane %v5076, %v5089
      %v5091 = vcombine.low %v5035, %v5051
      %v5092 = vcombine.high %v5035, %v5051
      %v5094 = vunpack.c.l.s4 1934713408
      %v5095 = vunpack.c.0.s8 %v5094
      %v5096 = vlaneseq
      %v5097 = vshrl.u32 %v5096, 7
      %v5098 = vsub.s32 %v5095, %v5097
      %v5099 = vrot.slane %v5091, %v5098
      %v5101 = vunpack.c.l.s4 1934713408
      %v5102 = vunpack.c.0.s8 %v5101
      %v5103 = vlaneseq
      %v5104 = vshrl.u32 %v5103, 7
      %v5105 = vsub.s32 %v5102, %v5104
      %v5106 = vrot.slane %v5092, %v5105
      %v5107 = vcombine.low %v5042, %v5058
      %v5108 = vcombine.high %v5042, %v5058
      %v5110 = vunpack.c.l.s4 1934713408
      %v5111 = vunpack.c.0.s8 %v5110
      %v5112 = vlaneseq
      %v5113 = vshrl.u32 %v5112, 7
      %v5114 = vsub.s32 %v5111, %v5113
      %v5115 = vrot.slane %v5107, %v5114
      %v5117 = vunpack.c.l.s4 1934713408
      %v5118 = vunpack.c.0.s8 %v5117
      %v5119 = vlaneseq
      %v5120 = vshrl.u32 %v5119, 7
      %v5121 = vsub.s32 %v5118, %v5120
      %v5122 = vrot.slane %v5108, %v5121
      %v5123 = vcombine.low %v5067, %v5099
      %v5124 = vcombine.high %v5067, %v5099
      %v5125 = vcombine.low %v5074, %v5106
      %v5126 = vcombine.high %v5074, %v5106
      %v5127 = vcombine.low %v5083, %v5115
      %v5128 = vcombine.high %v5083, %v5115
      %v5129 = vcombine.low %v5090, %v5122
      %v5130 = vcombine.high %v5090, %v5122
      %v5131 = vpack.c.bf16 %v5123, %v5123
      %v5132 = vpack.c.bf16 %v5124, %v5124
      %v5133 = vpack.c.bf16 %v5125, %v5125
      %v5134 = vpack.c.bf16 %v5126, %v5126
      %v5135 = vpack.c.bf16 %v5127, %v5127
      %v5136 = vpack.c.bf16 %v5128, %v5128
      %v5137 = vpack.c.bf16 %v5129, %v5129
      %v5138 = vpack.c.bf16 %v5130, %v5130
      %5140 = vrot.lane.b32.xlu0 %v4929, 112
      %v5141 = vpop.permute.xlu0 %5140
      %5143 = vrot.lane.b32.xlu0 %v4929, 96
      %v5144 = vpop.permute.xlu0 %5143
      %5146 = vrot.lane.b32.xlu0 %v4929, 80
      %v5147 = vpop.permute.xlu0 %5146
      %5149 = vrot.lane.b32.xlu0 %v4929, 64
      %v5150 = vpop.permute.xlu0 %5149
      %5152 = vrot.lane.b32.xlu0 %v4929, 48
      %v5153 = vpop.permute.xlu0 %5152
      %5155 = vrot.lane.b32.xlu0 %v4929, 32
      %v5156 = vpop.permute.xlu0 %5155
      %5158 = vrot.lane.b32.xlu0 %v4929, 16
      %v5159 = vpop.permute.xlu0 %5158
      %v5161 = vcombine.low %v4929, %v5144
      %v5162 = vcombine.high %v4929, %v5144
      %v5164 = vunpack.c.l.s4 1983009808
      %v5165 = vunpack.c.0.s8 %v5164
      %v5166 = vlaneseq
      %v5167 = vshrl.u32 %v5166, 7
      %v5168 = vsub.s32 %v5165, %v5167
      %v5169 = vrot.slane %v5161, %v5168
      %v5171 = vunpack.c.l.s4 1983009808
      %v5172 = vunpack.c.0.s8 %v5171
      %v5173 = vlaneseq
      %v5174 = vshrl.u32 %v5173, 7
      %v5175 = vsub.s32 %v5172, %v5174
      %v5176 = vrot.slane %v5162, %v5175
      %v5177 = vcombine.low %v5141, %v5147
      %v5178 = vcombine.high %v5141, %v5147
      %v5180 = vunpack.c.l.s4 1983009808
      %v5181 = vunpack.c.0.s8 %v5180
      %v5182 = vlaneseq
      %v5183 = vshrl.u32 %v5182, 7
      %v5184 = vsub.s32 %v5181, %v5183
      %v5185 = vrot.slane %v5177, %v5184
      %v5187 = vunpack.c.l.s4 1983009808
      %v5188 = vunpack.c.0.s8 %v5187
      %v5189 = vlaneseq
      %v5190 = vshrl.u32 %v5189, 7
      %v5191 = vsub.s32 %v5188, %v5190
      %v5192 = vrot.slane %v5178, %v5191
      %v5193 = vcombine.low %v5150, %v5156
      %v5194 = vcombine.high %v5150, %v5156
      %v5196 = vunpack.c.l.s4 1983009808
      %v5197 = vunpack.c.0.s8 %v5196
      %v5198 = vlaneseq
      %v5199 = vshrl.u32 %v5198, 7
      %v5200 = vsub.s32 %v5197, %v5199
      %v5201 = vrot.slane %v5193, %v5200
      %v5203 = vunpack.c.l.s4 1983009808
      %v5204 = vunpack.c.0.s8 %v5203
      %v5205 = vlaneseq
      %v5206 = vshrl.u32 %v5205, 7
      %v5207 = vsub.s32 %v5204, %v5206
      %v5208 = vrot.slane %v5194, %v5207
      %v5209 = vcombine.low %v5153, %v5159
      %v5210 = vcombine.high %v5153, %v5159
      %v5212 = vunpack.c.l.s4 1983009808
      %v5213 = vunpack.c.0.s8 %v5212
      %v5214 = vlaneseq
      %v5215 = vshrl.u32 %v5214, 7
      %v5216 = vsub.s32 %v5213, %v5215
      %v5217 = vrot.slane %v5209, %v5216
      %v5219 = vunpack.c.l.s4 1983009808
      %v5220 = vunpack.c.0.s8 %v5219
      %v5221 = vlaneseq
      %v5222 = vshrl.u32 %v5221, 7
      %v5223 = vsub.s32 %v5220, %v5222
      %v5224 = vrot.slane %v5210, %v5223
      %v5225 = vcombine.low %v5169, %v5185
      %v5226 = vcombine.high %v5169, %v5185
      %v5228 = vunpack.c.l.s4 1934713408
      %v5229 = vunpack.c.0.s8 %v5228
      %v5230 = vlaneseq
      %v5231 = vshrl.u32 %v5230, 7
      %v5232 = vsub.s32 %v5229, %v5231
      %v5233 = vrot.slane %v5225, %v5232
      %v5235 = vunpack.c.l.s4 1934713408
      %v5236 = vunpack.c.0.s8 %v5235
      %v5237 = vlaneseq
      %v5238 = vshrl.u32 %v5237, 7
      %v5239 = vsub.s32 %v5236, %v5238
      %v5240 = vrot.slane %v5226, %v5239
      %v5241 = vcombine.low %v5176, %v5192
      %v5242 = vcombine.high %v5176, %v5192
      %v5244 = vunpack.c.l.s4 1934713408
      %v5245 = vunpack.c.0.s8 %v5244
      %v5246 = vlaneseq
      %v5247 = vshrl.u32 %v5246, 7
      %v5248 = vsub.s32 %v5245, %v5247
      %v5249 = vrot.slane %v5241, %v5248
      %v5251 = vunpack.c.l.s4 1934713408
      %v5252 = vunpack.c.0.s8 %v5251
      %v5253 = vlaneseq
      %v5254 = vshrl.u32 %v5253, 7
      %v5255 = vsub.s32 %v5252, %v5254
      %v5256 = vrot.slane %v5242, %v5255
      %v5257 = vcombine.low %v5201, %v5217
      %v5258 = vcombine.high %v5201, %v5217
      %v5260 = vunpack.c.l.s4 1934713408
      %v5261 = vunpack.c.0.s8 %v5260
      %v5262 = vlaneseq
      %v5263 = vshrl.u32 %v5262, 7
      %v5264 = vsub.s32 %v5261, %v5263
      %v5265 = vrot.slane %v5257, %v5264
      %v5267 = vunpack.c.l.s4 1934713408
      %v5268 = vunpack.c.0.s8 %v5267
      %v5269 = vlaneseq
      %v5270 = vshrl.u32 %v5269, 7
      %v5271 = vsub.s32 %v5268, %v5270
      %v5272 = vrot.slane %v5258, %v5271
      %v5273 = vcombine.low %v5208, %v5224
      %v5274 = vcombine.high %v5208, %v5224
      %v5276 = vunpack.c.l.s4 1934713408
      %v5277 = vunpack.c.0.s8 %v5276
      %v5278 = vlaneseq
      %v5279 = vshrl.u32 %v5278, 7
      %v5280 = vsub.s32 %v5277, %v5279
      %v5281 = vrot.slane %v5273, %v5280
      %v5283 = vunpack.c.l.s4 1934713408
      %v5284 = vunpack.c.0.s8 %v5283
      %v5285 = vlaneseq
      %v5286 = vshrl.u32 %v5285, 7
      %v5287 = vsub.s32 %v5284, %v5286
      %v5288 = vrot.slane %v5274, %v5287
      %v5289 = vcombine.low %v5233, %v5265
      %v5290 = vcombine.high %v5233, %v5265
      %v5291 = vcombine.low %v5240, %v5272
      %v5292 = vcombine.high %v5240, %v5272
      %v5293 = vcombine.low %v5249, %v5281
      %v5294 = vcombine.high %v5249, %v5281
      %v5295 = vcombine.low %v5256, %v5288
      %v5296 = vcombine.high %v5256, %v5288
      %v5297 = vpack.c.bf16 %v5289, %v5289
      %v5298 = vpack.c.bf16 %v5290, %v5290
      %v5299 = vpack.c.bf16 %v5291, %v5291
      %v5300 = vpack.c.bf16 %v5292, %v5292
      %v5301 = vpack.c.bf16 %v5293, %v5293
      %v5302 = vpack.c.bf16 %v5294, %v5294
      %v5303 = vpack.c.bf16 %v5295, %v5295
      %v5304 = vpack.c.bf16 %v5296, %v5296
      %5306 = vrot.lane.b32.xlu0 %v4968, 112
      %v5307 = vpop.permute.xlu0 %5306
      %5309 = vrot.lane.b32.xlu0 %v4968, 96
      %v5310 = vpop.permute.xlu0 %5309
      %5312 = vrot.lane.b32.xlu0 %v4968, 80
      %v5313 = vpop.permute.xlu0 %5312
      %5315 = vrot.lane.b32.xlu0 %v4968, 64
      %v5316 = vpop.permute.xlu0 %5315
      %5318 = vrot.lane.b32.xlu0 %v4968, 48
      %v5319 = vpop.permute.xlu0 %5318
      %5321 = vrot.lane.b32.xlu0 %v4968, 32
      %v5322 = vpop.permute.xlu0 %5321
      %5324 = vrot.lane.b32.xlu0 %v4968, 16
      %v5325 = vpop.permute.xlu0 %5324
      %v5327 = vcombine.low %v4968, %v5310
      %v5328 = vcombine.high %v4968, %v5310
      %v5330 = vunpack.c.l.s4 1983009808
      %v5331 = vunpack.c.0.s8 %v5330
      %v5332 = vlaneseq
      %v5333 = vshrl.u32 %v5332, 7
      %v5334 = vsub.s32 %v5331, %v5333
      %v5335 = vrot.slane %v5327, %v5334
      %v5337 = vunpack.c.l.s4 1983009808
      %v5338 = vunpack.c.0.s8 %v5337
      %v5339 = vlaneseq
      %v5340 = vshrl.u32 %v5339, 7
      %v5341 = vsub.s32 %v5338, %v5340
      %v5342 = vrot.slane %v5328, %v5341
      %v5343 = vcombine.low %v5307, %v5313
      %v5344 = vcombine.high %v5307, %v5313
      %v5346 = vunpack.c.l.s4 1983009808
      %v5347 = vunpack.c.0.s8 %v5346
      %v5348 = vlaneseq
      %v5349 = vshrl.u32 %v5348, 7
      %v5350 = vsub.s32 %v5347, %v5349
      %v5351 = vrot.slane %v5343, %v5350
      %v5353 = vunpack.c.l.s4 1983009808
      %v5354 = vunpack.c.0.s8 %v5353
      %v5355 = vlaneseq
      %v5356 = vshrl.u32 %v5355, 7
      %v5357 = vsub.s32 %v5354, %v5356
      %v5358 = vrot.slane %v5344, %v5357
      %v5359 = vcombine.low %v5316, %v5322
      %v5360 = vcombine.high %v5316, %v5322
      %v5362 = vunpack.c.l.s4 1983009808
      %v5363 = vunpack.c.0.s8 %v5362
      %v5364 = vlaneseq
      %v5365 = vshrl.u32 %v5364, 7
      %v5366 = vsub.s32 %v5363, %v5365
      %v5367 = vrot.slane %v5359, %v5366
      %v5369 = vunpack.c.l.s4 1983009808
      %v5370 = vunpack.c.0.s8 %v5369
      %v5371 = vlaneseq
      %v5372 = vshrl.u32 %v5371, 7
      %v5373 = vsub.s32 %v5370, %v5372
      %v5374 = vrot.slane %v5360, %v5373
      %v5375 = vcombine.low %v5319, %v5325
      %v5376 = vcombine.high %v5319, %v5325
      %v5378 = vunpack.c.l.s4 1983009808
      %v5379 = vunpack.c.0.s8 %v5378
      %v5380 = vlaneseq
      %v5381 = vshrl.u32 %v5380, 7
      %v5382 = vsub.s32 %v5379, %v5381
      %v5383 = vrot.slane %v5375, %v5382
      %v5385 = vunpack.c.l.s4 1983009808
      %v5386 = vunpack.c.0.s8 %v5385
      %v5387 = vlaneseq
      %v5388 = vshrl.u32 %v5387, 7
      %v5389 = vsub.s32 %v5386, %v5388
      %v5390 = vrot.slane %v5376, %v5389
      %v5391 = vcombine.low %v5335, %v5351
      %v5392 = vcombine.high %v5335, %v5351
      %v5394 = vunpack.c.l.s4 1934713408
      %v5395 = vunpack.c.0.s8 %v5394
      %v5396 = vlaneseq
      %v5397 = vshrl.u32 %v5396, 7
      %v5398 = vsub.s32 %v5395, %v5397
      %v5399 = vrot.slane %v5391, %v5398
      %v5401 = vunpack.c.l.s4 1934713408
      %v5402 = vunpack.c.0.s8 %v5401
      %v5403 = vlaneseq
      %v5404 = vshrl.u32 %v5403, 7
      %v5405 = vsub.s32 %v5402, %v5404
      %v5406 = vrot.slane %v5392, %v5405
      %v5407 = vcombine.low %v5342, %v5358
      %v5408 = vcombine.high %v5342, %v5358
      %v5410 = vunpack.c.l.s4 1934713408
      %v5411 = vunpack.c.0.s8 %v5410
      %v5412 = vlaneseq
      %v5413 = vshrl.u32 %v5412, 7
      %v5414 = vsub.s32 %v5411, %v5413
      %v5415 = vrot.slane %v5407, %v5414
      %v5417 = vunpack.c.l.s4 1934713408
      %v5418 = vunpack.c.0.s8 %v5417
      %v5419 = vlaneseq
      %v5420 = vshrl.u32 %v5419, 7
      %v5421 = vsub.s32 %v5418, %v5420
      %v5422 = vrot.slane %v5408, %v5421
      %v5423 = vcombine.low %v5367, %v5383
      %v5424 = vcombine.high %v5367, %v5383
      %v5426 = vunpack.c.l.s4 1934713408
      %v5427 = vunpack.c.0.s8 %v5426
      %v5428 = vlaneseq
      %v5429 = vshrl.u32 %v5428, 7
      %v5430 = vsub.s32 %v5427, %v5429
      %v5431 = vrot.slane %v5423, %v5430
      %v5433 = vunpack.c.l.s4 1934713408
      %v5434 = vunpack.c.0.s8 %v5433
      %v5435 = vlaneseq
      %v5436 = vshrl.u32 %v5435, 7
      %v5437 = vsub.s32 %v5434, %v5436
      %v5438 = vrot.slane %v5424, %v5437
      %v5439 = vcombine.low %v5374, %v5390
      %v5440 = vcombine.high %v5374, %v5390
      %v5442 = vunpack.c.l.s4 1934713408
      %v5443 = vunpack.c.0.s8 %v5442
      %v5444 = vlaneseq
      %v5445 = vshrl.u32 %v5444, 7
      %v5446 = vsub.s32 %v5443, %v5445
      %v5447 = vrot.slane %v5439, %v5446
      %v5449 = vunpack.c.l.s4 1934713408
      %v5450 = vunpack.c.0.s8 %v5449
      %v5451 = vlaneseq
      %v5452 = vshrl.u32 %v5451, 7
      %v5453 = vsub.s32 %v5450, %v5452
      %v5454 = vrot.slane %v5440, %v5453
      %v5455 = vcombine.low %v5399, %v5431
      %v5456 = vcombine.high %v5399, %v5431
      %v5457 = vcombine.low %v5406, %v5438
      %v5458 = vcombine.high %v5406, %v5438
      %v5459 = vcombine.low %v5415, %v5447
      %v5460 = vcombine.high %v5415, %v5447
      %v5461 = vcombine.low %v5422, %v5454
      %v5462 = vcombine.high %v5422, %v5454
      %v5463 = vpack.c.bf16 %v5455, %v5455
      %v5464 = vpack.c.bf16 %v5456, %v5456
      %v5465 = vpack.c.bf16 %v5457, %v5457
      %v5466 = vpack.c.bf16 %v5458, %v5458
      %v5467 = vpack.c.bf16 %v5459, %v5459
      %v5468 = vpack.c.bf16 %v5460, %v5460
      %v5469 = vpack.c.bf16 %v5461, %v5461
      %v5470 = vpack.c.bf16 %v5462, %v5462
      %v5472 = vsel %vm1294, %v5131, 0
      %v5475 = vsel %vm1294, %v5297, 0
      %5477 = vmatprep.subr.bf16.mxu0 0
      %5478 = vmatpush1.bf16.xpose.msra.mxu0 0
      %5479 = vmatprep.subr.bf16.mxu0 0
      %5480 = vmatpush1.bf16.xpose.msra.mxu0 0
      %5481 = vmatprep.subr.bf16.mxu0 0
      %5482 = vmatpush1.bf16.xpose.msra.mxu0 0
      %5483 = vmatprep.subr.bf16.mxu0 0
      %5484 = vmatpush1.bf16.xpose.msra.mxu0 0
      %5485 = vmatprep.subr.bf16.mxu0 0
      %5486 = vmatpush1.bf16.xpose.msra.mxu0 0
      %5487 = vmatprep.subr.bf16.mxu0 0
      %5488 = vmatpush1.bf16.xpose.msra.mxu0 0
      %5489 = vmatprep.subr.bf16.mxu0 0
      %5490 = vmatpush1.bf16.xpose.msra.mxu0 0
      %5491 = vmatprep.subr.bf16.mxu0 0
      %5492 = vmatpush1.bf16.xpose.msra.mxu0 %v5475
      %5493 = vmatprep.subr.bf16.mxu0 0
      %5494 = vmatpush2.bf16.xpose.msra.mxu0 0
      %5495 = vmatprep.subr.bf16.mxu0 0
      %5496 = vmatpush2.bf16.xpose.msra.mxu0 0
      %5497 = vmatprep.subr.bf16.mxu0 0
      %5498 = vmatpush2.bf16.xpose.msra.mxu0 0
      %5499 = vmatprep.subr.bf16.mxu0 0
      %5500 = vmatpush2.bf16.xpose.msra.mxu0 0
      %5501 = vmatprep.subr.bf16.mxu0 0
      %5502 = vmatpush2.bf16.xpose.msra.mxu0 0
      %5503 = vmatprep.subr.bf16.mxu0 0
      %5504 = vmatpush2.bf16.xpose.msra.mxu0 0
      %5505 = vmatprep.subr.bf16.mxu0 0
      %5506 = vmatpush2.bf16.xpose.msra.mxu0 0
      %5507 = vmatprep.subr.bf16.mxu0 0
      %5508 = vmatpush2.bf16.xpose.msra.mxu0 0
      %5509 = vmatprep.mubr.bf16.mxu0 0
      %5510 = vmatmul.mubr.bf16.gmra.mxu0 %v5472
      %v5511 = vpop.f32.mrf.mxu0
      %v5512 = vadd.f32 0.0, %v5511
      %v5513 = vpop.f32.mrf.mxu0
      %v5514 = vpop.f32.mrf.mxu0
      %v5515 = vpop.f32.mrf.mxu0
      %5516 = vdwg.mxu0
      %v5518 = vsel %vm1294, %v5132, 0
      %v5521 = vsel %vm1294, %v5298, 0
      %5523 = vmatprep.subr.bf16.mxu0 0
      %5524 = vmatpush1.bf16.xpose.msra.mxu0 0
      %5525 = vmatprep.subr.bf16.mxu0 0
      %5526 = vmatpush1.bf16.xpose.msra.mxu0 0
      %5527 = vmatprep.subr.bf16.mxu0 0
      %5528 = vmatpush1.bf16.xpose.msra.mxu0 0
      %5529 = vmatprep.subr.bf16.mxu0 0
      %5530 = vmatpush1.bf16.xpose.msra.mxu0 0
      %5531 = vmatprep.subr.bf16.mxu0 0
      %5532 = vmatpush1.bf16.xpose.msra.mxu0 0
      %5533 = vmatprep.subr.bf16.mxu0 0
      %5534 = vmatpush1.bf16.xpose.msra.mxu0 0
      %5535 = vmatprep.subr.bf16.mxu0 0
      %5536 = vmatpush1.bf16.xpose.msra.mxu0 0
      %5537 = vmatprep.subr.bf16.mxu0 0
      %5538 = vmatpush1.bf16.xpose.msra.mxu0 %v5521
      %5539 = vmatprep.subr.bf16.mxu0 0
      %5540 = vmatpush2.bf16.xpose.msra.mxu0 0
      %5541 = vmatprep.subr.bf16.mxu0 0
      %5542 = vmatpush2.bf16.xpose.msra.mxu0 0
      %5543 = vmatprep.subr.bf16.mxu0 0
      %5544 = vmatpush2.bf16.xpose.msra.mxu0 0
      %5545 = vmatprep.subr.bf16.mxu0 0
      %5546 = vmatpush2.bf16.xpose.msra.mxu0 0
      %5547 = vmatprep.subr.bf16.mxu0 0
      %5548 = vmatpush2.bf16.xpose.msra.mxu0 0
      %5549 = vmatprep.subr.bf16.mxu0 0
      %5550 = vmatpush2.bf16.xpose.msra.mxu0 0
      %5551 = vmatprep.subr.bf16.mxu0 0
      %5552 = vmatpush2.bf16.xpose.msra.mxu0 0
      %5553 = vmatprep.subr.bf16.mxu0 0
      %5554 = vmatpush2.bf16.xpose.msra.mxu0 0
      %5555 = vmatprep.mubr.bf16.mxu0 0
      %5556 = vmatmul.mubr.bf16.gmra.mxu0 %v5518
      %v5557 = vpop.f32.mrf.mxu0
      %v5558 = vadd.f32 0.0, %v5557
      %v5559 = vpop.f32.mrf.mxu0
      %v5560 = vpop.f32.mrf.mxu0
      %v5561 = vpop.f32.mrf.mxu0
      %5562 = vdwg.mxu0
      %v5564 = vsel %vm1294, %v5133, 0
      %v5567 = vsel %vm1294, %v5299, 0
      %5569 = vmatprep.subr.bf16.mxu0 0
      %5570 = vmatpush1.bf16.xpose.msra.mxu0 0
      %5571 = vmatprep.subr.bf16.mxu0 0
      %5572 = vmatpush1.bf16.xpose.msra.mxu0 0
      %5573 = vmatprep.subr.bf16.mxu0 0
      %5574 = vmatpush1.bf16.xpose.msra.mxu0 0
      %5575 = vmatprep.subr.bf16.mxu0 0
      %5576 = vmatpush1.bf16.xpose.msra.mxu0 0
      %5577 = vmatprep.subr.bf16.mxu0 0
      %5578 = vmatpush1.bf16.xpose.msra.mxu0 0
      %5579 = vmatprep.subr.bf16.mxu0 0
      %5580 = vmatpush1.bf16.xpose.msra.mxu0 0
      %5581 = vmatprep.subr.bf16.mxu0 0
      %5582 = vmatpush1.bf16.xpose.msra.mxu0 0
      %5583 = vmatprep.subr.bf16.mxu0 0
      %5584 = vmatpush1.bf16.xpose.msra.mxu0 %v5567
      %5585 = vmatprep.subr.bf16.mxu0 0
      %5586 = vmatpush2.bf16.xpose.msra.mxu0 0
      %5587 = vmatprep.subr.bf16.mxu0 0
      %5588 = vmatpush2.bf16.xpose.msra.mxu0 0
      %5589 = vmatprep.subr.bf16.mxu0 0
      %5590 = vmatpush2.bf16.xpose.msra.mxu0 0
      %5591 = vmatprep.subr.bf16.mxu0 0
      %5592 = vmatpush2.bf16.xpose.msra.mxu0 0
      %5593 = vmatprep.subr.bf16.mxu0 0
      %5594 = vmatpush2.bf16.xpose.msra.mxu0 0
      %5595 = vmatprep.subr.bf16.mxu0 0
      %5596 = vmatpush2.bf16.xpose.msra.mxu0 0
      %5597 = vmatprep.subr.bf16.mxu0 0
      %5598 = vmatpush2.bf16.xpose.msra.mxu0 0
      %5599 = vmatprep.subr.bf16.mxu0 0
      %5600 = vmatpush2.bf16.xpose.msra.mxu0 0
      %5601 = vmatprep.mubr.bf16.mxu0 0
      %5602 = vmatmul.mubr.bf16.gmra.mxu0 %v5564
      %v5603 = vpop.f32.mrf.mxu0
      %v5604 = vadd.f32 0.0, %v5603
      %v5605 = vpop.f32.mrf.mxu0
      %v5606 = vpop.f32.mrf.mxu0
      %v5607 = vpop.f32.mrf.mxu0
      %5608 = vdwg.mxu0
      %v5610 = vsel %vm1294, %v5134, 0
      %v5613 = vsel %vm1294, %v5300, 0
      %5615 = vmatprep.subr.bf16.mxu0 0
      %5616 = vmatpush1.bf16.xpose.msra.mxu0 0
      %5617 = vmatprep.subr.bf16.mxu0 0
      %5618 = vmatpush1.bf16.xpose.msra.mxu0 0
      %5619 = vmatprep.subr.bf16.mxu0 0
      %5620 = vmatpush1.bf16.xpose.msra.mxu0 0
      %5621 = vmatprep.subr.bf16.mxu0 0
      %5622 = vmatpush1.bf16.xpose.msra.mxu0 0
      %5623 = vmatprep.subr.bf16.mxu0 0
      %5624 = vmatpush1.bf16.xpose.msra.mxu0 0
      %5625 = vmatprep.subr.bf16.mxu0 0
      %5626 = vmatpush1.bf16.xpose.msra.mxu0 0
      %5627 = vmatprep.subr.bf16.mxu0 0
      %5628 = vmatpush1.bf16.xpose.msra.mxu0 0
      %5629 = vmatprep.subr.bf16.mxu0 0
      %5630 = vmatpush1.bf16.xpose.msra.mxu0 %v5613
      %5631 = vmatprep.subr.bf16.mxu0 0
      %5632 = vmatpush2.bf16.xpose.msra.mxu0 0
      %5633 = vmatprep.subr.bf16.mxu0 0
      %5634 = vmatpush2.bf16.xpose.msra.mxu0 0
      %5635 = vmatprep.subr.bf16.mxu0 0
      %5636 = vmatpush2.bf16.xpose.msra.mxu0 0
      %5637 = vmatprep.subr.bf16.mxu0 0
      %5638 = vmatpush2.bf16.xpose.msra.mxu0 0
      %5639 = vmatprep.subr.bf16.mxu0 0
      %5640 = vmatpush2.bf16.xpose.msra.mxu0 0
      %5641 = vmatprep.subr.bf16.mxu0 0
      %5642 = vmatpush2.bf16.xpose.msra.mxu0 0
      %5643 = vmatprep.subr.bf16.mxu0 0
      %5644 = vmatpush2.bf16.xpose.msra.mxu0 0
      %5645 = vmatprep.subr.bf16.mxu0 0
      %5646 = vmatpush2.bf16.xpose.msra.mxu0 0
      %5647 = vmatprep.mubr.bf16.mxu0 0
      %5648 = vmatmul.mubr.bf16.gmra.mxu0 %v5610
      %v5649 = vpop.f32.mrf.mxu0
      %v5650 = vadd.f32 0.0, %v5649
      %v5651 = vpop.f32.mrf.mxu0
      %v5652 = vpop.f32.mrf.mxu0
      %v5653 = vpop.f32.mrf.mxu0
      %5654 = vdwg.mxu0
      %v5656 = vsel %vm1294, %v5135, 0
      %v5659 = vsel %vm1294, %v5301, 0
      %5661 = vmatprep.subr.bf16.mxu0 0
      %5662 = vmatpush1.bf16.xpose.msra.mxu0 0
      %5663 = vmatprep.subr.bf16.mxu0 0
      %5664 = vmatpush1.bf16.xpose.msra.mxu0 0
      %5665 = vmatprep.subr.bf16.mxu0 0
      %5666 = vmatpush1.bf16.xpose.msra.mxu0 0
      %5667 = vmatprep.subr.bf16.mxu0 0
      %5668 = vmatpush1.bf16.xpose.msra.mxu0 0
      %5669 = vmatprep.subr.bf16.mxu0 0
      %5670 = vmatpush1.bf16.xpose.msra.mxu0 0
      %5671 = vmatprep.subr.bf16.mxu0 0
      %5672 = vmatpush1.bf16.xpose.msra.mxu0 0
      %5673 = vmatprep.subr.bf16.mxu0 0
      %5674 = vmatpush1.bf16.xpose.msra.mxu0 0
      %5675 = vmatprep.subr.bf16.mxu0 0
      %5676 = vmatpush1.bf16.xpose.msra.mxu0 %v5659
      %5677 = vmatprep.subr.bf16.mxu0 0
      %5678 = vmatpush2.bf16.xpose.msra.mxu0 0
      %5679 = vmatprep.subr.bf16.mxu0 0
      %5680 = vmatpush2.bf16.xpose.msra.mxu0 0
      %5681 = vmatprep.subr.bf16.mxu0 0
      %5682 = vmatpush2.bf16.xpose.msra.mxu0 0
      %5683 = vmatprep.subr.bf16.mxu0 0
      %5684 = vmatpush2.bf16.xpose.msra.mxu0 0
      %5685 = vmatprep.subr.bf16.mxu0 0
      %5686 = vmatpush2.bf16.xpose.msra.mxu0 0
      %5687 = vmatprep.subr.bf16.mxu0 0
      %5688 = vmatpush2.bf16.xpose.msra.mxu0 0
      %5689 = vmatprep.subr.bf16.mxu0 0
      %5690 = vmatpush2.bf16.xpose.msra.mxu0 0
      %5691 = vmatprep.subr.bf16.mxu0 0
      %5692 = vmatpush2.bf16.xpose.msra.mxu0 0
      %5693 = vmatprep.mubr.bf16.mxu0 0
      %5694 = vmatmul.mubr.bf16.gmra.mxu0 %v5656
      %v5695 = vpop.f32.mrf.mxu0
      %v5696 = vadd.f32 0.0, %v5695
      %v5697 = vpop.f32.mrf.mxu0
      %v5698 = vpop.f32.mrf.mxu0
      %v5699 = vpop.f32.mrf.mxu0
      %5700 = vdwg.mxu0
      %v5702 = vsel %vm1294, %v5136, 0
      %v5705 = vsel %vm1294, %v5302, 0
      %5707 = vmatprep.subr.bf16.mxu0 0
      %5708 = vmatpush1.bf16.xpose.msra.mxu0 0
      %5709 = vmatprep.subr.bf16.mxu0 0
      %5710 = vmatpush1.bf16.xpose.msra.mxu0 0
      %5711 = vmatprep.subr.bf16.mxu0 0
      %5712 = vmatpush1.bf16.xpose.msra.mxu0 0
      %5713 = vmatprep.subr.bf16.mxu0 0
      %5714 = vmatpush1.bf16.xpose.msra.mxu0 0
      %5715 = vmatprep.subr.bf16.mxu0 0
      %5716 = vmatpush1.bf16.xpose.msra.mxu0 0
      %5717 = vmatprep.subr.bf16.mxu0 0
      %5718 = vmatpush1.bf16.xpose.msra.mxu0 0
      %5719 = vmatprep.subr.bf16.mxu0 0
      %5720 = vmatpush1.bf16.xpose.msra.mxu0 0
      %5721 = vmatprep.subr.bf16.mxu0 0
      %5722 = vmatpush1.bf16.xpose.msra.mxu0 %v5705
      %5723 = vmatprep.subr.bf16.mxu0 0
      %5724 = vmatpush2.bf16.xpose.msra.mxu0 0
      %5725 = vmatprep.subr.bf16.mxu0 0
      %5726 = vmatpush2.bf16.xpose.msra.mxu0 0
      %5727 = vmatprep.subr.bf16.mxu0 0
      %5728 = vmatpush2.bf16.xpose.msra.mxu0 0
      %5729 = vmatprep.subr.bf16.mxu0 0
      %5730 = vmatpush2.bf16.xpose.msra.mxu0 0
      %5731 = vmatprep.subr.bf16.mxu0 0
      %5732 = vmatpush2.bf16.xpose.msra.mxu0 0
      %5733 = vmatprep.subr.bf16.mxu0 0
      %5734 = vmatpush2.bf16.xpose.msra.mxu0 0
      %5735 = vmatprep.subr.bf16.mxu0 0
      %5736 = vmatpush2.bf16.xpose.msra.mxu0 0
      %5737 = vmatprep.subr.bf16.mxu0 0
      %5738 = vmatpush2.bf16.xpose.msra.mxu0 0
      %5739 = vmatprep.mubr.bf16.mxu0 0
      %5740 = vmatmul.mubr.bf16.gmra.mxu0 %v5702
      %v5741 = vpop.f32.mrf.mxu0
      %v5742 = vadd.f32 0.0, %v5741
      %v5743 = vpop.f32.mrf.mxu0
      %v5744 = vpop.f32.mrf.mxu0
      %v5745 = vpop.f32.mrf.mxu0
      %5746 = vdwg.mxu0
      %v5748 = vsel %vm1294, %v5137, 0
      %v5751 = vsel %vm1294, %v5303, 0
      %5753 = vmatprep.subr.bf16.mxu0 0
      %5754 = vmatpush1.bf16.xpose.msra.mxu0 0
      %5755 = vmatprep.subr.bf16.mxu0 0
      %5756 = vmatpush1.bf16.xpose.msra.mxu0 0
      %5757 = vmatprep.subr.bf16.mxu0 0
      %5758 = vmatpush1.bf16.xpose.msra.mxu0 0
      %5759 = vmatprep.subr.bf16.mxu0 0
      %5760 = vmatpush1.bf16.xpose.msra.mxu0 0
      %5761 = vmatprep.subr.bf16.mxu0 0
      %5762 = vmatpush1.bf16.xpose.msra.mxu0 0
      %5763 = vmatprep.subr.bf16.mxu0 0
      %5764 = vmatpush1.bf16.xpose.msra.mxu0 0
      %5765 = vmatprep.subr.bf16.mxu0 0
      %5766 = vmatpush1.bf16.xpose.msra.mxu0 0
      %5767 = vmatprep.subr.bf16.mxu0 0
      %5768 = vmatpush1.bf16.xpose.msra.mxu0 %v5751
      %5769 = vmatprep.subr.bf16.mxu0 0
      %5770 = vmatpush2.bf16.xpose.msra.mxu0 0
      %5771 = vmatprep.subr.bf16.mxu0 0
      %5772 = vmatpush2.bf16.xpose.msra.mxu0 0
      %5773 = vmatprep.subr.bf16.mxu0 0
      %5774 = vmatpush2.bf16.xpose.msra.mxu0 0
      %5775 = vmatprep.subr.bf16.mxu0 0
      %5776 = vmatpush2.bf16.xpose.msra.mxu0 0
      %5777 = vmatprep.subr.bf16.mxu0 0
      %5778 = vmatpush2.bf16.xpose.msra.mxu0 0
      %5779 = vmatprep.subr.bf16.mxu0 0
      %5780 = vmatpush2.bf16.xpose.msra.mxu0 0
      %5781 = vmatprep.subr.bf16.mxu0 0
      %5782 = vmatpush2.bf16.xpose.msra.mxu0 0
      %5783 = vmatprep.subr.bf16.mxu0 0
      %5784 = vmatpush2.bf16.xpose.msra.mxu0 0
      %5785 = vmatprep.mubr.bf16.mxu0 0
      %5786 = vmatmul.mubr.bf16.gmra.mxu0 %v5748
      %v5787 = vpop.f32.mrf.mxu0
      %v5788 = vadd.f32 0.0, %v5787
      %v5789 = vpop.f32.mrf.mxu0
      %v5790 = vpop.f32.mrf.mxu0
      %v5791 = vpop.f32.mrf.mxu0
      %5792 = vdwg.mxu0
      %v5794 = vsel %vm1294, %v5138, 0
      %v5797 = vsel %vm1294, %v5304, 0
      %5799 = vmatprep.subr.bf16.mxu0 0
      %5800 = vmatpush1.bf16.xpose.msra.mxu0 0
      %5801 = vmatprep.subr.bf16.mxu0 0
      %5802 = vmatpush1.bf16.xpose.msra.mxu0 0
      %5803 = vmatprep.subr.bf16.mxu0 0
      %5804 = vmatpush1.bf16.xpose.msra.mxu0 0
      %5805 = vmatprep.subr.bf16.mxu0 0
      %5806 = vmatpush1.bf16.xpose.msra.mxu0 0
      %5807 = vmatprep.subr.bf16.mxu0 0
      %5808 = vmatpush1.bf16.xpose.msra.mxu0 0
      %5809 = vmatprep.subr.bf16.mxu0 0
      %5810 = vmatpush1.bf16.xpose.msra.mxu0 0
      %5811 = vmatprep.subr.bf16.mxu0 0
      %5812 = vmatpush1.bf16.xpose.msra.mxu0 0
      %5813 = vmatprep.subr.bf16.mxu0 0
      %5814 = vmatpush1.bf16.xpose.msra.mxu0 %v5797
      %5815 = vmatprep.subr.bf16.mxu0 0
      %5816 = vmatpush2.bf16.xpose.msra.mxu0 0
      %5817 = vmatprep.subr.bf16.mxu0 0
      %5818 = vmatpush2.bf16.xpose.msra.mxu0 0
      %5819 = vmatprep.subr.bf16.mxu0 0
      %5820 = vmatpush2.bf16.xpose.msra.mxu0 0
      %5821 = vmatprep.subr.bf16.mxu0 0
      %5822 = vmatpush2.bf16.xpose.msra.mxu0 0
      %5823 = vmatprep.subr.bf16.mxu0 0
      %5824 = vmatpush2.bf16.xpose.msra.mxu0 0
      %5825 = vmatprep.subr.bf16.mxu0 0
      %5826 = vmatpush2.bf16.xpose.msra.mxu0 0
      %5827 = vmatprep.subr.bf16.mxu0 0
      %5828 = vmatpush2.bf16.xpose.msra.mxu0 0
      %5829 = vmatprep.subr.bf16.mxu0 0
      %5830 = vmatpush2.bf16.xpose.msra.mxu0 0
      %5831 = vmatprep.mubr.bf16.mxu0 0
      %5832 = vmatmul.mubr.bf16.gmra.mxu0 %v5794
      %v5833 = vpop.f32.mrf.mxu0
      %v5834 = vadd.f32 0.0, %v5833
      %v5835 = vpop.f32.mrf.mxu0
      %v5836 = vpop.f32.mrf.mxu0
      %v5837 = vpop.f32.mrf.mxu0
      %5838 = vdwg.mxu0
      %v5839 = vsel %vm1663, %v5512, -inf
      %5840 = vmax.xlane.f32.xlu0 %v5839
      %v5841 = vpop.xlane.xlu0 %5840
      %v5842 = vsel %vm1663, %v5558, -inf
      %5843 = vmax.xlane.f32.xlu0 %v5842
      %v5844 = vpop.xlane.xlu0 %5843
      %v5845 = vsel %vm1663, %v5604, -inf
      %5846 = vmax.xlane.f32.xlu0 %v5845
      %v5847 = vpop.xlane.xlu0 %5846
      %v5848 = vsel %vm1663, %v5650, -inf
      %5849 = vmax.xlane.f32.xlu0 %v5848
      %v5850 = vpop.xlane.xlu0 %5849
      %v5851 = vsel %vm1663, %v5696, -inf
      %5852 = vmax.xlane.f32.xlu0 %v5851
      %v5853 = vpop.xlane.xlu0 %5852
      %v5854 = vsel %vm1663, %v5742, -inf
      %5855 = vmax.xlane.f32.xlu0 %v5854
      %v5856 = vpop.xlane.xlu0 %5855
      %v5857 = vsel %vm1663, %v5788, -inf
      %5858 = vmax.xlane.f32.xlu0 %v5857
      %v5859 = vpop.xlane.xlu0 %5858
      %v5860 = vsel %vm1663, %v5834, -inf
      %5861 = vmax.xlane.f32.xlu0 %v5860
      %v5862 = vpop.xlane.xlu0 %5861
      %v5863 = vsub.f32 %v5512, %v5841
      %v5864 = vsub.f32 %v5558, %v5844
      %v5865 = vsub.f32 %v5604, %v5847
      %v5866 = vsub.f32 %v5650, %v5850
      %v5867 = vsub.f32 %v5696, %v5853
      %v5868 = vsub.f32 %v5742, %v5856
      %v5869 = vsub.f32 %v5788, %v5859
      %v5870 = vsub.f32 %v5834, %v5862
      %v5871 = vmul.f32 %v5863, 1.442695
      %v5872 = vpow.pop %v5871
      %v5873 = vmul.f32 %v5864, 1.442695
      %v5874 = vpow.pop %v5873
      %v5875 = vmul.f32 %v5865, 1.442695
      %v5876 = vpow.pop %v5875
      %v5877 = vmul.f32 %v5866, 1.442695
      %v5878 = vpow.pop %v5877
      %v5879 = vmul.f32 %v5867, 1.442695
      %v5880 = vpow.pop %v5879
      %v5881 = vmul.f32 %v5868, 1.442695
      %v5882 = vpow.pop %v5881
      %v5883 = vmul.f32 %v5869, 1.442695
      %v5884 = vpow.pop %v5883
      %v5885 = vmul.f32 %v5870, 1.442695
      %v5886 = vpow.pop %v5885
      %v5887 = vsel %vm1663, %v5872, 0.0
      %5888 = vadd.xlane.f32.xlu0 %v5887
      %v5889 = vpop.xlane.xlu0 %5888
      %v5890 = vsel %vm1663, %v5874, 0.0
      %5891 = vadd.xlane.f32.xlu0 %v5890
      %v5892 = vpop.xlane.xlu0 %5891
      %v5893 = vsel %vm1663, %v5876, 0.0
      %5894 = vadd.xlane.f32.xlu0 %v5893
      %v5895 = vpop.xlane.xlu0 %5894
      %v5896 = vsel %vm1663, %v5878, 0.0
      %5897 = vadd.xlane.f32.xlu0 %v5896
      %v5898 = vpop.xlane.xlu0 %5897
      %v5899 = vsel %vm1663, %v5880, 0.0
      %5900 = vadd.xlane.f32.xlu0 %v5899
      %v5901 = vpop.xlane.xlu0 %5900
      %v5902 = vsel %vm1663, %v5882, 0.0
      %5903 = vadd.xlane.f32.xlu0 %v5902
      %v5904 = vpop.xlane.xlu0 %5903
      %v5905 = vsel %vm1663, %v5884, 0.0
      %5906 = vadd.xlane.f32.xlu0 %v5905
      %v5907 = vpop.xlane.xlu0 %5906
      %v5908 = vsel %vm1663, %v5886, 0.0
      %5909 = vadd.xlane.f32.xlu0 %v5908
      %v5910 = vpop.xlane.xlu0 %5909
      %v5911 = vrcp.pop %v5889
      %v5912 = vrcp.pop %v5892
      %v5913 = vrcp.pop %v5895
      %v5914 = vrcp.pop %v5898
      %v5915 = vrcp.pop %v5901
      %v5916 = vrcp.pop %v5904
      %v5917 = vrcp.pop %v5907
      %v5918 = vrcp.pop %v5910
      %v5919 = vmul.f32 %v5872, %v5911
      %v5920 = vmul.f32 %v5874, %v5912
      %v5921 = vmul.f32 %v5876, %v5913
      %v5922 = vmul.f32 %v5878, %v5914
      %v5923 = vmul.f32 %v5880, %v5915
      %v5924 = vmul.f32 %v5882, %v5916
      %v5925 = vmul.f32 %v5884, %v5917
      %v5926 = vmul.f32 %v5886, %v5918
      %v5927 = vpack.c.bf16 %v5919, %v5919
      %v5928 = vpack.c.bf16 %v5920, %v5920
      %v5929 = vpack.c.bf16 %v5921, %v5921
      %v5930 = vpack.c.bf16 %v5922, %v5922
      %v5931 = vpack.c.bf16 %v5923, %v5923
      %v5932 = vpack.c.bf16 %v5924, %v5924
      %v5933 = vpack.c.bf16 %v5925, %v5925
      %v5934 = vpack.c.bf16 %v5926, %v5926
      %v5936 = vsel %vm1663, %v5927, 0
      %v5939 = vsel %vm1763, %v5463, 0
      %5941 = vmatprep.subr.bf16.mxu0 0
      %5942 = vmatpush1.bf16.msra.mxu0 0
      %5943 = vmatprep.subr.bf16.mxu0 0
      %5944 = vmatpush1.bf16.msra.mxu0 0
      %5945 = vmatprep.subr.bf16.mxu0 0
      %5946 = vmatpush1.bf16.msra.mxu0 0
      %5947 = vmatprep.subr.bf16.mxu0 0
      %5948 = vmatpush1.bf16.msra.mxu0 0
      %5949 = vmatprep.subr.bf16.mxu0 0
      %5950 = vmatpush1.bf16.msra.mxu0 0
      %5951 = vmatprep.subr.bf16.mxu0 0
      %5952 = vmatpush1.bf16.msra.mxu0 0
      %5953 = vmatprep.subr.bf16.mxu0 0
      %5954 = vmatpush1.bf16.msra.mxu0 0
      %5955 = vmatprep.subr.bf16.mxu0 0
      %5956 = vmatpush1.bf16.msra.mxu0 %v5939
      %5957 = vmatprep.subr.bf16.mxu0 0
      %5958 = vmatpush2.bf16.msra.mxu0 0
      %5959 = vmatprep.subr.bf16.mxu0 0
      %5960 = vmatpush2.bf16.msra.mxu0 0
      %5961 = vmatprep.subr.bf16.mxu0 0
      %5962 = vmatpush2.bf16.msra.mxu0 0
      %5963 = vmatprep.subr.bf16.mxu0 0
      %5964 = vmatpush2.bf16.msra.mxu0 0
      %5965 = vmatprep.subr.bf16.mxu0 0
      %5966 = vmatpush2.bf16.msra.mxu0 0
      %5967 = vmatprep.subr.bf16.mxu0 0
      %5968 = vmatpush2.bf16.msra.mxu0 0
      %5969 = vmatprep.subr.bf16.mxu0 0
      %5970 = vmatpush2.bf16.msra.mxu0 0
      %5971 = vmatprep.subr.bf16.mxu0 0
      %5972 = vmatpush2.bf16.msra.mxu0 0
      %5973 = vmatprep.mubr.bf16.mxu0 0
      %5974 = vmatmul.mubr.bf16.gmra.mxu0 %v5936
      %v5975 = vpop.f32.mrf.mxu0
      %v5976 = vadd.f32 0.0, %v5975
      %v5977 = vpop.f32.mrf.mxu0
      %v5978 = vpop.f32.mrf.mxu0
      %v5979 = vpop.f32.mrf.mxu0
      %5980 = vdwg.mxu0
      %v5982 = vsel %vm1663, %v5928, 0
      %v5985 = vsel %vm1763, %v5464, 0
      %5987 = vmatprep.subr.bf16.mxu0 0
      %5988 = vmatpush1.bf16.msra.mxu0 0
      %5989 = vmatprep.subr.bf16.mxu0 0
      %5990 = vmatpush1.bf16.msra.mxu0 0
      %5991 = vmatprep.subr.bf16.mxu0 0
      %5992 = vmatpush1.bf16.msra.mxu0 0
      %5993 = vmatprep.subr.bf16.mxu0 0
      %5994 = vmatpush1.bf16.msra.mxu0 0
      %5995 = vmatprep.subr.bf16.mxu0 0
      %5996 = vmatpush1.bf16.msra.mxu0 0
      %5997 = vmatprep.subr.bf16.mxu0 0
      %5998 = vmatpush1.bf16.msra.mxu0 0
      %5999 = vmatprep.subr.bf16.mxu0 0
      %6000 = vmatpush1.bf16.msra.mxu0 0
      %6001 = vmatprep.subr.bf16.mxu0 0
      %6002 = vmatpush1.bf16.msra.mxu0 %v5985
      %6003 = vmatprep.subr.bf16.mxu0 0
      %6004 = vmatpush2.bf16.msra.mxu0 0
      %6005 = vmatprep.subr.bf16.mxu0 0
      %6006 = vmatpush2.bf16.msra.mxu0 0
      %6007 = vmatprep.subr.bf16.mxu0 0
      %6008 = vmatpush2.bf16.msra.mxu0 0
      %6009 = vmatprep.subr.bf16.mxu0 0
      %6010 = vmatpush2.bf16.msra.mxu0 0
      %6011 = vmatprep.subr.bf16.mxu0 0
      %6012 = vmatpush2.bf16.msra.mxu0 0
      %6013 = vmatprep.subr.bf16.mxu0 0
      %6014 = vmatpush2.bf16.msra.mxu0 0
      %6015 = vmatprep.subr.bf16.mxu0 0
      %6016 = vmatpush2.bf16.msra.mxu0 0
      %6017 = vmatprep.subr.bf16.mxu0 0
      %6018 = vmatpush2.bf16.msra.mxu0 0
      %6019 = vmatprep.mubr.bf16.mxu0 0
      %6020 = vmatmul.mubr.bf16.gmra.mxu0 %v5982
      %v6021 = vpop.f32.mrf.mxu0
      %v6022 = vadd.f32 0.0, %v6021
      %v6023 = vpop.f32.mrf.mxu0
      %v6024 = vpop.f32.mrf.mxu0
      %v6025 = vpop.f32.mrf.mxu0
      %6026 = vdwg.mxu0
      %v6028 = vsel %vm1663, %v5929, 0
      %v6031 = vsel %vm1763, %v5465, 0
      %6033 = vmatprep.subr.bf16.mxu0 0
      %6034 = vmatpush1.bf16.msra.mxu0 0
      %6035 = vmatprep.subr.bf16.mxu0 0
      %6036 = vmatpush1.bf16.msra.mxu0 0
      %6037 = vmatprep.subr.bf16.mxu0 0
      %6038 = vmatpush1.bf16.msra.mxu0 0
      %6039 = vmatprep.subr.bf16.mxu0 0
      %6040 = vmatpush1.bf16.msra.mxu0 0
      %6041 = vmatprep.subr.bf16.mxu0 0
      %6042 = vmatpush1.bf16.msra.mxu0 0
      %6043 = vmatprep.subr.bf16.mxu0 0
      %6044 = vmatpush1.bf16.msra.mxu0 0
      %6045 = vmatprep.subr.bf16.mxu0 0
      %6046 = vmatpush1.bf16.msra.mxu0 0
      %6047 = vmatprep.subr.bf16.mxu0 0
      %6048 = vmatpush1.bf16.msra.mxu0 %v6031
      %6049 = vmatprep.subr.bf16.mxu0 0
      %6050 = vmatpush2.bf16.msra.mxu0 0
      %6051 = vmatprep.subr.bf16.mxu0 0
      %6052 = vmatpush2.bf16.msra.mxu0 0
      %6053 = vmatprep.subr.bf16.mxu0 0
      %6054 = vmatpush2.bf16.msra.mxu0 0
      %6055 = vmatprep.subr.bf16.mxu0 0
      %6056 = vmatpush2.bf16.msra.mxu0 0
      %6057 = vmatprep.subr.bf16.mxu0 0
      %6058 = vmatpush2.bf16.msra.mxu0 0
      %6059 = vmatprep.subr.bf16.mxu0 0
      %6060 = vmatpush2.bf16.msra.mxu0 0
      %6061 = vmatprep.subr.bf16.mxu0 0
      %6062 = vmatpush2.bf16.msra.mxu0 0
      %6063 = vmatprep.subr.bf16.mxu0 0
      %6064 = vmatpush2.bf16.msra.mxu0 0
      %6065 = vmatprep.mubr.bf16.mxu0 0
      %6066 = vmatmul.mubr.bf16.gmra.mxu0 %v6028
      %v6067 = vpop.f32.mrf.mxu0
      %v6068 = vadd.f32 0.0, %v6067
      %v6069 = vpop.f32.mrf.mxu0
      %v6070 = vpop.f32.mrf.mxu0
      %v6071 = vpop.f32.mrf.mxu0
      %6072 = vdwg.mxu0
      %v6074 = vsel %vm1663, %v5930, 0
      %v6077 = vsel %vm1763, %v5466, 0
      %6079 = vmatprep.subr.bf16.mxu0 0
      %6080 = vmatpush1.bf16.msra.mxu0 0
      %6081 = vmatprep.subr.bf16.mxu0 0
      %6082 = vmatpush1.bf16.msra.mxu0 0
      %6083 = vmatprep.subr.bf16.mxu0 0
      %6084 = vmatpush1.bf16.msra.mxu0 0
      %6085 = vmatprep.subr.bf16.mxu0 0
      %6086 = vmatpush1.bf16.msra.mxu0 0
      %6087 = vmatprep.subr.bf16.mxu0 0
      %6088 = vmatpush1.bf16.msra.mxu0 0
      %6089 = vmatprep.subr.bf16.mxu0 0
      %6090 = vmatpush1.bf16.msra.mxu0 0
      %6091 = vmatprep.subr.bf16.mxu0 0
      %6092 = vmatpush1.bf16.msra.mxu0 0
      %6093 = vmatprep.subr.bf16.mxu0 0
      %6094 = vmatpush1.bf16.msra.mxu0 %v6077
      %6095 = vmatprep.subr.bf16.mxu0 0
      %6096 = vmatpush2.bf16.msra.mxu0 0
      %6097 = vmatprep.subr.bf16.mxu0 0
      %6098 = vmatpush2.bf16.msra.mxu0 0
      %6099 = vmatprep.subr.bf16.mxu0 0
      %6100 = vmatpush2.bf16.msra.mxu0 0
      %6101 = vmatprep.subr.bf16.mxu0 0
      %6102 = vmatpush2.bf16.msra.mxu0 0
      %6103 = vmatprep.subr.bf16.mxu0 0
      %6104 = vmatpush2.bf16.msra.mxu0 0
      %6105 = vmatprep.subr.bf16.mxu0 0
      %6106 = vmatpush2.bf16.msra.mxu0 0
      %6107 = vmatprep.subr.bf16.mxu0 0
      %6108 = vmatpush2.bf16.msra.mxu0 0
      %6109 = vmatprep.subr.bf16.mxu0 0
      %6110 = vmatpush2.bf16.msra.mxu0 0
      %6111 = vmatprep.mubr.bf16.mxu0 0
      %6112 = vmatmul.mubr.bf16.gmra.mxu0 %v6074
      %v6113 = vpop.f32.mrf.mxu0
      %v6114 = vadd.f32 0.0, %v6113
      %v6115 = vpop.f32.mrf.mxu0
      %v6116 = vpop.f32.mrf.mxu0
      %v6117 = vpop.f32.mrf.mxu0
      %6118 = vdwg.mxu0
      %v6120 = vsel %vm1663, %v5931, 0
      %v6123 = vsel %vm1763, %v5467, 0
      %6125 = vmatprep.subr.bf16.mxu0 0
      %6126 = vmatpush1.bf16.msra.mxu0 0
      %6127 = vmatprep.subr.bf16.mxu0 0
      %6128 = vmatpush1.bf16.msra.mxu0 0
      %6129 = vmatprep.subr.bf16.mxu0 0
      %6130 = vmatpush1.bf16.msra.mxu0 0
      %6131 = vmatprep.subr.bf16.mxu0 0
      %6132 = vmatpush1.bf16.msra.mxu0 0
      %6133 = vmatprep.subr.bf16.mxu0 0
      %6134 = vmatpush1.bf16.msra.mxu0 0
      %6135 = vmatprep.subr.bf16.mxu0 0
      %6136 = vmatpush1.bf16.msra.mxu0 0
      %6137 = vmatprep.subr.bf16.mxu0 0
      %6138 = vmatpush1.bf16.msra.mxu0 0
      %6139 = vmatprep.subr.bf16.mxu0 0
      %6140 = vmatpush1.bf16.msra.mxu0 %v6123
      %6141 = vmatprep.subr.bf16.mxu0 0
      %6142 = vmatpush2.bf16.msra.mxu0 0
      %6143 = vmatprep.subr.bf16.mxu0 0
      %6144 = vmatpush2.bf16.msra.mxu0 0
      %6145 = vmatprep.subr.bf16.mxu0 0
      %6146 = vmatpush2.bf16.msra.mxu0 0
      %6147 = vmatprep.subr.bf16.mxu0 0
      %6148 = vmatpush2.bf16.msra.mxu0 0
      %6149 = vmatprep.subr.bf16.mxu0 0
      %6150 = vmatpush2.bf16.msra.mxu0 0
      %6151 = vmatprep.subr.bf16.mxu0 0
      %6152 = vmatpush2.bf16.msra.mxu0 0
      %6153 = vmatprep.subr.bf16.mxu0 0
      %6154 = vmatpush2.bf16.msra.mxu0 0
      %6155 = vmatprep.subr.bf16.mxu0 0
      %6156 = vmatpush2.bf16.msra.mxu0 0
      %6157 = vmatprep.mubr.bf16.mxu0 0
      %6158 = vmatmul.mubr.bf16.gmra.mxu0 %v6120
      %v6159 = vpop.f32.mrf.mxu0
      %v6160 = vadd.f32 0.0, %v6159
      %v6161 = vpop.f32.mrf.mxu0
      %v6162 = vpop.f32.mrf.mxu0
      %v6163 = vpop.f32.mrf.mxu0
      %6164 = vdwg.mxu0
      %v6166 = vsel %vm1663, %v5932, 0
      %v6169 = vsel %vm1763, %v5468, 0
      %6171 = vmatprep.subr.bf16.mxu0 0
      %6172 = vmatpush1.bf16.msra.mxu0 0
      %6173 = vmatprep.subr.bf16.mxu0 0
      %6174 = vmatpush1.bf16.msra.mxu0 0
      %6175 = vmatprep.subr.bf16.mxu0 0
      %6176 = vmatpush1.bf16.msra.mxu0 0
      %6177 = vmatprep.subr.bf16.mxu0 0
      %6178 = vmatpush1.bf16.msra.mxu0 0
      %6179 = vmatprep.subr.bf16.mxu0 0
      %6180 = vmatpush1.bf16.msra.mxu0 0
      %6181 = vmatprep.subr.bf16.mxu0 0
      %6182 = vmatpush1.bf16.msra.mxu0 0
      %6183 = vmatprep.subr.bf16.mxu0 0
      %6184 = vmatpush1.bf16.msra.mxu0 0
      %6185 = vmatprep.subr.bf16.mxu0 0
      %6186 = vmatpush1.bf16.msra.mxu0 %v6169
      %6187 = vmatprep.subr.bf16.mxu0 0
      %6188 = vmatpush2.bf16.msra.mxu0 0
      %6189 = vmatprep.subr.bf16.mxu0 0
      %6190 = vmatpush2.bf16.msra.mxu0 0
      %6191 = vmatprep.subr.bf16.mxu0 0
      %6192 = vmatpush2.bf16.msra.mxu0 0
      %6193 = vmatprep.subr.bf16.mxu0 0
      %6194 = vmatpush2.bf16.msra.mxu0 0
      %6195 = vmatprep.subr.bf16.mxu0 0
      %6196 = vmatpush2.bf16.msra.mxu0 0
      %6197 = vmatprep.subr.bf16.mxu0 0
      %6198 = vmatpush2.bf16.msra.mxu0 0
      %6199 = vmatprep.subr.bf16.mxu0 0
      %6200 = vmatpush2.bf16.msra.mxu0 0
      %6201 = vmatprep.subr.bf16.mxu0 0
      %6202 = vmatpush2.bf16.msra.mxu0 0
      %6203 = vmatprep.mubr.bf16.mxu0 0
      %6204 = vmatmul.mubr.bf16.gmra.mxu0 %v6166
      %v6205 = vpop.f32.mrf.mxu0
      %v6206 = vadd.f32 0.0, %v6205
      %v6207 = vpop.f32.mrf.mxu0
      %v6208 = vpop.f32.mrf.mxu0
      %v6209 = vpop.f32.mrf.mxu0
      %6210 = vdwg.mxu0
      %v6212 = vsel %vm1663, %v5933, 0
      %v6215 = vsel %vm1763, %v5469, 0
      %6217 = vmatprep.subr.bf16.mxu0 0
      %6218 = vmatpush1.bf16.msra.mxu0 0
      %6219 = vmatprep.subr.bf16.mxu0 0
      %6220 = vmatpush1.bf16.msra.mxu0 0
      %6221 = vmatprep.subr.bf16.mxu0 0
      %6222 = vmatpush1.bf16.msra.mxu0 0
      %6223 = vmatprep.subr.bf16.mxu0 0
      %6224 = vmatpush1.bf16.msra.mxu0 0
      %6225 = vmatprep.subr.bf16.mxu0 0
      %6226 = vmatpush1.bf16.msra.mxu0 0
      %6227 = vmatprep.subr.bf16.mxu0 0
      %6228 = vmatpush1.bf16.msra.mxu0 0
      %6229 = vmatprep.subr.bf16.mxu0 0
      %6230 = vmatpush1.bf16.msra.mxu0 0
      %6231 = vmatprep.subr.bf16.mxu0 0
      %6232 = vmatpush1.bf16.msra.mxu0 %v6215
      %6233 = vmatprep.subr.bf16.mxu0 0
      %6234 = vmatpush2.bf16.msra.mxu0 0
      %6235 = vmatprep.subr.bf16.mxu0 0
      %6236 = vmatpush2.bf16.msra.mxu0 0
      %6237 = vmatprep.subr.bf16.mxu0 0
      %6238 = vmatpush2.bf16.msra.mxu0 0
      %6239 = vmatprep.subr.bf16.mxu0 0
      %6240 = vmatpush2.bf16.msra.mxu0 0
      %6241 = vmatprep.subr.bf16.mxu0 0
      %6242 = vmatpush2.bf16.msra.mxu0 0
      %6243 = vmatprep.subr.bf16.mxu0 0
      %6244 = vmatpush2.bf16.msra.mxu0 0
      %6245 = vmatprep.subr.bf16.mxu0 0
      %6246 = vmatpush2.bf16.msra.mxu0 0
      %6247 = vmatprep.subr.bf16.mxu0 0
      %6248 = vmatpush2.bf16.msra.mxu0 0
      %6249 = vmatprep.mubr.bf16.mxu0 0
      %6250 = vmatmul.mubr.bf16.gmra.mxu0 %v6212
      %v6251 = vpop.f32.mrf.mxu0
      %v6252 = vadd.f32 0.0, %v6251
      %v6253 = vpop.f32.mrf.mxu0
      %v6254 = vpop.f32.mrf.mxu0
      %v6255 = vpop.f32.mrf.mxu0
      %6256 = vdwg.mxu0
      %v6258 = vsel %vm1663, %v5934, 0
      %v6261 = vsel %vm1763, %v5470, 0
      %6263 = vmatprep.subr.bf16.mxu0 0
      %6264 = vmatpush1.bf16.msra.mxu0 0
      %6265 = vmatprep.subr.bf16.mxu0 0
      %6266 = vmatpush1.bf16.msra.mxu0 0
      %6267 = vmatprep.subr.bf16.mxu0 0
      %6268 = vmatpush1.bf16.msra.mxu0 0
      %6269 = vmatprep.subr.bf16.mxu0 0
      %6270 = vmatpush1.bf16.msra.mxu0 0
      %6271 = vmatprep.subr.bf16.mxu0 0
      %6272 = vmatpush1.bf16.msra.mxu0 0
      %6273 = vmatprep.subr.bf16.mxu0 0
      %6274 = vmatpush1.bf16.msra.mxu0 0
      %6275 = vmatprep.subr.bf16.mxu0 0
      %6276 = vmatpush1.bf16.msra.mxu0 0
      %6277 = vmatprep.subr.bf16.mxu0 0
      %6278 = vmatpush1.bf16.msra.mxu0 %v6261
      %6279 = vmatprep.subr.bf16.mxu0 0
      %6280 = vmatpush2.bf16.msra.mxu0 0
      %6281 = vmatprep.subr.bf16.mxu0 0
      %6282 = vmatpush2.bf16.msra.mxu0 0
      %6283 = vmatprep.subr.bf16.mxu0 0
      %6284 = vmatpush2.bf16.msra.mxu0 0
      %6285 = vmatprep.subr.bf16.mxu0 0
      %6286 = vmatpush2.bf16.msra.mxu0 0
      %6287 = vmatprep.subr.bf16.mxu0 0
      %6288 = vmatpush2.bf16.msra.mxu0 0
      %6289 = vmatprep.subr.bf16.mxu0 0
      %6290 = vmatpush2.bf16.msra.mxu0 0
      %6291 = vmatprep.subr.bf16.mxu0 0
      %6292 = vmatpush2.bf16.msra.mxu0 0
      %6293 = vmatprep.subr.bf16.mxu0 0
      %6294 = vmatpush2.bf16.msra.mxu0 0
      %6295 = vmatprep.mubr.bf16.mxu0 0
      %6296 = vmatmul.mubr.bf16.gmra.mxu0 %v6258
      %v6297 = vpop.f32.mrf.mxu0
      %v6298 = vadd.f32 0.0, %v6297
      %v6299 = vpop.f32.mrf.mxu0
      %v6300 = vpop.f32.mrf.mxu0
      %v6301 = vpop.f32.mrf.mxu0
      %6302 = vdwg.mxu0
      %v6303 = vcombine.low %v5976, %v6068
      %v6304 = vcombine.high %v5976, %v6068
      %v6306 = vunpack.c.l.s4 1983009808
      %v6307 = vunpack.c.0.s8 %v6306
      %v6308 = vlaneseq
      %v6309 = vshrl.u32 %v6308, 7
      %v6310 = vsub.s32 %v6307, %v6309
      %v6311 = vrot.slane %v6303, %v6310
      %v6313 = vunpack.c.l.s4 1983009808
      %v6314 = vunpack.c.0.s8 %v6313
      %v6315 = vlaneseq
      %v6316 = vshrl.u32 %v6315, 7
      %v6317 = vsub.s32 %v6314, %v6316
      %v6318 = vrot.slane %v6304, %v6317
      %v6319 = vcombine.low %v6022, %v6114
      %v6320 = vcombine.high %v6022, %v6114
      %v6322 = vunpack.c.l.s4 1983009808
      %v6323 = vunpack.c.0.s8 %v6322
      %v6324 = vlaneseq
      %v6325 = vshrl.u32 %v6324, 7
      %v6326 = vsub.s32 %v6323, %v6325
      %v6327 = vrot.slane %v6319, %v6326
      %v6329 = vunpack.c.l.s4 1983009808
      %v6330 = vunpack.c.0.s8 %v6329
      %v6331 = vlaneseq
      %v6332 = vshrl.u32 %v6331, 7
      %v6333 = vsub.s32 %v6330, %v6332
      %v6334 = vrot.slane %v6320, %v6333
      %v6335 = vcombine.low %v6160, %v6252
      %v6336 = vcombine.high %v6160, %v6252
      %v6338 = vunpack.c.l.s4 1983009808
      %v6339 = vunpack.c.0.s8 %v6338
      %v6340 = vlaneseq
      %v6341 = vshrl.u32 %v6340, 7
      %v6342 = vsub.s32 %v6339, %v6341
      %v6343 = vrot.slane %v6335, %v6342
      %v6345 = vunpack.c.l.s4 1983009808
      %v6346 = vunpack.c.0.s8 %v6345
      %v6347 = vlaneseq
      %v6348 = vshrl.u32 %v6347, 7
      %v6349 = vsub.s32 %v6346, %v6348
      %v6350 = vrot.slane %v6336, %v6349
      %v6351 = vcombine.low %v6206, %v6298
      %v6352 = vcombine.high %v6206, %v6298
      %v6354 = vunpack.c.l.s4 1983009808
      %v6355 = vunpack.c.0.s8 %v6354
      %v6356 = vlaneseq
      %v6357 = vshrl.u32 %v6356, 7
      %v6358 = vsub.s32 %v6355, %v6357
      %v6359 = vrot.slane %v6351, %v6358
      %v6361 = vunpack.c.l.s4 1983009808
      %v6362 = vunpack.c.0.s8 %v6361
      %v6363 = vlaneseq
      %v6364 = vshrl.u32 %v6363, 7
      %v6365 = vsub.s32 %v6362, %v6364
      %v6366 = vrot.slane %v6352, %v6365
      %v6367 = vcombine.low %v6311, %v6327
      %v6368 = vcombine.high %v6311, %v6327
      %v6370 = vunpack.c.l.s4 1934713408
      %v6371 = vunpack.c.0.s8 %v6370
      %v6372 = vlaneseq
      %v6373 = vshrl.u32 %v6372, 7
      %v6374 = vsub.s32 %v6371, %v6373
      %v6375 = vrot.slane %v6367, %v6374
      %v6377 = vunpack.c.l.s4 1934713408
      %v6378 = vunpack.c.0.s8 %v6377
      %v6379 = vlaneseq
      %v6380 = vshrl.u32 %v6379, 7
      %v6381 = vsub.s32 %v6378, %v6380
      %v6382 = vrot.slane %v6368, %v6381
      %v6383 = vcombine.low %v6318, %v6334
      %v6384 = vcombine.high %v6318, %v6334
      %v6386 = vunpack.c.l.s4 1934713408
      %v6387 = vunpack.c.0.s8 %v6386
      %v6388 = vlaneseq
      %v6389 = vshrl.u32 %v6388, 7
      %v6390 = vsub.s32 %v6387, %v6389
      %v6391 = vrot.slane %v6383, %v6390
      %v6393 = vunpack.c.l.s4 1934713408
      %v6394 = vunpack.c.0.s8 %v6393
      %v6395 = vlaneseq
      %v6396 = vshrl.u32 %v6395, 7
      %v6397 = vsub.s32 %v6394, %v6396
      %v6398 = vrot.slane %v6384, %v6397
      %v6399 = vcombine.low %v6343, %v6359
      %v6400 = vcombine.high %v6343, %v6359
      %v6402 = vunpack.c.l.s4 1934713408
      %v6403 = vunpack.c.0.s8 %v6402
      %v6404 = vlaneseq
      %v6405 = vshrl.u32 %v6404, 7
      %v6406 = vsub.s32 %v6403, %v6405
      %v6407 = vrot.slane %v6399, %v6406
      %v6409 = vunpack.c.l.s4 1934713408
      %v6410 = vunpack.c.0.s8 %v6409
      %v6411 = vlaneseq
      %v6412 = vshrl.u32 %v6411, 7
      %v6413 = vsub.s32 %v6410, %v6412
      %v6414 = vrot.slane %v6400, %v6413
      %v6415 = vcombine.low %v6350, %v6366
      %v6416 = vcombine.high %v6350, %v6366
      %v6418 = vunpack.c.l.s4 1934713408
      %v6419 = vunpack.c.0.s8 %v6418
      %v6420 = vlaneseq
      %v6421 = vshrl.u32 %v6420, 7
      %v6422 = vsub.s32 %v6419, %v6421
      %v6423 = vrot.slane %v6415, %v6422
      %v6425 = vunpack.c.l.s4 1934713408
      %v6426 = vunpack.c.0.s8 %v6425
      %v6427 = vlaneseq
      %v6428 = vshrl.u32 %v6427, 7
      %v6429 = vsub.s32 %v6426, %v6428
      %v6430 = vrot.slane %v6416, %v6429
      %v6431 = vcombine.low %v6375, %v6407
      %v6432 = vcombine.high %v6375, %v6407
      %v6433 = vcombine.low %v6382, %v6414
      %v6434 = vcombine.high %v6382, %v6414
      %v6435 = vcombine.low %v6391, %v6423
      %v6436 = vcombine.high %v6391, %v6423
      %v6437 = vcombine.low %v6398, %v6430
      %v6438 = vcombine.high %v6398, %v6430
      %6440 = vrot.lane.b32.xlu0 %v6432, 16
      %v6441 = vpop.permute.xlu0 %6440
      %6444 = vrot.lane.b32.xlu0 %v6433, 32
      %v6445 = vpop.permute.xlu0 %6444
      %6448 = vrot.lane.b32.xlu0 %v6434, 48
      %v6449 = vpop.permute.xlu0 %6448
      %6452 = vrot.lane.b32.xlu0 %v6435, 64
      %v6453 = vpop.permute.xlu0 %6452
      %6456 = vrot.lane.b32.xlu0 %v6436, 80
      %v6457 = vpop.permute.xlu0 %6456
      %6460 = vrot.lane.b32.xlu0 %v6437, 96
      %v6461 = vpop.permute.xlu0 %6460
      %6464 = vrot.lane.b32.xlu0 %v6438, 112
      %v6465 = vpop.permute.xlu0 %6464
      %v6467 = vsel %vm1294, %v6431, %v6441
      %v6468 = vsel %vm2294, %v6467, %v6445
      %v6469 = vsel %vm2296, %v6468, %v6449
      %v6470 = vsel %vm2298, %v6469, %v6453
      %v6471 = vsel %vm2300, %v6470, %v6457
      %v6472 = vsel %vm2302, %v6471, %v6461
      %v6473 = vsel %vm2304, %v6472, %v6465
      %v6474 = vpack.c.bf16 %v6473, %v6473
      %s6475 = scalar_lea.vmem %s4, 128
      %v6476 = vld [vmem:[%s6475] sm:$0xf]
      %v6477 = vld [vmem:[%s6475 + $0x4] sm:$0xf]
      %v6478 = vld [vmem:[%s6475 + $0x8] sm:$0xf]
      %v6479 = vld [vmem:[%s6475 + $0xc] sm:$0xf]
      %v6480 = vld [vmem:[%s6475 + $0x10] sm:$0xf]
      %v6481 = vld [vmem:[%s6475 + $0x14] sm:$0xf]
      %v6482 = vld [vmem:[%s6475 + $0x18] sm:$0xf]
      %v6483 = vld [vmem:[%s6475 + $0x1c] sm:$0xf]
      %v6484 = vld [vmem:[%s6475 + $0x20] sm:$0xf]
      %v6485 = vld [vmem:[%s6475 + $0x24] sm:$0xf]
      %v6486 = vld [vmem:[%s6475 + $0x28] sm:$0xf]
      %v6487 = vld [vmem:[%s6475 + $0x2c] sm:$0xf]
      %v6488 = vld [vmem:[%s6475 + $0x30] sm:$0xf]
      %v6489 = vld [vmem:[%s6475 + $0x34] sm:$0xf]
      %v6490 = vld [vmem:[%s6475 + $0x38] sm:$0xf]
      %v6491 = vld [vmem:[%s6475 + $0x3c] sm:$0xf]
      %s6492 = scalar_lea.vmem %s5, 2
      %v6493 = vld [vmem:[%s6492] sm:$0x1]
      %v6495 = vlaneseq
      %v6496 = vshrl.u32 %v6495, 7
      %v6497 = vsub.s32 0, %v6496
      %v6498 = vrot.slane %v6493, %v6497
      %v6516 = vunpack.c.l.b16 %v6476
      %v6517 = vunpack.c.l.b16 %v6477
      %v6518 = vunpack.c.l.b16 %v6478
      %v6519 = vunpack.c.l.b16 %v6479
      %v6520 = vunpack.c.l.b16 %v6480
      %v6521 = vunpack.c.l.b16 %v6481
      %v6522 = vunpack.c.l.b16 %v6482
      %v6523 = vunpack.c.l.b16 %v6483
      %v6524 = vunpack.c.l.b16 %v6484
      %v6525 = vunpack.c.l.b16 %v6485
      %v6526 = vunpack.c.l.b16 %v6486
      %v6527 = vunpack.c.l.b16 %v6487
      %v6528 = vunpack.c.l.b16 %v6488
      %v6529 = vunpack.c.l.b16 %v6489
      %v6530 = vunpack.c.l.b16 %v6490
      %v6531 = vunpack.c.l.b16 %v6491
      %v6532 = vpack.c.b16 %v6517, %v6516
      %v6533 = vpack.c.b16 %v6519, %v6518
      %v6534 = vpack.c.b16 %v6521, %v6520
      %v6535 = vpack.c.b16 %v6523, %v6522
      %v6536 = vpack.c.b16 %v6525, %v6524
      %v6537 = vpack.c.b16 %v6527, %v6526
      %v6538 = vpack.c.b16 %v6529, %v6528
      %v6539 = vpack.c.b16 %v6531, %v6530
      %6548 = vmatprep.subr.bf16.mxu0 0
      %6549 = vmatpush1.bf16.msra.mxu0 %v6539
      %6550 = vmatprep.subr.bf16.mxu0 0
      %6551 = vmatpush1.bf16.msra.mxu0 %v6538
      %6552 = vmatprep.subr.bf16.mxu0 0
      %6553 = vmatpush1.bf16.msra.mxu0 %v6537
      %6554 = vmatprep.subr.bf16.mxu0 0
      %6555 = vmatpush1.bf16.msra.mxu0 %v6536
      %6556 = vmatprep.subr.bf16.mxu0 0
      %6557 = vmatpush1.bf16.msra.mxu0 %v6535
      %6558 = vmatprep.subr.bf16.mxu0 0
      %6559 = vmatpush1.bf16.msra.mxu0 %v6534
      %6560 = vmatprep.subr.bf16.mxu0 0
      %6561 = vmatpush1.bf16.msra.mxu0 %v6533
      %6562 = vmatprep.subr.bf16.mxu0 0
      %6563 = vmatpush1.bf16.msra.mxu0 %v6532
      %6564 = vmatprep.subr.bf16.mxu0 0
      %6565 = vmatpush2.bf16.msra.mxu0 0
      %6566 = vmatprep.subr.bf16.mxu0 0
      %6567 = vmatpush2.bf16.msra.mxu0 0
      %6568 = vmatprep.subr.bf16.mxu0 0
      %6569 = vmatpush2.bf16.msra.mxu0 0
      %6570 = vmatprep.subr.bf16.mxu0 0
      %6571 = vmatpush2.bf16.msra.mxu0 0
      %6572 = vmatprep.subr.bf16.mxu0 0
      %6573 = vmatpush2.bf16.msra.mxu0 0
      %6574 = vmatprep.subr.bf16.mxu0 0
      %6575 = vmatpush2.bf16.msra.mxu0 0
      %6576 = vmatprep.subr.bf16.mxu0 0
      %6577 = vmatpush2.bf16.msra.mxu0 0
      %6578 = vmatprep.subr.bf16.mxu0 0
      %6579 = vmatpush2.bf16.msra.mxu0 0
      %6580 = vmatprep.mubr.bf16.mxu0 0
      %6581 = vmatmul.mubr.bf16.gmra.mxu0 %v6474
      %v6582 = vpop.f32.mrf.mxu0
      %v6583 = vadd.f32 %v6498, %v6582
      %v6584 = vpop.f32.mrf.mxu0
      %v6585 = vpop.f32.mrf.mxu0
      %v6586 = vpop.f32.mrf.mxu0
      %6587 = vdwg.mxu0
      %v6588 = vadd.f32 %v6583, %v4711
      %s6589 = scalar_lea.vmem %s10, 3
      %v6590 = vld [vmem:[%s6589] sm:$0x1]
      %s6591 = scalar_lea.vmem %s11, 3
      %v6592 = vld [vmem:[%s6591] sm:$0x1]
      %6593 = vadd.xlane.f32.xlu0 %v6588
      %v6594 = vpop.xlane.xlu0 %6593
      %v6595 = vmul.f32 %v6594, %v2423
      %v6596 = vsub.f32 %v6588, %v6595
      %v6597 = vmul.f32 %v6596, %v6596
      %6598 = vadd.xlane.f32.xlu0 %v6597
      %v6599 = vpop.xlane.xlu0 %6598
      %v6600 = vmul.f32 %v6599, %v2423
      %v6601 = vadd.f32 %v6600, 1e-05
      %v6602 = vrsqrt.pop %v6601
      %v6603 = vmul.f32 %v6596, %v6602
      %v6605 = vlaneseq
      %v6606 = vshrl.u32 %v6605, 7
      %v6607 = vsub.s32 0, %v6606
      %v6608 = vrot.slane %v6590, %v6607
      %v6610 = vmul.f32 %v6603, %v6608
      %v6612 = vlaneseq
      %v6613 = vshrl.u32 %v6612, 7
      %v6614 = vsub.s32 0, %v6613
      %v6615 = vrot.slane %v6592, %v6614
      %v6617 = vadd.f32 %v6610, %v6615
      %s6618 = scalar_lea.vmem %s2, 576
      %v6619 = vld [vmem:[%s6618] sm:$0xff]
      %v6620 = vld [vmem:[%s6618 + $0x8] sm:$0xf]
      %v6621 = vld [vmem:[%s6618 + $0xc] sm:$0xff]
      %v6622 = vld [vmem:[%s6618 + $0x14] sm:$0xf]
      %v6623 = vld [vmem:[%s6618 + $0x18] sm:$0xff]
      %v6624 = vld [vmem:[%s6618 + $0x20] sm:$0xf]
      %v6625 = vld [vmem:[%s6618 + $0x24] sm:$0xff]
      %v6626 = vld [vmem:[%s6618 + $0x2c] sm:$0xf]
      %v6627 = vld [vmem:[%s6618 + $0x30] sm:$0xff]
      %v6628 = vld [vmem:[%s6618 + $0x38] sm:$0xf]
      %v6629 = vld [vmem:[%s6618 + $0x3c] sm:$0xff]
      %v6630 = vld [vmem:[%s6618 + $0x44] sm:$0xf]
      %v6631 = vld [vmem:[%s6618 + $0x48] sm:$0xff]
      %v6632 = vld [vmem:[%s6618 + $0x50] sm:$0xf]
      %v6633 = vld [vmem:[%s6618 + $0x54] sm:$0xff]
      %v6634 = vld [vmem:[%s6618 + $0x5c] sm:$0xf]
      %v6635 = vld [vmem:[%s6618 + $0x60] sm:$0xff]
      %v6636 = vld [vmem:[%s6618 + $0x68] sm:$0xf]
      %v6637 = vld [vmem:[%s6618 + $0x6c] sm:$0xff]
      %v6638 = vld [vmem:[%s6618 + $0x74] sm:$0xf]
      %v6639 = vld [vmem:[%s6618 + $0x78] sm:$0xff]
      %v6640 = vld [vmem:[%s6618 + $0x80] sm:$0xf]
      %v6641 = vld [vmem:[%s6618 + $0x84] sm:$0xff]
      %v6642 = vld [vmem:[%s6618 + $0x8c] sm:$0xf]
      %v6643 = vld [vmem:[%s6618 + $0x90] sm:$0xff]
      %v6644 = vld [vmem:[%s6618 + $0x98] sm:$0xf]
      %v6645 = vld [vmem:[%s6618 + $0x9c] sm:$0xff]
      %v6646 = vld [vmem:[%s6618 + $0xa4] sm:$0xf]
      %v6647 = vld [vmem:[%s6618 + $0xa8] sm:$0xff]
      %v6648 = vld [vmem:[%s6618 + $0xb0] sm:$0xf]
      %v6649 = vld [vmem:[%s6618 + $0xb4] sm:$0xff]
      %v6650 = vld [vmem:[%s6618 + $0xbc] sm:$0xf]
      %s6651 = scalar_lea.vmem %s3, 9
      %v6652 = vld [vmem:[%s6651] sm:$0x7]
      %v6654 = vlaneseq
      %v6655 = vshrl.u32 %v6654, 7
      %v6656 = vsub.s32 0, %v6655
      %v6657 = vrot.slane %v6652, %v6656
      %v6658 = vlaneseq
      %v6659 = vshrl.u32 %v6658, 7
      %v6660 = vsub.s32 1, %v6659
      %v6661 = vrot.slane %v6652, %v6660
      %v6662 = vlaneseq
      %v6663 = vshrl.u32 %v6662, 7
      %v6664 = vsub.s32 2, %v6663
      %v6665 = vrot.slane %v6652, %v6664
      %v6701 = vunpack.c.l.b16 %v6619
      %v6702 = vunpack.c.h.b16 %v6619
      %v6703 = vunpack.c.l.b16 %v6620
      %v6704 = vunpack.c.l.b16 %v6621
      %v6705 = vunpack.c.h.b16 %v6621
      %v6706 = vunpack.c.l.b16 %v6622
      %v6707 = vunpack.c.l.b16 %v6623
      %v6708 = vunpack.c.h.b16 %v6623
      %v6709 = vunpack.c.l.b16 %v6624
      %v6710 = vunpack.c.l.b16 %v6625
      %v6711 = vunpack.c.h.b16 %v6625
      %v6712 = vunpack.c.l.b16 %v6626
      %v6713 = vunpack.c.l.b16 %v6627
      %v6714 = vunpack.c.h.b16 %v6627
      %v6715 = vunpack.c.l.b16 %v6628
      %v6716 = vunpack.c.l.b16 %v6629
      %v6717 = vunpack.c.h.b16 %v6629
      %v6718 = vunpack.c.l.b16 %v6630
      %v6719 = vunpack.c.l.b16 %v6631
      %v6720 = vunpack.c.h.b16 %v6631
      %v6721 = vunpack.c.l.b16 %v6632
      %v6722 = vunpack.c.l.b16 %v6633
      %v6723 = vunpack.c.h.b16 %v6633
      %v6724 = vunpack.c.l.b16 %v6634
      %v6725 = vunpack.c.l.b16 %v6635
      %v6726 = vunpack.c.h.b16 %v6635
      %v6727 = vunpack.c.l.b16 %v6636
      %v6728 = vunpack.c.l.b16 %v6637
      %v6729 = vunpack.c.h.b16 %v6637
      %v6730 = vunpack.c.l.b16 %v6638
      %v6731 = vunpack.c.l.b16 %v6639
      %v6732 = vunpack.c.h.b16 %v6639
      %v6733 = vunpack.c.l.b16 %v6640
      %v6734 = vunpack.c.l.b16 %v6641
      %v6735 = vunpack.c.h.b16 %v6641
      %v6736 = vunpack.c.l.b16 %v6642
      %v6737 = vunpack.c.l.b16 %v6643
      %v6738 = vunpack.c.h.b16 %v6643
      %v6739 = vunpack.c.l.b16 %v6644
      %v6740 = vunpack.c.l.b16 %v6645
      %v6741 = vunpack.c.h.b16 %v6645
      %v6742 = vunpack.c.l.b16 %v6646
      %v6743 = vunpack.c.l.b16 %v6647
      %v6744 = vunpack.c.h.b16 %v6647
      %v6745 = vunpack.c.l.b16 %v6648
      %v6746 = vunpack.c.l.b16 %v6649
      %v6747 = vunpack.c.h.b16 %v6649
      %v6748 = vunpack.c.l.b16 %v6650
      %v6749 = vpack.c.b16 %v6704, %v6701
      %v6750 = vpack.c.b16 %v6705, %v6702
      %v6751 = vpack.c.b16 %v6706, %v6703
      %v6752 = vpack.c.b16 %v6710, %v6707
      %v6753 = vpack.c.b16 %v6711, %v6708
      %v6754 = vpack.c.b16 %v6712, %v6709
      %v6755 = vpack.c.b16 %v6716, %v6713
      %v6756 = vpack.c.b16 %v6717, %v6714
      %v6757 = vpack.c.b16 %v6718, %v6715
      %v6758 = vpack.c.b16 %v6722, %v6719
      %v6759 = vpack.c.b16 %v6723, %v6720
      %v6760 = vpack.c.b16 %v6724, %v6721
      %v6761 = vpack.c.b16 %v6728, %v6725
      %v6762 = vpack.c.b16 %v6729, %v6726
      %v6763 = vpack.c.b16 %v6730, %v6727
      %v6764 = vpack.c.b16 %v6734, %v6731
      %v6765 = vpack.c.b16 %v6735, %v6732
      %v6766 = vpack.c.b16 %v6736, %v6733
      %v6767 = vpack.c.b16 %v6740, %v6737
      %v6768 = vpack.c.b16 %v6741, %v6738
      %v6769 = vpack.c.b16 %v6742, %v6739
      %v6770 = vpack.c.b16 %v6746, %v6743
      %v6771 = vpack.c.b16 %v6747, %v6744
      %v6772 = vpack.c.b16 %v6748, %v6745
      %6797 = vmatprep.subr.bf16.mxu0 %v6771
      %6798 = vmatpush1.bf16.msra.mxu0 %v6770
      %6799 = vmatprep.subr.bf16.mxu0 %v6768
      %6800 = vmatpush1.bf16.msra.mxu0 %v6767
      %6801 = vmatprep.subr.bf16.mxu0 %v6765
      %6802 = vmatpush1.bf16.msra.mxu0 %v6764
      %6803 = vmatprep.subr.bf16.mxu0 %v6762
      %6804 = vmatpush1.bf16.msra.mxu0 %v6761
      %6805 = vmatprep.subr.bf16.mxu0 %v6759
      %6806 = vmatpush1.bf16.msra.mxu0 %v6758
      %6807 = vmatprep.subr.bf16.mxu0 %v6756
      %6808 = vmatpush1.bf16.msra.mxu0 %v6755
      %6809 = vmatprep.subr.bf16.mxu0 %v6753
      %6810 = vmatpush1.bf16.msra.mxu0 %v6752
      %6811 = vmatprep.subr.bf16.mxu0 %v6750
      %6812 = vmatpush1.bf16.msra.mxu0 %v6749
      %6813 = vmatprep.subr.bf16.mxu0 0
      %6814 = vmatpush2.bf16.msra.mxu0 0
      %6815 = vmatprep.subr.bf16.mxu0 0
      %6816 = vmatpush2.bf16.msra.mxu0 0
      %6817 = vmatprep.subr.bf16.mxu0 0
      %6818 = vmatpush2.bf16.msra.mxu0 0
      %6819 = vmatprep.subr.bf16.mxu0 0
      %6820 = vmatpush2.bf16.msra.mxu0 0
      %6821 = vmatprep.subr.bf16.mxu0 0
      %6822 = vmatpush2.bf16.msra.mxu0 0
      %6823 = vmatprep.subr.bf16.mxu0 0
      %6824 = vmatpush2.bf16.msra.mxu0 0
      %6825 = vmatprep.subr.bf16.mxu0 0
      %6826 = vmatpush2.bf16.msra.mxu0 0
      %6827 = vmatprep.subr.bf16.mxu0 0
      %6828 = vmatpush2.bf16.msra.mxu0 0
      %6829 = vmatprep.mubr.bf16.mxu0 0
      %6830 = vmatmul.mubr.bf16.gmra.mxu0 %v2447
      %v6831 = vpop.f32.mrf.mxu0
      %v6832 = vadd.f32 %v6657, %v6831
      %v6833 = vpop.f32.mrf.mxu0
      %v6834 = vadd.f32 %v6661, %v6833
      %v6835 = vpop.f32.mrf.mxu0
      %v6836 = vpop.f32.mrf.mxu0
      %6837 = vdwg.mxu0
      %6838 = vmatprep.subr.bf16.mxu0 0
      %6839 = vmatpush1.bf16.msra.mxu0 %v6772
      %6840 = vmatprep.subr.bf16.mxu0 0
      %6841 = vmatpush1.bf16.msra.mxu0 %v6769
      %6842 = vmatprep.subr.bf16.mxu0 0
      %6843 = vmatpush1.bf16.msra.mxu0 %v6766
      %6844 = vmatprep.subr.bf16.mxu0 0
      %6845 = vmatpush1.bf16.msra.mxu0 %v6763
      %6846 = vmatprep.subr.bf16.mxu0 0
      %6847 = vmatpush1.bf16.msra.mxu0 %v6760
      %6848 = vmatprep.subr.bf16.mxu0 0
      %6849 = vmatpush1.bf16.msra.mxu0 %v6757
      %6850 = vmatprep.subr.bf16.mxu0 0
      %6851 = vmatpush1.bf16.msra.mxu0 %v6754
      %6852 = vmatprep.subr.bf16.mxu0 0
      %6853 = vmatpush1.bf16.msra.mxu0 %v6751
      %6854 = vmatprep.subr.bf16.mxu0 0
      %6855 = vmatpush2.bf16.msra.mxu0 0
      %6856 = vmatprep.subr.bf16.mxu0 0
      %6857 = vmatpush2.bf16.msra.mxu0 0
      %6858 = vmatprep.subr.bf16.mxu0 0
      %6859 = vmatpush2.bf16.msra.mxu0 0
      %6860 = vmatprep.subr.bf16.mxu0 0
      %6861 = vmatpush2.bf16.msra.mxu0 0
      %6862 = vmatprep.subr.bf16.mxu0 0
      %6863 = vmatpush2.bf16.msra.mxu0 0
      %6864 = vmatprep.subr.bf16.mxu0 0
      %6865 = vmatpush2.bf16.msra.mxu0 0
      %6866 = vmatprep.subr.bf16.mxu0 0
      %6867 = vmatpush2.bf16.msra.mxu0 0
      %6868 = vmatprep.subr.bf16.mxu0 0
      %6869 = vmatpush2.bf16.msra.mxu0 0
      %6870 = vmatprep.mubr.bf16.mxu0 0
      %6871 = vmatmul.mubr.bf16.gmra.mxu0 %v2447
      %v6872 = vpop.f32.mrf.mxu0
      %v6873 = vadd.f32 %v6665, %v6872
      %v6874 = vpop.f32.mrf.mxu0
      %v6875 = vpop.f32.mrf.mxu0
      %v6876 = vpop.f32.mrf.mxu0
      %6877 = vdwg.mxu0
      %6879 = vrot.lane.b32.xlu0 %v6832, 112
      %v6880 = vpop.permute.xlu0 %6879
      %6882 = vrot.lane.b32.xlu0 %v6832, 96
      %v6883 = vpop.permute.xlu0 %6882
      %6885 = vrot.lane.b32.xlu0 %v6832, 80
      %v6886 = vpop.permute.xlu0 %6885
      %6888 = vrot.lane.b32.xlu0 %v6832, 64
      %v6889 = vpop.permute.xlu0 %6888
      %6891 = vrot.lane.b32.xlu0 %v6832, 48
      %v6892 = vpop.permute.xlu0 %6891
      %6894 = vrot.lane.b32.xlu0 %v6832, 32
      %v6895 = vpop.permute.xlu0 %6894
      %6897 = vrot.lane.b32.xlu0 %v6832, 16
      %v6898 = vpop.permute.xlu0 %6897
      %v6900 = vcombine.low %v6832, %v6883
      %v6901 = vcombine.high %v6832, %v6883
      %v6903 = vunpack.c.l.s4 1983009808
      %v6904 = vunpack.c.0.s8 %v6903
      %v6905 = vlaneseq
      %v6906 = vshrl.u32 %v6905, 7
      %v6907 = vsub.s32 %v6904, %v6906
      %v6908 = vrot.slane %v6900, %v6907
      %v6910 = vunpack.c.l.s4 1983009808
      %v6911 = vunpack.c.0.s8 %v6910
      %v6912 = vlaneseq
      %v6913 = vshrl.u32 %v6912, 7
      %v6914 = vsub.s32 %v6911, %v6913
      %v6915 = vrot.slane %v6901, %v6914
      %v6916 = vcombine.low %v6880, %v6886
      %v6917 = vcombine.high %v6880, %v6886
      %v6919 = vunpack.c.l.s4 1983009808
      %v6920 = vunpack.c.0.s8 %v6919
      %v6921 = vlaneseq
      %v6922 = vshrl.u32 %v6921, 7
      %v6923 = vsub.s32 %v6920, %v6922
      %v6924 = vrot.slane %v6916, %v6923
      %v6926 = vunpack.c.l.s4 1983009808
      %v6927 = vunpack.c.0.s8 %v6926
      %v6928 = vlaneseq
      %v6929 = vshrl.u32 %v6928, 7
      %v6930 = vsub.s32 %v6927, %v6929
      %v6931 = vrot.slane %v6917, %v6930
      %v6932 = vcombine.low %v6889, %v6895
      %v6933 = vcombine.high %v6889, %v6895
      %v6935 = vunpack.c.l.s4 1983009808
      %v6936 = vunpack.c.0.s8 %v6935
      %v6937 = vlaneseq
      %v6938 = vshrl.u32 %v6937, 7
      %v6939 = vsub.s32 %v6936, %v6938
      %v6940 = vrot.slane %v6932, %v6939
      %v6942 = vunpack.c.l.s4 1983009808
      %v6943 = vunpack.c.0.s8 %v6942
      %v6944 = vlaneseq
      %v6945 = vshrl.u32 %v6944, 7
      %v6946 = vsub.s32 %v6943, %v6945
      %v6947 = vrot.slane %v6933, %v6946
      %v6948 = vcombine.low %v6892, %v6898
      %v6949 = vcombine.high %v6892, %v6898
      %v6951 = vunpack.c.l.s4 1983009808
      %v6952 = vunpack.c.0.s8 %v6951
      %v6953 = vlaneseq
      %v6954 = vshrl.u32 %v6953, 7
      %v6955 = vsub.s32 %v6952, %v6954
      %v6956 = vrot.slane %v6948, %v6955
      %v6958 = vunpack.c.l.s4 1983009808
      %v6959 = vunpack.c.0.s8 %v6958
      %v6960 = vlaneseq
      %v6961 = vshrl.u32 %v6960, 7
      %v6962 = vsub.s32 %v6959, %v6961
      %v6963 = vrot.slane %v6949, %v6962
      %v6964 = vcombine.low %v6908, %v6924
      %v6965 = vcombine.high %v6908, %v6924
      %v6967 = vunpack.c.l.s4 1934713408
      %v6968 = vunpack.c.0.s8 %v6967
      %v6969 = vlaneseq
      %v6970 = vshrl.u32 %v6969, 7
      %v6971 = vsub.s32 %v6968, %v6970
      %v6972 = vrot.slane %v6964, %v6971
      %v6974 = vunpack.c.l.s4 1934713408
      %v6975 = vunpack.c.0.s8 %v6974
      %v6976 = vlaneseq
      %v6977 = vshrl.u32 %v6976, 7
      %v6978 = vsub.s32 %v6975, %v6977
      %v6979 = vrot.slane %v6965, %v6978
      %v6980 = vcombine.low %v6915, %v6931
      %v6981 = vcombine.high %v6915, %v6931
      %v6983 = vunpack.c.l.s4 1934713408
      %v6984 = vunpack.c.0.s8 %v6983
      %v6985 = vlaneseq
      %v6986 = vshrl.u32 %v6985, 7
      %v6987 = vsub.s32 %v6984, %v6986
      %v6988 = vrot.slane %v6980, %v6987
      %v6990 = vunpack.c.l.s4 1934713408
      %v6991 = vunpack.c.0.s8 %v6990
      %v6992 = vlaneseq
      %v6993 = vshrl.u32 %v6992, 7
      %v6994 = vsub.s32 %v6991, %v6993
      %v6995 = vrot.slane %v6981, %v6994
      %v6996 = vcombine.low %v6940, %v6956
      %v6997 = vcombine.high %v6940, %v6956
      %v6999 = vunpack.c.l.s4 1934713408
      %v7000 = vunpack.c.0.s8 %v6999
      %v7001 = vlaneseq
      %v7002 = vshrl.u32 %v7001, 7
      %v7003 = vsub.s32 %v7000, %v7002
      %v7004 = vrot.slane %v6996, %v7003
      %v7006 = vunpack.c.l.s4 1934713408
      %v7007 = vunpack.c.0.s8 %v7006
      %v7008 = vlaneseq
      %v7009 = vshrl.u32 %v7008, 7
      %v7010 = vsub.s32 %v7007, %v7009
      %v7011 = vrot.slane %v6997, %v7010
      %v7012 = vcombine.low %v6947, %v6963
      %v7013 = vcombine.high %v6947, %v6963
      %v7015 = vunpack.c.l.s4 1934713408
      %v7016 = vunpack.c.0.s8 %v7015
      %v7017 = vlaneseq
      %v7018 = vshrl.u32 %v7017, 7
      %v7019 = vsub.s32 %v7016, %v7018
      %v7020 = vrot.slane %v7012, %v7019
      %v7022 = vunpack.c.l.s4 1934713408
      %v7023 = vunpack.c.0.s8 %v7022
      %v7024 = vlaneseq
      %v7025 = vshrl.u32 %v7024, 7
      %v7026 = vsub.s32 %v7023, %v7025
      %v7027 = vrot.slane %v7013, %v7026
      %v7028 = vcombine.low %v6972, %v7004
      %v7029 = vcombine.high %v6972, %v7004
      %v7030 = vcombine.low %v6979, %v7011
      %v7031 = vcombine.high %v6979, %v7011
      %v7032 = vcombine.low %v6988, %v7020
      %v7033 = vcombine.high %v6988, %v7020
      %v7034 = vcombine.low %v6995, %v7027
      %v7035 = vcombine.high %v6995, %v7027
      %v7036 = vpack.c.bf16 %v7028, %v7028
      %v7037 = vpack.c.bf16 %v7029, %v7029
      %v7038 = vpack.c.bf16 %v7030, %v7030
      %v7039 = vpack.c.bf16 %v7031, %v7031
      %v7040 = vpack.c.bf16 %v7032, %v7032
      %v7041 = vpack.c.bf16 %v7033, %v7033
      %v7042 = vpack.c.bf16 %v7034, %v7034
      %v7043 = vpack.c.bf16 %v7035, %v7035
      %7045 = vrot.lane.b32.xlu0 %v6834, 112
      %v7046 = vpop.permute.xlu0 %7045
      %7048 = vrot.lane.b32.xlu0 %v6834, 96
      %v7049 = vpop.permute.xlu0 %7048
      %7051 = vrot.lane.b32.xlu0 %v6834, 80
      %v7052 = vpop.permute.xlu0 %7051
      %7054 = vrot.lane.b32.xlu0 %v6834, 64
      %v7055 = vpop.permute.xlu0 %7054
      %7057 = vrot.lane.b32.xlu0 %v6834, 48
      %v7058 = vpop.permute.xlu0 %7057
      %7060 = vrot.lane.b32.xlu0 %v6834, 32
      %v7061 = vpop.permute.xlu0 %7060
      %7063 = vrot.lane.b32.xlu0 %v6834, 16
      %v7064 = vpop.permute.xlu0 %7063
      %v7066 = vcombine.low %v6834, %v7049
      %v7067 = vcombine.high %v6834, %v7049
      %v7069 = vunpack.c.l.s4 1983009808
      %v7070 = vunpack.c.0.s8 %v7069
      %v7071 = vlaneseq
      %v7072 = vshrl.u32 %v7071, 7
      %v7073 = vsub.s32 %v7070, %v7072
      %v7074 = vrot.slane %v7066, %v7073
      %v7076 = vunpack.c.l.s4 1983009808
      %v7077 = vunpack.c.0.s8 %v7076
      %v7078 = vlaneseq
      %v7079 = vshrl.u32 %v7078, 7
      %v7080 = vsub.s32 %v7077, %v7079
      %v7081 = vrot.slane %v7067, %v7080
      %v7082 = vcombine.low %v7046, %v7052
      %v7083 = vcombine.high %v7046, %v7052
      %v7085 = vunpack.c.l.s4 1983009808
      %v7086 = vunpack.c.0.s8 %v7085
      %v7087 = vlaneseq
      %v7088 = vshrl.u32 %v7087, 7
      %v7089 = vsub.s32 %v7086, %v7088
      %v7090 = vrot.slane %v7082, %v7089
      %v7092 = vunpack.c.l.s4 1983009808
      %v7093 = vunpack.c.0.s8 %v7092
      %v7094 = vlaneseq
      %v7095 = vshrl.u32 %v7094, 7
      %v7096 = vsub.s32 %v7093, %v7095
      %v7097 = vrot.slane %v7083, %v7096
      %v7098 = vcombine.low %v7055, %v7061
      %v7099 = vcombine.high %v7055, %v7061
      %v7101 = vunpack.c.l.s4 1983009808
      %v7102 = vunpack.c.0.s8 %v7101
      %v7103 = vlaneseq
      %v7104 = vshrl.u32 %v7103, 7
      %v7105 = vsub.s32 %v7102, %v7104
      %v7106 = vrot.slane %v7098, %v7105
      %v7108 = vunpack.c.l.s4 1983009808
      %v7109 = vunpack.c.0.s8 %v7108
      %v7110 = vlaneseq
      %v7111 = vshrl.u32 %v7110, 7
      %v7112 = vsub.s32 %v7109, %v7111
      %v7113 = vrot.slane %v7099, %v7112
      %v7114 = vcombine.low %v7058, %v7064
      %v7115 = vcombine.high %v7058, %v7064
      %v7117 = vunpack.c.l.s4 1983009808
      %v7118 = vunpack.c.0.s8 %v7117
      %v7119 = vlaneseq
      %v7120 = vshrl.u32 %v7119, 7
      %v7121 = vsub.s32 %v7118, %v7120
      %v7122 = vrot.slane %v7114, %v7121
      %v7124 = vunpack.c.l.s4 1983009808
      %v7125 = vunpack.c.0.s8 %v7124
      %v7126 = vlaneseq
      %v7127 = vshrl.u32 %v7126, 7
      %v7128 = vsub.s32 %v7125, %v7127
      %v7129 = vrot.slane %v7115, %v7128
      %v7130 = vcombine.low %v7074, %v7090
      %v7131 = vcombine.high %v7074, %v7090
      %v7133 = vunpack.c.l.s4 1934713408
      %v7134 = vunpack.c.0.s8 %v7133
      %v7135 = vlaneseq
      %v7136 = vshrl.u32 %v7135, 7
      %v7137 = vsub.s32 %v7134, %v7136
      %v7138 = vrot.slane %v7130, %v7137
      %v7140 = vunpack.c.l.s4 1934713408
      %v7141 = vunpack.c.0.s8 %v7140
      %v7142 = vlaneseq
      %v7143 = vshrl.u32 %v7142, 7
      %v7144 = vsub.s32 %v7141, %v7143
      %v7145 = vrot.slane %v7131, %v7144
      %v7146 = vcombine.low %v7081, %v7097
      %v7147 = vcombine.high %v7081, %v7097
      %v7149 = vunpack.c.l.s4 1934713408
      %v7150 = vunpack.c.0.s8 %v7149
      %v7151 = vlaneseq
      %v7152 = vshrl.u32 %v7151, 7
      %v7153 = vsub.s32 %v7150, %v7152
      %v7154 = vrot.slane %v7146, %v7153
      %v7156 = vunpack.c.l.s4 1934713408
      %v7157 = vunpack.c.0.s8 %v7156
      %v7158 = vlaneseq
      %v7159 = vshrl.u32 %v7158, 7
      %v7160 = vsub.s32 %v7157, %v7159
      %v7161 = vrot.slane %v7147, %v7160
      %v7162 = vcombine.low %v7106, %v7122
      %v7163 = vcombine.high %v7106, %v7122
      %v7165 = vunpack.c.l.s4 1934713408
      %v7166 = vunpack.c.0.s8 %v7165
      %v7167 = vlaneseq
      %v7168 = vshrl.u32 %v7167, 7
      %v7169 = vsub.s32 %v7166, %v7168
      %v7170 = vrot.slane %v7162, %v7169
      %v7172 = vunpack.c.l.s4 1934713408
      %v7173 = vunpack.c.0.s8 %v7172
      %v7174 = vlaneseq
      %v7175 = vshrl.u32 %v7174, 7
      %v7176 = vsub.s32 %v7173, %v7175
      %v7177 = vrot.slane %v7163, %v7176
      %v7178 = vcombine.low %v7113, %v7129
      %v7179 = vcombine.high %v7113, %v7129
      %v7181 = vunpack.c.l.s4 1934713408
      %v7182 = vunpack.c.0.s8 %v7181
      %v7183 = vlaneseq
      %v7184 = vshrl.u32 %v7183, 7
      %v7185 = vsub.s32 %v7182, %v7184
      %v7186 = vrot.slane %v7178, %v7185
      %v7188 = vunpack.c.l.s4 1934713408
      %v7189 = vunpack.c.0.s8 %v7188
      %v7190 = vlaneseq
      %v7191 = vshrl.u32 %v7190, 7
      %v7192 = vsub.s32 %v7189, %v7191
      %v7193 = vrot.slane %v7179, %v7192
      %v7194 = vcombine.low %v7138, %v7170
      %v7195 = vcombine.high %v7138, %v7170
      %v7196 = vcombine.low %v7145, %v7177
      %v7197 = vcombine.high %v7145, %v7177
      %v7198 = vcombine.low %v7154, %v7186
      %v7199 = vcombine.high %v7154, %v7186
      %v7200 = vcombine.low %v7161, %v7193
      %v7201 = vcombine.high %v7161, %v7193
      %v7202 = vpack.c.bf16 %v7194, %v7194
      %v7203 = vpack.c.bf16 %v7195, %v7195
      %v7204 = vpack.c.bf16 %v7196, %v7196
      %v7205 = vpack.c.bf16 %v7197, %v7197
      %v7206 = vpack.c.bf16 %v7198, %v7198
      %v7207 = vpack.c.bf16 %v7199, %v7199
      %v7208 = vpack.c.bf16 %v7200, %v7200
      %v7209 = vpack.c.bf16 %v7201, %v7201
      %7211 = vrot.lane.b32.xlu0 %v6873, 112
      %v7212 = vpop.permute.xlu0 %7211
      %7214 = vrot.lane.b32.xlu0 %v6873, 96
      %v7215 = vpop.permute.xlu0 %7214
      %7217 = vrot.lane.b32.xlu0 %v6873, 80
      %v7218 = vpop.permute.xlu0 %7217
      %7220 = vrot.lane.b32.xlu0 %v6873, 64
      %v7221 = vpop.permute.xlu0 %7220
      %7223 = vrot.lane.b32.xlu0 %v6873, 48
      %v7224 = vpop.permute.xlu0 %7223
      %7226 = vrot.lane.b32.xlu0 %v6873, 32
      %v7227 = vpop.permute.xlu0 %7226
      %7229 = vrot.lane.b32.xlu0 %v6873, 16
      %v7230 = vpop.permute.xlu0 %7229
      %v7232 = vcombine.low %v6873, %v7215
      %v7233 = vcombine.high %v6873, %v7215
      %v7235 = vunpack.c.l.s4 1983009808
      %v7236 = vunpack.c.0.s8 %v7235
      %v7237 = vlaneseq
      %v7238 = vshrl.u32 %v7237, 7
      %v7239 = vsub.s32 %v7236, %v7238
      %v7240 = vrot.slane %v7232, %v7239
      %v7242 = vunpack.c.l.s4 1983009808
      %v7243 = vunpack.c.0.s8 %v7242
      %v7244 = vlaneseq
      %v7245 = vshrl.u32 %v7244, 7
      %v7246 = vsub.s32 %v7243, %v7245
      %v7247 = vrot.slane %v7233, %v7246
      %v7248 = vcombine.low %v7212, %v7218
      %v7249 = vcombine.high %v7212, %v7218
      %v7251 = vunpack.c.l.s4 1983009808
      %v7252 = vunpack.c.0.s8 %v7251
      %v7253 = vlaneseq
      %v7254 = vshrl.u32 %v7253, 7
      %v7255 = vsub.s32 %v7252, %v7254
      %v7256 = vrot.slane %v7248, %v7255
      %v7258 = vunpack.c.l.s4 1983009808
      %v7259 = vunpack.c.0.s8 %v7258
      %v7260 = vlaneseq
      %v7261 = vshrl.u32 %v7260, 7
      %v7262 = vsub.s32 %v7259, %v7261
      %v7263 = vrot.slane %v7249, %v7262
      %v7264 = vcombine.low %v7221, %v7227
      %v7265 = vcombine.high %v7221, %v7227
      %v7267 = vunpack.c.l.s4 1983009808
      %v7268 = vunpack.c.0.s8 %v7267
      %v7269 = vlaneseq
      %v7270 = vshrl.u32 %v7269, 7
      %v7271 = vsub.s32 %v7268, %v7270
      %v7272 = vrot.slane %v7264, %v7271
      %v7274 = vunpack.c.l.s4 1983009808
      %v7275 = vunpack.c.0.s8 %v7274
      %v7276 = vlaneseq
      %v7277 = vshrl.u32 %v7276, 7
      %v7278 = vsub.s32 %v7275, %v7277
      %v7279 = vrot.slane %v7265, %v7278
      %v7280 = vcombine.low %v7224, %v7230
      %v7281 = vcombine.high %v7224, %v7230
      %v7283 = vunpack.c.l.s4 1983009808
      %v7284 = vunpack.c.0.s8 %v7283
      %v7285 = vlaneseq
      %v7286 = vshrl.u32 %v7285, 7
      %v7287 = vsub.s32 %v7284, %v7286
      %v7288 = vrot.slane %v7280, %v7287
      %v7290 = vunpack.c.l.s4 1983009808
      %v7291 = vunpack.c.0.s8 %v7290
      %v7292 = vlaneseq
      %v7293 = vshrl.u32 %v7292, 7
      %v7294 = vsub.s32 %v7291, %v7293
      %v7295 = vrot.slane %v7281, %v7294
      %v7296 = vcombine.low %v7240, %v7256
      %v7297 = vcombine.high %v7240, %v7256
      %v7299 = vunpack.c.l.s4 1934713408
      %v7300 = vunpack.c.0.s8 %v7299
      %v7301 = vlaneseq
      %v7302 = vshrl.u32 %v7301, 7
      %v7303 = vsub.s32 %v7300, %v7302
      %v7304 = vrot.slane %v7296, %v7303
      %v7306 = vunpack.c.l.s4 1934713408
      %v7307 = vunpack.c.0.s8 %v7306
      %v7308 = vlaneseq
      %v7309 = vshrl.u32 %v7308, 7
      %v7310 = vsub.s32 %v7307, %v7309
      %v7311 = vrot.slane %v7297, %v7310
      %v7312 = vcombine.low %v7247, %v7263
      %v7313 = vcombine.high %v7247, %v7263
      %v7315 = vunpack.c.l.s4 1934713408
      %v7316 = vunpack.c.0.s8 %v7315
      %v7317 = vlaneseq
      %v7318 = vshrl.u32 %v7317, 7
      %v7319 = vsub.s32 %v7316, %v7318
      %v7320 = vrot.slane %v7312, %v7319
      %v7322 = vunpack.c.l.s4 1934713408
      %v7323 = vunpack.c.0.s8 %v7322
      %v7324 = vlaneseq
      %v7325 = vshrl.u32 %v7324, 7
      %v7326 = vsub.s32 %v7323, %v7325
      %v7327 = vrot.slane %v7313, %v7326
      %v7328 = vcombine.low %v7272, %v7288
      %v7329 = vcombine.high %v7272, %v7288
      %v7331 = vunpack.c.l.s4 1934713408
      %v7332 = vunpack.c.0.s8 %v7331
      %v7333 = vlaneseq
      %v7334 = vshrl.u32 %v7333, 7
      %v7335 = vsub.s32 %v7332, %v7334
      %v7336 = vrot.slane %v7328, %v7335
      %v7338 = vunpack.c.l.s4 1934713408
      %v7339 = vunpack.c.0.s8 %v7338
      %v7340 = vlaneseq
      %v7341 = vshrl.u32 %v7340, 7
      %v7342 = vsub.s32 %v7339, %v7341
      %v7343 = vrot.slane %v7329, %v7342
      %v7344 = vcombine.low %v7279, %v7295
      %v7345 = vcombine.high %v7279, %v7295
      %v7347 = vunpack.c.l.s4 1934713408
      %v7348 = vunpack.c.0.s8 %v7347
      %v7349 = vlaneseq
      %v7350 = vshrl.u32 %v7349, 7
      %v7351 = vsub.s32 %v7348, %v7350
      %v7352 = vrot.slane %v7344, %v7351
      %v7354 = vunpack.c.l.s4 1934713408
      %v7355 = vunpack.c.0.s8 %v7354
      %v7356 = vlaneseq
      %v7357 = vshrl.u32 %v7356, 7
      %v7358 = vsub.s32 %v7355, %v7357
      %v7359 = vrot.slane %v7345, %v7358
      %v7360 = vcombine.low %v7304, %v7336
      %v7361 = vcombine.high %v7304, %v7336
      %v7362 = vcombine.low %v7311, %v7343
      %v7363 = vcombine.high %v7311, %v7343
      %v7364 = vcombine.low %v7320, %v7352
      %v7365 = vcombine.high %v7320, %v7352
      %v7366 = vcombine.low %v7327, %v7359
      %v7367 = vcombine.high %v7327, %v7359
      %v7368 = vpack.c.bf16 %v7360, %v7360
      %v7369 = vpack.c.bf16 %v7361, %v7361
      %v7370 = vpack.c.bf16 %v7362, %v7362
      %v7371 = vpack.c.bf16 %v7363, %v7363
      %v7372 = vpack.c.bf16 %v7364, %v7364
      %v7373 = vpack.c.bf16 %v7365, %v7365
      %v7374 = vpack.c.bf16 %v7366, %v7366
      %v7375 = vpack.c.bf16 %v7367, %v7367
      %v7377 = vsel %vm1294, %v7036, 0
      %v7380 = vsel %vm1294, %v7202, 0
      %7382 = vmatprep.subr.bf16.mxu0 0
      %7383 = vmatpush1.bf16.xpose.msra.mxu0 0
      %7384 = vmatprep.subr.bf16.mxu0 0
      %7385 = vmatpush1.bf16.xpose.msra.mxu0 0
      %7386 = vmatprep.subr.bf16.mxu0 0
      %7387 = vmatpush1.bf16.xpose.msra.mxu0 0
      %7388 = vmatprep.subr.bf16.mxu0 0
      %7389 = vmatpush1.bf16.xpose.msra.mxu0 0
      %7390 = vmatprep.subr.bf16.mxu0 0
      %7391 = vmatpush1.bf16.xpose.msra.mxu0 0
      %7392 = vmatprep.subr.bf16.mxu0 0
      %7393 = vmatpush1.bf16.xpose.msra.mxu0 0
      %7394 = vmatprep.subr.bf16.mxu0 0
      %7395 = vmatpush1.bf16.xpose.msra.mxu0 0
      %7396 = vmatprep.subr.bf16.mxu0 0
      %7397 = vmatpush1.bf16.xpose.msra.mxu0 %v7380
      %7398 = vmatprep.subr.bf16.mxu0 0
      %7399 = vmatpush2.bf16.xpose.msra.mxu0 0
      %7400 = vmatprep.subr.bf16.mxu0 0
      %7401 = vmatpush2.bf16.xpose.msra.mxu0 0
      %7402 = vmatprep.subr.bf16.mxu0 0
      %7403 = vmatpush2.bf16.xpose.msra.mxu0 0
      %7404 = vmatprep.subr.bf16.mxu0 0
      %7405 = vmatpush2.bf16.xpose.msra.mxu0 0
      %7406 = vmatprep.subr.bf16.mxu0 0
      %7407 = vmatpush2.bf16.xpose.msra.mxu0 0
      %7408 = vmatprep.subr.bf16.mxu0 0
      %7409 = vmatpush2.bf16.xpose.msra.mxu0 0
      %7410 = vmatprep.subr.bf16.mxu0 0
      %7411 = vmatpush2.bf16.xpose.msra.mxu0 0
      %7412 = vmatprep.subr.bf16.mxu0 0
      %7413 = vmatpush2.bf16.xpose.msra.mxu0 0
      %7414 = vmatprep.mubr.bf16.mxu0 0
      %7415 = vmatmul.mubr.bf16.gmra.mxu0 %v7377
      %v7416 = vpop.f32.mrf.mxu0
      %v7417 = vadd.f32 0.0, %v7416
      %v7418 = vpop.f32.mrf.mxu0
      %v7419 = vpop.f32.mrf.mxu0
      %v7420 = vpop.f32.mrf.mxu0
      %7421 = vdwg.mxu0
      %v7423 = vsel %vm1294, %v7037, 0
      %v7426 = vsel %vm1294, %v7203, 0
      %7428 = vmatprep.subr.bf16.mxu0 0
      %7429 = vmatpush1.bf16.xpose.msra.mxu0 0
      %7430 = vmatprep.subr.bf16.mxu0 0
      %7431 = vmatpush1.bf16.xpose.msra.mxu0 0
      %7432 = vmatprep.subr.bf16.mxu0 0
      %7433 = vmatpush1.bf16.xpose.msra.mxu0 0
      %7434 = vmatprep.subr.bf16.mxu0 0
      %7435 = vmatpush1.bf16.xpose.msra.mxu0 0
      %7436 = vmatprep.subr.bf16.mxu0 0
      %7437 = vmatpush1.bf16.xpose.msra.mxu0 0
      %7438 = vmatprep.subr.bf16.mxu0 0
      %7439 = vmatpush1.bf16.xpose.msra.mxu0 0
      %7440 = vmatprep.subr.bf16.mxu0 0
      %7441 = vmatpush1.bf16.xpose.msra.mxu0 0
      %7442 = vmatprep.subr.bf16.mxu0 0
      %7443 = vmatpush1.bf16.xpose.msra.mxu0 %v7426
      %7444 = vmatprep.subr.bf16.mxu0 0
      %7445 = vmatpush2.bf16.xpose.msra.mxu0 0
      %7446 = vmatprep.subr.bf16.mxu0 0
      %7447 = vmatpush2.bf16.xpose.msra.mxu0 0
      %7448 = vmatprep.subr.bf16.mxu0 0
      %7449 = vmatpush2.bf16.xpose.msra.mxu0 0
      %7450 = vmatprep.subr.bf16.mxu0 0
      %7451 = vmatpush2.bf16.xpose.msra.mxu0 0
      %7452 = vmatprep.subr.bf16.mxu0 0
      %7453 = vmatpush2.bf16.xpose.msra.mxu0 0
      %7454 = vmatprep.subr.bf16.mxu0 0
      %7455 = vmatpush2.bf16.xpose.msra.mxu0 0
      %7456 = vmatprep.subr.bf16.mxu0 0
      %7457 = vmatpush2.bf16.xpose.msra.mxu0 0
      %7458 = vmatprep.subr.bf16.mxu0 0
      %7459 = vmatpush2.bf16.xpose.msra.mxu0 0
      %7460 = vmatprep.mubr.bf16.mxu0 0
      %7461 = vmatmul.mubr.bf16.gmra.mxu0 %v7423
      %v7462 = vpop.f32.mrf.mxu0
      %v7463 = vadd.f32 0.0, %v7462
      %v7464 = vpop.f32.mrf.mxu0
      %v7465 = vpop.f32.mrf.mxu0
      %v7466 = vpop.f32.mrf.mxu0
      %7467 = vdwg.mxu0
      %v7469 = vsel %vm1294, %v7038, 0
      %v7472 = vsel %vm1294, %v7204, 0
      %7474 = vmatprep.subr.bf16.mxu0 0
      %7475 = vmatpush1.bf16.xpose.msra.mxu0 0
      %7476 = vmatprep.subr.bf16.mxu0 0
      %7477 = vmatpush1.bf16.xpose.msra.mxu0 0
      %7478 = vmatprep.subr.bf16.mxu0 0
      %7479 = vmatpush1.bf16.xpose.msra.mxu0 0
      %7480 = vmatprep.subr.bf16.mxu0 0
      %7481 = vmatpush1.bf16.xpose.msra.mxu0 0
      %7482 = vmatprep.subr.bf16.mxu0 0
      %7483 = vmatpush1.bf16.xpose.msra.mxu0 0
      %7484 = vmatprep.subr.bf16.mxu0 0
      %7485 = vmatpush1.bf16.xpose.msra.mxu0 0
      %7486 = vmatprep.subr.bf16.mxu0 0
      %7487 = vmatpush1.bf16.xpose.msra.mxu0 0
      %7488 = vmatprep.subr.bf16.mxu0 0
      %7489 = vmatpush1.bf16.xpose.msra.mxu0 %v7472
      %7490 = vmatprep.subr.bf16.mxu0 0
      %7491 = vmatpush2.bf16.xpose.msra.mxu0 0
      %7492 = vmatprep.subr.bf16.mxu0 0
      %7493 = vmatpush2.bf16.xpose.msra.mxu0 0
      %7494 = vmatprep.subr.bf16.mxu0 0
      %7495 = vmatpush2.bf16.xpose.msra.mxu0 0
      %7496 = vmatprep.subr.bf16.mxu0 0
      %7497 = vmatpush2.bf16.xpose.msra.mxu0 0
      %7498 = vmatprep.subr.bf16.mxu0 0
      %7499 = vmatpush2.bf16.xpose.msra.mxu0 0
      %7500 = vmatprep.subr.bf16.mxu0 0
      %7501 = vmatpush2.bf16.xpose.msra.mxu0 0
      %7502 = vmatprep.subr.bf16.mxu0 0
      %7503 = vmatpush2.bf16.xpose.msra.mxu0 0
      %7504 = vmatprep.subr.bf16.mxu0 0
      %7505 = vmatpush2.bf16.xpose.msra.mxu0 0
      %7506 = vmatprep.mubr.bf16.mxu0 0
      %7507 = vmatmul.mubr.bf16.gmra.mxu0 %v7469
      %v7508 = vpop.f32.mrf.mxu0
      %v7509 = vadd.f32 0.0, %v7508
      %v7510 = vpop.f32.mrf.mxu0
      %v7511 = vpop.f32.mrf.mxu0
      %v7512 = vpop.f32.mrf.mxu0
      %7513 = vdwg.mxu0
      %v7515 = vsel %vm1294, %v7039, 0
      %v7518 = vsel %vm1294, %v7205, 0
      %7520 = vmatprep.subr.bf16.mxu0 0
      %7521 = vmatpush1.bf16.xpose.msra.mxu0 0
      %7522 = vmatprep.subr.bf16.mxu0 0
      %7523 = vmatpush1.bf16.xpose.msra.mxu0 0
      %7524 = vmatprep.subr.bf16.mxu0 0
      %7525 = vmatpush1.bf16.xpose.msra.mxu0 0
      %7526 = vmatprep.subr.bf16.mxu0 0
      %7527 = vmatpush1.bf16.xpose.msra.mxu0 0
      %7528 = vmatprep.subr.bf16.mxu0 0
      %7529 = vmatpush1.bf16.xpose.msra.mxu0 0
      %7530 = vmatprep.subr.bf16.mxu0 0
      %7531 = vmatpush1.bf16.xpose.msra.mxu0 0
      %7532 = vmatprep.subr.bf16.mxu0 0
      %7533 = vmatpush1.bf16.xpose.msra.mxu0 0
      %7534 = vmatprep.subr.bf16.mxu0 0
      %7535 = vmatpush1.bf16.xpose.msra.mxu0 %v7518
      %7536 = vmatprep.subr.bf16.mxu0 0
      %7537 = vmatpush2.bf16.xpose.msra.mxu0 0
      %7538 = vmatprep.subr.bf16.mxu0 0
      %7539 = vmatpush2.bf16.xpose.msra.mxu0 0
      %7540 = vmatprep.subr.bf16.mxu0 0
      %7541 = vmatpush2.bf16.xpose.msra.mxu0 0
      %7542 = vmatprep.subr.bf16.mxu0 0
      %7543 = vmatpush2.bf16.xpose.msra.mxu0 0
      %7544 = vmatprep.subr.bf16.mxu0 0
      %7545 = vmatpush2.bf16.xpose.msra.mxu0 0
      %7546 = vmatprep.subr.bf16.mxu0 0
      %7547 = vmatpush2.bf16.xpose.msra.mxu0 0
      %7548 = vmatprep.subr.bf16.mxu0 0
      %7549 = vmatpush2.bf16.xpose.msra.mxu0 0
      %7550 = vmatprep.subr.bf16.mxu0 0
      %7551 = vmatpush2.bf16.xpose.msra.mxu0 0
      %7552 = vmatprep.mubr.bf16.mxu0 0
      %7553 = vmatmul.mubr.bf16.gmra.mxu0 %v7515
      %v7554 = vpop.f32.mrf.mxu0
      %v7555 = vadd.f32 0.0, %v7554
      %v7556 = vpop.f32.mrf.mxu0
      %v7557 = vpop.f32.mrf.mxu0
      %v7558 = vpop.f32.mrf.mxu0
      %7559 = vdwg.mxu0
      %v7561 = vsel %vm1294, %v7040, 0
      %v7564 = vsel %vm1294, %v7206, 0
      %7566 = vmatprep.subr.bf16.mxu0 0
      %7567 = vmatpush1.bf16.xpose.msra.mxu0 0
      %7568 = vmatprep.subr.bf16.mxu0 0
      %7569 = vmatpush1.bf16.xpose.msra.mxu0 0
      %7570 = vmatprep.subr.bf16.mxu0 0
      %7571 = vmatpush1.bf16.xpose.msra.mxu0 0
      %7572 = vmatprep.subr.bf16.mxu0 0
      %7573 = vmatpush1.bf16.xpose.msra.mxu0 0
      %7574 = vmatprep.subr.bf16.mxu0 0
      %7575 = vmatpush1.bf16.xpose.msra.mxu0 0
      %7576 = vmatprep.subr.bf16.mxu0 0
      %7577 = vmatpush1.bf16.xpose.msra.mxu0 0
      %7578 = vmatprep.subr.bf16.mxu0 0
      %7579 = vmatpush1.bf16.xpose.msra.mxu0 0
      %7580 = vmatprep.subr.bf16.mxu0 0
      %7581 = vmatpush1.bf16.xpose.msra.mxu0 %v7564
      %7582 = vmatprep.subr.bf16.mxu0 0
      %7583 = vmatpush2.bf16.xpose.msra.mxu0 0
      %7584 = vmatprep.subr.bf16.mxu0 0
      %7585 = vmatpush2.bf16.xpose.msra.mxu0 0
      %7586 = vmatprep.subr.bf16.mxu0 0
      %7587 = vmatpush2.bf16.xpose.msra.mxu0 0
      %7588 = vmatprep.subr.bf16.mxu0 0
      %7589 = vmatpush2.bf16.xpose.msra.mxu0 0
      %7590 = vmatprep.subr.bf16.mxu0 0
      %7591 = vmatpush2.bf16.xpose.msra.mxu0 0
      %7592 = vmatprep.subr.bf16.mxu0 0
      %7593 = vmatpush2.bf16.xpose.msra.mxu0 0
      %7594 = vmatprep.subr.bf16.mxu0 0
      %7595 = vmatpush2.bf16.xpose.msra.mxu0 0
      %7596 = vmatprep.subr.bf16.mxu0 0
      %7597 = vmatpush2.bf16.xpose.msra.mxu0 0
      %7598 = vmatprep.mubr.bf16.mxu0 0
      %7599 = vmatmul.mubr.bf16.gmra.mxu0 %v7561
      %v7600 = vpop.f32.mrf.mxu0
      %v7601 = vadd.f32 0.0, %v7600
      %v7602 = vpop.f32.mrf.mxu0
      %v7603 = vpop.f32.mrf.mxu0
      %v7604 = vpop.f32.mrf.mxu0
      %7605 = vdwg.mxu0
      %v7607 = vsel %vm1294, %v7041, 0
      %v7610 = vsel %vm1294, %v7207, 0
      %7612 = vmatprep.subr.bf16.mxu0 0
      %7613 = vmatpush1.bf16.xpose.msra.mxu0 0
      %7614 = vmatprep.subr.bf16.mxu0 0
      %7615 = vmatpush1.bf16.xpose.msra.mxu0 0
      %7616 = vmatprep.subr.bf16.mxu0 0
      %7617 = vmatpush1.bf16.xpose.msra.mxu0 0
      %7618 = vmatprep.subr.bf16.mxu0 0
      %7619 = vmatpush1.bf16.xpose.msra.mxu0 0
      %7620 = vmatprep.subr.bf16.mxu0 0
      %7621 = vmatpush1.bf16.xpose.msra.mxu0 0
      %7622 = vmatprep.subr.bf16.mxu0 0
      %7623 = vmatpush1.bf16.xpose.msra.mxu0 0
      %7624 = vmatprep.subr.bf16.mxu0 0
      %7625 = vmatpush1.bf16.xpose.msra.mxu0 0
      %7626 = vmatprep.subr.bf16.mxu0 0
      %7627 = vmatpush1.bf16.xpose.msra.mxu0 %v7610
      %7628 = vmatprep.subr.bf16.mxu0 0
      %7629 = vmatpush2.bf16.xpose.msra.mxu0 0
      %7630 = vmatprep.subr.bf16.mxu0 0
      %7631 = vmatpush2.bf16.xpose.msra.mxu0 0
      %7632 = vmatprep.subr.bf16.mxu0 0
      %7633 = vmatpush2.bf16.xpose.msra.mxu0 0
      %7634 = vmatprep.subr.bf16.mxu0 0
      %7635 = vmatpush2.bf16.xpose.msra.mxu0 0
      %7636 = vmatprep.subr.bf16.mxu0 0
      %7637 = vmatpush2.bf16.xpose.msra.mxu0 0
      %7638 = vmatprep.subr.bf16.mxu0 0
      %7639 = vmatpush2.bf16.xpose.msra.mxu0 0
      %7640 = vmatprep.subr.bf16.mxu0 0
      %7641 = vmatpush2.bf16.xpose.msra.mxu0 0
      %7642 = vmatprep.subr.bf16.mxu0 0
      %7643 = vmatpush2.bf16.xpose.msra.mxu0 0
      %7644 = vmatprep.mubr.bf16.mxu0 0
      %7645 = vmatmul.mubr.bf16.gmra.mxu0 %v7607
      %v7646 = vpop.f32.mrf.mxu0
      %v7647 = vadd.f32 0.0, %v7646
      %v7648 = vpop.f32.mrf.mxu0
      %v7649 = vpop.f32.mrf.mxu0
      %v7650 = vpop.f32.mrf.mxu0
      %7651 = vdwg.mxu0
      %v7653 = vsel %vm1294, %v7042, 0
      %v7656 = vsel %vm1294, %v7208, 0
      %7658 = vmatprep.subr.bf16.mxu0 0
      %7659 = vmatpush1.bf16.xpose.msra.mxu0 0
      %7660 = vmatprep.subr.bf16.mxu0 0
      %7661 = vmatpush1.bf16.xpose.msra.mxu0 0
      %7662 = vmatprep.subr.bf16.mxu0 0
      %7663 = vmatpush1.bf16.xpose.msra.mxu0 0
      %7664 = vmatprep.subr.bf16.mxu0 0
      %7665 = vmatpush1.bf16.xpose.msra.mxu0 0
      %7666 = vmatprep.subr.bf16.mxu0 0
      %7667 = vmatpush1.bf16.xpose.msra.mxu0 0
      %7668 = vmatprep.subr.bf16.mxu0 0
      %7669 = vmatpush1.bf16.xpose.msra.mxu0 0
      %7670 = vmatprep.subr.bf16.mxu0 0
      %7671 = vmatpush1.bf16.xpose.msra.mxu0 0
      %7672 = vmatprep.subr.bf16.mxu0 0
      %7673 = vmatpush1.bf16.xpose.msra.mxu0 %v7656
      %7674 = vmatprep.subr.bf16.mxu0 0
      %7675 = vmatpush2.bf16.xpose.msra.mxu0 0
      %7676 = vmatprep.subr.bf16.mxu0 0
      %7677 = vmatpush2.bf16.xpose.msra.mxu0 0
      %7678 = vmatprep.subr.bf16.mxu0 0
      %7679 = vmatpush2.bf16.xpose.msra.mxu0 0
      %7680 = vmatprep.subr.bf16.mxu0 0
      %7681 = vmatpush2.bf16.xpose.msra.mxu0 0
      %7682 = vmatprep.subr.bf16.mxu0 0
      %7683 = vmatpush2.bf16.xpose.msra.mxu0 0
      %7684 = vmatprep.subr.bf16.mxu0 0
      %7685 = vmatpush2.bf16.xpose.msra.mxu0 0
      %7686 = vmatprep.subr.bf16.mxu0 0
      %7687 = vmatpush2.bf16.xpose.msra.mxu0 0
      %7688 = vmatprep.subr.bf16.mxu0 0
      %7689 = vmatpush2.bf16.xpose.msra.mxu0 0
      %7690 = vmatprep.mubr.bf16.mxu0 0
      %7691 = vmatmul.mubr.bf16.gmra.mxu0 %v7653
      %v7692 = vpop.f32.mrf.mxu0
      %v7693 = vadd.f32 0.0, %v7692
      %v7694 = vpop.f32.mrf.mxu0
      %v7695 = vpop.f32.mrf.mxu0
      %v7696 = vpop.f32.mrf.mxu0
      %7697 = vdwg.mxu0
      %v7699 = vsel %vm1294, %v7043, 0
      %v7702 = vsel %vm1294, %v7209, 0
      %7704 = vmatprep.subr.bf16.mxu0 0
      %7705 = vmatpush1.bf16.xpose.msra.mxu0 0
      %7706 = vmatprep.subr.bf16.mxu0 0
      %7707 = vmatpush1.bf16.xpose.msra.mxu0 0
      %7708 = vmatprep.subr.bf16.mxu0 0
      %7709 = vmatpush1.bf16.xpose.msra.mxu0 0
      %7710 = vmatprep.subr.bf16.mxu0 0
      %7711 = vmatpush1.bf16.xpose.msra.mxu0 0
      %7712 = vmatprep.subr.bf16.mxu0 0
      %7713 = vmatpush1.bf16.xpose.msra.mxu0 0
      %7714 = vmatprep.subr.bf16.mxu0 0
      %7715 = vmatpush1.bf16.xpose.msra.mxu0 0
      %7716 = vmatprep.subr.bf16.mxu0 0
      %7717 = vmatpush1.bf16.xpose.msra.mxu0 0
      %7718 = vmatprep.subr.bf16.mxu0 0
      %7719 = vmatpush1.bf16.xpose.msra.mxu0 %v7702
      %7720 = vmatprep.subr.bf16.mxu0 0
      %7721 = vmatpush2.bf16.xpose.msra.mxu0 0
      %7722 = vmatprep.subr.bf16.mxu0 0
      %7723 = vmatpush2.bf16.xpose.msra.mxu0 0
      %7724 = vmatprep.subr.bf16.mxu0 0
      %7725 = vmatpush2.bf16.xpose.msra.mxu0 0
      %7726 = vmatprep.subr.bf16.mxu0 0
      %7727 = vmatpush2.bf16.xpose.msra.mxu0 0
      %7728 = vmatprep.subr.bf16.mxu0 0
      %7729 = vmatpush2.bf16.xpose.msra.mxu0 0
      %7730 = vmatprep.subr.bf16.mxu0 0
      %7731 = vmatpush2.bf16.xpose.msra.mxu0 0
      %7732 = vmatprep.subr.bf16.mxu0 0
      %7733 = vmatpush2.bf16.xpose.msra.mxu0 0
      %7734 = vmatprep.subr.bf16.mxu0 0
      %7735 = vmatpush2.bf16.xpose.msra.mxu0 0
      %7736 = vmatprep.mubr.bf16.mxu0 0
      %7737 = vmatmul.mubr.bf16.gmra.mxu0 %v7699
      %v7738 = vpop.f32.mrf.mxu0
      %v7739 = vadd.f32 0.0, %v7738
      %v7740 = vpop.f32.mrf.mxu0
      %v7741 = vpop.f32.mrf.mxu0
      %v7742 = vpop.f32.mrf.mxu0
      %7743 = vdwg.mxu0
      %v7744 = vsel %vm1663, %v7417, -inf
      %7745 = vmax.xlane.f32.xlu0 %v7744
      %v7746 = vpop.xlane.xlu0 %7745
      %v7747 = vsel %vm1663, %v7463, -inf
      %7748 = vmax.xlane.f32.xlu0 %v7747
      %v7749 = vpop.xlane.xlu0 %7748
      %v7750 = vsel %vm1663, %v7509, -inf
      %7751 = vmax.xlane.f32.xlu0 %v7750
      %v7752 = vpop.xlane.xlu0 %7751
      %v7753 = vsel %vm1663, %v7555, -inf
      %7754 = vmax.xlane.f32.xlu0 %v7753
      %v7755 = vpop.xlane.xlu0 %7754
      %v7756 = vsel %vm1663, %v7601, -inf
      %7757 = vmax.xlane.f32.xlu0 %v7756
      %v7758 = vpop.xlane.xlu0 %7757
      %v7759 = vsel %vm1663, %v7647, -inf
      %7760 = vmax.xlane.f32.xlu0 %v7759
      %v7761 = vpop.xlane.xlu0 %7760
      %v7762 = vsel %vm1663, %v7693, -inf
      %7763 = vmax.xlane.f32.xlu0 %v7762
      %v7764 = vpop.xlane.xlu0 %7763
      %v7765 = vsel %vm1663, %v7739, -inf
      %7766 = vmax.xlane.f32.xlu0 %v7765
      %v7767 = vpop.xlane.xlu0 %7766
      %v7768 = vsub.f32 %v7417, %v7746
      %v7769 = vsub.f32 %v7463, %v7749
      %v7770 = vsub.f32 %v7509, %v7752
      %v7771 = vsub.f32 %v7555, %v7755
      %v7772 = vsub.f32 %v7601, %v7758
      %v7773 = vsub.f32 %v7647, %v7761
      %v7774 = vsub.f32 %v7693, %v7764
      %v7775 = vsub.f32 %v7739, %v7767
      %v7776 = vmul.f32 %v7768, 1.442695
      %v7777 = vpow.pop %v7776
      %v7778 = vmul.f32 %v7769, 1.442695
      %v7779 = vpow.pop %v7778
      %v7780 = vmul.f32 %v7770, 1.442695
      %v7781 = vpow.pop %v7780
      %v7782 = vmul.f32 %v7771, 1.442695
      %v7783 = vpow.pop %v7782
      %v7784 = vmul.f32 %v7772, 1.442695
      %v7785 = vpow.pop %v7784
      %v7786 = vmul.f32 %v7773, 1.442695
      %v7787 = vpow.pop %v7786
      %v7788 = vmul.f32 %v7774, 1.442695
      %v7789 = vpow.pop %v7788
      %v7790 = vmul.f32 %v7775, 1.442695
      %v7791 = vpow.pop %v7790
      %v7792 = vsel %vm1663, %v7777, 0.0
      %7793 = vadd.xlane.f32.xlu0 %v7792
      %v7794 = vpop.xlane.xlu0 %7793
      %v7795 = vsel %vm1663, %v7779, 0.0
      %7796 = vadd.xlane.f32.xlu0 %v7795
      %v7797 = vpop.xlane.xlu0 %7796
      %v7798 = vsel %vm1663, %v7781, 0.0
      %7799 = vadd.xlane.f32.xlu0 %v7798
      %v7800 = vpop.xlane.xlu0 %7799
      %v7801 = vsel %vm1663, %v7783, 0.0
      %7802 = vadd.xlane.f32.xlu0 %v7801
      %v7803 = vpop.xlane.xlu0 %7802
      %v7804 = vsel %vm1663, %v7785, 0.0
      %7805 = vadd.xlane.f32.xlu0 %v7804
      %v7806 = vpop.xlane.xlu0 %7805
      %v7807 = vsel %vm1663, %v7787, 0.0
      %7808 = vadd.xlane.f32.xlu0 %v7807
      %v7809 = vpop.xlane.xlu0 %7808
      %v7810 = vsel %vm1663, %v7789, 0.0
      %7811 = vadd.xlane.f32.xlu0 %v7810
      %v7812 = vpop.xlane.xlu0 %7811
      %v7813 = vsel %vm1663, %v7791, 0.0
      %7814 = vadd.xlane.f32.xlu0 %v7813
      %v7815 = vpop.xlane.xlu0 %7814
      %v7816 = vrcp.pop %v7794
      %v7817 = vrcp.pop %v7797
      %v7818 = vrcp.pop %v7800
      %v7819 = vrcp.pop %v7803
      %v7820 = vrcp.pop %v7806
      %v7821 = vrcp.pop %v7809
      %v7822 = vrcp.pop %v7812
      %v7823 = vrcp.pop %v7815
      %v7824 = vmul.f32 %v7777, %v7816
      %v7825 = vmul.f32 %v7779, %v7817
      %v7826 = vmul.f32 %v7781, %v7818
      %v7827 = vmul.f32 %v7783, %v7819
      %v7828 = vmul.f32 %v7785, %v7820
      %v7829 = vmul.f32 %v7787, %v7821
      %v7830 = vmul.f32 %v7789, %v7822
      %v7831 = vmul.f32 %v7791, %v7823
      %v7832 = vpack.c.bf16 %v7824, %v7824
      %v7833 = vpack.c.bf16 %v7825, %v7825
      %v7834 = vpack.c.bf16 %v7826, %v7826
      %v7835 = vpack.c.bf16 %v7827, %v7827
      %v7836 = vpack.c.bf16 %v7828, %v7828
      %v7837 = vpack.c.bf16 %v7829, %v7829
      %v7838 = vpack.c.bf16 %v7830, %v7830
      %v7839 = vpack.c.bf16 %v7831, %v7831
      %v7841 = vsel %vm1663, %v7832, 0
      %v7844 = vsel %vm1763, %v7368, 0
      %7846 = vmatprep.subr.bf16.mxu0 0
      %7847 = vmatpush1.bf16.msra.mxu0 0
      %7848 = vmatprep.subr.bf16.mxu0 0
      %7849 = vmatpush1.bf16.msra.mxu0 0
      %7850 = vmatprep.subr.bf16.mxu0 0
      %7851 = vmatpush1.bf16.msra.mxu0 0
      %7852 = vmatprep.subr.bf16.mxu0 0
      %7853 = vmatpush1.bf16.msra.mxu0 0
      %7854 = vmatprep.subr.bf16.mxu0 0
      %7855 = vmatpush1.bf16.msra.mxu0 0
      %7856 = vmatprep.subr.bf16.mxu0 0
      %7857 = vmatpush1.bf16.msra.mxu0 0
      %7858 = vmatprep.subr.bf16.mxu0 0
      %7859 = vmatpush1.bf16.msra.mxu0 0
      %7860 = vmatprep.subr.bf16.mxu0 0
      %7861 = vmatpush1.bf16.msra.mxu0 %v7844
      %7862 = vmatprep.subr.bf16.mxu0 0
      %7863 = vmatpush2.bf16.msra.mxu0 0
      %7864 = vmatprep.subr.bf16.mxu0 0
      %7865 = vmatpush2.bf16.msra.mxu0 0
      %7866 = vmatprep.subr.bf16.mxu0 0
      %7867 = vmatpush2.bf16.msra.mxu0 0
      %7868 = vmatprep.subr.bf16.mxu0 0
      %7869 = vmatpush2.bf16.msra.mxu0 0
      %7870 = vmatprep.subr.bf16.mxu0 0
      %7871 = vmatpush2.bf16.msra.mxu0 0
      %7872 = vmatprep.subr.bf16.mxu0 0
      %7873 = vmatpush2.bf16.msra.mxu0 0
      %7874 = vmatprep.subr.bf16.mxu0 0
      %7875 = vmatpush2.bf16.msra.mxu0 0
      %7876 = vmatprep.subr.bf16.mxu0 0
      %7877 = vmatpush2.bf16.msra.mxu0 0
      %7878 = vmatprep.mubr.bf16.mxu0 0
      %7879 = vmatmul.mubr.bf16.gmra.mxu0 %v7841
      %v7880 = vpop.f32.mrf.mxu0
      %v7881 = vadd.f32 0.0, %v7880
      %v7882 = vpop.f32.mrf.mxu0
      %v7883 = vpop.f32.mrf.mxu0
      %v7884 = vpop.f32.mrf.mxu0
      %7885 = vdwg.mxu0
      %v7887 = vsel %vm1663, %v7833, 0
      %v7890 = vsel %vm1763, %v7369, 0
      %7892 = vmatprep.subr.bf16.mxu0 0
      %7893 = vmatpush1.bf16.msra.mxu0 0
      %7894 = vmatprep.subr.bf16.mxu0 0
      %7895 = vmatpush1.bf16.msra.mxu0 0
      %7896 = vmatprep.subr.bf16.mxu0 0
      %7897 = vmatpush1.bf16.msra.mxu0 0
      %7898 = vmatprep.subr.bf16.mxu0 0
      %7899 = vmatpush1.bf16.msra.mxu0 0
      %7900 = vmatprep.subr.bf16.mxu0 0
      %7901 = vmatpush1.bf16.msra.mxu0 0
      %7902 = vmatprep.subr.bf16.mxu0 0
      %7903 = vmatpush1.bf16.msra.mxu0 0
      %7904 = vmatprep.subr.bf16.mxu0 0
      %7905 = vmatpush1.bf16.msra.mxu0 0
      %7906 = vmatprep.subr.bf16.mxu0 0
      %7907 = vmatpush1.bf16.msra.mxu0 %v7890
      %7908 = vmatprep.subr.bf16.mxu0 0
      %7909 = vmatpush2.bf16.msra.mxu0 0
      %7910 = vmatprep.subr.bf16.mxu0 0
      %7911 = vmatpush2.bf16.msra.mxu0 0
      %7912 = vmatprep.subr.bf16.mxu0 0
      %7913 = vmatpush2.bf16.msra.mxu0 0
      %7914 = vmatprep.subr.bf16.mxu0 0
      %7915 = vmatpush2.bf16.msra.mxu0 0
      %7916 = vmatprep.subr.bf16.mxu0 0
      %7917 = vmatpush2.bf16.msra.mxu0 0
      %7918 = vmatprep.subr.bf16.mxu0 0
      %7919 = vmatpush2.bf16.msra.mxu0 0
      %7920 = vmatprep.subr.bf16.mxu0 0
      %7921 = vmatpush2.bf16.msra.mxu0 0
      %7922 = vmatprep.subr.bf16.mxu0 0
      %7923 = vmatpush2.bf16.msra.mxu0 0
      %7924 = vmatprep.mubr.bf16.mxu0 0
      %7925 = vmatmul.mubr.bf16.gmra.mxu0 %v7887
      %v7926 = vpop.f32.mrf.mxu0
      %v7927 = vadd.f32 0.0, %v7926
      %v7928 = vpop.f32.mrf.mxu0
      %v7929 = vpop.f32.mrf.mxu0
      %v7930 = vpop.f32.mrf.mxu0
      %7931 = vdwg.mxu0
      %v7933 = vsel %vm1663, %v7834, 0
      %v7936 = vsel %vm1763, %v7370, 0
      %7938 = vmatprep.subr.bf16.mxu0 0
      %7939 = vmatpush1.bf16.msra.mxu0 0
      %7940 = vmatprep.subr.bf16.mxu0 0
      %7941 = vmatpush1.bf16.msra.mxu0 0
      %7942 = vmatprep.subr.bf16.mxu0 0
      %7943 = vmatpush1.bf16.msra.mxu0 0
      %7944 = vmatprep.subr.bf16.mxu0 0
      %7945 = vmatpush1.bf16.msra.mxu0 0
      %7946 = vmatprep.subr.bf16.mxu0 0
      %7947 = vmatpush1.bf16.msra.mxu0 0
      %7948 = vmatprep.subr.bf16.mxu0 0
      %7949 = vmatpush1.bf16.msra.mxu0 0
      %7950 = vmatprep.subr.bf16.mxu0 0
      %7951 = vmatpush1.bf16.msra.mxu0 0
      %7952 = vmatprep.subr.bf16.mxu0 0
      %7953 = vmatpush1.bf16.msra.mxu0 %v7936
      %7954 = vmatprep.subr.bf16.mxu0 0
      %7955 = vmatpush2.bf16.msra.mxu0 0
      %7956 = vmatprep.subr.bf16.mxu0 0
      %7957 = vmatpush2.bf16.msra.mxu0 0
      %7958 = vmatprep.subr.bf16.mxu0 0
      %7959 = vmatpush2.bf16.msra.mxu0 0
      %7960 = vmatprep.subr.bf16.mxu0 0
      %7961 = vmatpush2.bf16.msra.mxu0 0
      %7962 = vmatprep.subr.bf16.mxu0 0
      %7963 = vmatpush2.bf16.msra.mxu0 0
      %7964 = vmatprep.subr.bf16.mxu0 0
      %7965 = vmatpush2.bf16.msra.mxu0 0
      %7966 = vmatprep.subr.bf16.mxu0 0
      %7967 = vmatpush2.bf16.msra.mxu0 0
      %7968 = vmatprep.subr.bf16.mxu0 0
      %7969 = vmatpush2.bf16.msra.mxu0 0
      %7970 = vmatprep.mubr.bf16.mxu0 0
      %7971 = vmatmul.mubr.bf16.gmra.mxu0 %v7933
      %v7972 = vpop.f32.mrf.mxu0
      %v7973 = vadd.f32 0.0, %v7972
      %v7974 = vpop.f32.mrf.mxu0
      %v7975 = vpop.f32.mrf.mxu0
      %v7976 = vpop.f32.mrf.mxu0
      %7977 = vdwg.mxu0
      %v7979 = vsel %vm1663, %v7835, 0
      %v7982 = vsel %vm1763, %v7371, 0
      %7984 = vmatprep.subr.bf16.mxu0 0
      %7985 = vmatpush1.bf16.msra.mxu0 0
      %7986 = vmatprep.subr.bf16.mxu0 0
      %7987 = vmatpush1.bf16.msra.mxu0 0
      %7988 = vmatprep.subr.bf16.mxu0 0
      %7989 = vmatpush1.bf16.msra.mxu0 0
      %7990 = vmatprep.subr.bf16.mxu0 0
      %7991 = vmatpush1.bf16.msra.mxu0 0
      %7992 = vmatprep.subr.bf16.mxu0 0
      %7993 = vmatpush1.bf16.msra.mxu0 0
      %7994 = vmatprep.subr.bf16.mxu0 0
      %7995 = vmatpush1.bf16.msra.mxu0 0
      %7996 = vmatprep.subr.bf16.mxu0 0
      %7997 = vmatpush1.bf16.msra.mxu0 0
      %7998 = vmatprep.subr.bf16.mxu0 0
      %7999 = vmatpush1.bf16.msra.mxu0 %v7982
      %8000 = vmatprep.subr.bf16.mxu0 0
      %8001 = vmatpush2.bf16.msra.mxu0 0
      %8002 = vmatprep.subr.bf16.mxu0 0
      %8003 = vmatpush2.bf16.msra.mxu0 0
      %8004 = vmatprep.subr.bf16.mxu0 0
      %8005 = vmatpush2.bf16.msra.mxu0 0
      %8006 = vmatprep.subr.bf16.mxu0 0
      %8007 = vmatpush2.bf16.msra.mxu0 0
      %8008 = vmatprep.subr.bf16.mxu0 0
      %8009 = vmatpush2.bf16.msra.mxu0 0
      %8010 = vmatprep.subr.bf16.mxu0 0
      %8011 = vmatpush2.bf16.msra.mxu0 0
      %8012 = vmatprep.subr.bf16.mxu0 0
      %8013 = vmatpush2.bf16.msra.mxu0 0
      %8014 = vmatprep.subr.bf16.mxu0 0
      %8015 = vmatpush2.bf16.msra.mxu0 0
      %8016 = vmatprep.mubr.bf16.mxu0 0
      %8017 = vmatmul.mubr.bf16.gmra.mxu0 %v7979
      %v8018 = vpop.f32.mrf.mxu0
      %v8019 = vadd.f32 0.0, %v8018
      %v8020 = vpop.f32.mrf.mxu0
      %v8021 = vpop.f32.mrf.mxu0
      %v8022 = vpop.f32.mrf.mxu0
      %8023 = vdwg.mxu0
      %v8025 = vsel %vm1663, %v7836, 0
      %v8028 = vsel %vm1763, %v7372, 0
      %8030 = vmatprep.subr.bf16.mxu0 0
      %8031 = vmatpush1.bf16.msra.mxu0 0
      %8032 = vmatprep.subr.bf16.mxu0 0
      %8033 = vmatpush1.bf16.msra.mxu0 0
      %8034 = vmatprep.subr.bf16.mxu0 0
      %8035 = vmatpush1.bf16.msra.mxu0 0
      %8036 = vmatprep.subr.bf16.mxu0 0
      %8037 = vmatpush1.bf16.msra.mxu0 0
      %8038 = vmatprep.subr.bf16.mxu0 0
      %8039 = vmatpush1.bf16.msra.mxu0 0
      %8040 = vmatprep.subr.bf16.mxu0 0
      %8041 = vmatpush1.bf16.msra.mxu0 0
      %8042 = vmatprep.subr.bf16.mxu0 0
      %8043 = vmatpush1.bf16.msra.mxu0 0
      %8044 = vmatprep.subr.bf16.mxu0 0
      %8045 = vmatpush1.bf16.msra.mxu0 %v8028
      %8046 = vmatprep.subr.bf16.mxu0 0
      %8047 = vmatpush2.bf16.msra.mxu0 0
      %8048 = vmatprep.subr.bf16.mxu0 0
      %8049 = vmatpush2.bf16.msra.mxu0 0
      %8050 = vmatprep.subr.bf16.mxu0 0
      %8051 = vmatpush2.bf16.msra.mxu0 0
      %8052 = vmatprep.subr.bf16.mxu0 0
      %8053 = vmatpush2.bf16.msra.mxu0 0
      %8054 = vmatprep.subr.bf16.mxu0 0
      %8055 = vmatpush2.bf16.msra.mxu0 0
      %8056 = vmatprep.subr.bf16.mxu0 0
      %8057 = vmatpush2.bf16.msra.mxu0 0
      %8058 = vmatprep.subr.bf16.mxu0 0
      %8059 = vmatpush2.bf16.msra.mxu0 0
      %8060 = vmatprep.subr.bf16.mxu0 0
      %8061 = vmatpush2.bf16.msra.mxu0 0
      %8062 = vmatprep.mubr.bf16.mxu0 0
      %8063 = vmatmul.mubr.bf16.gmra.mxu0 %v8025
      %v8064 = vpop.f32.mrf.mxu0
      %v8065 = vadd.f32 0.0, %v8064
      %v8066 = vpop.f32.mrf.mxu0
      %v8067 = vpop.f32.mrf.mxu0
      %v8068 = vpop.f32.mrf.mxu0
      %8069 = vdwg.mxu0
      %v8071 = vsel %vm1663, %v7837, 0
      %v8074 = vsel %vm1763, %v7373, 0
      %8076 = vmatprep.subr.bf16.mxu0 0
      %8077 = vmatpush1.bf16.msra.mxu0 0
      %8078 = vmatprep.subr.bf16.mxu0 0
      %8079 = vmatpush1.bf16.msra.mxu0 0
      %8080 = vmatprep.subr.bf16.mxu0 0
      %8081 = vmatpush1.bf16.msra.mxu0 0
      %8082 = vmatprep.subr.bf16.mxu0 0
      %8083 = vmatpush1.bf16.msra.mxu0 0
      %8084 = vmatprep.subr.bf16.mxu0 0
      %8085 = vmatpush1.bf16.msra.mxu0 0
      %8086 = vmatprep.subr.bf16.mxu0 0
      %8087 = vmatpush1.bf16.msra.mxu0 0
      %8088 = vmatprep.subr.bf16.mxu0 0
      %8089 = vmatpush1.bf16.msra.mxu0 0
      %8090 = vmatprep.subr.bf16.mxu0 0
      %8091 = vmatpush1.bf16.msra.mxu0 %v8074
      %8092 = vmatprep.subr.bf16.mxu0 0
      %8093 = vmatpush2.bf16.msra.mxu0 0
      %8094 = vmatprep.subr.bf16.mxu0 0
      %8095 = vmatpush2.bf16.msra.mxu0 0
      %8096 = vmatprep.subr.bf16.mxu0 0
      %8097 = vmatpush2.bf16.msra.mxu0 0
      %8098 = vmatprep.subr.bf16.mxu0 0
      %8099 = vmatpush2.bf16.msra.mxu0 0
      %8100 = vmatprep.subr.bf16.mxu0 0
      %8101 = vmatpush2.bf16.msra.mxu0 0
      %8102 = vmatprep.subr.bf16.mxu0 0
      %8103 = vmatpush2.bf16.msra.mxu0 0
      %8104 = vmatprep.subr.bf16.mxu0 0
      %8105 = vmatpush2.bf16.msra.mxu0 0
      %8106 = vmatprep.subr.bf16.mxu0 0
      %8107 = vmatpush2.bf16.msra.mxu0 0
      %8108 = vmatprep.mubr.bf16.mxu0 0
      %8109 = vmatmul.mubr.bf16.gmra.mxu0 %v8071
      %v8110 = vpop.f32.mrf.mxu0
      %v8111 = vadd.f32 0.0, %v8110
      %v8112 = vpop.f32.mrf.mxu0
      %v8113 = vpop.f32.mrf.mxu0
      %v8114 = vpop.f32.mrf.mxu0
      %8115 = vdwg.mxu0
      %v8117 = vsel %vm1663, %v7838, 0
      %v8120 = vsel %vm1763, %v7374, 0
      %8122 = vmatprep.subr.bf16.mxu0 0
      %8123 = vmatpush1.bf16.msra.mxu0 0
      %8124 = vmatprep.subr.bf16.mxu0 0
      %8125 = vmatpush1.bf16.msra.mxu0 0
      %8126 = vmatprep.subr.bf16.mxu0 0
      %8127 = vmatpush1.bf16.msra.mxu0 0
      %8128 = vmatprep.subr.bf16.mxu0 0
      %8129 = vmatpush1.bf16.msra.mxu0 0
      %8130 = vmatprep.subr.bf16.mxu0 0
      %8131 = vmatpush1.bf16.msra.mxu0 0
      %8132 = vmatprep.subr.bf16.mxu0 0
      %8133 = vmatpush1.bf16.msra.mxu0 0
      %8134 = vmatprep.subr.bf16.mxu0 0
      %8135 = vmatpush1.bf16.msra.mxu0 0
      %8136 = vmatprep.subr.bf16.mxu0 0
      %8137 = vmatpush1.bf16.msra.mxu0 %v8120
      %8138 = vmatprep.subr.bf16.mxu0 0
      %8139 = vmatpush2.bf16.msra.mxu0 0
      %8140 = vmatprep.subr.bf16.mxu0 0
      %8141 = vmatpush2.bf16.msra.mxu0 0
      %8142 = vmatprep.subr.bf16.mxu0 0
      %8143 = vmatpush2.bf16.msra.mxu0 0
      %8144 = vmatprep.subr.bf16.mxu0 0
      %8145 = vmatpush2.bf16.msra.mxu0 0
      %8146 = vmatprep.subr.bf16.mxu0 0
      %8147 = vmatpush2.bf16.msra.mxu0 0
      %8148 = vmatprep.subr.bf16.mxu0 0
      %8149 = vmatpush2.bf16.msra.mxu0 0
      %8150 = vmatprep.subr.bf16.mxu0 0
      %8151 = vmatpush2.bf16.msra.mxu0 0
      %8152 = vmatprep.subr.bf16.mxu0 0
      %8153 = vmatpush2.bf16.msra.mxu0 0
      %8154 = vmatprep.mubr.bf16.mxu0 0
      %8155 = vmatmul.mubr.bf16.gmra.mxu0 %v8117
      %v8156 = vpop.f32.mrf.mxu0
      %v8157 = vadd.f32 0.0, %v8156
      %v8158 = vpop.f32.mrf.mxu0
      %v8159 = vpop.f32.mrf.mxu0
      %v8160 = vpop.f32.mrf.mxu0
      %8161 = vdwg.mxu0
      %v8163 = vsel %vm1663, %v7839, 0
      %v8166 = vsel %vm1763, %v7375, 0
      %8168 = vmatprep.subr.bf16.mxu0 0
      %8169 = vmatpush1.bf16.msra.mxu0 0
      %8170 = vmatprep.subr.bf16.mxu0 0
      %8171 = vmatpush1.bf16.msra.mxu0 0
      %8172 = vmatprep.subr.bf16.mxu0 0
      %8173 = vmatpush1.bf16.msra.mxu0 0
      %8174 = vmatprep.subr.bf16.mxu0 0
      %8175 = vmatpush1.bf16.msra.mxu0 0
      %8176 = vmatprep.subr.bf16.mxu0 0
      %8177 = vmatpush1.bf16.msra.mxu0 0
      %8178 = vmatprep.subr.bf16.mxu0 0
      %8179 = vmatpush1.bf16.msra.mxu0 0
      %8180 = vmatprep.subr.bf16.mxu0 0
      %8181 = vmatpush1.bf16.msra.mxu0 0
      %8182 = vmatprep.subr.bf16.mxu0 0
      %8183 = vmatpush1.bf16.msra.mxu0 %v8166
      %8184 = vmatprep.subr.bf16.mxu0 0
      %8185 = vmatpush2.bf16.msra.mxu0 0
      %8186 = vmatprep.subr.bf16.mxu0 0
      %8187 = vmatpush2.bf16.msra.mxu0 0
      %8188 = vmatprep.subr.bf16.mxu0 0
      %8189 = vmatpush2.bf16.msra.mxu0 0
      %8190 = vmatprep.subr.bf16.mxu0 0
      %8191 = vmatpush2.bf16.msra.mxu0 0
      %8192 = vmatprep.subr.bf16.mxu0 0
      %8193 = vmatpush2.bf16.msra.mxu0 0
      %8194 = vmatprep.subr.bf16.mxu0 0
      %8195 = vmatpush2.bf16.msra.mxu0 0
      %8196 = vmatprep.subr.bf16.mxu0 0
      %8197 = vmatpush2.bf16.msra.mxu0 0
      %8198 = vmatprep.subr.bf16.mxu0 0
      %8199 = vmatpush2.bf16.msra.mxu0 0
      %8200 = vmatprep.mubr.bf16.mxu0 0
      %8201 = vmatmul.mubr.bf16.gmra.mxu0 %v8163
      %v8202 = vpop.f32.mrf.mxu0
      %v8203 = vadd.f32 0.0, %v8202
      %v8204 = vpop.f32.mrf.mxu0
      %v8205 = vpop.f32.mrf.mxu0
      %v8206 = vpop.f32.mrf.mxu0
      %8207 = vdwg.mxu0
      %v8208 = vcombine.low %v7881, %v7973
      %v8209 = vcombine.high %v7881, %v7973
      %v8211 = vunpack.c.l.s4 1983009808
      %v8212 = vunpack.c.0.s8 %v8211
      %v8213 = vlaneseq
      %v8214 = vshrl.u32 %v8213, 7
      %v8215 = vsub.s32 %v8212, %v8214
      %v8216 = vrot.slane %v8208, %v8215
      %v8218 = vunpack.c.l.s4 1983009808
      %v8219 = vunpack.c.0.s8 %v8218
      %v8220 = vlaneseq
      %v8221 = vshrl.u32 %v8220, 7
      %v8222 = vsub.s32 %v8219, %v8221
      %v8223 = vrot.slane %v8209, %v8222
      %v8224 = vcombine.low %v7927, %v8019
      %v8225 = vcombine.high %v7927, %v8019
      %v8227 = vunpack.c.l.s4 1983009808
      %v8228 = vunpack.c.0.s8 %v8227
      %v8229 = vlaneseq
      %v8230 = vshrl.u32 %v8229, 7
      %v8231 = vsub.s32 %v8228, %v8230
      %v8232 = vrot.slane %v8224, %v8231
      %v8234 = vunpack.c.l.s4 1983009808
      %v8235 = vunpack.c.0.s8 %v8234
      %v8236 = vlaneseq
      %v8237 = vshrl.u32 %v8236, 7
      %v8238 = vsub.s32 %v8235, %v8237
      %v8239 = vrot.slane %v8225, %v8238
      %v8240 = vcombine.low %v8065, %v8157
      %v8241 = vcombine.high %v8065, %v8157
      %v8243 = vunpack.c.l.s4 1983009808
      %v8244 = vunpack.c.0.s8 %v8243
      %v8245 = vlaneseq
      %v8246 = vshrl.u32 %v8245, 7
      %v8247 = vsub.s32 %v8244, %v8246
      %v8248 = vrot.slane %v8240, %v8247
      %v8250 = vunpack.c.l.s4 1983009808
      %v8251 = vunpack.c.0.s8 %v8250
      %v8252 = vlaneseq
      %v8253 = vshrl.u32 %v8252, 7
      %v8254 = vsub.s32 %v8251, %v8253
      %v8255 = vrot.slane %v8241, %v8254
      %v8256 = vcombine.low %v8111, %v8203
      %v8257 = vcombine.high %v8111, %v8203
      %v8259 = vunpack.c.l.s4 1983009808
      %v8260 = vunpack.c.0.s8 %v8259
      %v8261 = vlaneseq
      %v8262 = vshrl.u32 %v8261, 7
      %v8263 = vsub.s32 %v8260, %v8262
      %v8264 = vrot.slane %v8256, %v8263
      %v8266 = vunpack.c.l.s4 1983009808
      %v8267 = vunpack.c.0.s8 %v8266
      %v8268 = vlaneseq
      %v8269 = vshrl.u32 %v8268, 7
      %v8270 = vsub.s32 %v8267, %v8269
      %v8271 = vrot.slane %v8257, %v8270
      %v8272 = vcombine.low %v8216, %v8232
      %v8273 = vcombine.high %v8216, %v8232
      %v8275 = vunpack.c.l.s4 1934713408
      %v8276 = vunpack.c.0.s8 %v8275
      %v8277 = vlaneseq
      %v8278 = vshrl.u32 %v8277, 7
      %v8279 = vsub.s32 %v8276, %v8278
      %v8280 = vrot.slane %v8272, %v8279
      %v8282 = vunpack.c.l.s4 1934713408
      %v8283 = vunpack.c.0.s8 %v8282
      %v8284 = vlaneseq
      %v8285 = vshrl.u32 %v8284, 7
      %v8286 = vsub.s32 %v8283, %v8285
      %v8287 = vrot.slane %v8273, %v8286
      %v8288 = vcombine.low %v8223, %v8239
      %v8289 = vcombine.high %v8223, %v8239
      %v8291 = vunpack.c.l.s4 1934713408
      %v8292 = vunpack.c.0.s8 %v8291
      %v8293 = vlaneseq
      %v8294 = vshrl.u32 %v8293, 7
      %v8295 = vsub.s32 %v8292, %v8294
      %v8296 = vrot.slane %v8288, %v8295
      %v8298 = vunpack.c.l.s4 1934713408
      %v8299 = vunpack.c.0.s8 %v8298
      %v8300 = vlaneseq
      %v8301 = vshrl.u32 %v8300, 7
      %v8302 = vsub.s32 %v8299, %v8301
      %v8303 = vrot.slane %v8289, %v8302
      %v8304 = vcombine.low %v8248, %v8264
      %v8305 = vcombine.high %v8248, %v8264
      %v8307 = vunpack.c.l.s4 1934713408
      %v8308 = vunpack.c.0.s8 %v8307
      %v8309 = vlaneseq
      %v8310 = vshrl.u32 %v8309, 7
      %v8311 = vsub.s32 %v8308, %v8310
      %v8312 = vrot.slane %v8304, %v8311
      %v8314 = vunpack.c.l.s4 1934713408
      %v8315 = vunpack.c.0.s8 %v8314
      %v8316 = vlaneseq
      %v8317 = vshrl.u32 %v8316, 7
      %v8318 = vsub.s32 %v8315, %v8317
      %v8319 = vrot.slane %v8305, %v8318
      %v8320 = vcombine.low %v8255, %v8271
      %v8321 = vcombine.high %v8255, %v8271
      %v8323 = vunpack.c.l.s4 1934713408
      %v8324 = vunpack.c.0.s8 %v8323
      %v8325 = vlaneseq
      %v8326 = vshrl.u32 %v8325, 7
      %v8327 = vsub.s32 %v8324, %v8326
      %v8328 = vrot.slane %v8320, %v8327
      %v8330 = vunpack.c.l.s4 1934713408
      %v8331 = vunpack.c.0.s8 %v8330
      %v8332 = vlaneseq
      %v8333 = vshrl.u32 %v8332, 7
      %v8334 = vsub.s32 %v8331, %v8333
      %v8335 = vrot.slane %v8321, %v8334
      %v8336 = vcombine.low %v8280, %v8312
      %v8337 = vcombine.high %v8280, %v8312
      %v8338 = vcombine.low %v8287, %v8319
      %v8339 = vcombine.high %v8287, %v8319
      %v8340 = vcombine.low %v8296, %v8328
      %v8341 = vcombine.high %v8296, %v8328
      %v8342 = vcombine.low %v8303, %v8335
      %v8343 = vcombine.high %v8303, %v8335
      %8345 = vrot.lane.b32.xlu0 %v8337, 16
      %v8346 = vpop.permute.xlu0 %8345
      %8349 = vrot.lane.b32.xlu0 %v8338, 32
      %v8350 = vpop.permute.xlu0 %8349
      %8353 = vrot.lane.b32.xlu0 %v8339, 48
      %v8354 = vpop.permute.xlu0 %8353
      %8357 = vrot.lane.b32.xlu0 %v8340, 64
      %v8358 = vpop.permute.xlu0 %8357
      %8361 = vrot.lane.b32.xlu0 %v8341, 80
      %v8362 = vpop.permute.xlu0 %8361
      %8365 = vrot.lane.b32.xlu0 %v8342, 96
      %v8366 = vpop.permute.xlu0 %8365
      %8369 = vrot.lane.b32.xlu0 %v8343, 112
      %v8370 = vpop.permute.xlu0 %8369
      %v8372 = vsel %vm1294, %v8336, %v8346
      %v8373 = vsel %vm2294, %v8372, %v8350
      %v8374 = vsel %vm2296, %v8373, %v8354
      %v8375 = vsel %vm2298, %v8374, %v8358
      %v8376 = vsel %vm2300, %v8375, %v8362
      %v8377 = vsel %vm2302, %v8376, %v8366
      %v8378 = vsel %vm2304, %v8377, %v8370
      %v8379 = vpack.c.bf16 %v8378, %v8378
      %s8380 = scalar_lea.vmem %s4, 192
      %v8381 = vld [vmem:[%s8380] sm:$0xf]
      %v8382 = vld [vmem:[%s8380 + $0x4] sm:$0xf]
      %v8383 = vld [vmem:[%s8380 + $0x8] sm:$0xf]
      %v8384 = vld [vmem:[%s8380 + $0xc] sm:$0xf]
      %v8385 = vld [vmem:[%s8380 + $0x10] sm:$0xf]
      %v8386 = vld [vmem:[%s8380 + $0x14] sm:$0xf]
      %v8387 = vld [vmem:[%s8380 + $0x18] sm:$0xf]
      %v8388 = vld [vmem:[%s8380 + $0x1c] sm:$0xf]
      %v8389 = vld [vmem:[%s8380 + $0x20] sm:$0xf]
      %v8390 = vld [vmem:[%s8380 + $0x24] sm:$0xf]
      %v8391 = vld [vmem:[%s8380 + $0x28] sm:$0xf]
      %v8392 = vld [vmem:[%s8380 + $0x2c] sm:$0xf]
      %v8393 = vld [vmem:[%s8380 + $0x30] sm:$0xf]
      %v8394 = vld [vmem:[%s8380 + $0x34] sm:$0xf]
      %v8395 = vld [vmem:[%s8380 + $0x38] sm:$0xf]
      %v8396 = vld [vmem:[%s8380 + $0x3c] sm:$0xf]
      %s8397 = scalar_lea.vmem %s5, 3
      %v8398 = vld [vmem:[%s8397] sm:$0x1]
      %v8400 = vlaneseq
      %v8401 = vshrl.u32 %v8400, 7
      %v8402 = vsub.s32 0, %v8401
      %v8403 = vrot.slane %v8398, %v8402
      %v8421 = vunpack.c.l.b16 %v8381
      %v8422 = vunpack.c.l.b16 %v8382
      %v8423 = vunpack.c.l.b16 %v8383
      %v8424 = vunpack.c.l.b16 %v8384
      %v8425 = vunpack.c.l.b16 %v8385
      %v8426 = vunpack.c.l.b16 %v8386
      %v8427 = vunpack.c.l.b16 %v8387
      %v8428 = vunpack.c.l.b16 %v8388
      %v8429 = vunpack.c.l.b16 %v8389
      %v8430 = vunpack.c.l.b16 %v8390
      %v8431 = vunpack.c.l.b16 %v8391
      %v8432 = vunpack.c.l.b16 %v8392
      %v8433 = vunpack.c.l.b16 %v8393
      %v8434 = vunpack.c.l.b16 %v8394
      %v8435 = vunpack.c.l.b16 %v8395
      %v8436 = vunpack.c.l.b16 %v8396
      %v8437 = vpack.c.b16 %v8422, %v8421
      %v8438 = vpack.c.b16 %v8424, %v8423
      %v8439 = vpack.c.b16 %v8426, %v8425
      %v8440 = vpack.c.b16 %v8428, %v8427
      %v8441 = vpack.c.b16 %v8430, %v8429
      %v8442 = vpack.c.b16 %v8432, %v8431
      %v8443 = vpack.c.b16 %v8434, %v8433
      %v8444 = vpack.c.b16 %v8436, %v8435
      %8453 = vmatprep.subr.bf16.mxu0 0
      %8454 = vmatpush1.bf16.msra.mxu0 %v8444
      %8455 = vmatprep.subr.bf16.mxu0 0
      %8456 = vmatpush1.bf16.msra.mxu0 %v8443
      %8457 = vmatprep.subr.bf16.mxu0 0
      %8458 = vmatpush1.bf16.msra.mxu0 %v8442
      %8459 = vmatprep.subr.bf16.mxu0 0
      %8460 = vmatpush1.bf16.msra.mxu0 %v8441
      %8461 = vmatprep.subr.bf16.mxu0 0
      %8462 = vmatpush1.bf16.msra.mxu0 %v8440
      %8463 = vmatprep.subr.bf16.mxu0 0
      %8464 = vmatpush1.bf16.msra.mxu0 %v8439
      %8465 = vmatprep.subr.bf16.mxu0 0
      %8466 = vmatpush1.bf16.msra.mxu0 %v8438
      %8467 = vmatprep.subr.bf16.mxu0 0
      %8468 = vmatpush1.bf16.msra.mxu0 %v8437
      %8469 = vmatprep.subr.bf16.mxu0 0
      %8470 = vmatpush2.bf16.msra.mxu0 0
      %8471 = vmatprep.subr.bf16.mxu0 0
      %8472 = vmatpush2.bf16.msra.mxu0 0
      %8473 = vmatprep.subr.bf16.mxu0 0
      %8474 = vmatpush2.bf16.msra.mxu0 0
      %8475 = vmatprep.subr.bf16.mxu0 0
      %8476 = vmatpush2.bf16.msra.mxu0 0
      %8477 = vmatprep.subr.bf16.mxu0 0
      %8478 = vmatpush2.bf16.msra.mxu0 0
      %8479 = vmatprep.subr.bf16.mxu0 0
      %8480 = vmatpush2.bf16.msra.mxu0 0
      %8481 = vmatprep.subr.bf16.mxu0 0
      %8482 = vmatpush2.bf16.msra.mxu0 0
      %8483 = vmatprep.subr.bf16.mxu0 0
      %8484 = vmatpush2.bf16.msra.mxu0 0
      %8485 = vmatprep.mubr.bf16.mxu0 0
      %8486 = vmatmul.mubr.bf16.gmra.mxu0 %v8379
      %v8487 = vpop.f32.mrf.mxu0
      %v8488 = vadd.f32 %v8403, %v8487
      %v8489 = vpop.f32.mrf.mxu0
      %v8490 = vpop.f32.mrf.mxu0
      %v8491 = vpop.f32.mrf.mxu0
      %8492 = vdwg.mxu0
      %v8493 = vadd.f32 %v8488, %v6617
      %s8494 = scalar_lea.vmem %s10, 4
      %v8495 = vld [vmem:[%s8494] sm:$0x1]
      %s8496 = scalar_lea.vmem %s11, 4
      %v8497 = vld [vmem:[%s8496] sm:$0x1]
      %8498 = vadd.xlane.f32.xlu0 %v8493
      %v8499 = vpop.xlane.xlu0 %8498
      %v8500 = vmul.f32 %v8499, %v2423
      %v8501 = vsub.f32 %v8493, %v8500
      %v8502 = vmul.f32 %v8501, %v8501
      %8503 = vadd.xlane.f32.xlu0 %v8502
      %v8504 = vpop.xlane.xlu0 %8503
      %v8505 = vmul.f32 %v8504, %v2423
      %v8506 = vadd.f32 %v8505, 1e-05
      %v8507 = vrsqrt.pop %v8506
      %v8508 = vmul.f32 %v8501, %v8507
      %v8510 = vlaneseq
      %v8511 = vshrl.u32 %v8510, 7
      %v8512 = vsub.s32 0, %v8511
      %v8513 = vrot.slane %v8495, %v8512
      %v8515 = vmul.f32 %v8508, %v8513
      %v8517 = vlaneseq
      %v8518 = vshrl.u32 %v8517, 7
      %v8519 = vsub.s32 0, %v8518
      %v8520 = vrot.slane %v8497, %v8519
      %v8522 = vadd.f32 %v8515, %v8520
      %v8523 = vpack.c.bf16 %v8522, %v8522
      %s8524 = scalar_lea.vmem %s6, 128
      %v8525 = vld [vmem:[%s8524] sm:$0xff]
      %v8526 = vld [vmem:[%s8524 + $0x8] sm:$0xff]
      %v8527 = vld [vmem:[%s8524 + $0x10] sm:$0xff]
      %v8528 = vld [vmem:[%s8524 + $0x18] sm:$0xff]
      %v8529 = vld [vmem:[%s8524 + $0x20] sm:$0xff]
      %v8530 = vld [vmem:[%s8524 + $0x28] sm:$0xff]
      %v8531 = vld [vmem:[%s8524 + $0x30] sm:$0xff]
      %v8532 = vld [vmem:[%s8524 + $0x38] sm:$0xff]
      %v8533 = vld [vmem:[%s8524 + $0x40] sm:$0xff]
      %v8534 = vld [vmem:[%s8524 + $0x48] sm:$0xff]
      %v8535 = vld [vmem:[%s8524 + $0x50] sm:$0xff]
      %v8536 = vld [vmem:[%s8524 + $0x58] sm:$0xff]
      %v8537 = vld [vmem:[%s8524 + $0x60] sm:$0xff]
      %v8538 = vld [vmem:[%s8524 + $0x68] sm:$0xff]
      %v8539 = vld [vmem:[%s8524 + $0x70] sm:$0xff]
      %v8540 = vld [vmem:[%s8524 + $0x78] sm:$0xff]
      %s8541 = scalar_lea.vmem %s7, 2
      %v8542 = vld [vmem:[%s8541] sm:$0x3]
      %v8544 = vlaneseq
      %v8545 = vshrl.u32 %v8544, 7
      %v8546 = vsub.s32 0, %v8545
      %v8547 = vrot.slane %v8542, %v8546
      %v8548 = vlaneseq
      %v8549 = vshrl.u32 %v8548, 7
      %v8550 = vsub.s32 1, %v8549
      %v8551 = vrot.slane %v8542, %v8550
      %v8570 = vunpack.c.l.b16 %v8525
      %v8571 = vunpack.c.h.b16 %v8525
      %v8572 = vunpack.c.l.b16 %v8526
      %v8573 = vunpack.c.h.b16 %v8526
      %v8574 = vunpack.c.l.b16 %v8527
      %v8575 = vunpack.c.h.b16 %v8527
      %v8576 = vunpack.c.l.b16 %v8528
      %v8577 = vunpack.c.h.b16 %v8528
      %v8578 = vunpack.c.l.b16 %v8529
      %v8579 = vunpack.c.h.b16 %v8529
      %v8580 = vunpack.c.l.b16 %v8530
      %v8581 = vunpack.c.h.b16 %v8530
      %v8582 = vunpack.c.l.b16 %v8531
      %v8583 = vunpack.c.h.b16 %v8531
      %v8584 = vunpack.c.l.b16 %v8532
      %v8585 = vunpack.c.h.b16 %v8532
      %v8586 = vunpack.c.l.b16 %v8533
      %v8587 = vunpack.c.h.b16 %v8533
      %v8588 = vunpack.c.l.b16 %v8534
      %v8589 = vunpack.c.h.b16 %v8534
      %v8590 = vunpack.c.l.b16 %v8535
      %v8591 = vunpack.c.h.b16 %v8535
      %v8592 = vunpack.c.l.b16 %v8536
      %v8593 = vunpack.c.h.b16 %v8536
      %v8594 = vunpack.c.l.b16 %v8537
      %v8595 = vunpack.c.h.b16 %v8537
      %v8596 = vunpack.c.l.b16 %v8538
      %v8597 = vunpack.c.h.b16 %v8538
      %v8598 = vunpack.c.l.b16 %v8539
      %v8599 = vunpack.c.h.b16 %v8539
      %v8600 = vunpack.c.l.b16 %v8540
      %v8601 = vunpack.c.h.b16 %v8540
      %v8602 = vpack.c.b16 %v8572, %v8570
      %v8603 = vpack.c.b16 %v8573, %v8571
      %v8604 = vpack.c.b16 %v8576, %v8574
      %v8605 = vpack.c.b16 %v8577, %v8575
      %v8606 = vpack.c.b16 %v8580, %v8578
      %v8607 = vpack.c.b16 %v8581, %v8579
      %v8608 = vpack.c.b16 %v8584, %v8582
      %v8609 = vpack.c.b16 %v8585, %v8583
      %v8610 = vpack.c.b16 %v8588, %v8586
      %v8611 = vpack.c.b16 %v8589, %v8587
      %v8612 = vpack.c.b16 %v8592, %v8590
      %v8613 = vpack.c.b16 %v8593, %v8591
      %v8614 = vpack.c.b16 %v8596, %v8594
      %v8615 = vpack.c.b16 %v8597, %v8595
      %v8616 = vpack.c.b16 %v8600, %v8598
      %v8617 = vpack.c.b16 %v8601, %v8599
      %8634 = vmatprep.subr.bf16.mxu0 %v8617
      %8635 = vmatpush1.bf16.msra.mxu0 %v8616
      %8636 = vmatprep.subr.bf16.mxu0 %v8615
      %8637 = vmatpush1.bf16.msra.mxu0 %v8614
      %8638 = vmatprep.subr.bf16.mxu0 %v8613
      %8639 = vmatpush1.bf16.msra.mxu0 %v8612
      %8640 = vmatprep.subr.bf16.mxu0 %v8611
      %8641 = vmatpush1.bf16.msra.mxu0 %v8610
      %8642 = vmatprep.subr.bf16.mxu0 %v8609
      %8643 = vmatpush1.bf16.msra.mxu0 %v8608
      %8644 = vmatprep.subr.bf16.mxu0 %v8607
      %8645 = vmatpush1.bf16.msra.mxu0 %v8606
      %8646 = vmatprep.subr.bf16.mxu0 %v8605
      %8647 = vmatpush1.bf16.msra.mxu0 %v8604
      %8648 = vmatprep.subr.bf16.mxu0 %v8603
      %8649 = vmatpush1.bf16.msra.mxu0 %v8602
      %8650 = vmatprep.subr.bf16.mxu0 0
      %8651 = vmatpush2.bf16.msra.mxu0 0
      %8652 = vmatprep.subr.bf16.mxu0 0
      %8653 = vmatpush2.bf16.msra.mxu0 0
      %8654 = vmatprep.subr.bf16.mxu0 0
      %8655 = vmatpush2.bf16.msra.mxu0 0
      %8656 = vmatprep.subr.bf16.mxu0 0
      %8657 = vmatpush2.bf16.msra.mxu0 0
      %8658 = vmatprep.subr.bf16.mxu0 0
      %8659 = vmatpush2.bf16.msra.mxu0 0
      %8660 = vmatprep.subr.bf16.mxu0 0
      %8661 = vmatpush2.bf16.msra.mxu0 0
      %8662 = vmatprep.subr.bf16.mxu0 0
      %8663 = vmatpush2.bf16.msra.mxu0 0
      %8664 = vmatprep.subr.bf16.mxu0 0
      %8665 = vmatpush2.bf16.msra.mxu0 0
      %8666 = vmatprep.mubr.bf16.mxu0 0
      %8667 = vmatmul.mubr.bf16.gmra.mxu0 %v8523
      %v8668 = vpop.f32.mrf.mxu0
      %v8669 = vadd.f32 %v8547, %v8668
      %v8670 = vpop.f32.mrf.mxu0
      %v8671 = vadd.f32 %v8551, %v8670
      %v8672 = vpop.f32.mrf.mxu0
      %v8673 = vpop.f32.mrf.mxu0
      %8674 = vdwg.mxu0
      %v8675 = vmax.f32 %v8669, 0.0
      %v8676 = vmax.f32 %v8671, 0.0
      %v8677 = vpack.c.bf16 %v8675, %v8675
      %v8678 = vpack.c.bf16 %v8676, %v8676
      %s8679 = scalar_lea.vmem %s8, 128
      %v8680 = vld [vmem:[%s8679] sm:$0xf]
      %v8681 = vld [vmem:[%s8679 + $0x4] sm:$0xf]
      %v8682 = vld [vmem:[%s8679 + $0x8] sm:$0xf]
      %v8683 = vld [vmem:[%s8679 + $0xc] sm:$0xf]
      %v8684 = vld [vmem:[%s8679 + $0x10] sm:$0xf]
      %v8685 = vld [vmem:[%s8679 + $0x14] sm:$0xf]
      %v8686 = vld [vmem:[%s8679 + $0x18] sm:$0xf]
      %v8687 = vld [vmem:[%s8679 + $0x1c] sm:$0xf]
      %v8688 = vld [vmem:[%s8679 + $0x20] sm:$0xf]
      %v8689 = vld [vmem:[%s8679 + $0x24] sm:$0xf]
      %v8690 = vld [vmem:[%s8679 + $0x28] sm:$0xf]
      %v8691 = vld [vmem:[%s8679 + $0x2c] sm:$0xf]
      %v8692 = vld [vmem:[%s8679 + $0x30] sm:$0xf]
      %v8693 = vld [vmem:[%s8679 + $0x34] sm:$0xf]
      %v8694 = vld [vmem:[%s8679 + $0x38] sm:$0xf]
      %v8695 = vld [vmem:[%s8679 + $0x3c] sm:$0xf]
      %v8696 = vld [vmem:[%s8679 + $0x40] sm:$0xf]
      %v8697 = vld [vmem:[%s8679 + $0x44] sm:$0xf]
      %v8698 = vld [vmem:[%s8679 + $0x48] sm:$0xf]
      %v8699 = vld [vmem:[%s8679 + $0x4c] sm:$0xf]
      %v8700 = vld [vmem:[%s8679 + $0x50] sm:$0xf]
      %v8701 = vld [vmem:[%s8679 + $0x54] sm:$0xf]
      %v8702 = vld [vmem:[%s8679 + $0x58] sm:$0xf]
      %v8703 = vld [vmem:[%s8679 + $0x5c] sm:$0xf]
      %v8704 = vld [vmem:[%s8679 + $0x60] sm:$0xf]
      %v8705 = vld [vmem:[%s8679 + $0x64] sm:$0xf]
      %v8706 = vld [vmem:[%s8679 + $0x68] sm:$0xf]
      %v8707 = vld [vmem:[%s8679 + $0x6c] sm:$0xf]
      %v8708 = vld [vmem:[%s8679 + $0x70] sm:$0xf]
      %v8709 = vld [vmem:[%s8679 + $0x74] sm:$0xf]
      %v8710 = vld [vmem:[%s8679 + $0x78] sm:$0xf]
      %v8711 = vld [vmem:[%s8679 + $0x7c] sm:$0xf]
      %s8712 = scalar_lea.vmem %s9, 1
      %v8713 = vld [vmem:[%s8712] sm:$0x1]
      %v8715 = vlaneseq
      %v8716 = vshrl.u32 %v8715, 7
      %v8717 = vsub.s32 0, %v8716
      %v8718 = vrot.slane %v8713, %v8717
      %v8752 = vunpack.c.l.b16 %v8680
      %v8753 = vunpack.c.l.b16 %v8681
      %v8754 = vunpack.c.l.b16 %v8682
      %v8755 = vunpack.c.l.b16 %v8683
      %v8756 = vunpack.c.l.b16 %v8684
      %v8757 = vunpack.c.l.b16 %v8685
      %v8758 = vunpack.c.l.b16 %v8686
      %v8759 = vunpack.c.l.b16 %v8687
      %v8760 = vunpack.c.l.b16 %v8688
      %v8761 = vunpack.c.l.b16 %v8689
      %v8762 = vunpack.c.l.b16 %v8690
      %v8763 = vunpack.c.l.b16 %v8691
      %v8764 = vunpack.c.l.b16 %v8692
      %v8765 = vunpack.c.l.b16 %v8693
      %v8766 = vunpack.c.l.b16 %v8694
      %v8767 = vunpack.c.l.b16 %v8695
      %v8768 = vunpack.c.l.b16 %v8696
      %v8769 = vunpack.c.l.b16 %v8697
      %v8770 = vunpack.c.l.b16 %v8698
      %v8771 = vunpack.c.l.b16 %v8699
      %v8772 = vunpack.c.l.b16 %v8700
      %v8773 = vunpack.c.l.b16 %v8701
      %v8774 = vunpack.c.l.b16 %v8702
      %v8775 = vunpack.c.l.b16 %v8703
      %v8776 = vunpack.c.l.b16 %v8704
      %v8777 = vunpack.c.l.b16 %v8705
      %v8778 = vunpack.c.l.b16 %v8706
      %v8779 = vunpack.c.l.b16 %v8707
      %v8780 = vunpack.c.l.b16 %v8708
      %v8781 = vunpack.c.l.b16 %v8709
      %v8782 = vunpack.c.l.b16 %v8710
      %v8783 = vunpack.c.l.b16 %v8711
      %v8784 = vpack.c.b16 %v8753, %v8752
      %v8785 = vpack.c.b16 %v8755, %v8754
      %v8786 = vpack.c.b16 %v8757, %v8756
      %v8787 = vpack.c.b16 %v8759, %v8758
      %v8788 = vpack.c.b16 %v8761, %v8760
      %v8789 = vpack.c.b16 %v8763, %v8762
      %v8790 = vpack.c.b16 %v8765, %v8764
      %v8791 = vpack.c.b16 %v8767, %v8766
      %v8792 = vpack.c.b16 %v8769, %v8768
      %v8793 = vpack.c.b16 %v8771, %v8770
      %v8794 = vpack.c.b16 %v8773, %v8772
      %v8795 = vpack.c.b16 %v8775, %v8774
      %v8796 = vpack.c.b16 %v8777, %v8776
      %v8797 = vpack.c.b16 %v8779, %v8778
      %v8798 = vpack.c.b16 %v8781, %v8780
      %v8799 = vpack.c.b16 %v8783, %v8782
      %8816 = vmatprep.subr.bf16.mxu0 0
      %8817 = vmatpush1.bf16.msra.mxu0 %v8791
      %8818 = vmatprep.subr.bf16.mxu0 0
      %8819 = vmatpush1.bf16.msra.mxu0 %v8790
      %8820 = vmatprep.subr.bf16.mxu0 0
      %8821 = vmatpush1.bf16.msra.mxu0 %v8789
      %8822 = vmatprep.subr.bf16.mxu0 0
      %8823 = vmatpush1.bf16.msra.mxu0 %v8788
      %8824 = vmatprep.subr.bf16.mxu0 0
      %8825 = vmatpush1.bf16.msra.mxu0 %v8787
      %8826 = vmatprep.subr.bf16.mxu0 0
      %8827 = vmatpush1.bf16.msra.mxu0 %v8786
      %8828 = vmatprep.subr.bf16.mxu0 0
      %8829 = vmatpush1.bf16.msra.mxu0 %v8785
      %8830 = vmatprep.subr.bf16.mxu0 0
      %8831 = vmatpush1.bf16.msra.mxu0 %v8784
      %8832 = vmatprep.subr.bf16.mxu0 0
      %8833 = vmatpush2.bf16.msra.mxu0 %v8799
      %8834 = vmatprep.subr.bf16.mxu0 0
      %8835 = vmatpush2.bf16.msra.mxu0 %v8798
      %8836 = vmatprep.subr.bf16.mxu0 0
      %8837 = vmatpush2.bf16.msra.mxu0 %v8797
      %8838 = vmatprep.subr.bf16.mxu0 0
      %8839 = vmatpush2.bf16.msra.mxu0 %v8796
      %8840 = vmatprep.subr.bf16.mxu0 0
      %8841 = vmatpush2.bf16.msra.mxu0 %v8795
      %8842 = vmatprep.subr.bf16.mxu0 0
      %8843 = vmatpush2.bf16.msra.mxu0 %v8794
      %8844 = vmatprep.subr.bf16.mxu0 0
      %8845 = vmatpush2.bf16.msra.mxu0 %v8793
      %8846 = vmatprep.subr.bf16.mxu0 0
      %8847 = vmatpush2.bf16.msra.mxu0 %v8792
      %8848 = vmatprep.mubr.bf16.mxu0 %v8678
      %8849 = vmatmul.mubr.bf16.gmra.mxu0 %v8677
      %v8850 = vpop.f32.mrf.mxu0
      %v8851 = vadd.f32 %v8718, %v8850
      %v8852 = vpop.f32.mrf.mxu0
      %v8853 = vpop.f32.mrf.mxu0
      %v8854 = vpop.f32.mrf.mxu0
      %8855 = vdwg.mxu0
      %v8856 = vadd.f32 %v8851, %v8522
      %s8857 = scalar_lea.vmem %s10, 5
      %v8858 = vld [vmem:[%s8857] sm:$0x1]
      %s8859 = scalar_lea.vmem %s11, 5
      %v8860 = vld [vmem:[%s8859] sm:$0x1]
      %8861 = vadd.xlane.f32.xlu0 %v8856
      %v8862 = vpop.xlane.xlu0 %8861
      %v8863 = vmul.f32 %v8862, %v2423
      %v8864 = vsub.f32 %v8856, %v8863
      %v8865 = vmul.f32 %v8864, %v8864
      %8866 = vadd.xlane.f32.xlu0 %v8865
      %v8867 = vpop.xlane.xlu0 %8866
      %v8868 = vmul.f32 %v8867, %v2423
      %v8869 = vadd.f32 %v8868, 1e-05
      %v8870 = vrsqrt.pop %v8869
      %v8871 = vmul.f32 %v8864, %v8870
      %v8873 = vlaneseq
      %v8874 = vshrl.u32 %v8873, 7
      %v8875 = vsub.s32 0, %v8874
      %v8876 = vrot.slane %v8858, %v8875
      %v8878 = vmul.f32 %v8871, %v8876
      %v8880 = vlaneseq
      %v8881 = vshrl.u32 %v8880, 7
      %v8882 = vsub.s32 0, %v8881
      %v8883 = vrot.slane %v8860, %v8882
      %v8885 = vadd.f32 %v8878, %v8883
      %v8886 = vld [vmem:[%s12] sm:$0x1]
      %v8887 = vld [vmem:[%s13] sm:$0x1]
      %8888 = vadd.xlane.f32.xlu0 %v8885
      %v8889 = vpop.xlane.xlu0 %8888
      %v8890 = vmul.f32 %v8889, %v2423
      %v8891 = vsub.f32 %v8885, %v8890
      %v8892 = vmul.f32 %v8891, %v8891
      %8893 = vadd.xlane.f32.xlu0 %v8892
      %v8894 = vpop.xlane.xlu0 %8893
      %v8895 = vmul.f32 %v8894, %v2423
      %v8896 = vadd.f32 %v8895, 1e-05
      %v8897 = vrsqrt.pop %v8896
      %v8898 = vmul.f32 %v8891, %v8897
      %v8900 = vlaneseq
      %v8901 = vshrl.u32 %v8900, 7
      %v8902 = vsub.s32 0, %v8901
      %v8903 = vrot.slane %v8886, %v8902
      %v8905 = vmul.f32 %v8898, %v8903
      %v8907 = vlaneseq
      %v8908 = vshrl.u32 %v8907, 7
      %v8909 = vsub.s32 0, %v8908
      %v8910 = vrot.slane %v8887, %v8909
      %v8912 = vadd.f32 %v8905, %v8910
      %v8913 = vpack.c.bf16 %v8912, %v8912
      %v8914 = vld [vmem:[%s14] sm:$0xf]
      %v8915 = vld [vmem:[%s14 + $0x4] sm:$0xf]
      %v8916 = vld [vmem:[%s14 + $0x8] sm:$0xf]
      %v8917 = vld [vmem:[%s14 + $0xc] sm:$0xf]
      %v8918 = vld [vmem:[%s14 + $0x10] sm:$0xf]
      %v8919 = vld [vmem:[%s14 + $0x14] sm:$0xf]
      %v8920 = vld [vmem:[%s14 + $0x18] sm:$0xf]
      %v8921 = vld [vmem:[%s14 + $0x1c] sm:$0xf]
      %v8922 = vld [vmem:[%s14 + $0x20] sm:$0xf]
      %v8923 = vld [vmem:[%s14 + $0x24] sm:$0xf]
      %v8924 = vld [vmem:[%s14 + $0x28] sm:$0xf]
      %v8925 = vld [vmem:[%s14 + $0x2c] sm:$0xf]
      %v8926 = vld [vmem:[%s14 + $0x30] sm:$0xf]
      %v8927 = vld [vmem:[%s14 + $0x34] sm:$0xf]
      %v8928 = vld [vmem:[%s14 + $0x38] sm:$0xf]
      %v8929 = vld [vmem:[%s14 + $0x3c] sm:$0xf]
      %v8930 = vld [vmem:[%s15] sm:$0x1]
      %v8932 = vlaneseq
      %v8933 = vshrl.u32 %v8932, 7
      %v8934 = vsub.s32 0, %v8933
      %v8935 = vrot.slane %v8930, %v8934
      %v8953 = vunpack.c.l.b16 %v8914
      %v8954 = vunpack.c.l.b16 %v8915
      %v8955 = vunpack.c.l.b16 %v8916
      %v8956 = vunpack.c.l.b16 %v8917
      %v8957 = vunpack.c.l.b16 %v8918
      %v8958 = vunpack.c.l.b16 %v8919
      %v8959 = vunpack.c.l.b16 %v8920
      %v8960 = vunpack.c.l.b16 %v8921
      %v8961 = vunpack.c.l.b16 %v8922
      %v8962 = vunpack.c.l.b16 %v8923
      %v8963 = vunpack.c.l.b16 %v8924
      %v8964 = vunpack.c.l.b16 %v8925
      %v8965 = vunpack.c.l.b16 %v8926
      %v8966 = vunpack.c.l.b16 %v8927
      %v8967 = vunpack.c.l.b16 %v8928
      %v8968 = vunpack.c.l.b16 %v8929
      %v8969 = vpack.c.b16 %v8954, %v8953
      %v8970 = vpack.c.b16 %v8956, %v8955
      %v8971 = vpack.c.b16 %v8958, %v8957
      %v8972 = vpack.c.b16 %v8960, %v8959
      %v8973 = vpack.c.b16 %v8962, %v8961
      %v8974 = vpack.c.b16 %v8964, %v8963
      %v8975 = vpack.c.b16 %v8966, %v8965
      %v8976 = vpack.c.b16 %v8968, %v8967
      %8985 = vmatprep.subr.bf16.mxu0 0
      %8986 = vmatpush1.bf16.msra.mxu0 %v8976
      %8987 = vmatprep.subr.bf16.mxu0 0
      %8988 = vmatpush1.bf16.msra.mxu0 %v8975
      %8989 = vmatprep.subr.bf16.mxu0 0
      %8990 = vmatpush1.bf16.msra.mxu0 %v8974
      %8991 = vmatprep.subr.bf16.mxu0 0
      %8992 = vmatpush1.bf16.msra.mxu0 %v8973
      %8993 = vmatprep.subr.bf16.mxu0 0
      %8994 = vmatpush1.bf16.msra.mxu0 %v8972
      %8995 = vmatprep.subr.bf16.mxu0 0
      %8996 = vmatpush1.bf16.msra.mxu0 %v8971
      %8997 = vmatprep.subr.bf16.mxu0 0
      %8998 = vmatpush1.bf16.msra.mxu0 %v8970
      %8999 = vmatprep.subr.bf16.mxu0 0
      %9000 = vmatpush1.bf16.msra.mxu0 %v8969
      %9001 = vmatprep.subr.bf16.mxu0 0
      %9002 = vmatpush2.bf16.msra.mxu0 0
      %9003 = vmatprep.subr.bf16.mxu0 0
      %9004 = vmatpush2.bf16.msra.mxu0 0
      %9005 = vmatprep.subr.bf16.mxu0 0
      %9006 = vmatpush2.bf16.msra.mxu0 0
      %9007 = vmatprep.subr.bf16.mxu0 0
      %9008 = vmatpush2.bf16.msra.mxu0 0
      %9009 = vmatprep.subr.bf16.mxu0 0
      %9010 = vmatpush2.bf16.msra.mxu0 0
      %9011 = vmatprep.subr.bf16.mxu0 0
      %9012 = vmatpush2.bf16.msra.mxu0 0
      %9013 = vmatprep.subr.bf16.mxu0 0
      %9014 = vmatpush2.bf16.msra.mxu0 0
      %9015 = vmatprep.subr.bf16.mxu0 0
      %9016 = vmatpush2.bf16.msra.mxu0 0
      %9017 = vmatprep.mubr.bf16.mxu0 0
      %9018 = vmatmul.mubr.bf16.gmra.mxu0 %v8913
      %v9019 = vpop.f32.mrf.mxu0
      %v9020 = vadd.f32 %v8935, %v9019
      %v9021 = vpop.f32.mrf.mxu0
      %v9022 = vpop.f32.mrf.mxu0
      %v9023 = vpop.f32.mrf.mxu0
      %9024 = vdwg.mxu0
      %9025 = vst [vmem:[%s533] sm:$0xff] %v9020
      %p9026 = scmp.lt.s32.totalorder %s27, 1
      %s9027 = scalar_select %p9026, %s27, 1
      %s9028 = smul.addr %s9027, 8
      %s9029 = scalar_lea.vmem %s16, %s9028
      // Predicated region
      $region85: #{transformer_forward.1} parent=83 // pred_check
        %p9030 = pneg %p391
      $region86: #{transformer_forward.1} parent=83 // pred_check_branch
        %9032 = sbr.rel (%p9030) target = $region88
      $region87: #{transformer_forward.1} parent=83 // pred_region
        _
      $region88: #{transformer_forward.1} parent=83 // pred_fallthru
        _
    $region84: #{transformer_forward.1} parent=5 // pred_fallthru
      _
    %p9033 = scmp.le.s32.totalorder 2, %s22
    // Predicated region
    $region89: #{transformer_forward.1} parent=5 // pred_check
      %p9034 = pneg %p9033
    $region90: #{transformer_forward.1} parent=5 // pred_check_branch
      %9036 = sbr.rel (%p9034) target = $region92
    $region91: #{transformer_forward.1} parent=5 // pred_region
      %s9037 = ssub.s32 %s22, 2
      // Predicated region
      $region93: #{transformer_forward.1} parent=91 // pred_check
        %p9038 = pneg %p397
      $region94: #{transformer_forward.1} parent=91 // pred_check_branch
        %9040 = sbr.rel (%p9038) target = $region96
      $region95: #{transformer_forward.1} parent=91 // pred_region
        %p9041 = scmp.lt.s32.totalorder %s28, 1
        %s9042 = scalar_select %p9041, %s28, 1
        %s9043 = smul.addr %s9042, 8
        %s9044 = scalar_lea.vmem %s16, %s9043
      $region96: #{transformer_forward.1} parent=91 // pred_fallthru
        _
    $region92: #{transformer_forward.1} parent=5 // pred_fallthru
      _
  $region6: #{transformer_forward.1} parent=0 // loop_footer
    %s26 = sadd.s32 1, %s22
  $region7: #{transformer_forward.1} parent=0 // loop_footer_branch
    %21 = sbr.rel target = $region3
  $region8: #{transformer_forward.1} parent=0 // loop_exit
    _

</llo_original>
